<compile_context>
chip_gen: v7x
topology: tpu7x:2x2x1
jax: 0.10.0
libtpu: 0.0.40
codegen_flags: <defaults>
</compile_context>

<pallas_src>
import functools

import jax
import jax.numpy as jnp
from jax.experimental import pallas as pl
from jax.experimental.pallas import tpu as pltpu

ACT_DTYPE = jnp.bfloat16   # hidden activations + hidden weights feed the MXU in bf16
                           # (f32 accumulation); conv1 input, conv5 VPU path, biases stay f32.


def _tensorcores_per_chip():
    """Best-effort TensorCores/chip (perf heuristic only; correctness unaffected if wrong)."""
    try:
        kind = jax.devices()[0].device_kind.lower()
    except Exception:
        return 1
    if "lite" in kind or "v5e" in kind or "v6e" in kind or "v6" in kind:
        return 1                                   # v5e / v6e: single TensorCore
    if "v7" in kind or "v5p" in kind or "v4" in kind or "v3" in kind or "v2" in kind:
        return 2                                   # v7x / v5p / v4 ...: 2 TensorCores
    return 1


def _make_fused_kernel(H, W, CH, G):
    Hp, Wp = H + 2, W + 2
    P = Hp * Wp                      # padded-flat pixels per image
    R = (H - 1) * Wp + W             # valid output span per image (wrap columns are garbage)
    GP = G * P                       # lanes per group buffer (G images back-to-back)
    T = (G - 1) * P + R              # output lanes computed per layer (covers all G images)
    LC = GP - 2                      # lanes the shifted bands actually need
    TAPS = [(dy, dx) for dy in range(3) for dx in range(3)]

    def write_bands(b_ref, o):
        """Store a layer result (CH, T) f32 into the dx-pre-shifted band buffer (3*CH, GP).

        Band dx holds the zero-ring-padded activation shifted left by dx lanes:
            b_ref[dx*CH + c, p] = a[c, p + dx]
        so a 3x3 conv becomes 3 contiguous dy-band matmuls (no im2col materialization).
        """
        lane = jax.lax.broadcasted_iota(jnp.int32, (1, T), 1)
        u = lane % P
        valid = (u < R) & ((u % Wp) < W)            # kill wrap-around + inter-image lanes
        o = jnp.where(valid, o, 0.0).astype(ACT_DTYPE)
        edge = jnp.zeros((CH, Wp + 1), ACT_DTYPE)
        # band 0 == the padded activation itself
        b_ref[pl.ds(0, CH), pl.ds(0, Wp + 1)] = edge
        b_ref[pl.ds(0, CH), pl.ds(Wp + 1, T)] = o
        b_ref[pl.ds(0, CH), pl.ds(Wp + 1 + T, Wp + 1)] = edge
        # bands 1, 2: lane-shifted copies of band 0 (only the lanes the matmuls read)
        b_ref[pl.ds(CH, CH), pl.ds(0, LC)] = b_ref[pl.ds(0, CH), pl.ds(1, LC)]
        b_ref[pl.ds(2 * CH, CH), pl.ds(0, LC)] = b_ref[pl.ds(0, CH), pl.ds(2, LC)]

    def conv_in(x_ref, w_ref, b_ref):
        """Cin=1 layer on the VPU: 9 broadcast multiply-accumulates over (CH, T) tiles."""
        xrow = x_ref[0]                              # (1, GP) f32
        w = w_ref[...]                               # (CH, 9) f32
        acc = jnp.zeros((CH, T), jnp.float32)
        for t, (dy, dx) in enumerate(TAPS):
            off = dy * Wp + dx
            acc = acc + w[:, t:t + 1] * xrow[:, off:off + T]
        return jnp.maximum(acc + b_ref[...], 0.0)

    def conv_hidden(b_in, w_ref, b_ref):
        """32->32 layer: 3 accumulated K=3*CH bf16 MXU matmuls over contiguous dy-band slabs."""
        acc = jnp.zeros((CH, T), jnp.float32)
        for dy in range(3):
            slab = b_in[pl.ds(0, 3 * CH), pl.ds(dy * Wp, T)]           # (3*CH, T) bf16
            acc = acc + jnp.dot(w_ref[dy], slab,
                                preferred_element_type=jnp.float32)    # (CH, T) f32
        return jnp.maximum(acc + b_ref[...], 0.0)

    def conv_out(b_in, w_ref, b_ref):
        """Cout=1 layer on the VPU + one sublane reduction (avoids a 1-row MXU matmul)."""
        w = w_ref[...]                               # (CH, 9) f32
        acc = jnp.zeros((CH, T), jnp.float32)
        for t, (dy, dx) in enumerate(TAPS):
            slab = b_in[pl.ds(dx * CH, CH), pl.ds(dy * Wp, T)].astype(jnp.float32)
            acc = acc + w[:, t:t + 1] * slab
        out = jnp.sum(acc, axis=0, keepdims=True) + b_ref[...]         # (1, T)
        return jnp.maximum(out, 0.0)                 # final ReLU (per spec)

    def kernel(x_ref, w1_ref, b1_ref, w2_ref, b2_ref, w3_ref, b3_ref,
               w4_ref, b4_ref, w5_ref, b5_ref, o_ref, buf_a, buf_b):
        write_bands(buf_a, conv_in(x_ref, w1_ref, b1_ref))
        write_bands(buf_b, conv_hidden(buf_a, w2_ref, b2_ref))
        write_bands(buf_a, conv_hidden(buf_b, w3_ref, b3_ref))
        write_bands(buf_b, conv_hidden(buf_a, w4_ref, b4_ref))
        o_ref[0] = conv_out(buf_b, w5_ref, b5_ref)

    return kernel


@functools.partial(jax.jit, static_argnames=("G",))
def _forward_impl(x_nchw, params, *, G):
    N, _, H, W = x_nchw.shape
    CH = params[0][0].shape[0]                       # torch layout (Cout, Cin, 3, 3) -> 32
    Hp, Wp = H + 2, W + 2
    P = Hp * Wp
    R = (H - 1) * Wp + W
    NG = N // G
    GP = G * P
    T = (G - 1) * P + R

    (w1t, b1t), (w2t, b2t), (w3t, b3t), (w4t, b4t), (w5t, b5t) = params

    # conv1 / conv5 stay f32 (VPU path); tap index = dy*3 + dx along the second axis.
    w1 = w1t.reshape(CH, 9).astype(jnp.float32)                      # (Cout, 9)
    w5 = w5t[0].reshape(CH, 9).astype(jnp.float32)                   # (Cin, 9)

    # hidden convs: per-dy (Cout, 3*Cin) matrices, column index = dx*CH + ci, in bf16.
    def hidden_w(w):
        return jnp.transpose(w, (2, 0, 3, 1)).reshape(3, CH, 3 * CH).astype(ACT_DTYPE)

    w2, w3, w4 = hidden_w(w2t), hidden_w(w3t), hidden_w(w4t)
    b1 = b1t.reshape(CH, 1).astype(jnp.float32)
    b2 = b2t.reshape(CH, 1).astype(jnp.float32)
    b3 = b3t.reshape(CH, 1).astype(jnp.float32)
    b4 = b4t.reshape(CH, 1).astype(jnp.float32)
    b5 = b5t.reshape(1, 1).astype(jnp.float32)

    # Pad once; each grid step sees G images laid back-to-back on the lane axis (their zero
    # padding rings keep the 3x3 taps from bleeding across images).
    xp = jnp.pad(x_nchw[:, 0].astype(jnp.float32), ((0, 0), (1, 1), (1, 1)))
    x_flat = xp.reshape(NG, 1, GP)

    kernel = _make_fused_kernel(H, W, CH, G)

    flops = 2 * N * H * W * 9 * (2 * CH + 3 * CH * CH)
    bytes_accessed = 4 * N * (P + R) + 2 * 3 * (3 * CH * 3 * CH) + 4 * (2 * 9 * CH + 4 * CH + 1)

    out_flat = pl.pallas_call(
        kernel,
        out_shape=jax.ShapeDtypeStruct((NG, 1, T), jnp.float32),
        grid_spec=pltpu.PrefetchScalarGridSpec(
            num_scalar_prefetch=0,
            grid=(NG,),
            in_specs=[
                pl.BlockSpec((1, 1, GP), lambda n: (n, 0, 0)),        # padded-flat input group
                pl.BlockSpec((CH, 9), lambda n: (0, 0)),              # w1 (Cin=1, VPU)
                pl.BlockSpec((CH, 1), lambda n: (0, 0)),              # b1
                pl.BlockSpec((3, CH, 3 * CH), lambda n: (0, 0, 0)),   # w2 (bf16, per-dy)
                pl.BlockSpec((CH, 1), lambda n: (0, 0)),              # b2
                pl.BlockSpec((3, CH, 3 * CH), lambda n: (0, 0, 0)),   # w3
                pl.BlockSpec((CH, 1), lambda n: (0, 0)),              # b3
                pl.BlockSpec((3, CH, 3 * CH), lambda n: (0, 0, 0)),   # w4
                pl.BlockSpec((CH, 1), lambda n: (0, 0)),              # b4
                pl.BlockSpec((CH, 9), lambda n: (0, 0)),              # w5 (Cout=1, VPU)
                pl.BlockSpec((1, 1), lambda n: (0, 0)),               # b5
            ],
            out_specs=pl.BlockSpec((1, 1, T), lambda n: (n, 0, 0)),   # lane-dense (1, T) rows
            scratch_shapes=[pltpu.VMEM((3 * CH, GP), ACT_DTYPE),      # ping-pong band buffers
                            pltpu.VMEM((3 * CH, GP), ACT_DTYPE)],
        ),
        compiler_params=pltpu.CompilerParams(
            dimension_semantics=("parallel",)),                       # groups across TCs (v7x)
        cost_estimate=pl.CostEstimate(
            flops=flops, transcendentals=0, bytes_accessed=bytes_accessed),
    )(x_flat, w1, b1, w2, b2, w3, b3, w4, b4, w5, b5)

    # (NG, 1, T) -> per image take its R-span -> drop the wrap-around columns -> (N, 1, H, W)
    out_rows = out_flat[:, 0, :]                                      # (NG, T)
    per_img = [out_rows[:, g * P: g * P + R] for g in range(G)]
    out_r = jnp.stack(per_img, axis=1).reshape(N, R)                  # (N, R)
    out = jnp.pad(out_r, ((0, 0), (0, H * Wp - R))).reshape(N, H, Wp)[:, :, :W]
    return out[:, None, :, :]


def predict_noise_map_forward(x_nchw, params):
    """x_nchw: (N, 1, H, W) f32; params: 5 tuples of PyTorch-layout (w (Co,Ci,3,3), b (Co,))."""
    N = x_nchw.shape[0]
    n_tc = _tensorcores_per_chip()
    # Fold the whole batch into one grid step on single-TC chips (v5e/v6e); keep one image per
    # parallel grid step on 2-TC chips (v7x) so both TensorCores are busy.
    NG = n_tc if (n_tc > 1 and N % n_tc == 0) else 1
    G = N // NG
    return _forward_impl(x_nchw, params, G=G)


def _reference_forward(x, params):
    y = x
    for w, b in params:
        y = jax.lax.conv_general_dilated(
            y, w, window_strides=(1, 1), padding=((1, 1), (1, 1)),
            dimension_numbers=("NCHW", "OIHW", "NCHW"))
        y = jnp.maximum(y + b.reshape(1, -1, 1, 1), 0.0)
    return y


def init_conv_params(key, cin, cout):
    """PyTorch-style default Conv2d init; weights kept in torch (Cout, Cin, 3, 3) layout."""
    kw, kb = jax.random.split(key)
    fan_in = cin * 9
    bound = 1.0 / jnp.sqrt(fan_in)
    w = jax.random.uniform(kw, (cout, cin, 3, 3), jnp.float32, -bound, bound)
    b = jax.random.uniform(kb, (cout,), jnp.float32, -bound, bound)
    return w, b


if __name__ == "__main__":
    key = jax.random.PRNGKey(0)
    k_in, k1, k2, k3, k4, k5 = jax.random.split(key, 6)

    # Input: batch=2, 1 channel, 16x16 spatial (NCHW like the PyTorch module).
    x = jax.random.normal(k_in, (2, 1, 16, 16), jnp.float32)

    params = [
        init_conv_params(k1, 1, 32),
        init_conv_params(k2, 32, 32),
        init_conv_params(k3, 32, 32),
        init_conv_params(k4, 32, 32),
        init_conv_params(k5, 32, 1),
    ]

    out = predict_noise_map_forward(x, params)
    out = jax.block_until_ready(out)
    assert out.shape == (2, 1, 16, 16), out.shape
    assert bool(jnp.all(out >= 0.0))                 # final ReLU (module ends in nn.ReLU())

    # loose tolerance: hidden layers run with bf16 MXU operands (f32 accumulation)
    ref = _reference_forward(x, params)
    err = float(jnp.max(jnp.abs(out - ref)))
    assert err < 5e-2, f"max abs err vs f32 reference = {err}"

    print("KERNEL_OK")
</pallas_src>

<mosaic_0001>
module attributes {stable_mosaic.version = 11 : i64} {
  func.func @kernel(%arg0: i32, %arg1: memref<1x1x648xf32, #tpu.memory_space<vmem>>, %arg2: memref<32x9xf32, #tpu.memory_space<vmem>>, %arg3: memref<32x1xf32, #tpu.memory_space<vmem>>, %arg4: memref<3x32x96xbf16, #tpu.memory_space<vmem>>, %arg5: memref<32x1xf32, #tpu.memory_space<vmem>>, %arg6: memref<3x32x96xbf16, #tpu.memory_space<vmem>>, %arg7: memref<32x1xf32, #tpu.memory_space<vmem>>, %arg8: memref<3x32x96xbf16, #tpu.memory_space<vmem>>, %arg9: memref<32x1xf32, #tpu.memory_space<vmem>>, %arg10: memref<32x9xf32, #tpu.memory_space<vmem>>, %arg11: memref<1x1xf32, #tpu.memory_space<vmem>>, %arg12: memref<1x1x610xf32, #tpu.memory_space<vmem>>, %arg13: memref<96x648xbf16, #tpu.memory_space<vmem>>, %arg14: memref<96x648xbf16, #tpu.memory_space<vmem>>) attributes {dimension_semantics = [#tpu.dimension_semantics<parallel>], iteration_bounds = array<i64: 1>, scalar_prefetch = 0 : i64, scratch_operands = 2 : i64, tpu.core_type = #tpu.core_type<tc>, window_params = [{transform_indices = @transform_0, window_bounds = array<i64: 1, 1, 648>}, {pipeline_mode = #tpu.pipeline_mode<synchronous>, transform_indices = @transform_1, window_bounds = array<i64: 32, 9>}, {pipeline_mode = #tpu.pipeline_mode<synchronous>, transform_indices = @transform_2, window_bounds = array<i64: 32, 1>}, {pipeline_mode = #tpu.pipeline_mode<synchronous>, transform_indices = @transform_3, window_bounds = array<i64: 3, 32, 96>}, {pipeline_mode = #tpu.pipeline_mode<synchronous>, transform_indices = @transform_4, window_bounds = array<i64: 32, 1>}, {pipeline_mode = #tpu.pipeline_mode<synchronous>, transform_indices = @transform_5, window_bounds = array<i64: 3, 32, 96>}, {pipeline_mode = #tpu.pipeline_mode<synchronous>, transform_indices = @transform_6, window_bounds = array<i64: 32, 1>}, {pipeline_mode = #tpu.pipeline_mode<synchronous>, transform_indices = @transform_7, window_bounds = array<i64: 3, 32, 96>}, {pipeline_mode = #tpu.pipeline_mode<synchronous>, transform_indices = @transform_8, window_bounds = array<i64: 32, 1>}, {pipeline_mode = #tpu.pipeline_mode<synchronous>, transform_indices = @transform_9, window_bounds = array<i64: 32, 9>}, {pipeline_mode = #tpu.pipeline_mode<synchronous>, transform_indices = @transform_10, window_bounds = array<i64: 1, 1>}, {transform_indices = @transform_11, window_bounds = array<i64: 1, 1, 610>}]} {
    %c0 = arith.constant 0 : index
    %c0_0 = arith.constant 0 : index
    %c0_1 = arith.constant 0 : index
    %0 = vector.load %arg1[%c0, %c0_0, %c0_1] : memref<1x1x648xf32, #tpu.memory_space<vmem>>, vector<1x1x648xf32>
    %1 = vector.shape_cast %0 : vector<1x1x648xf32> to vector<1x648xf32>
    %c0_2 = arith.constant 0 : index
    %c0_3 = arith.constant 0 : index
    %2 = vector.load %arg2[%c0_2, %c0_3] : memref<32x9xf32, #tpu.memory_space<vmem>>, vector<32x9xf32>
    %cst = arith.constant 0.000000e+00 : f32
    %3 = vector.broadcast %cst : f32 to vector<32x610xf32>
    %4 = vector.extract_strided_slice %2 {offsets = [0, 0], sizes = [32, 1], strides = [1, 1]} : vector<32x9xf32> to vector<32x1xf32>
    %5 = vector.extract_strided_slice %1 {offsets = [0, 0], sizes = [1, 610], strides = [1, 1]} : vector<1x648xf32> to vector<1x610xf32>
    %6 = vector.broadcast %4 : vector<32x1xf32> to vector<32x610xf32>
    %7 = vector.broadcast %5 : vector<1x610xf32> to vector<32x610xf32>
    %8 = arith.mulf %6, %7 : vector<32x610xf32>
    %9 = arith.addf %3, %8 : vector<32x610xf32>
    %10 = vector.extract_strided_slice %2 {offsets = [0, 1], sizes = [32, 1], strides = [1, 1]} : vector<32x9xf32> to vector<32x1xf32>
    %11 = vector.extract_strided_slice %1 {offsets = [0, 1], sizes = [1, 610], strides = [1, 1]} : vector<1x648xf32> to vector<1x610xf32>
    %12 = vector.broadcast %10 : vector<32x1xf32> to vector<32x610xf32>
    %13 = vector.broadcast %11 : vector<1x610xf32> to vector<32x610xf32>
    %14 = arith.mulf %12, %13 : vector<32x610xf32>
    %15 = arith.addf %9, %14 : vector<32x610xf32>
    %16 = vector.extract_strided_slice %2 {offsets = [0, 2], sizes = [32, 1], strides = [1, 1]} : vector<32x9xf32> to vector<32x1xf32>
    %17 = vector.extract_strided_slice %1 {offsets = [0, 2], sizes = [1, 610], strides = [1, 1]} : vector<1x648xf32> to vector<1x610xf32>
    %18 = vector.broadcast %16 : vector<32x1xf32> to vector<32x610xf32>
    %19 = vector.broadcast %17 : vector<1x610xf32> to vector<32x610xf32>
    %20 = arith.mulf %18, %19 : vector<32x610xf32>
    %21 = arith.addf %15, %20 : vector<32x610xf32>
    %22 = vector.extract_strided_slice %2 {offsets = [0, 3], sizes = [32, 1], strides = [1, 1]} : vector<32x9xf32> to vector<32x1xf32>
    %23 = vector.extract_strided_slice %1 {offsets = [0, 18], sizes = [1, 610], strides = [1, 1]} : vector<1x648xf32> to vector<1x610xf32>
    %24 = vector.broadcast %22 : vector<32x1xf32> to vector<32x610xf32>
    %25 = vector.broadcast %23 : vector<1x610xf32> to vector<32x610xf32>
    %26 = arith.mulf %24, %25 : vector<32x610xf32>
    %27 = arith.addf %21, %26 : vector<32x610xf32>
    %28 = vector.extract_strided_slice %2 {offsets = [0, 4], sizes = [32, 1], strides = [1, 1]} : vector<32x9xf32> to vector<32x1xf32>
    %29 = vector.extract_strided_slice %1 {offsets = [0, 19], sizes = [1, 610], strides = [1, 1]} : vector<1x648xf32> to vector<1x610xf32>
    %30 = vector.broadcast %28 : vector<32x1xf32> to vector<32x610xf32>
    %31 = vector.broadcast %29 : vector<1x610xf32> to vector<32x610xf32>
    %32 = arith.mulf %30, %31 : vector<32x610xf32>
    %33 = arith.addf %27, %32 : vector<32x610xf32>
    %34 = vector.extract_strided_slice %2 {offsets = [0, 5], sizes = [32, 1], strides = [1, 1]} : vector<32x9xf32> to vector<32x1xf32>
    %35 = vector.extract_strided_slice %1 {offsets = [0, 20], sizes = [1, 610], strides = [1, 1]} : vector<1x648xf32> to vector<1x610xf32>
    %36 = vector.broadcast %34 : vector<32x1xf32> to vector<32x610xf32>
    %37 = vector.broadcast %35 : vector<1x610xf32> to vector<32x610xf32>
    %38 = arith.mulf %36, %37 : vector<32x610xf32>
    %39 = arith.addf %33, %38 : vector<32x610xf32>
    %40 = vector.extract_strided_slice %2 {offsets = [0, 6], sizes = [32, 1], strides = [1, 1]} : vector<32x9xf32> to vector<32x1xf32>
    %41 = vector.extract_strided_slice %1 {offsets = [0, 36], sizes = [1, 610], strides = [1, 1]} : vector<1x648xf32> to vector<1x610xf32>
    %42 = vector.broadcast %40 : vector<32x1xf32> to vector<32x610xf32>
    %43 = vector.broadcast %41 : vector<1x610xf32> to vector<32x610xf32>
    %44 = arith.mulf %42, %43 : vector<32x610xf32>
    %45 = arith.addf %39, %44 : vector<32x610xf32>
    %46 = vector.extract_strided_slice %2 {offsets = [0, 7], sizes = [32, 1], strides = [1, 1]} : vector<32x9xf32> to vector<32x1xf32>
    %47 = vector.extract_strided_slice %1 {offsets = [0, 37], sizes = [1, 610], strides = [1, 1]} : vector<1x648xf32> to vector<1x610xf32>
    %48 = vector.broadcast %46 : vector<32x1xf32> to vector<32x610xf32>
    %49 = vector.broadcast %47 : vector<1x610xf32> to vector<32x610xf32>
    %50 = arith.mulf %48, %49 : vector<32x610xf32>
    %51 = arith.addf %45, %50 : vector<32x610xf32>
    %52 = vector.extract_strided_slice %2 {offsets = [0, 8], sizes = [32, 1], strides = [1, 1]} : vector<32x9xf32> to vector<32x1xf32>
    %53 = vector.extract_strided_slice %1 {offsets = [0, 38], sizes = [1, 610], strides = [1, 1]} : vector<1x648xf32> to vector<1x610xf32>
    %54 = vector.broadcast %52 : vector<32x1xf32> to vector<32x610xf32>
    %55 = vector.broadcast %53 : vector<1x610xf32> to vector<32x610xf32>
    %56 = arith.mulf %54, %55 : vector<32x610xf32>
    %57 = arith.addf %51, %56 : vector<32x610xf32>
    %c0_4 = arith.constant 0 : index
    %c0_5 = arith.constant 0 : index
    %58 = vector.load %arg3[%c0_4, %c0_5] : memref<32x1xf32, #tpu.memory_space<vmem>>, vector<32x1xf32>
    %59 = vector.broadcast %58 : vector<32x1xf32> to vector<32x610xf32>
    %60 = arith.addf %57, %59 : vector<32x610xf32>
    %cst_6 = arith.constant 0.000000e+00 : f32
    %61 = vector.broadcast %cst_6 : f32 to vector<32x610xf32>
    %62 = arith.maximumf %60, %61 : vector<32x610xf32>
    %63 = tpu.iota {dimensions = array<i32: 1>} : vector<1x610xi32>
    %c324_i32 = arith.constant 324 : i32
    %c0_i32 = arith.constant 0 : i32
    %64 = arith.cmpi eq, %c324_i32, %c0_i32 : i32
    %c1_i32 = arith.constant 1 : i32
    %65 = arith.select %64, %c1_i32, %c324_i32 : i32
    %66 = vector.broadcast %65 : i32 to vector<1x610xi32>
    %67 = arith.remsi %63, %66 : vector<1x610xi32>
    %c0_i32_7 = arith.constant 0 : i32
    %68 = vector.broadcast %c0_i32_7 : i32 to vector<1x610xi32>
    %69 = arith.cmpi ne, %67, %68 : vector<1x610xi32>
    %c0_i32_8 = arith.constant 0 : i32
    %70 = vector.broadcast %c0_i32_8 : i32 to vector<1x610xi32>
    %71 = arith.cmpi slt, %67, %70 : vector<1x610xi32>
    %c0_i32_9 = arith.constant 0 : i32
    %72 = arith.cmpi slt, %65, %c0_i32_9 : i32
    %73 = vector.broadcast %72 : i1 to vector<1x610xi1>
    %74 = vector.broadcast %73 : vector<1x610xi1> to vector<1x610xi1>
    %75 = arith.xori %71, %74 : vector<1x610xi1>
    %76 = arith.andi %75, %69 : vector<1x610xi1>
    %77 = vector.broadcast %65 : i32 to vector<1x610xi32>
    %78 = arith.addi %67, %77 : vector<1x610xi32>
    %79 = arith.select %76, %78, %67 : vector<1x610xi1>, vector<1x610xi32>
    %c286_i32 = arith.constant 286 : i32
    %80 = vector.broadcast %c286_i32 : i32 to vector<1x610xi32>
    %81 = arith.cmpi slt, %79, %80 : vector<1x610xi32>
    %c18_i32 = arith.constant 18 : i32
    %c0_i32_10 = arith.constant 0 : i32
    %82 = arith.cmpi eq, %c18_i32, %c0_i32_10 : i32
    %c1_i32_11 = arith.constant 1 : i32
    %83 = arith.select %82, %c1_i32_11, %c18_i32 : i32
    %84 = vector.broadcast %83 : i32 to vector<1x610xi32>
    %85 = arith.remsi %79, %84 : vector<1x610xi32>
    %c0_i32_12 = arith.constant 0 : i32
    %86 = vector.broadcast %c0_i32_12 : i32 to vector<1x610xi32>
    %87 = arith.cmpi ne, %85, %86 : vector<1x610xi32>
    %c0_i32_13 = arith.constant 0 : i32
    %88 = vector.broadcast %c0_i32_13 : i32 to vector<1x610xi32>
    %89 = arith.cmpi slt, %85, %88 : vector<1x610xi32>
    %c0_i32_14 = arith.constant 0 : i32
    %90 = arith.cmpi slt, %83, %c0_i32_14 : i32
    %91 = vector.broadcast %90 : i1 to vector<1x610xi1>
    %92 = vector.broadcast %91 : vector<1x610xi1> to vector<1x610xi1>
    %93 = arith.xori %89, %92 : vector<1x610xi1>
    %94 = arith.andi %93, %87 : vector<1x610xi1>
    %95 = vector.broadcast %83 : i32 to vector<1x610xi32>
    %96 = arith.addi %85, %95 : vector<1x610xi32>
    %97 = arith.select %94, %96, %85 : vector<1x610xi1>, vector<1x610xi32>
    %c16_i32 = arith.constant 16 : i32
    %98 = vector.broadcast %c16_i32 : i32 to vector<1x610xi32>
    %99 = arith.cmpi slt, %97, %98 : vector<1x610xi32>
    %100 = arith.andi %81, %99 : vector<1x610xi1>
    %cst_15 = arith.constant 0.000000e+00 : f32
    %101 = vector.shape_cast %100 : vector<1x610xi1> to vector<1x610xi1>
    %102 = vector.broadcast %101 : vector<1x610xi1> to vector<32x610xi1>
    %103 = vector.broadcast %cst_15 : f32 to vector<32x610xf32>
    %104 = arith.select %102, %62, %103 : vector<32x610xi1>, vector<32x610xf32>
    %105 = arith.truncf %104 : vector<32x610xf32> to vector<32x610xbf16>
    %cst_16 = arith.constant 0.000000e+00 : bf16
    %106 = vector.broadcast %cst_16 : bf16 to vector<32x19xbf16>
    %c0_17 = arith.constant 0 : index
    %c0_18 = arith.constant 0 : index
    %107 = vector.load %arg13[%c0_17, %c0_18] : memref<96x648xbf16, #tpu.memory_space<vmem>>, vector<32x19xbf16>
    tpu.vector_store %arg13[%c0_17, %c0_18], %106 {strides = array<i32>} : memref<96x648xbf16, #tpu.memory_space<vmem>>, vector<32x19xbf16>,
    %c0_19 = arith.constant 0 : index
    %c19 = arith.constant 19 : index
    %108 = vector.load %arg13[%c0_19, %c19] : memref<96x648xbf16, #tpu.memory_space<vmem>>, vector<32x610xbf16>
    tpu.vector_store %arg13[%c0_19, %c19], %105 {strides = array<i32>} : memref<96x648xbf16, #tpu.memory_space<vmem>>, vector<32x610xbf16>,
    %c0_20 = arith.constant 0 : index
    %c629 = arith.constant 629 : index
    %109 = vector.load %arg13[%c0_20, %c629] : memref<96x648xbf16, #tpu.memory_space<vmem>>, vector<32x19xbf16>
    tpu.vector_store %arg13[%c0_20, %c629], %106 {strides = array<i32>} : memref<96x648xbf16, #tpu.memory_space<vmem>>, vector<32x19xbf16>,
    %c0_21 = arith.constant 0 : index
    %c1 = arith.constant 1 : index
    %110 = vector.load %arg13[%c0_21, %c1] : memref<96x648xbf16, #tpu.memory_space<vmem>>, vector<32x646xbf16>
    %c32 = arith.constant 32 : index
    %c0_22 = arith.constant 0 : index
    %111 = vector.load %arg13[%c32, %c0_22] : memref<96x648xbf16, #tpu.memory_space<vmem>>, vector<32x646xbf16>
    tpu.vector_store %arg13[%c32, %c0_22], %110 {strides = array<i32>} : memref<96x648xbf16, #tpu.memory_space<vmem>>, vector<32x646xbf16>,
    %c0_23 = arith.constant 0 : index
    %c2 = arith.constant 2 : index
    %112 = vector.load %arg13[%c0_23, %c2] : memref<96x648xbf16, #tpu.memory_space<vmem>>, vector<32x646xbf16>
    %c64 = arith.constant 64 : index
    %c0_24 = arith.constant 0 : index
    %113 = vector.load %arg13[%c64, %c0_24] : memref<96x648xbf16, #tpu.memory_space<vmem>>, vector<32x646xbf16>
    tpu.vector_store %arg13[%c64, %c0_24], %112 {strides = array<i32>} : memref<96x648xbf16, #tpu.memory_space<vmem>>, vector<32x646xbf16>,
    %cst_25 = arith.constant 0.000000e+00 : f32
    %114 = vector.broadcast %cst_25 : f32 to vector<32x610xf32>
    %c0_26 = arith.constant 0 : index
    %c0_27 = arith.constant 0 : index
    %115 = vector.load %arg13[%c0_26, %c0_27] : memref<96x648xbf16, #tpu.memory_space<vmem>>, vector<96x610xbf16>
    %c0_28 = arith.constant 0 : index
    %c0_29 = arith.constant 0 : index
    %c0_30 = arith.constant 0 : index
    %116 = vector.load %arg4[%c0_28, %c0_29, %c0_30] : memref<3x32x96xbf16, #tpu.memory_space<vmem>>, vector<1x32x96xbf16>
    %117 = vector.shape_cast %116 : vector<1x32x96xbf16> to vector<32x96xbf16>
    %cst_31 = arith.constant dense<0.000000e+00> : vector<32x610xf32>
    %118 = tpu.matmul %117, %115, %cst_31 {dimension_numbers = #tpu.dot_dimension_numbers<[1], [0], [0], [1], [0, 0, 1, 1], [], []>} : vector<32x96xbf16>, vector<96x610xbf16>, vector<32x610xf32> -> vector<32x610xf32>
    %119 = arith.addf %114, %118 : vector<32x610xf32>
    %c0_32 = arith.constant 0 : index
    %c18 = arith.constant 18 : index
    %120 = vector.load %arg13[%c0_32, %c18] : memref<96x648xbf16, #tpu.memory_space<vmem>>, vector<96x610xbf16>
    %c1_33 = arith.constant 1 : index
    %c0_34 = arith.constant 0 : index
    %c0_35 = arith.constant 0 : index
    %121 = vector.load %arg4[%c1_33, %c0_34, %c0_35] : memref<3x32x96xbf16, #tpu.memory_space<vmem>>, vector<1x32x96xbf16>
    %122 = vector.shape_cast %121 : vector<1x32x96xbf16> to vector<32x96xbf16>
    %cst_36 = arith.constant dense<0.000000e+00> : vector<32x610xf32>
    %123 = tpu.matmul %122, %120, %cst_36 {dimension_numbers = #tpu.dot_dimension_numbers<[1], [0], [0], [1], [0, 0, 1, 1], [], []>} : vector<32x96xbf16>, vector<96x610xbf16>, vector<32x610xf32> -> vector<32x610xf32>
    %124 = arith.addf %119, %123 : vector<32x610xf32>
    %c0_37 = arith.constant 0 : index
    %c36 = arith.constant 36 : index
    %125 = vector.load %arg13[%c0_37, %c36] : memref<96x648xbf16, #tpu.memory_space<vmem>>, vector<96x610xbf16>
    %c2_38 = arith.constant 2 : index
    %c0_39 = arith.constant 0 : index
    %c0_40 = arith.constant 0 : index
    %126 = vector.load %arg4[%c2_38, %c0_39, %c0_40] : memref<3x32x96xbf16, #tpu.memory_space<vmem>>, vector<1x32x96xbf16>
    %127 = vector.shape_cast %126 : vector<1x32x96xbf16> to vector<32x96xbf16>
    %cst_41 = arith.constant dense<0.000000e+00> : vector<32x610xf32>
    %128 = tpu.matmul %127, %125, %cst_41 {dimension_numbers = #tpu.dot_dimension_numbers<[1], [0], [0], [1], [0, 0, 1, 1], [], []>} : vector<32x96xbf16>, vector<96x610xbf16>, vector<32x610xf32> -> vector<32x610xf32>
    %129 = arith.addf %124, %128 : vector<32x610xf32>
    %c0_42 = arith.constant 0 : index
    %c0_43 = arith.constant 0 : index
    %130 = vector.load %arg5[%c0_42, %c0_43] : memref<32x1xf32, #tpu.memory_space<vmem>>, vector<32x1xf32>
    %131 = vector.broadcast %130 : vector<32x1xf32> to vector<32x610xf32>
    %132 = arith.addf %129, %131 : vector<32x610xf32>
    %cst_44 = arith.constant 0.000000e+00 : f32
    %133 = vector.broadcast %cst_44 : f32 to vector<32x610xf32>
    %134 = arith.maximumf %132, %133 : vector<32x610xf32>
    %135 = tpu.iota {dimensions = array<i32: 1>} : vector<1x610xi32>
    %c324_i32_45 = arith.constant 324 : i32
    %c0_i32_46 = arith.constant 0 : i32
    %136 = arith.cmpi eq, %c324_i32_45, %c0_i32_46 : i32
    %c1_i32_47 = arith.constant 1 : i32
    %137 = arith.select %136, %c1_i32_47, %c324_i32_45 : i32
    %138 = vector.broadcast %137 : i32 to vector<1x610xi32>
    %139 = arith.remsi %135, %138 : vector<1x610xi32>
    %c0_i32_48 = arith.constant 0 : i32
    %140 = vector.broadcast %c0_i32_48 : i32 to vector<1x610xi32>
    %141 = arith.cmpi ne, %139, %140 : vector<1x610xi32>
    %c0_i32_49 = arith.constant 0 : i32
    %142 = vector.broadcast %c0_i32_49 : i32 to vector<1x610xi32>
    %143 = arith.cmpi slt, %139, %142 : vector<1x610xi32>
    %c0_i32_50 = arith.constant 0 : i32
    %144 = arith.cmpi slt, %137, %c0_i32_50 : i32
    %145 = vector.broadcast %144 : i1 to vector<1x610xi1>
    %146 = vector.broadcast %145 : vector<1x610xi1> to vector<1x610xi1>
    %147 = arith.xori %143, %146 : vector<1x610xi1>
    %148 = arith.andi %147, %141 : vector<1x610xi1>
    %149 = vector.broadcast %137 : i32 to vector<1x610xi32>
    %150 = arith.addi %139, %149 : vector<1x610xi32>
    %151 = arith.select %148, %150, %139 : vector<1x610xi1>, vector<1x610xi32>
    %c286_i32_51 = arith.constant 286 : i32
    %152 = vector.broadcast %c286_i32_51 : i32 to vector<1x610xi32>
    %153 = arith.cmpi slt, %151, %152 : vector<1x610xi32>
    %c18_i32_52 = arith.constant 18 : i32
    %c0_i32_53 = arith.constant 0 : i32
    %154 = arith.cmpi eq, %c18_i32_52, %c0_i32_53 : i32
    %c1_i32_54 = arith.constant 1 : i32
    %155 = arith.select %154, %c1_i32_54, %c18_i32_52 : i32
    %156 = vector.broadcast %155 : i32 to vector<1x610xi32>
    %157 = arith.remsi %151, %156 : vector<1x610xi32>
    %c0_i32_55 = arith.constant 0 : i32
    %158 = vector.broadcast %c0_i32_55 : i32 to vector<1x610xi32>
    %159 = arith.cmpi ne, %157, %158 : vector<1x610xi32>
    %c0_i32_56 = arith.constant 0 : i32
    %160 = vector.broadcast %c0_i32_56 : i32 to vector<1x610xi32>
    %161 = arith.cmpi slt, %157, %160 : vector<1x610xi32>
    %c0_i32_57 = arith.constant 0 : i32
    %162 = arith.cmpi slt, %155, %c0_i32_57 : i32
    %163 = vector.broadcast %162 : i1 to vector<1x610xi1>
    %164 = vector.broadcast %163 : vector<1x610xi1> to vector<1x610xi1>
    %165 = arith.xori %161, %164 : vector<1x610xi1>
    %166 = arith.andi %165, %159 : vector<1x610xi1>
    %167 = vector.broadcast %155 : i32 to vector<1x610xi32>
    %168 = arith.addi %157, %167 : vector<1x610xi32>
    %169 = arith.select %166, %168, %157 : vector<1x610xi1>, vector<1x610xi32>
    %c16_i32_58 = arith.constant 16 : i32
    %170 = vector.broadcast %c16_i32_58 : i32 to vector<1x610xi32>
    %171 = arith.cmpi slt, %169, %170 : vector<1x610xi32>
    %172 = arith.andi %153, %171 : vector<1x610xi1>
    %cst_59 = arith.constant 0.000000e+00 : f32
    %173 = vector.shape_cast %172 : vector<1x610xi1> to vector<1x610xi1>
    %174 = vector.broadcast %173 : vector<1x610xi1> to vector<32x610xi1>
    %175 = vector.broadcast %cst_59 : f32 to vector<32x610xf32>
    %176 = arith.select %174, %134, %175 : vector<32x610xi1>, vector<32x610xf32>
    %177 = arith.truncf %176 : vector<32x610xf32> to vector<32x610xbf16>
    %cst_60 = arith.constant 0.000000e+00 : bf16
    %178 = vector.broadcast %cst_60 : bf16 to vector<32x19xbf16>
    %c0_61 = arith.constant 0 : index
    %c0_62 = arith.constant 0 : index
    %179 = vector.load %arg14[%c0_61, %c0_62] : memref<96x648xbf16, #tpu.memory_space<vmem>>, vector<32x19xbf16>
    tpu.vector_store %arg14[%c0_61, %c0_62], %178 {strides = array<i32>} : memref<96x648xbf16, #tpu.memory_space<vmem>>, vector<32x19xbf16>,
    %c0_63 = arith.constant 0 : index
    %c19_64 = arith.constant 19 : index
    %180 = vector.load %arg14[%c0_63, %c19_64] : memref<96x648xbf16, #tpu.memory_space<vmem>>, vector<32x610xbf16>
    tpu.vector_store %arg14[%c0_63, %c19_64], %177 {strides = array<i32>} : memref<96x648xbf16, #tpu.memory_space<vmem>>, vector<32x610xbf16>,
    %c0_65 = arith.constant 0 : index
    %c629_66 = arith.constant 629 : index
    %181 = vector.load %arg14[%c0_65, %c629_66] : memref<96x648xbf16, #tpu.memory_space<vmem>>, vector<32x19xbf16>
    tpu.vector_store %arg14[%c0_65, %c629_66], %178 {strides = array<i32>} : memref<96x648xbf16, #tpu.memory_space<vmem>>, vector<32x19xbf16>,
    %c0_67 = arith.constant 0 : index
    %c1_68 = arith.constant 1 : index
    %182 = vector.load %arg14[%c0_67, %c1_68] : memref<96x648xbf16, #tpu.memory_space<vmem>>, vector<32x646xbf16>
    %c32_69 = arith.constant 32 : index
    %c0_70 = arith.constant 0 : index
    %183 = vector.load %arg14[%c32_69, %c0_70] : memref<96x648xbf16, #tpu.memory_space<vmem>>, vector<32x646xbf16>
    tpu.vector_store %arg14[%c32_69, %c0_70], %182 {strides = array<i32>} : memref<96x648xbf16, #tpu.memory_space<vmem>>, vector<32x646xbf16>,
    %c0_71 = arith.constant 0 : index
    %c2_72 = arith.constant 2 : index
    %184 = vector.load %arg14[%c0_71, %c2_72] : memref<96x648xbf16, #tpu.memory_space<vmem>>, vector<32x646xbf16>
    %c64_73 = arith.constant 64 : index
    %c0_74 = arith.constant 0 : index
    %185 = vector.load %arg14[%c64_73, %c0_74] : memref<96x648xbf16, #tpu.memory_space<vmem>>, vector<32x646xbf16>
    tpu.vector_store %arg14[%c64_73, %c0_74], %184 {strides = array<i32>} : memref<96x648xbf16, #tpu.memory_space<vmem>>, vector<32x646xbf16>,
    %cst_75 = arith.constant 0.000000e+00 : f32
    %186 = vector.broadcast %cst_75 : f32 to vector<32x610xf32>
    %c0_76 = arith.constant 0 : index
    %c0_77 = arith.constant 0 : index
    %187 = vector.load %arg14[%c0_76, %c0_77] : memref<96x648xbf16, #tpu.memory_space<vmem>>, vector<96x610xbf16>
    %c0_78 = arith.constant 0 : index
    %c0_79 = arith.constant 0 : index
    %c0_80 = arith.constant 0 : index
    %188 = vector.load %arg6[%c0_78, %c0_79, %c0_80] : memref<3x32x96xbf16, #tpu.memory_space<vmem>>, vector<1x32x96xbf16>
    %189 = vector.shape_cast %188 : vector<1x32x96xbf16> to vector<32x96xbf16>
    %cst_81 = arith.constant dense<0.000000e+00> : vector<32x610xf32>
    %190 = tpu.matmul %189, %187, %cst_81 {dimension_numbers = #tpu.dot_dimension_numbers<[1], [0], [0], [1], [0, 0, 1, 1], [], []>} : vector<32x96xbf16>, vector<96x610xbf16>, vector<32x610xf32> -> vector<32x610xf32>
    %191 = arith.addf %186, %190 : vector<32x610xf32>
    %c0_82 = arith.constant 0 : index
    %c18_83 = arith.constant 18 : index
    %192 = vector.load %arg14[%c0_82, %c18_83] : memref<96x648xbf16, #tpu.memory_space<vmem>>, vector<96x610xbf16>
    %c1_84 = arith.constant 1 : index
    %c0_85 = arith.constant 0 : index
    %c0_86 = arith.constant 0 : index
    %193 = vector.load %arg6[%c1_84, %c0_85, %c0_86] : memref<3x32x96xbf16, #tpu.memory_space<vmem>>, vector<1x32x96xbf16>
    %194 = vector.shape_cast %193 : vector<1x32x96xbf16> to vector<32x96xbf16>
    %cst_87 = arith.constant dense<0.000000e+00> : vector<32x610xf32>
    %195 = tpu.matmul %194, %192, %cst_87 {dimension_numbers = #tpu.dot_dimension_numbers<[1], [0], [0], [1], [0, 0, 1, 1], [], []>} : vector<32x96xbf16>, vector<96x610xbf16>, vector<32x610xf32> -> vector<32x610xf32>
    %196 = arith.addf %191, %195 : vector<32x610xf32>
    %c0_88 = arith.constant 0 : index
    %c36_89 = arith.constant 36 : index
    %197 = vector.load %arg14[%c0_88, %c36_89] : memref<96x648xbf16, #tpu.memory_space<vmem>>, vector<96x610xbf16>
    %c2_90 = arith.constant 2 : index
    %c0_91 = arith.constant 0 : index
    %c0_92 = arith.constant 0 : index
    %198 = vector.load %arg6[%c2_90, %c0_91, %c0_92] : memref<3x32x96xbf16, #tpu.memory_space<vmem>>, vector<1x32x96xbf16>
    %199 = vector.shape_cast %198 : vector<1x32x96xbf16> to vector<32x96xbf16>
    %cst_93 = arith.constant dense<0.000000e+00> : vector<32x610xf32>
    %200 = tpu.matmul %199, %197, %cst_93 {dimension_numbers = #tpu.dot_dimension_numbers<[1], [0], [0], [1], [0, 0, 1, 1], [], []>} : vector<32x96xbf16>, vector<96x610xbf16>, vector<32x610xf32> -> vector<32x610xf32>
    %201 = arith.addf %196, %200 : vector<32x610xf32>
    %c0_94 = arith.constant 0 : index
    %c0_95 = arith.constant 0 : index
    %202 = vector.load %arg7[%c0_94, %c0_95] : memref<32x1xf32, #tpu.memory_space<vmem>>, vector<32x1xf32>
    %203 = vector.broadcast %202 : vector<32x1xf32> to vector<32x610xf32>
    %204 = arith.addf %201, %203 : vector<32x610xf32>
    %cst_96 = arith.constant 0.000000e+00 : f32
    %205 = vector.broadcast %cst_96 : f32 to vector<32x610xf32>
    %206 = arith.maximumf %204, %205 : vector<32x610xf32>
    %207 = tpu.iota {dimensions = array<i32: 1>} : vector<1x610xi32>
    %c324_i32_97 = arith.constant 324 : i32
    %c0_i32_98 = arith.constant 0 : i32
    %208 = arith.cmpi eq, %c324_i32_97, %c0_i32_98 : i32
    %c1_i32_99 = arith.constant 1 : i32
    %209 = arith.select %208, %c1_i32_99, %c324_i32_97 : i32
    %210 = vector.broadcast %209 : i32 to vector<1x610xi32>
    %211 = arith.remsi %207, %210 : vector<1x610xi32>
    %c0_i32_100 = arith.constant 0 : i32
    %212 = vector.broadcast %c0_i32_100 : i32 to vector<1x610xi32>
    %213 = arith.cmpi ne, %211, %212 : vector<1x610xi32>
    %c0_i32_101 = arith.constant 0 : i32
    %214 = vector.broadcast %c0_i32_101 : i32 to vector<1x610xi32>
    %215 = arith.cmpi slt, %211, %214 : vector<1x610xi32>
    %c0_i32_102 = arith.constant 0 : i32
    %216 = arith.cmpi slt, %209, %c0_i32_102 : i32
    %217 = vector.broadcast %216 : i1 to vector<1x610xi1>
    %218 = vector.broadcast %217 : vector<1x610xi1> to vector<1x610xi1>
    %219 = arith.xori %215, %218 : vector<1x610xi1>
    %220 = arith.andi %219, %213 : vector<1x610xi1>
    %221 = vector.broadcast %209 : i32 to vector<1x610xi32>
    %222 = arith.addi %211, %221 : vector<1x610xi32>
    %223 = arith.select %220, %222, %211 : vector<1x610xi1>, vector<1x610xi32>
    %c286_i32_103 = arith.constant 286 : i32
    %224 = vector.broadcast %c286_i32_103 : i32 to vector<1x610xi32>
    %225 = arith.cmpi slt, %223, %224 : vector<1x610xi32>
    %c18_i32_104 = arith.constant 18 : i32
    %c0_i32_105 = arith.constant 0 : i32
    %226 = arith.cmpi eq, %c18_i32_104, %c0_i32_105 : i32
    %c1_i32_106 = arith.constant 1 : i32
    %227 = arith.select %226, %c1_i32_106, %c18_i32_104 : i32
    %228 = vector.broadcast %227 : i32 to vector<1x610xi32>
    %229 = arith.remsi %223, %228 : vector<1x610xi32>
    %c0_i32_107 = arith.constant 0 : i32
    %230 = vector.broadcast %c0_i32_107 : i32 to vector<1x610xi32>
    %231 = arith.cmpi ne, %229, %230 : vector<1x610xi32>
    %c0_i32_108 = arith.constant 0 : i32
    %232 = vector.broadcast %c0_i32_108 : i32 to vector<1x610xi32>
    %233 = arith.cmpi slt, %229, %232 : vector<1x610xi32>
    %c0_i32_109 = arith.constant 0 : i32
    %234 = arith.cmpi slt, %227, %c0_i32_109 : i32
    %235 = vector.broadcast %234 : i1 to vector<1x610xi1>
    %236 = vector.broadcast %235 : vector<1x610xi1> to vector<1x610xi1>
    %237 = arith.xori %233, %236 : vector<1x610xi1>
    %238 = arith.andi %237, %231 : vector<1x610xi1>
    %239 = vector.broadcast %227 : i32 to vector<1x610xi32>
    %240 = arith.addi %229, %239 : vector<1x610xi32>
    %241 = arith.select %238, %240, %229 : vector<1x610xi1>, vector<1x610xi32>
    %c16_i32_110 = arith.constant 16 : i32
    %242 = vector.broadcast %c16_i32_110 : i32 to vector<1x610xi32>
    %243 = arith.cmpi slt, %241, %242 : vector<1x610xi32>
    %244 = arith.andi %225, %243 : vector<1x610xi1>
    %cst_111 = arith.constant 0.000000e+00 : f32
    %245 = vector.shape_cast %244 : vector<1x610xi1> to vector<1x610xi1>
    %246 = vector.broadcast %245 : vector<1x610xi1> to vector<32x610xi1>
    %247 = vector.broadcast %cst_111 : f32 to vector<32x610xf32>
    %248 = arith.select %246, %206, %247 : vector<32x610xi1>, vector<32x610xf32>
    %249 = arith.truncf %248 : vector<32x610xf32> to vector<32x610xbf16>
    %cst_112 = arith.constant 0.000000e+00 : bf16
    %250 = vector.broadcast %cst_112 : bf16 to vector<32x19xbf16>
    %c0_113 = arith.constant 0 : index
    %c0_114 = arith.constant 0 : index
    %251 = vector.load %arg13[%c0_113, %c0_114] : memref<96x648xbf16, #tpu.memory_space<vmem>>, vector<32x19xbf16>
    tpu.vector_store %arg13[%c0_113, %c0_114], %250 {strides = array<i32>} : memref<96x648xbf16, #tpu.memory_space<vmem>>, vector<32x19xbf16>,
    %c0_115 = arith.constant 0 : index
    %c19_116 = arith.constant 19 : index
    %252 = vector.load %arg13[%c0_115, %c19_116] : memref<96x648xbf16, #tpu.memory_space<vmem>>, vector<32x610xbf16>
    tpu.vector_store %arg13[%c0_115, %c19_116], %249 {strides = array<i32>} : memref<96x648xbf16, #tpu.memory_space<vmem>>, vector<32x610xbf16>,
    %c0_117 = arith.constant 0 : index
    %c629_118 = arith.constant 629 : index
    %253 = vector.load %arg13[%c0_117, %c629_118] : memref<96x648xbf16, #tpu.memory_space<vmem>>, vector<32x19xbf16>
    tpu.vector_store %arg13[%c0_117, %c629_118], %250 {strides = array<i32>} : memref<96x648xbf16, #tpu.memory_space<vmem>>, vector<32x19xbf16>,
    %c0_119 = arith.constant 0 : index
    %c1_120 = arith.constant 1 : index
    %254 = vector.load %arg13[%c0_119, %c1_120] : memref<96x648xbf16, #tpu.memory_space<vmem>>, vector<32x646xbf16>
    %c32_121 = arith.constant 32 : index
    %c0_122 = arith.constant 0 : index
    %255 = vector.load %arg13[%c32_121, %c0_122] : memref<96x648xbf16, #tpu.memory_space<vmem>>, vector<32x646xbf16>
    tpu.vector_store %arg13[%c32_121, %c0_122], %254 {strides = array<i32>} : memref<96x648xbf16, #tpu.memory_space<vmem>>, vector<32x646xbf16>,
    %c0_123 = arith.constant 0 : index
    %c2_124 = arith.constant 2 : index
    %256 = vector.load %arg13[%c0_123, %c2_124] : memref<96x648xbf16, #tpu.memory_space<vmem>>, vector<32x646xbf16>
    %c64_125 = arith.constant 64 : index
    %c0_126 = arith.constant 0 : index
    %257 = vector.load %arg13[%c64_125, %c0_126] : memref<96x648xbf16, #tpu.memory_space<vmem>>, vector<32x646xbf16>
    tpu.vector_store %arg13[%c64_125, %c0_126], %256 {strides = array<i32>} : memref<96x648xbf16, #tpu.memory_space<vmem>>, vector<32x646xbf16>,
    %cst_127 = arith.constant 0.000000e+00 : f32
    %258 = vector.broadcast %cst_127 : f32 to vector<32x610xf32>
    %c0_128 = arith.constant 0 : index
    %c0_129 = arith.constant 0 : index
    %259 = vector.load %arg13[%c0_128, %c0_129] : memref<96x648xbf16, #tpu.memory_space<vmem>>, vector<96x610xbf16>
    %c0_130 = arith.constant 0 : index
    %c0_131 = arith.constant 0 : index
    %c0_132 = arith.constant 0 : index
    %260 = vector.load %arg8[%c0_130, %c0_131, %c0_132] : memref<3x32x96xbf16, #tpu.memory_space<vmem>>, vector<1x32x96xbf16>
    %261 = vector.shape_cast %260 : vector<1x32x96xbf16> to vector<32x96xbf16>
    %cst_133 = arith.constant dense<0.000000e+00> : vector<32x610xf32>
    %262 = tpu.matmul %261, %259, %cst_133 {dimension_numbers = #tpu.dot_dimension_numbers<[1], [0], [0], [1], [0, 0, 1, 1], [], []>} : vector<32x96xbf16>, vector<96x610xbf16>, vector<32x610xf32> -> vector<32x610xf32>
    %263 = arith.addf %258, %262 : vector<32x610xf32>
    %c0_134 = arith.constant 0 : index
    %c18_135 = arith.constant 18 : index
    %264 = vector.load %arg13[%c0_134, %c18_135] : memref<96x648xbf16, #tpu.memory_space<vmem>>, vector<96x610xbf16>
    %c1_136 = arith.constant 1 : index
    %c0_137 = arith.constant 0 : index
    %c0_138 = arith.constant 0 : index
    %265 = vector.load %arg8[%c1_136, %c0_137, %c0_138] : memref<3x32x96xbf16, #tpu.memory_space<vmem>>, vector<1x32x96xbf16>
    %266 = vector.shape_cast %265 : vector<1x32x96xbf16> to vector<32x96xbf16>
    %cst_139 = arith.constant dense<0.000000e+00> : vector<32x610xf32>
    %267 = tpu.matmul %266, %264, %cst_139 {dimension_numbers = #tpu.dot_dimension_numbers<[1], [0], [0], [1], [0, 0, 1, 1], [], []>} : vector<32x96xbf16>, vector<96x610xbf16>, vector<32x610xf32> -> vector<32x610xf32>
    %268 = arith.addf %263, %267 : vector<32x610xf32>
    %c0_140 = arith.constant 0 : index
    %c36_141 = arith.constant 36 : index
    %269 = vector.load %arg13[%c0_140, %c36_141] : memref<96x648xbf16, #tpu.memory_space<vmem>>, vector<96x610xbf16>
    %c2_142 = arith.constant 2 : index
    %c0_143 = arith.constant 0 : index
    %c0_144 = arith.constant 0 : index
    %270 = vector.load %arg8[%c2_142, %c0_143, %c0_144] : memref<3x32x96xbf16, #tpu.memory_space<vmem>>, vector<1x32x96xbf16>
    %271 = vector.shape_cast %270 : vector<1x32x96xbf16> to vector<32x96xbf16>
    %cst_145 = arith.constant dense<0.000000e+00> : vector<32x610xf32>
    %272 = tpu.matmul %271, %269, %cst_145 {dimension_numbers = #tpu.dot_dimension_numbers<[1], [0], [0], [1], [0, 0, 1, 1], [], []>} : vector<32x96xbf16>, vector<96x610xbf16>, vector<32x610xf32> -> vector<32x610xf32>
    %273 = arith.addf %268, %272 : vector<32x610xf32>
    %c0_146 = arith.constant 0 : index
    %c0_147 = arith.constant 0 : index
    %274 = vector.load %arg9[%c0_146, %c0_147] : memref<32x1xf32, #tpu.memory_space<vmem>>, vector<32x1xf32>
    %275 = vector.broadcast %274 : vector<32x1xf32> to vector<32x610xf32>
    %276 = arith.addf %273, %275 : vector<32x610xf32>
    %cst_148 = arith.constant 0.000000e+00 : f32
    %277 = vector.broadcast %cst_148 : f32 to vector<32x610xf32>
    %278 = arith.maximumf %276, %277 : vector<32x610xf32>
    %279 = tpu.iota {dimensions = array<i32: 1>} : vector<1x610xi32>
    %c324_i32_149 = arith.constant 324 : i32
    %c0_i32_150 = arith.constant 0 : i32
    %280 = arith.cmpi eq, %c324_i32_149, %c0_i32_150 : i32
    %c1_i32_151 = arith.constant 1 : i32
    %281 = arith.select %280, %c1_i32_151, %c324_i32_149 : i32
    %282 = vector.broadcast %281 : i32 to vector<1x610xi32>
    %283 = arith.remsi %279, %282 : vector<1x610xi32>
    %c0_i32_152 = arith.constant 0 : i32
    %284 = vector.broadcast %c0_i32_152 : i32 to vector<1x610xi32>
    %285 = arith.cmpi ne, %283, %284 : vector<1x610xi32>
    %c0_i32_153 = arith.constant 0 : i32
    %286 = vector.broadcast %c0_i32_153 : i32 to vector<1x610xi32>
    %287 = arith.cmpi slt, %283, %286 : vector<1x610xi32>
    %c0_i32_154 = arith.constant 0 : i32
    %288 = arith.cmpi slt, %281, %c0_i32_154 : i32
    %289 = vector.broadcast %288 : i1 to vector<1x610xi1>
    %290 = vector.broadcast %289 : vector<1x610xi1> to vector<1x610xi1>
    %291 = arith.xori %287, %290 : vector<1x610xi1>
    %292 = arith.andi %291, %285 : vector<1x610xi1>
    %293 = vector.broadcast %281 : i32 to vector<1x610xi32>
    %294 = arith.addi %283, %293 : vector<1x610xi32>
    %295 = arith.select %292, %294, %283 : vector<1x610xi1>, vector<1x610xi32>
    %c286_i32_155 = arith.constant 286 : i32
    %296 = vector.broadcast %c286_i32_155 : i32 to vector<1x610xi32>
    %297 = arith.cmpi slt, %295, %296 : vector<1x610xi32>
    %c18_i32_156 = arith.constant 18 : i32
    %c0_i32_157 = arith.constant 0 : i32
    %298 = arith.cmpi eq, %c18_i32_156, %c0_i32_157 : i32
    %c1_i32_158 = arith.constant 1 : i32
    %299 = arith.select %298, %c1_i32_158, %c18_i32_156 : i32
    %300 = vector.broadcast %299 : i32 to vector<1x610xi32>
    %301 = arith.remsi %295, %300 : vector<1x610xi32>
    %c0_i32_159 = arith.constant 0 : i32
    %302 = vector.broadcast %c0_i32_159 : i32 to vector<1x610xi32>
    %303 = arith.cmpi ne, %301, %302 : vector<1x610xi32>
    %c0_i32_160 = arith.constant 0 : i32
    %304 = vector.broadcast %c0_i32_160 : i32 to vector<1x610xi32>
    %305 = arith.cmpi slt, %301, %304 : vector<1x610xi32>
    %c0_i32_161 = arith.constant 0 : i32
    %306 = arith.cmpi slt, %299, %c0_i32_161 : i32
    %307 = vector.broadcast %306 : i1 to vector<1x610xi1>
    %308 = vector.broadcast %307 : vector<1x610xi1> to vector<1x610xi1>
    %309 = arith.xori %305, %308 : vector<1x610xi1>
    %310 = arith.andi %309, %303 : vector<1x610xi1>
    %311 = vector.broadcast %299 : i32 to vector<1x610xi32>
    %312 = arith.addi %301, %311 : vector<1x610xi32>
    %313 = arith.select %310, %312, %301 : vector<1x610xi1>, vector<1x610xi32>
    %c16_i32_162 = arith.constant 16 : i32
    %314 = vector.broadcast %c16_i32_162 : i32 to vector<1x610xi32>
    %315 = arith.cmpi slt, %313, %314 : vector<1x610xi32>
    %316 = arith.andi %297, %315 : vector<1x610xi1>
    %cst_163 = arith.constant 0.000000e+00 : f32
    %317 = vector.shape_cast %316 : vector<1x610xi1> to vector<1x610xi1>
    %318 = vector.broadcast %317 : vector<1x610xi1> to vector<32x610xi1>
    %319 = vector.broadcast %cst_163 : f32 to vector<32x610xf32>
    %320 = arith.select %318, %278, %319 : vector<32x610xi1>, vector<32x610xf32>
    %321 = arith.truncf %320 : vector<32x610xf32> to vector<32x610xbf16>
    %cst_164 = arith.constant 0.000000e+00 : bf16
    %322 = vector.broadcast %cst_164 : bf16 to vector<32x19xbf16>
    %c0_165 = arith.constant 0 : index
    %c0_166 = arith.constant 0 : index
    %323 = vector.load %arg14[%c0_165, %c0_166] : memref<96x648xbf16, #tpu.memory_space<vmem>>, vector<32x19xbf16>
    tpu.vector_store %arg14[%c0_165, %c0_166], %322 {strides = array<i32>} : memref<96x648xbf16, #tpu.memory_space<vmem>>, vector<32x19xbf16>,
    %c0_167 = arith.constant 0 : index
    %c19_168 = arith.constant 19 : index
    %324 = vector.load %arg14[%c0_167, %c19_168] : memref<96x648xbf16, #tpu.memory_space<vmem>>, vector<32x610xbf16>
    tpu.vector_store %arg14[%c0_167, %c19_168], %321 {strides = array<i32>} : memref<96x648xbf16, #tpu.memory_space<vmem>>, vector<32x610xbf16>,
    %c0_169 = arith.constant 0 : index
    %c629_170 = arith.constant 629 : index
    %325 = vector.load %arg14[%c0_169, %c629_170] : memref<96x648xbf16, #tpu.memory_space<vmem>>, vector<32x19xbf16>
    tpu.vector_store %arg14[%c0_169, %c629_170], %322 {strides = array<i32>} : memref<96x648xbf16, #tpu.memory_space<vmem>>, vector<32x19xbf16>,
    %c0_171 = arith.constant 0 : index
    %c1_172 = arith.constant 1 : index
    %326 = vector.load %arg14[%c0_171, %c1_172] : memref<96x648xbf16, #tpu.memory_space<vmem>>, vector<32x646xbf16>
    %c32_173 = arith.constant 32 : index
    %c0_174 = arith.constant 0 : index
    %327 = vector.load %arg14[%c32_173, %c0_174] : memref<96x648xbf16, #tpu.memory_space<vmem>>, vector<32x646xbf16>
    tpu.vector_store %arg14[%c32_173, %c0_174], %326 {strides = array<i32>} : memref<96x648xbf16, #tpu.memory_space<vmem>>, vector<32x646xbf16>,
    %c0_175 = arith.constant 0 : index
    %c2_176 = arith.constant 2 : index
    %328 = vector.load %arg14[%c0_175, %c2_176] : memref<96x648xbf16, #tpu.memory_space<vmem>>, vector<32x646xbf16>
    %c64_177 = arith.constant 64 : index
    %c0_178 = arith.constant 0 : index
    %329 = vector.load %arg14[%c64_177, %c0_178] : memref<96x648xbf16, #tpu.memory_space<vmem>>, vector<32x646xbf16>
    tpu.vector_store %arg14[%c64_177, %c0_178], %328 {strides = array<i32>} : memref<96x648xbf16, #tpu.memory_space<vmem>>, vector<32x646xbf16>,
    %c0_179 = arith.constant 0 : index
    %c0_180 = arith.constant 0 : index
    %330 = vector.load %arg10[%c0_179, %c0_180] : memref<32x9xf32, #tpu.memory_space<vmem>>, vector<32x9xf32>
    %cst_181 = arith.constant 0.000000e+00 : f32
    %331 = vector.broadcast %cst_181 : f32 to vector<32x610xf32>
    %c0_182 = arith.constant 0 : index
    %c0_183 = arith.constant 0 : index
    %332 = vector.load %arg14[%c0_182, %c0_183] : memref<96x648xbf16, #tpu.memory_space<vmem>>, vector<32x610xbf16>
    %333 = arith.extf %332 : vector<32x610xbf16> to vector<32x610xf32>
    %334 = vector.extract_strided_slice %330 {offsets = [0, 0], sizes = [32, 1], strides = [1, 1]} : vector<32x9xf32> to vector<32x1xf32>
    %335 = vector.broadcast %334 : vector<32x1xf32> to vector<32x610xf32>
    %336 = arith.mulf %335, %333 : vector<32x610xf32>
    %337 = arith.addf %331, %336 : vector<32x610xf32>
    %c32_184 = arith.constant 32 : index
    %c0_185 = arith.constant 0 : index
    %338 = vector.load %arg14[%c32_184, %c0_185] : memref<96x648xbf16, #tpu.memory_space<vmem>>, vector<32x610xbf16>
    %339 = arith.extf %338 : vector<32x610xbf16> to vector<32x610xf32>
    %340 = vector.extract_strided_slice %330 {offsets = [0, 1], sizes = [32, 1], strides = [1, 1]} : vector<32x9xf32> to vector<32x1xf32>
    %341 = vector.broadcast %340 : vector<32x1xf32> to vector<32x610xf32>
    %342 = arith.mulf %341, %339 : vector<32x610xf32>
    %343 = arith.addf %337, %342 : vector<32x610xf32>
    %c64_186 = arith.constant 64 : index
    %c0_187 = arith.constant 0 : index
    %344 = vector.load %arg14[%c64_186, %c0_187] : memref<96x648xbf16, #tpu.memory_space<vmem>>, vector<32x610xbf16>
    %345 = arith.extf %344 : vector<32x610xbf16> to vector<32x610xf32>
    %346 = vector.extract_strided_slice %330 {offsets = [0, 2], sizes = [32, 1], strides = [1, 1]} : vector<32x9xf32> to vector<32x1xf32>
    %347 = vector.broadcast %346 : vector<32x1xf32> to vector<32x610xf32>
    %348 = arith.mulf %347, %345 : vector<32x610xf32>
    %349 = arith.addf %343, %348 : vector<32x610xf32>
    %c0_188 = arith.constant 0 : index
    %c18_189 = arith.constant 18 : index
    %350 = vector.load %arg14[%c0_188, %c18_189] : memref<96x648xbf16, #tpu.memory_space<vmem>>, vector<32x610xbf16>
    %351 = arith.extf %350 : vector<32x610xbf16> to vector<32x610xf32>
    %352 = vector.extract_strided_slice %330 {offsets = [0, 3], sizes = [32, 1], strides = [1, 1]} : vector<32x9xf32> to vector<32x1xf32>
    %353 = vector.broadcast %352 : vector<32x1xf32> to vector<32x610xf32>
    %354 = arith.mulf %353, %351 : vector<32x610xf32>
    %355 = arith.addf %349, %354 : vector<32x610xf32>
    %c32_190 = arith.constant 32 : index
    %c18_191 = arith.constant 18 : index
    %356 = vector.load %arg14[%c32_190, %c18_191] : memref<96x648xbf16, #tpu.memory_space<vmem>>, vector<32x610xbf16>
    %357 = arith.extf %356 : vector<32x610xbf16> to vector<32x610xf32>
    %358 = vector.extract_strided_slice %330 {offsets = [0, 4], sizes = [32, 1], strides = [1, 1]} : vector<32x9xf32> to vector<32x1xf32>
    %359 = vector.broadcast %358 : vector<32x1xf32> to vector<32x610xf32>
    %360 = arith.mulf %359, %357 : vector<32x610xf32>
    %361 = arith.addf %355, %360 : vector<32x610xf32>
    %c64_192 = arith.constant 64 : index
    %c18_193 = arith.constant 18 : index
    %362 = vector.load %arg14[%c64_192, %c18_193] : memref<96x648xbf16, #tpu.memory_space<vmem>>, vector<32x610xbf16>
    %363 = arith.extf %362 : vector<32x610xbf16> to vector<32x610xf32>
    %364 = vector.extract_strided_slice %330 {offsets = [0, 5], sizes = [32, 1], strides = [1, 1]} : vector<32x9xf32> to vector<32x1xf32>
    %365 = vector.broadcast %364 : vector<32x1xf32> to vector<32x610xf32>
    %366 = arith.mulf %365, %363 : vector<32x610xf32>
    %367 = arith.addf %361, %366 : vector<32x610xf32>
    %c0_194 = arith.constant 0 : index
    %c36_195 = arith.constant 36 : index
    %368 = vector.load %arg14[%c0_194, %c36_195] : memref<96x648xbf16, #tpu.memory_space<vmem>>, vector<32x610xbf16>
    %369 = arith.extf %368 : vector<32x610xbf16> to vector<32x610xf32>
    %370 = vector.extract_strided_slice %330 {offsets = [0, 6], sizes = [32, 1], strides = [1, 1]} : vector<32x9xf32> to vector<32x1xf32>
    %371 = vector.broadcast %370 : vector<32x1xf32> to vector<32x610xf32>
    %372 = arith.mulf %371, %369 : vector<32x610xf32>
    %373 = arith.addf %367, %372 : vector<32x610xf32>
    %c32_196 = arith.constant 32 : index
    %c36_197 = arith.constant 36 : index
    %374 = vector.load %arg14[%c32_196, %c36_197] : memref<96x648xbf16, #tpu.memory_space<vmem>>, vector<32x610xbf16>
    %375 = arith.extf %374 : vector<32x610xbf16> to vector<32x610xf32>
    %376 = vector.extract_strided_slice %330 {offsets = [0, 7], sizes = [32, 1], strides = [1, 1]} : vector<32x9xf32> to vector<32x1xf32>
    %377 = vector.broadcast %376 : vector<32x1xf32> to vector<32x610xf32>
    %378 = arith.mulf %377, %375 : vector<32x610xf32>
    %379 = arith.addf %373, %378 : vector<32x610xf32>
    %c64_198 = arith.constant 64 : index
    %c36_199 = arith.constant 36 : index
    %380 = vector.load %arg14[%c64_198, %c36_199] : memref<96x648xbf16, #tpu.memory_space<vmem>>, vector<32x610xbf16>
    %381 = arith.extf %380 : vector<32x610xbf16> to vector<32x610xf32>
    %382 = vector.extract_strided_slice %330 {offsets = [0, 8], sizes = [32, 1], strides = [1, 1]} : vector<32x9xf32> to vector<32x1xf32>
    %383 = vector.broadcast %382 : vector<32x1xf32> to vector<32x610xf32>
    %384 = arith.mulf %383, %381 : vector<32x610xf32>
    %385 = arith.addf %379, %384 : vector<32x610xf32>
    %cst_200 = arith.constant dense<0.000000e+00> : vector<610xf32>
    %386 = vector.multi_reduction <add>, %385, %cst_200 [0] : vector<32x610xf32> to vector<610xf32>
    %387 = vector.shape_cast %386 : vector<610xf32> to vector<1x610xf32>
    %c0_201 = arith.constant 0 : index
    %c0_202 = arith.constant 0 : index
    %388 = vector.load %arg11[%c0_201, %c0_202] : memref<1x1xf32, #tpu.memory_space<vmem>>, vector<1x1xf32>
    %389 = vector.broadcast %388 : vector<1x1xf32> to vector<1x610xf32>
    %390 = arith.addf %387, %389 : vector<1x610xf32>
    %cst_203 = arith.constant 0.000000e+00 : f32
    %391 = vector.broadcast %cst_203 : f32 to vector<1x610xf32>
    %392 = arith.maximumf %390, %391 : vector<1x610xf32>
    %c0_204 = arith.constant 0 : index
    %c0_205 = arith.constant 0 : index
    %c0_206 = arith.constant 0 : index
    %393 = vector.load %arg12[%c0_204, %c0_205, %c0_206] : memref<1x1x610xf32, #tpu.memory_space<vmem>>, vector<1x1x610xf32>
    %394 = vector.shape_cast %393 : vector<1x1x610xf32> to vector<1x610xf32>
    %395 = vector.shape_cast %392 : vector<1x610xf32> to vector<1x1x610xf32>
    tpu.vector_store %arg12[%c0_204, %c0_205, %c0_206], %395 {strides = array<i32>} : memref<1x1x610xf32, #tpu.memory_space<vmem>>, vector<1x1x610xf32>,
    return
  }
  func.func @transform_0(%arg0: i32) -> (i32, i32, i32) {
    %c0_i32 = arith.constant 0 : i32
    %c0_i32_0 = arith.constant 0 : i32
    %c0_i32_1 = arith.constant 0 : i32
    return %arg0, %c0_i32, %c0_i32_0 : i32, i32, i32
  }
  func.func @transform_1(%arg0: i32) -> (i32, i32) {
    %c0_i32 = arith.constant 0 : i32
    %c0_i32_0 = arith.constant 0 : i32
    %c0_i32_1 = arith.constant 0 : i32
    return %c0_i32, %c0_i32_0 : i32, i32
  }
  func.func @transform_2(%arg0: i32) -> (i32, i32) {
    %c0_i32 = arith.constant 0 : i32
    %c0_i32_0 = arith.constant 0 : i32
    %c0_i32_1 = arith.constant 0 : i32
    return %c0_i32, %c0_i32_0 : i32, i32
  }
  func.func @transform_3(%arg0: i32) -> (i32, i32, i32) {
    %c0_i32 = arith.constant 0 : i32
    %c0_i32_0 = arith.constant 0 : i32
    %c0_i32_1 = arith.constant 0 : i32
    %c0_i32_2 = arith.constant 0 : i32
    return %c0_i32, %c0_i32_0, %c0_i32_1 : i32, i32, i32
  }
  func.func @transform_4(%arg0: i32) -> (i32, i32) {
    %c0_i32 = arith.constant 0 : i32
    %c0_i32_0 = arith.constant 0 : i32
    %c0_i32_1 = arith.constant 0 : i32
    return %c0_i32, %c0_i32_0 : i32, i32
  }
  func.func @transform_5(%arg0: i32) -> (i32, i32, i32) {
    %c0_i32 = arith.constant 0 : i32
    %c0_i32_0 = arith.constant 0 : i32
    %c0_i32_1 = arith.constant 0 : i32
    %c0_i32_2 = arith.constant 0 : i32
    return %c0_i32, %c0_i32_0, %c0_i32_1 : i32, i32, i32
  }
  func.func @transform_6(%arg0: i32) -> (i32, i32) {
    %c0_i32 = arith.constant 0 : i32
    %c0_i32_0 = arith.constant 0 : i32
    %c0_i32_1 = arith.constant 0 : i32
    return %c0_i32, %c0_i32_0 : i32, i32
  }
  func.func @transform_7(%arg0: i32) -> (i32, i32, i32) {
    %c0_i32 = arith.constant 0 : i32
    %c0_i32_0 = arith.constant 0 : i32
    %c0_i32_1 = arith.constant 0 : i32
    %c0_i32_2 = arith.constant 0 : i32
    return %c0_i32, %c0_i32_0, %c0_i32_1 : i32, i32, i32
  }
  func.func @transform_8(%arg0: i32) -> (i32, i32) {
    %c0_i32 = arith.constant 0 : i32
    %c0_i32_0 = arith.constant 0 : i32
    %c0_i32_1 = arith.constant 0 : i32
    return %c0_i32, %c0_i32_0 : i32, i32
  }
  func.func @transform_9(%arg0: i32) -> (i32, i32) {
    %c0_i32 = arith.constant 0 : i32
    %c0_i32_0 = arith.constant 0 : i32
    %c0_i32_1 = arith.constant 0 : i32
    return %c0_i32, %c0_i32_0 : i32, i32
  }
  func.func @transform_10(%arg0: i32) -> (i32, i32) {
    %c0_i32 = arith.constant 0 : i32
    %c0_i32_0 = arith.constant 0 : i32
    %c0_i32_1 = arith.constant 0 : i32
    return %c0_i32, %c0_i32_0 : i32, i32
  }
  func.func @transform_11(%arg0: i32) -> (i32, i32, i32) {
    %c0_i32 = arith.constant 0 : i32
    %c0_i32_0 = arith.constant 0 : i32
    %c0_i32_1 = arith.constant 0 : i32
    return %arg0, %c0_i32, %c0_i32_0 : i32, i32, i32
  }
}

</mosaic_0001>

<llo_original>
// kernel: _forward_impl.1
$region0: #{_forward_impl.1}
  #allocation0 [shape = 'u32[]', space=smem, size = 0x4, offset = 0x4, fixed_abs, tag = 'smem constant byte address 0x4 - core index']
  #allocation1 [shape = 'u32[144,128]{1,0:T(1,128)}', space=vmem, size = 0x12000, scoped, tag = 'internal scratch']
  #allocation2 [shape = 'bf16[96,648]{1,0:T(16,128)(2,1)}', space=vmem, size = 0x24000, scoped, tag = 'scratch operand']
  #allocation3 [shape = 'bf16[96,648]{1,0:T(16,128)(2,1)}', space=vmem, size = 0x24000, scoped, tag = 'scratch operand']
  #allocation4 [shape = 'f32[1,1]{1,0:T(1,128)S(1)}', space=vmem, size = 0x200, scoped, tag = 'scoped memory for _forward_impl.1']
  %s0 = inlined_call_operand.vmem [shape: f32[1,1,648], index: 0, kind: input, shape index: {}]
  %s1 = inlined_call_operand.vmem [shape: f32[32,9], index: 1, kind: input, shape index: {}]
  %s2 = inlined_call_operand.vmem [shape: f32[32,1], index: 2, kind: input, shape index: {}]
  %s3 = inlined_call_operand.vmem [shape: bf16[3,32,96], index: 3, kind: input, shape index: {}]
  %s4 = inlined_call_operand.vmem [shape: f32[32,1], index: 4, kind: input, shape index: {}]
  %s5 = inlined_call_operand.vmem [shape: bf16[3,32,96], index: 5, kind: input, shape index: {}]
  %s6 = inlined_call_operand.vmem [shape: f32[32,1], index: 6, kind: input, shape index: {}]
  %s7 = inlined_call_operand.vmem [shape: bf16[3,32,96], index: 7, kind: input, shape index: {}]
  %s8 = inlined_call_operand.vmem [shape: f32[32,1], index: 8, kind: input, shape index: {}]
  %s9 = inlined_call_operand.vmem [shape: f32[32,9], index: 9, kind: input, shape index: {}]
  %s10 = inlined_call_operand.<no memory space> [shape: f32[1,1], index: 10, kind: input, shape index: {}]
  %s11 = inlined_call_operand.vmem [shape: f32[1,1,610], index: 11, kind: output, shape index: {}]
  %s12 = sld [smem:[#allocation0]]
  $region54: #{_forward_impl.1} parent=0
    _
  %s14 = ssub.s32 1, %s12
  %s15 = scalar_select 0, %s14, %s12
  %v16 = vstv %s10
  %17 = vst [vmem:[#allocation4] sm:$0x1] %v16
  // Predicated region
  $region2: #{_forward_impl.1} parent=0 // pred_check
    _
  $region3: #{_forward_impl.1} parent=0 // pred_check_branch
    %19 = sbr.rel (0) target = $region5
  $region4: #{_forward_impl.1} parent=0 // pred_region
    _
  $region5: #{_forward_impl.1} parent=0 // pred_fallthru
    _
  // Predicated region
  $region6: #{_forward_impl.1} parent=0 // pred_check
    _
  $region7: #{_forward_impl.1} parent=0 // pred_check_branch
    %21 = sbr.rel (0) target = $region9
  $region8: #{_forward_impl.1} parent=0 // pred_region
    _
  $region9: #{_forward_impl.1} parent=0 // pred_fallthru
    _
  // Predicated region
  $region10: #{_forward_impl.1} parent=0 // pred_check
    _
  $region11: #{_forward_impl.1} parent=0 // pred_check_branch
    %23 = sbr.rel (0) target = $region13
  $region12: #{_forward_impl.1} parent=0 // pred_region
    _
  $region13: #{_forward_impl.1} parent=0 // pred_fallthru
    _
  // Predicated region
  $region14: #{_forward_impl.1} parent=0 // pred_check
    _
  $region15: #{_forward_impl.1} parent=0 // pred_check_branch
    %25 = sbr.rel (0) target = $region17
  $region16: #{_forward_impl.1} parent=0 // pred_region
    _
  $region17: #{_forward_impl.1} parent=0 // pred_fallthru
    _
  // Predicated region
  $region18: #{_forward_impl.1} parent=0 // pred_check
    _
  $region19: #{_forward_impl.1} parent=0 // pred_check_branch
    %27 = sbr.rel (0) target = $region21
  $region20: #{_forward_impl.1} parent=0 // pred_region
    _
  $region21: #{_forward_impl.1} parent=0 // pred_fallthru
    _
  // Predicated region
  $region22: #{_forward_impl.1} parent=0 // pred_check
    _
  $region23: #{_forward_impl.1} parent=0 // pred_check_branch
    %29 = sbr.rel (0) target = $region25
  $region24: #{_forward_impl.1} parent=0 // pred_region
    _
  $region25: #{_forward_impl.1} parent=0 // pred_fallthru
    _
  // Predicated region
  $region26: #{_forward_impl.1} parent=0 // pred_check
    _
  $region27: #{_forward_impl.1} parent=0 // pred_check_branch
    %31 = sbr.rel (0) target = $region29
  $region28: #{_forward_impl.1} parent=0 // pred_region
    _
  $region29: #{_forward_impl.1} parent=0 // pred_fallthru
    _
  // Predicated region
  $region30: #{_forward_impl.1} parent=0 // pred_check
    _
  $region31: #{_forward_impl.1} parent=0 // pred_check_branch
    %33 = sbr.rel (0) target = $region33
  $region32: #{_forward_impl.1} parent=0 // pred_region
    _
  $region33: #{_forward_impl.1} parent=0 // pred_fallthru
    _
  // Predicated region
  $region34: #{_forward_impl.1} parent=0 // pred_check
    _
  $region35: #{_forward_impl.1} parent=0 // pred_check_branch
    %35 = sbr.rel (0) target = $region37
  $region36: #{_forward_impl.1} parent=0 // pred_region
    _
  $region37: #{_forward_impl.1} parent=0 // pred_fallthru
    _
  // Predicated region
  $region38: #{_forward_impl.1} parent=0 // pred_check
    _
  $region39: #{_forward_impl.1} parent=0 // pred_check_branch
    %37 = sbr.rel (0) target = $region41
  $region40: #{_forward_impl.1} parent=0 // pred_region
    _
  $region41: #{_forward_impl.1} parent=0 // pred_fallthru
    _
  // Predicated region
  $region42: #{_forward_impl.1} parent=0 // pred_check
    _
  $region43: #{_forward_impl.1} parent=0 // pred_check_branch
    %39 = sbr.rel (0) target = $region45
  $region44: #{_forward_impl.1} parent=0 // pred_region
    _
  $region45: #{_forward_impl.1} parent=0 // pred_fallthru
    _
  %v41 = vld [vmem:[%s0] sm:$0x3f]
  %v42 = vld [vmem:[%s1] sm:$0xff]
  %v43 = vld [vmem:[%s1 + $0x8] sm:$0xff]
  %v44 = vld [vmem:[%s1 + $0x10] sm:$0xff]
  %v45 = vld [vmem:[%s1 + $0x18] sm:$0xff]
  %47 = vset.pattern.permute.xlu0 0
  %48 = vperm.xlu0 %47, %v42
  %v49 = vpop.permute.xlu0 %48
  %52 = vset.pattern.permute.xlu0 0
  %53 = vperm.xlu0 %52, %v43
  %v54 = vpop.permute.xlu0 %53
  %57 = vset.pattern.permute.xlu0 0
  %58 = vperm.xlu0 %57, %v44
  %v59 = vpop.permute.xlu0 %58
  %62 = vset.pattern.permute.xlu0 0
  %63 = vperm.xlu0 %62, %v45
  %v64 = vpop.permute.xlu0 %63
  %v67 = vlaneseq
  %v68 = vshrl.u32 %v67, 7
  %v69 = vsub.s32 0, %v68
  %v70 = vrot.slane %v41, %v69
  %v71 = vlaneseq
  %v72 = vshrl.u32 %v71, 7
  %v73 = vsub.s32 1, %v72
  %v74 = vrot.slane %v41, %v73
  %v75 = vlaneseq
  %v76 = vshrl.u32 %v75, 7
  %v77 = vsub.s32 2, %v76
  %v78 = vrot.slane %v41, %v77
  %v79 = vlaneseq
  %v80 = vshrl.u32 %v79, 7
  %v81 = vsub.s32 3, %v80
  %v82 = vrot.slane %v41, %v81
  %v83 = vlaneseq
  %v84 = vshrl.u32 %v83, 7
  %v85 = vsub.s32 4, %v84
  %v86 = vrot.slane %v41, %v85
  %v92 = vmul.f32 %v49, %v70
  %v93 = vmul.f32 %v49, %v74
  %v94 = vmul.f32 %v49, %v78
  %v95 = vmul.f32 %v49, %v82
  %v96 = vmul.f32 %v49, %v86
  %v97 = vmul.f32 %v54, %v70
  %v98 = vmul.f32 %v54, %v74
  %v99 = vmul.f32 %v54, %v78
  %v100 = vmul.f32 %v54, %v82
  %v101 = vmul.f32 %v54, %v86
  %v102 = vmul.f32 %v59, %v70
  %v103 = vmul.f32 %v59, %v74
  %v104 = vmul.f32 %v59, %v78
  %v105 = vmul.f32 %v59, %v82
  %v106 = vmul.f32 %v59, %v86
  %v107 = vmul.f32 %v64, %v70
  %v108 = vmul.f32 %v64, %v74
  %v109 = vmul.f32 %v64, %v78
  %v110 = vmul.f32 %v64, %v82
  %v111 = vmul.f32 %v64, %v86
  %v112 = vadd.f32 %v92, 0.0
  %v113 = vadd.f32 %v93, 0.0
  %v114 = vadd.f32 %v94, 0.0
  %v115 = vadd.f32 %v95, 0.0
  %v116 = vadd.f32 %v96, 0.0
  %v117 = vadd.f32 %v97, 0.0
  %v118 = vadd.f32 %v98, 0.0
  %v119 = vadd.f32 %v99, 0.0
  %v120 = vadd.f32 %v100, 0.0
  %v121 = vadd.f32 %v101, 0.0
  %v122 = vadd.f32 %v102, 0.0
  %v123 = vadd.f32 %v103, 0.0
  %v124 = vadd.f32 %v104, 0.0
  %v125 = vadd.f32 %v105, 0.0
  %v126 = vadd.f32 %v106, 0.0
  %v127 = vadd.f32 %v107, 0.0
  %v128 = vadd.f32 %v108, 0.0
  %v129 = vadd.f32 %v109, 0.0
  %v130 = vadd.f32 %v110, 0.0
  %v131 = vadd.f32 %v111, 0.0
  %132 = vset.pattern.permute.xlu0 1
  %133 = vperm.xlu0 %132, %v42
  %v134 = vpop.permute.xlu0 %133
  %136 = vset.pattern.permute.xlu0 1
  %137 = vperm.xlu0 %136, %v43
  %v138 = vpop.permute.xlu0 %137
  %140 = vset.pattern.permute.xlu0 1
  %141 = vperm.xlu0 %140, %v44
  %v142 = vpop.permute.xlu0 %141
  %144 = vset.pattern.permute.xlu0 1
  %145 = vperm.xlu0 %144, %v45
  %v146 = vpop.permute.xlu0 %145
  %v148 = vmul.f32 %v134, %v70
  %v149 = vmul.f32 %v134, %v74
  %v150 = vmul.f32 %v134, %v78
  %v151 = vmul.f32 %v134, %v82
  %v152 = vmul.f32 %v134, %v86
  %v153 = vmul.f32 %v138, %v70
  %v154 = vmul.f32 %v138, %v74
  %v155 = vmul.f32 %v138, %v78
  %v156 = vmul.f32 %v138, %v82
  %v157 = vmul.f32 %v138, %v86
  %v158 = vmul.f32 %v142, %v70
  %v159 = vmul.f32 %v142, %v74
  %v160 = vmul.f32 %v142, %v78
  %v161 = vmul.f32 %v142, %v82
  %v162 = vmul.f32 %v142, %v86
  %v163 = vmul.f32 %v146, %v70
  %v164 = vmul.f32 %v146, %v74
  %v165 = vmul.f32 %v146, %v78
  %v166 = vmul.f32 %v146, %v82
  %v167 = vmul.f32 %v146, %v86
  %188 = vrot.lane.b32.xlu0 %v148, 127
  %v189 = vpop.permute.xlu0 %188
  %190 = vrot.lane.b32.xlu0 %v149, 127
  %v191 = vpop.permute.xlu0 %190
  %192 = vrot.lane.b32.xlu0 %v150, 127
  %v193 = vpop.permute.xlu0 %192
  %194 = vrot.lane.b32.xlu0 %v151, 127
  %v195 = vpop.permute.xlu0 %194
  %196 = vrot.lane.b32.xlu0 %v152, 127
  %v197 = vpop.permute.xlu0 %196
  %198 = vrot.lane.b32.xlu0 %v153, 127
  %v199 = vpop.permute.xlu0 %198
  %200 = vrot.lane.b32.xlu0 %v154, 127
  %v201 = vpop.permute.xlu0 %200
  %202 = vrot.lane.b32.xlu0 %v155, 127
  %v203 = vpop.permute.xlu0 %202
  %204 = vrot.lane.b32.xlu0 %v156, 127
  %v205 = vpop.permute.xlu0 %204
  %206 = vrot.lane.b32.xlu0 %v157, 127
  %v207 = vpop.permute.xlu0 %206
  %208 = vrot.lane.b32.xlu0 %v158, 127
  %v209 = vpop.permute.xlu0 %208
  %210 = vrot.lane.b32.xlu0 %v159, 127
  %v211 = vpop.permute.xlu0 %210
  %212 = vrot.lane.b32.xlu0 %v160, 127
  %v213 = vpop.permute.xlu0 %212
  %214 = vrot.lane.b32.xlu0 %v161, 127
  %v215 = vpop.permute.xlu0 %214
  %216 = vrot.lane.b32.xlu0 %v162, 127
  %v217 = vpop.permute.xlu0 %216
  %218 = vrot.lane.b32.xlu0 %v163, 127
  %v219 = vpop.permute.xlu0 %218
  %220 = vrot.lane.b32.xlu0 %v164, 127
  %v221 = vpop.permute.xlu0 %220
  %222 = vrot.lane.b32.xlu0 %v165, 127
  %v223 = vpop.permute.xlu0 %222
  %224 = vrot.lane.b32.xlu0 %v166, 127
  %v225 = vpop.permute.xlu0 %224
  %226 = vrot.lane.b32.xlu0 %v167, 127
  %v227 = vpop.permute.xlu0 %226
  %vm228 = vcmask 1039360
  %v229 = vsel %vm228, %v189, %v191
  %v230 = vsel %vm228, %v191, %v193
  %v231 = vsel %vm228, %v193, %v195
  %v232 = vsel %vm228, %v195, %v197
  %v233 = vsel %vm228, %v199, %v201
  %v234 = vsel %vm228, %v201, %v203
  %v235 = vsel %vm228, %v203, %v205
  %v236 = vsel %vm228, %v205, %v207
  %v237 = vsel %vm228, %v209, %v211
  %v238 = vsel %vm228, %v211, %v213
  %v239 = vsel %vm228, %v213, %v215
  %v240 = vsel %vm228, %v215, %v217
  %v241 = vsel %vm228, %v219, %v221
  %v242 = vsel %vm228, %v221, %v223
  %v243 = vsel %vm228, %v223, %v225
  %v244 = vsel %vm228, %v225, %v227
  %v265 = vadd.f32 %v112, %v229
  %v266 = vadd.f32 %v113, %v230
  %v267 = vadd.f32 %v114, %v231
  %v268 = vadd.f32 %v115, %v232
  %v269 = vadd.f32 %v116, %v197
  %v270 = vadd.f32 %v117, %v233
  %v271 = vadd.f32 %v118, %v234
  %v272 = vadd.f32 %v119, %v235
  %v273 = vadd.f32 %v120, %v236
  %v274 = vadd.f32 %v121, %v207
  %v275 = vadd.f32 %v122, %v237
  %v276 = vadd.f32 %v123, %v238
  %v277 = vadd.f32 %v124, %v239
  %v278 = vadd.f32 %v125, %v240
  %v279 = vadd.f32 %v126, %v217
  %v280 = vadd.f32 %v127, %v241
  %v281 = vadd.f32 %v128, %v242
  %v282 = vadd.f32 %v129, %v243
  %v283 = vadd.f32 %v130, %v244
  %v284 = vadd.f32 %v131, %v227
  %285 = vset.pattern.permute.xlu0 2
  %286 = vperm.xlu0 %285, %v42
  %v287 = vpop.permute.xlu0 %286
  %289 = vset.pattern.permute.xlu0 2
  %290 = vperm.xlu0 %289, %v43
  %v291 = vpop.permute.xlu0 %290
  %293 = vset.pattern.permute.xlu0 2
  %294 = vperm.xlu0 %293, %v44
  %v295 = vpop.permute.xlu0 %294
  %297 = vset.pattern.permute.xlu0 2
  %298 = vperm.xlu0 %297, %v45
  %v299 = vpop.permute.xlu0 %298
  %v301 = vmul.f32 %v287, %v70
  %v302 = vmul.f32 %v287, %v74
  %v303 = vmul.f32 %v287, %v78
  %v304 = vmul.f32 %v287, %v82
  %v305 = vmul.f32 %v287, %v86
  %v306 = vmul.f32 %v291, %v70
  %v307 = vmul.f32 %v291, %v74
  %v308 = vmul.f32 %v291, %v78
  %v309 = vmul.f32 %v291, %v82
  %v310 = vmul.f32 %v291, %v86
  %v311 = vmul.f32 %v295, %v70
  %v312 = vmul.f32 %v295, %v74
  %v313 = vmul.f32 %v295, %v78
  %v314 = vmul.f32 %v295, %v82
  %v315 = vmul.f32 %v295, %v86
  %v316 = vmul.f32 %v299, %v70
  %v317 = vmul.f32 %v299, %v74
  %v318 = vmul.f32 %v299, %v78
  %v319 = vmul.f32 %v299, %v82
  %v320 = vmul.f32 %v299, %v86
  %341 = vrot.lane.b32.xlu0 %v301, 126
  %v342 = vpop.permute.xlu0 %341
  %343 = vrot.lane.b32.xlu0 %v302, 126
  %v344 = vpop.permute.xlu0 %343
  %345 = vrot.lane.b32.xlu0 %v303, 126
  %v346 = vpop.permute.xlu0 %345
  %347 = vrot.lane.b32.xlu0 %v304, 126
  %v348 = vpop.permute.xlu0 %347
  %349 = vrot.lane.b32.xlu0 %v305, 126
  %v350 = vpop.permute.xlu0 %349
  %351 = vrot.lane.b32.xlu0 %v306, 126
  %v352 = vpop.permute.xlu0 %351
  %353 = vrot.lane.b32.xlu0 %v307, 126
  %v354 = vpop.permute.xlu0 %353
  %355 = vrot.lane.b32.xlu0 %v308, 126
  %v356 = vpop.permute.xlu0 %355
  %357 = vrot.lane.b32.xlu0 %v309, 126
  %v358 = vpop.permute.xlu0 %357
  %359 = vrot.lane.b32.xlu0 %v310, 126
  %v360 = vpop.permute.xlu0 %359
  %361 = vrot.lane.b32.xlu0 %v311, 126
  %v362 = vpop.permute.xlu0 %361
  %363 = vrot.lane.b32.xlu0 %v312, 126
  %v364 = vpop.permute.xlu0 %363
  %365 = vrot.lane.b32.xlu0 %v313, 126
  %v366 = vpop.permute.xlu0 %365
  %367 = vrot.lane.b32.xlu0 %v314, 126
  %v368 = vpop.permute.xlu0 %367
  %369 = vrot.lane.b32.xlu0 %v315, 126
  %v370 = vpop.permute.xlu0 %369
  %371 = vrot.lane.b32.xlu0 %v316, 126
  %v372 = vpop.permute.xlu0 %371
  %373 = vrot.lane.b32.xlu0 %v317, 126
  %v374 = vpop.permute.xlu0 %373
  %375 = vrot.lane.b32.xlu0 %v318, 126
  %v376 = vpop.permute.xlu0 %375
  %377 = vrot.lane.b32.xlu0 %v319, 126
  %v378 = vpop.permute.xlu0 %377
  %379 = vrot.lane.b32.xlu0 %v320, 126
  %v380 = vpop.permute.xlu0 %379
  %vm381 = vcmask 1031168
  %v382 = vsel %vm381, %v342, %v344
  %v383 = vsel %vm381, %v344, %v346
  %v384 = vsel %vm381, %v346, %v348
  %v385 = vsel %vm381, %v348, %v350
  %v386 = vsel %vm381, %v352, %v354
  %v387 = vsel %vm381, %v354, %v356
  %v388 = vsel %vm381, %v356, %v358
  %v389 = vsel %vm381, %v358, %v360
  %v390 = vsel %vm381, %v362, %v364
  %v391 = vsel %vm381, %v364, %v366
  %v392 = vsel %vm381, %v366, %v368
  %v393 = vsel %vm381, %v368, %v370
  %v394 = vsel %vm381, %v372, %v374
  %v395 = vsel %vm381, %v374, %v376
  %v396 = vsel %vm381, %v376, %v378
  %v397 = vsel %vm381, %v378, %v380
  %v418 = vadd.f32 %v265, %v382
  %v419 = vadd.f32 %v266, %v383
  %v420 = vadd.f32 %v267, %v384
  %v421 = vadd.f32 %v268, %v385
  %v422 = vadd.f32 %v269, %v350
  %v423 = vadd.f32 %v270, %v386
  %v424 = vadd.f32 %v271, %v387
  %v425 = vadd.f32 %v272, %v388
  %v426 = vadd.f32 %v273, %v389
  %v427 = vadd.f32 %v274, %v360
  %v428 = vadd.f32 %v275, %v390
  %v429 = vadd.f32 %v276, %v391
  %v430 = vadd.f32 %v277, %v392
  %v431 = vadd.f32 %v278, %v393
  %v432 = vadd.f32 %v279, %v370
  %v433 = vadd.f32 %v280, %v394
  %v434 = vadd.f32 %v281, %v395
  %v435 = vadd.f32 %v282, %v396
  %v436 = vadd.f32 %v283, %v397
  %v437 = vadd.f32 %v284, %v380
  %438 = vset.pattern.permute.xlu0 3
  %439 = vperm.xlu0 %438, %v42
  %v440 = vpop.permute.xlu0 %439
  %442 = vset.pattern.permute.xlu0 3
  %443 = vperm.xlu0 %442, %v43
  %v444 = vpop.permute.xlu0 %443
  %446 = vset.pattern.permute.xlu0 3
  %447 = vperm.xlu0 %446, %v44
  %v448 = vpop.permute.xlu0 %447
  %450 = vset.pattern.permute.xlu0 3
  %451 = vperm.xlu0 %450, %v45
  %v452 = vpop.permute.xlu0 %451
  %v454 = vmul.f32 %v440, %v70
  %v455 = vmul.f32 %v440, %v74
  %v456 = vmul.f32 %v440, %v78
  %v457 = vmul.f32 %v440, %v82
  %v458 = vmul.f32 %v440, %v86
  %v459 = vmul.f32 %v444, %v70
  %v460 = vmul.f32 %v444, %v74
  %v461 = vmul.f32 %v444, %v78
  %v462 = vmul.f32 %v444, %v82
  %v463 = vmul.f32 %v444, %v86
  %v464 = vmul.f32 %v448, %v70
  %v465 = vmul.f32 %v448, %v74
  %v466 = vmul.f32 %v448, %v78
  %v467 = vmul.f32 %v448, %v82
  %v468 = vmul.f32 %v448, %v86
  %v469 = vmul.f32 %v452, %v70
  %v470 = vmul.f32 %v452, %v74
  %v471 = vmul.f32 %v452, %v78
  %v472 = vmul.f32 %v452, %v82
  %v473 = vmul.f32 %v452, %v86
  %494 = vrot.lane.b32.xlu0 %v454, 110
  %v495 = vpop.permute.xlu0 %494
  %496 = vrot.lane.b32.xlu0 %v455, 110
  %v497 = vpop.permute.xlu0 %496
  %498 = vrot.lane.b32.xlu0 %v456, 110
  %v499 = vpop.permute.xlu0 %498
  %500 = vrot.lane.b32.xlu0 %v457, 110
  %v501 = vpop.permute.xlu0 %500
  %502 = vrot.lane.b32.xlu0 %v458, 110
  %v503 = vpop.permute.xlu0 %502
  %504 = vrot.lane.b32.xlu0 %v459, 110
  %v505 = vpop.permute.xlu0 %504
  %506 = vrot.lane.b32.xlu0 %v460, 110
  %v507 = vpop.permute.xlu0 %506
  %508 = vrot.lane.b32.xlu0 %v461, 110
  %v509 = vpop.permute.xlu0 %508
  %510 = vrot.lane.b32.xlu0 %v462, 110
  %v511 = vpop.permute.xlu0 %510
  %512 = vrot.lane.b32.xlu0 %v463, 110
  %v513 = vpop.permute.xlu0 %512
  %514 = vrot.lane.b32.xlu0 %v464, 110
  %v515 = vpop.permute.xlu0 %514
  %516 = vrot.lane.b32.xlu0 %v465, 110
  %v517 = vpop.permute.xlu0 %516
  %518 = vrot.lane.b32.xlu0 %v466, 110
  %v519 = vpop.permute.xlu0 %518
  %520 = vrot.lane.b32.xlu0 %v467, 110
  %v521 = vpop.permute.xlu0 %520
  %522 = vrot.lane.b32.xlu0 %v468, 110
  %v523 = vpop.permute.xlu0 %522
  %524 = vrot.lane.b32.xlu0 %v469, 110
  %v525 = vpop.permute.xlu0 %524
  %526 = vrot.lane.b32.xlu0 %v470, 110
  %v527 = vpop.permute.xlu0 %526
  %528 = vrot.lane.b32.xlu0 %v471, 110
  %v529 = vpop.permute.xlu0 %528
  %530 = vrot.lane.b32.xlu0 %v472, 110
  %v531 = vpop.permute.xlu0 %530
  %532 = vrot.lane.b32.xlu0 %v473, 110
  %v533 = vpop.permute.xlu0 %532
  %vm534 = vcmask 900096
  %v535 = vsel %vm534, %v495, %v497
  %v536 = vsel %vm534, %v497, %v499
  %v537 = vsel %vm534, %v499, %v501
  %v538 = vsel %vm534, %v501, %v503
  %v539 = vsel %vm534, %v505, %v507
  %v540 = vsel %vm534, %v507, %v509
  %v541 = vsel %vm534, %v509, %v511
  %v542 = vsel %vm534, %v511, %v513
  %v543 = vsel %vm534, %v515, %v517
  %v544 = vsel %vm534, %v517, %v519
  %v545 = vsel %vm534, %v519, %v521
  %v546 = vsel %vm534, %v521, %v523
  %v547 = vsel %vm534, %v525, %v527
  %v548 = vsel %vm534, %v527, %v529
  %v549 = vsel %vm534, %v529, %v531
  %v550 = vsel %vm534, %v531, %v533
  %v571 = vadd.f32 %v418, %v535
  %v572 = vadd.f32 %v419, %v536
  %v573 = vadd.f32 %v420, %v537
  %v574 = vadd.f32 %v421, %v538
  %v575 = vadd.f32 %v422, %v503
  %v576 = vadd.f32 %v423, %v539
  %v577 = vadd.f32 %v424, %v540
  %v578 = vadd.f32 %v425, %v541
  %v579 = vadd.f32 %v426, %v542
  %v580 = vadd.f32 %v427, %v513
  %v581 = vadd.f32 %v428, %v543
  %v582 = vadd.f32 %v429, %v544
  %v583 = vadd.f32 %v430, %v545
  %v584 = vadd.f32 %v431, %v546
  %v585 = vadd.f32 %v432, %v523
  %v586 = vadd.f32 %v433, %v547
  %v587 = vadd.f32 %v434, %v548
  %v588 = vadd.f32 %v435, %v549
  %v589 = vadd.f32 %v436, %v550
  %v590 = vadd.f32 %v437, %v533
  %591 = vset.pattern.permute.xlu0 4
  %592 = vperm.xlu0 %591, %v42
  %v593 = vpop.permute.xlu0 %592
  %595 = vset.pattern.permute.xlu0 4
  %596 = vperm.xlu0 %595, %v43
  %v597 = vpop.permute.xlu0 %596
  %599 = vset.pattern.permute.xlu0 4
  %600 = vperm.xlu0 %599, %v44
  %v601 = vpop.permute.xlu0 %600
  %603 = vset.pattern.permute.xlu0 4
  %604 = vperm.xlu0 %603, %v45
  %v605 = vpop.permute.xlu0 %604
  %v607 = vmul.f32 %v593, %v70
  %v608 = vmul.f32 %v593, %v74
  %v609 = vmul.f32 %v593, %v78
  %v610 = vmul.f32 %v593, %v82
  %v611 = vmul.f32 %v593, %v86
  %v612 = vmul.f32 %v597, %v70
  %v613 = vmul.f32 %v597, %v74
  %v614 = vmul.f32 %v597, %v78
  %v615 = vmul.f32 %v597, %v82
  %v616 = vmul.f32 %v597, %v86
  %v617 = vmul.f32 %v601, %v70
  %v618 = vmul.f32 %v601, %v74
  %v619 = vmul.f32 %v601, %v78
  %v620 = vmul.f32 %v601, %v82
  %v621 = vmul.f32 %v601, %v86
  %v622 = vmul.f32 %v605, %v70
  %v623 = vmul.f32 %v605, %v74
  %v624 = vmul.f32 %v605, %v78
  %v625 = vmul.f32 %v605, %v82
  %v626 = vmul.f32 %v605, %v86
  %647 = vrot.lane.b32.xlu0 %v607, 109
  %v648 = vpop.permute.xlu0 %647
  %649 = vrot.lane.b32.xlu0 %v608, 109
  %v650 = vpop.permute.xlu0 %649
  %651 = vrot.lane.b32.xlu0 %v609, 109
  %v652 = vpop.permute.xlu0 %651
  %653 = vrot.lane.b32.xlu0 %v610, 109
  %v654 = vpop.permute.xlu0 %653
  %655 = vrot.lane.b32.xlu0 %v611, 109
  %v656 = vpop.permute.xlu0 %655
  %657 = vrot.lane.b32.xlu0 %v612, 109
  %v658 = vpop.permute.xlu0 %657
  %659 = vrot.lane.b32.xlu0 %v613, 109
  %v660 = vpop.permute.xlu0 %659
  %661 = vrot.lane.b32.xlu0 %v614, 109
  %v662 = vpop.permute.xlu0 %661
  %663 = vrot.lane.b32.xlu0 %v615, 109
  %v664 = vpop.permute.xlu0 %663
  %665 = vrot.lane.b32.xlu0 %v616, 109
  %v666 = vpop.permute.xlu0 %665
  %667 = vrot.lane.b32.xlu0 %v617, 109
  %v668 = vpop.permute.xlu0 %667
  %669 = vrot.lane.b32.xlu0 %v618, 109
  %v670 = vpop.permute.xlu0 %669
  %671 = vrot.lane.b32.xlu0 %v619, 109
  %v672 = vpop.permute.xlu0 %671
  %673 = vrot.lane.b32.xlu0 %v620, 109
  %v674 = vpop.permute.xlu0 %673
  %675 = vrot.lane.b32.xlu0 %v621, 109
  %v676 = vpop.permute.xlu0 %675
  %677 = vrot.lane.b32.xlu0 %v622, 109
  %v678 = vpop.permute.xlu0 %677
  %679 = vrot.lane.b32.xlu0 %v623, 109
  %v680 = vpop.permute.xlu0 %679
  %681 = vrot.lane.b32.xlu0 %v624, 109
  %v682 = vpop.permute.xlu0 %681
  %683 = vrot.lane.b32.xlu0 %v625, 109
  %v684 = vpop.permute.xlu0 %683
  %685 = vrot.lane.b32.xlu0 %v626, 109
  %v686 = vpop.permute.xlu0 %685
  %vm687 = vcmask 891904
  %v688 = vsel %vm687, %v648, %v650
  %v689 = vsel %vm687, %v650, %v652
  %v690 = vsel %vm687, %v652, %v654
  %v691 = vsel %vm687, %v654, %v656
  %v692 = vsel %vm687, %v658, %v660
  %v693 = vsel %vm687, %v660, %v662
  %v694 = vsel %vm687, %v662, %v664
  %v695 = vsel %vm687, %v664, %v666
  %v696 = vsel %vm687, %v668, %v670
  %v697 = vsel %vm687, %v670, %v672
  %v698 = vsel %vm687, %v672, %v674
  %v699 = vsel %vm687, %v674, %v676
  %v700 = vsel %vm687, %v678, %v680
  %v701 = vsel %vm687, %v680, %v682
  %v702 = vsel %vm687, %v682, %v684
  %v703 = vsel %vm687, %v684, %v686
  %v724 = vadd.f32 %v571, %v688
  %v725 = vadd.f32 %v572, %v689
  %v726 = vadd.f32 %v573, %v690
  %v727 = vadd.f32 %v574, %v691
  %v728 = vadd.f32 %v575, %v656
  %v729 = vadd.f32 %v576, %v692
  %v730 = vadd.f32 %v577, %v693
  %v731 = vadd.f32 %v578, %v694
  %v732 = vadd.f32 %v579, %v695
  %v733 = vadd.f32 %v580, %v666
  %v734 = vadd.f32 %v581, %v696
  %v735 = vadd.f32 %v582, %v697
  %v736 = vadd.f32 %v583, %v698
  %v737 = vadd.f32 %v584, %v699
  %v738 = vadd.f32 %v585, %v676
  %v739 = vadd.f32 %v586, %v700
  %v740 = vadd.f32 %v587, %v701
  %v741 = vadd.f32 %v588, %v702
  %v742 = vadd.f32 %v589, %v703
  %v743 = vadd.f32 %v590, %v686
  %744 = vset.pattern.permute.xlu0 5
  %745 = vperm.xlu0 %744, %v42
  %v746 = vpop.permute.xlu0 %745
  %748 = vset.pattern.permute.xlu0 5
  %749 = vperm.xlu0 %748, %v43
  %v750 = vpop.permute.xlu0 %749
  %752 = vset.pattern.permute.xlu0 5
  %753 = vperm.xlu0 %752, %v44
  %v754 = vpop.permute.xlu0 %753
  %756 = vset.pattern.permute.xlu0 5
  %757 = vperm.xlu0 %756, %v45
  %v758 = vpop.permute.xlu0 %757
  %v760 = vmul.f32 %v746, %v70
  %v761 = vmul.f32 %v746, %v74
  %v762 = vmul.f32 %v746, %v78
  %v763 = vmul.f32 %v746, %v82
  %v764 = vmul.f32 %v746, %v86
  %v765 = vmul.f32 %v750, %v70
  %v766 = vmul.f32 %v750, %v74
  %v767 = vmul.f32 %v750, %v78
  %v768 = vmul.f32 %v750, %v82
  %v769 = vmul.f32 %v750, %v86
  %v770 = vmul.f32 %v754, %v70
  %v771 = vmul.f32 %v754, %v74
  %v772 = vmul.f32 %v754, %v78
  %v773 = vmul.f32 %v754, %v82
  %v774 = vmul.f32 %v754, %v86
  %v775 = vmul.f32 %v758, %v70
  %v776 = vmul.f32 %v758, %v74
  %v777 = vmul.f32 %v758, %v78
  %v778 = vmul.f32 %v758, %v82
  %v779 = vmul.f32 %v758, %v86
  %800 = vrot.lane.b32.xlu0 %v760, 108
  %v801 = vpop.permute.xlu0 %800
  %802 = vrot.lane.b32.xlu0 %v761, 108
  %v803 = vpop.permute.xlu0 %802
  %804 = vrot.lane.b32.xlu0 %v762, 108
  %v805 = vpop.permute.xlu0 %804
  %806 = vrot.lane.b32.xlu0 %v763, 108
  %v807 = vpop.permute.xlu0 %806
  %808 = vrot.lane.b32.xlu0 %v764, 108
  %v809 = vpop.permute.xlu0 %808
  %810 = vrot.lane.b32.xlu0 %v765, 108
  %v811 = vpop.permute.xlu0 %810
  %812 = vrot.lane.b32.xlu0 %v766, 108
  %v813 = vpop.permute.xlu0 %812
  %814 = vrot.lane.b32.xlu0 %v767, 108
  %v815 = vpop.permute.xlu0 %814
  %816 = vrot.lane.b32.xlu0 %v768, 108
  %v817 = vpop.permute.xlu0 %816
  %818 = vrot.lane.b32.xlu0 %v769, 108
  %v819 = vpop.permute.xlu0 %818
  %820 = vrot.lane.b32.xlu0 %v770, 108
  %v821 = vpop.permute.xlu0 %820
  %822 = vrot.lane.b32.xlu0 %v771, 108
  %v823 = vpop.permute.xlu0 %822
  %824 = vrot.lane.b32.xlu0 %v772, 108
  %v825 = vpop.permute.xlu0 %824
  %826 = vrot.lane.b32.xlu0 %v773, 108
  %v827 = vpop.permute.xlu0 %826
  %828 = vrot.lane.b32.xlu0 %v774, 108
  %v829 = vpop.permute.xlu0 %828
  %830 = vrot.lane.b32.xlu0 %v775, 108
  %v831 = vpop.permute.xlu0 %830
  %832 = vrot.lane.b32.xlu0 %v776, 108
  %v833 = vpop.permute.xlu0 %832
  %834 = vrot.lane.b32.xlu0 %v777, 108
  %v835 = vpop.permute.xlu0 %834
  %836 = vrot.lane.b32.xlu0 %v778, 108
  %v837 = vpop.permute.xlu0 %836
  %838 = vrot.lane.b32.xlu0 %v779, 108
  %v839 = vpop.permute.xlu0 %838
  %vm840 = vcmask 883712
  %v841 = vsel %vm840, %v801, %v803
  %v842 = vsel %vm840, %v803, %v805
  %v843 = vsel %vm840, %v805, %v807
  %v844 = vsel %vm840, %v807, %v809
  %v845 = vsel %vm840, %v811, %v813
  %v846 = vsel %vm840, %v813, %v815
  %v847 = vsel %vm840, %v815, %v817
  %v848 = vsel %vm840, %v817, %v819
  %v849 = vsel %vm840, %v821, %v823
  %v850 = vsel %vm840, %v823, %v825
  %v851 = vsel %vm840, %v825, %v827
  %v852 = vsel %vm840, %v827, %v829
  %v853 = vsel %vm840, %v831, %v833
  %v854 = vsel %vm840, %v833, %v835
  %v855 = vsel %vm840, %v835, %v837
  %v856 = vsel %vm840, %v837, %v839
  %v877 = vadd.f32 %v724, %v841
  %v878 = vadd.f32 %v725, %v842
  %v879 = vadd.f32 %v726, %v843
  %v880 = vadd.f32 %v727, %v844
  %v881 = vadd.f32 %v728, %v809
  %v882 = vadd.f32 %v729, %v845
  %v883 = vadd.f32 %v730, %v846
  %v884 = vadd.f32 %v731, %v847
  %v885 = vadd.f32 %v732, %v848
  %v886 = vadd.f32 %v733, %v819
  %v887 = vadd.f32 %v734, %v849
  %v888 = vadd.f32 %v735, %v850
  %v889 = vadd.f32 %v736, %v851
  %v890 = vadd.f32 %v737, %v852
  %v891 = vadd.f32 %v738, %v829
  %v892 = vadd.f32 %v739, %v853
  %v893 = vadd.f32 %v740, %v854
  %v894 = vadd.f32 %v741, %v855
  %v895 = vadd.f32 %v742, %v856
  %v896 = vadd.f32 %v743, %v839
  %897 = vset.pattern.permute.xlu0 6
  %898 = vperm.xlu0 %897, %v42
  %v899 = vpop.permute.xlu0 %898
  %901 = vset.pattern.permute.xlu0 6
  %902 = vperm.xlu0 %901, %v43
  %v903 = vpop.permute.xlu0 %902
  %905 = vset.pattern.permute.xlu0 6
  %906 = vperm.xlu0 %905, %v44
  %v907 = vpop.permute.xlu0 %906
  %909 = vset.pattern.permute.xlu0 6
  %910 = vperm.xlu0 %909, %v45
  %v911 = vpop.permute.xlu0 %910
  %v913 = vlaneseq
  %v914 = vshrl.u32 %v913, 7
  %v915 = vsub.s32 5, %v914
  %v916 = vrot.slane %v41, %v915
  %v918 = vmul.f32 %v899, %v70
  %v919 = vmul.f32 %v899, %v74
  %v920 = vmul.f32 %v899, %v78
  %v921 = vmul.f32 %v899, %v82
  %v922 = vmul.f32 %v899, %v86
  %v923 = vmul.f32 %v899, %v916
  %v924 = vmul.f32 %v903, %v70
  %v925 = vmul.f32 %v903, %v74
  %v926 = vmul.f32 %v903, %v78
  %v927 = vmul.f32 %v903, %v82
  %v928 = vmul.f32 %v903, %v86
  %v929 = vmul.f32 %v903, %v916
  %v930 = vmul.f32 %v907, %v70
  %v931 = vmul.f32 %v907, %v74
  %v932 = vmul.f32 %v907, %v78
  %v933 = vmul.f32 %v907, %v82
  %v934 = vmul.f32 %v907, %v86
  %v935 = vmul.f32 %v907, %v916
  %v936 = vmul.f32 %v911, %v70
  %v937 = vmul.f32 %v911, %v74
  %v938 = vmul.f32 %v911, %v78
  %v939 = vmul.f32 %v911, %v82
  %v940 = vmul.f32 %v911, %v86
  %v941 = vmul.f32 %v911, %v916
  %966 = vrot.lane.b32.xlu0 %v918, 92
  %v967 = vpop.permute.xlu0 %966
  %968 = vrot.lane.b32.xlu0 %v919, 92
  %v969 = vpop.permute.xlu0 %968
  %970 = vrot.lane.b32.xlu0 %v920, 92
  %v971 = vpop.permute.xlu0 %970
  %972 = vrot.lane.b32.xlu0 %v921, 92
  %v973 = vpop.permute.xlu0 %972
  %974 = vrot.lane.b32.xlu0 %v922, 92
  %v975 = vpop.permute.xlu0 %974
  %976 = vrot.lane.b32.xlu0 %v923, 92
  %v977 = vpop.permute.xlu0 %976
  %978 = vrot.lane.b32.xlu0 %v924, 92
  %v979 = vpop.permute.xlu0 %978
  %980 = vrot.lane.b32.xlu0 %v925, 92
  %v981 = vpop.permute.xlu0 %980
  %982 = vrot.lane.b32.xlu0 %v926, 92
  %v983 = vpop.permute.xlu0 %982
  %984 = vrot.lane.b32.xlu0 %v927, 92
  %v985 = vpop.permute.xlu0 %984
  %986 = vrot.lane.b32.xlu0 %v928, 92
  %v987 = vpop.permute.xlu0 %986
  %988 = vrot.lane.b32.xlu0 %v929, 92
  %v989 = vpop.permute.xlu0 %988
  %990 = vrot.lane.b32.xlu0 %v930, 92
  %v991 = vpop.permute.xlu0 %990
  %992 = vrot.lane.b32.xlu0 %v931, 92
  %v993 = vpop.permute.xlu0 %992
  %994 = vrot.lane.b32.xlu0 %v932, 92
  %v995 = vpop.permute.xlu0 %994
  %996 = vrot.lane.b32.xlu0 %v933, 92
  %v997 = vpop.permute.xlu0 %996
  %998 = vrot.lane.b32.xlu0 %v934, 92
  %v999 = vpop.permute.xlu0 %998
  %1000 = vrot.lane.b32.xlu0 %v935, 92
  %v1001 = vpop.permute.xlu0 %1000
  %1002 = vrot.lane.b32.xlu0 %v936, 92
  %v1003 = vpop.permute.xlu0 %1002
  %1004 = vrot.lane.b32.xlu0 %v937, 92
  %v1005 = vpop.permute.xlu0 %1004
  %1006 = vrot.lane.b32.xlu0 %v938, 92
  %v1007 = vpop.permute.xlu0 %1006
  %1008 = vrot.lane.b32.xlu0 %v939, 92
  %v1009 = vpop.permute.xlu0 %1008
  %1010 = vrot.lane.b32.xlu0 %v940, 92
  %v1011 = vpop.permute.xlu0 %1010
  %1012 = vrot.lane.b32.xlu0 %v941, 92
  %v1013 = vpop.permute.xlu0 %1012
  %vm1014 = vcmask 752640
  %v1015 = vsel %vm1014, %v967, %v969
  %v1016 = vsel %vm1014, %v969, %v971
  %v1017 = vsel %vm1014, %v971, %v973
  %v1018 = vsel %vm1014, %v973, %v975
  %v1019 = vsel %vm1014, %v975, %v977
  %v1020 = vsel %vm1014, %v979, %v981
  %v1021 = vsel %vm1014, %v981, %v983
  %v1022 = vsel %vm1014, %v983, %v985
  %v1023 = vsel %vm1014, %v985, %v987
  %v1024 = vsel %vm1014, %v987, %v989
  %v1025 = vsel %vm1014, %v991, %v993
  %v1026 = vsel %vm1014, %v993, %v995
  %v1027 = vsel %vm1014, %v995, %v997
  %v1028 = vsel %vm1014, %v997, %v999
  %v1029 = vsel %vm1014, %v999, %v1001
  %v1030 = vsel %vm1014, %v1003, %v1005
  %v1031 = vsel %vm1014, %v1005, %v1007
  %v1032 = vsel %vm1014, %v1007, %v1009
  %v1033 = vsel %vm1014, %v1009, %v1011
  %v1034 = vsel %vm1014, %v1011, %v1013
  %v1055 = vadd.f32 %v877, %v1015
  %v1056 = vadd.f32 %v878, %v1016
  %v1057 = vadd.f32 %v879, %v1017
  %v1058 = vadd.f32 %v880, %v1018
  %v1059 = vadd.f32 %v881, %v1019
  %v1060 = vadd.f32 %v882, %v1020
  %v1061 = vadd.f32 %v883, %v1021
  %v1062 = vadd.f32 %v884, %v1022
  %v1063 = vadd.f32 %v885, %v1023
  %v1064 = vadd.f32 %v886, %v1024
  %v1065 = vadd.f32 %v887, %v1025
  %v1066 = vadd.f32 %v888, %v1026
  %v1067 = vadd.f32 %v889, %v1027
  %v1068 = vadd.f32 %v890, %v1028
  %v1069 = vadd.f32 %v891, %v1029
  %v1070 = vadd.f32 %v892, %v1030
  %v1071 = vadd.f32 %v893, %v1031
  %v1072 = vadd.f32 %v894, %v1032
  %v1073 = vadd.f32 %v895, %v1033
  %v1074 = vadd.f32 %v896, %v1034
  %1075 = vset.pattern.permute.xlu0 7
  %1076 = vperm.xlu0 %1075, %v42
  %v1077 = vpop.permute.xlu0 %1076
  %1079 = vset.pattern.permute.xlu0 7
  %1080 = vperm.xlu0 %1079, %v43
  %v1081 = vpop.permute.xlu0 %1080
  %1083 = vset.pattern.permute.xlu0 7
  %1084 = vperm.xlu0 %1083, %v44
  %v1085 = vpop.permute.xlu0 %1084
  %1087 = vset.pattern.permute.xlu0 7
  %1088 = vperm.xlu0 %1087, %v45
  %v1089 = vpop.permute.xlu0 %1088
  %v1091 = vmul.f32 %v1077, %v70
  %v1092 = vmul.f32 %v1077, %v74
  %v1093 = vmul.f32 %v1077, %v78
  %v1094 = vmul.f32 %v1077, %v82
  %v1095 = vmul.f32 %v1077, %v86
  %v1096 = vmul.f32 %v1077, %v916
  %v1097 = vmul.f32 %v1081, %v70
  %v1098 = vmul.f32 %v1081, %v74
  %v1099 = vmul.f32 %v1081, %v78
  %v1100 = vmul.f32 %v1081, %v82
  %v1101 = vmul.f32 %v1081, %v86
  %v1102 = vmul.f32 %v1081, %v916
  %v1103 = vmul.f32 %v1085, %v70
  %v1104 = vmul.f32 %v1085, %v74
  %v1105 = vmul.f32 %v1085, %v78
  %v1106 = vmul.f32 %v1085, %v82
  %v1107 = vmul.f32 %v1085, %v86
  %v1108 = vmul.f32 %v1085, %v916
  %v1109 = vmul.f32 %v1089, %v70
  %v1110 = vmul.f32 %v1089, %v74
  %v1111 = vmul.f32 %v1089, %v78
  %v1112 = vmul.f32 %v1089, %v82
  %v1113 = vmul.f32 %v1089, %v86
  %v1114 = vmul.f32 %v1089, %v916
  %1139 = vrot.lane.b32.xlu0 %v1091, 91
  %v1140 = vpop.permute.xlu0 %1139
  %1141 = vrot.lane.b32.xlu0 %v1092, 91
  %v1142 = vpop.permute.xlu0 %1141
  %1143 = vrot.lane.b32.xlu0 %v1093, 91
  %v1144 = vpop.permute.xlu0 %1143
  %1145 = vrot.lane.b32.xlu0 %v1094, 91
  %v1146 = vpop.permute.xlu0 %1145
  %1147 = vrot.lane.b32.xlu0 %v1095, 91
  %v1148 = vpop.permute.xlu0 %1147
  %1149 = vrot.lane.b32.xlu0 %v1096, 91
  %v1150 = vpop.permute.xlu0 %1149
  %1151 = vrot.lane.b32.xlu0 %v1097, 91
  %v1152 = vpop.permute.xlu0 %1151
  %1153 = vrot.lane.b32.xlu0 %v1098, 91
  %v1154 = vpop.permute.xlu0 %1153
  %1155 = vrot.lane.b32.xlu0 %v1099, 91
  %v1156 = vpop.permute.xlu0 %1155
  %1157 = vrot.lane.b32.xlu0 %v1100, 91
  %v1158 = vpop.permute.xlu0 %1157
  %1159 = vrot.lane.b32.xlu0 %v1101, 91
  %v1160 = vpop.permute.xlu0 %1159
  %1161 = vrot.lane.b32.xlu0 %v1102, 91
  %v1162 = vpop.permute.xlu0 %1161
  %1163 = vrot.lane.b32.xlu0 %v1103, 91
  %v1164 = vpop.permute.xlu0 %1163
  %1165 = vrot.lane.b32.xlu0 %v1104, 91
  %v1166 = vpop.permute.xlu0 %1165
  %1167 = vrot.lane.b32.xlu0 %v1105, 91
  %v1168 = vpop.permute.xlu0 %1167
  %1169 = vrot.lane.b32.xlu0 %v1106, 91
  %v1170 = vpop.permute.xlu0 %1169
  %1171 = vrot.lane.b32.xlu0 %v1107, 91
  %v1172 = vpop.permute.xlu0 %1171
  %1173 = vrot.lane.b32.xlu0 %v1108, 91
  %v1174 = vpop.permute.xlu0 %1173
  %1175 = vrot.lane.b32.xlu0 %v1109, 91
  %v1176 = vpop.permute.xlu0 %1175
  %1177 = vrot.lane.b32.xlu0 %v1110, 91
  %v1178 = vpop.permute.xlu0 %1177
  %1179 = vrot.lane.b32.xlu0 %v1111, 91
  %v1180 = vpop.permute.xlu0 %1179
  %1181 = vrot.lane.b32.xlu0 %v1112, 91
  %v1182 = vpop.permute.xlu0 %1181
  %1183 = vrot.lane.b32.xlu0 %v1113, 91
  %v1184 = vpop.permute.xlu0 %1183
  %1185 = vrot.lane.b32.xlu0 %v1114, 91
  %v1186 = vpop.permute.xlu0 %1185
  %vm1187 = vcmask 744448
  %v1188 = vsel %vm1187, %v1140, %v1142
  %v1189 = vsel %vm1187, %v1142, %v1144
  %v1190 = vsel %vm1187, %v1144, %v1146
  %v1191 = vsel %vm1187, %v1146, %v1148
  %v1192 = vsel %vm1187, %v1148, %v1150
  %v1193 = vsel %vm1187, %v1152, %v1154
  %v1194 = vsel %vm1187, %v1154, %v1156
  %v1195 = vsel %vm1187, %v1156, %v1158
  %v1196 = vsel %vm1187, %v1158, %v1160
  %v1197 = vsel %vm1187, %v1160, %v1162
  %v1198 = vsel %vm1187, %v1164, %v1166
  %v1199 = vsel %vm1187, %v1166, %v1168
  %v1200 = vsel %vm1187, %v1168, %v1170
  %v1201 = vsel %vm1187, %v1170, %v1172
  %v1202 = vsel %vm1187, %v1172, %v1174
  %v1203 = vsel %vm1187, %v1176, %v1178
  %v1204 = vsel %vm1187, %v1178, %v1180
  %v1205 = vsel %vm1187, %v1180, %v1182
  %v1206 = vsel %vm1187, %v1182, %v1184
  %v1207 = vsel %vm1187, %v1184, %v1186
  %v1228 = vadd.f32 %v1055, %v1188
  %v1229 = vadd.f32 %v1056, %v1189
  %v1230 = vadd.f32 %v1057, %v1190
  %v1231 = vadd.f32 %v1058, %v1191
  %v1232 = vadd.f32 %v1059, %v1192
  %v1233 = vadd.f32 %v1060, %v1193
  %v1234 = vadd.f32 %v1061, %v1194
  %v1235 = vadd.f32 %v1062, %v1195
  %v1236 = vadd.f32 %v1063, %v1196
  %v1237 = vadd.f32 %v1064, %v1197
  %v1238 = vadd.f32 %v1065, %v1198
  %v1239 = vadd.f32 %v1066, %v1199
  %v1240 = vadd.f32 %v1067, %v1200
  %v1241 = vadd.f32 %v1068, %v1201
  %v1242 = vadd.f32 %v1069, %v1202
  %v1243 = vadd.f32 %v1070, %v1203
  %v1244 = vadd.f32 %v1071, %v1204
  %v1245 = vadd.f32 %v1072, %v1205
  %v1246 = vadd.f32 %v1073, %v1206
  %v1247 = vadd.f32 %v1074, %v1207
  %1248 = vset.pattern.permute.xlu0 8
  %1249 = vperm.xlu0 %1248, %v42
  %v1250 = vpop.permute.xlu0 %1249
  %1252 = vset.pattern.permute.xlu0 8
  %1253 = vperm.xlu0 %1252, %v43
  %v1254 = vpop.permute.xlu0 %1253
  %1256 = vset.pattern.permute.xlu0 8
  %1257 = vperm.xlu0 %1256, %v44
  %v1258 = vpop.permute.xlu0 %1257
  %1260 = vset.pattern.permute.xlu0 8
  %1261 = vperm.xlu0 %1260, %v45
  %v1262 = vpop.permute.xlu0 %1261
  %v1264 = vmul.f32 %v1250, %v70
  %v1265 = vmul.f32 %v1250, %v74
  %v1266 = vmul.f32 %v1250, %v78
  %v1267 = vmul.f32 %v1250, %v82
  %v1268 = vmul.f32 %v1250, %v86
  %v1269 = vmul.f32 %v1250, %v916
  %v1270 = vmul.f32 %v1254, %v70
  %v1271 = vmul.f32 %v1254, %v74
  %v1272 = vmul.f32 %v1254, %v78
  %v1273 = vmul.f32 %v1254, %v82
  %v1274 = vmul.f32 %v1254, %v86
  %v1275 = vmul.f32 %v1254, %v916
  %v1276 = vmul.f32 %v1258, %v70
  %v1277 = vmul.f32 %v1258, %v74
  %v1278 = vmul.f32 %v1258, %v78
  %v1279 = vmul.f32 %v1258, %v82
  %v1280 = vmul.f32 %v1258, %v86
  %v1281 = vmul.f32 %v1258, %v916
  %v1282 = vmul.f32 %v1262, %v70
  %v1283 = vmul.f32 %v1262, %v74
  %v1284 = vmul.f32 %v1262, %v78
  %v1285 = vmul.f32 %v1262, %v82
  %v1286 = vmul.f32 %v1262, %v86
  %v1287 = vmul.f32 %v1262, %v916
  %1312 = vrot.lane.b32.xlu0 %v1264, 90
  %v1313 = vpop.permute.xlu0 %1312
  %1314 = vrot.lane.b32.xlu0 %v1265, 90
  %v1315 = vpop.permute.xlu0 %1314
  %1316 = vrot.lane.b32.xlu0 %v1266, 90
  %v1317 = vpop.permute.xlu0 %1316
  %1318 = vrot.lane.b32.xlu0 %v1267, 90
  %v1319 = vpop.permute.xlu0 %1318
  %1320 = vrot.lane.b32.xlu0 %v1268, 90
  %v1321 = vpop.permute.xlu0 %1320
  %1322 = vrot.lane.b32.xlu0 %v1269, 90
  %v1323 = vpop.permute.xlu0 %1322
  %1324 = vrot.lane.b32.xlu0 %v1270, 90
  %v1325 = vpop.permute.xlu0 %1324
  %1326 = vrot.lane.b32.xlu0 %v1271, 90
  %v1327 = vpop.permute.xlu0 %1326
  %1328 = vrot.lane.b32.xlu0 %v1272, 90
  %v1329 = vpop.permute.xlu0 %1328
  %1330 = vrot.lane.b32.xlu0 %v1273, 90
  %v1331 = vpop.permute.xlu0 %1330
  %1332 = vrot.lane.b32.xlu0 %v1274, 90
  %v1333 = vpop.permute.xlu0 %1332
  %1334 = vrot.lane.b32.xlu0 %v1275, 90
  %v1335 = vpop.permute.xlu0 %1334
  %1336 = vrot.lane.b32.xlu0 %v1276, 90
  %v1337 = vpop.permute.xlu0 %1336
  %1338 = vrot.lane.b32.xlu0 %v1277, 90
  %v1339 = vpop.permute.xlu0 %1338
  %1340 = vrot.lane.b32.xlu0 %v1278, 90
  %v1341 = vpop.permute.xlu0 %1340
  %1342 = vrot.lane.b32.xlu0 %v1279, 90
  %v1343 = vpop.permute.xlu0 %1342
  %1344 = vrot.lane.b32.xlu0 %v1280, 90
  %v1345 = vpop.permute.xlu0 %1344
  %1346 = vrot.lane.b32.xlu0 %v1281, 90
  %v1347 = vpop.permute.xlu0 %1346
  %1348 = vrot.lane.b32.xlu0 %v1282, 90
  %v1349 = vpop.permute.xlu0 %1348
  %1350 = vrot.lane.b32.xlu0 %v1283, 90
  %v1351 = vpop.permute.xlu0 %1350
  %1352 = vrot.lane.b32.xlu0 %v1284, 90
  %v1353 = vpop.permute.xlu0 %1352
  %1354 = vrot.lane.b32.xlu0 %v1285, 90
  %v1355 = vpop.permute.xlu0 %1354
  %1356 = vrot.lane.b32.xlu0 %v1286, 90
  %v1357 = vpop.permute.xlu0 %1356
  %1358 = vrot.lane.b32.xlu0 %v1287, 90
  %v1359 = vpop.permute.xlu0 %1358
  %vm1360 = vcmask 736256
  %v1361 = vsel %vm1360, %v1313, %v1315
  %v1362 = vsel %vm1360, %v1315, %v1317
  %v1363 = vsel %vm1360, %v1317, %v1319
  %v1364 = vsel %vm1360, %v1319, %v1321
  %v1365 = vsel %vm1360, %v1321, %v1323
  %v1366 = vsel %vm1360, %v1325, %v1327
  %v1367 = vsel %vm1360, %v1327, %v1329
  %v1368 = vsel %vm1360, %v1329, %v1331
  %v1369 = vsel %vm1360, %v1331, %v1333
  %v1370 = vsel %vm1360, %v1333, %v1335
  %v1371 = vsel %vm1360, %v1337, %v1339
  %v1372 = vsel %vm1360, %v1339, %v1341
  %v1373 = vsel %vm1360, %v1341, %v1343
  %v1374 = vsel %vm1360, %v1343, %v1345
  %v1375 = vsel %vm1360, %v1345, %v1347
  %v1376 = vsel %vm1360, %v1349, %v1351
  %v1377 = vsel %vm1360, %v1351, %v1353
  %v1378 = vsel %vm1360, %v1353, %v1355
  %v1379 = vsel %vm1360, %v1355, %v1357
  %v1380 = vsel %vm1360, %v1357, %v1359
  %v1401 = vadd.f32 %v1228, %v1361
  %v1402 = vadd.f32 %v1229, %v1362
  %v1403 = vadd.f32 %v1230, %v1363
  %v1404 = vadd.f32 %v1231, %v1364
  %v1405 = vadd.f32 %v1232, %v1365
  %v1406 = vadd.f32 %v1233, %v1366
  %v1407 = vadd.f32 %v1234, %v1367
  %v1408 = vadd.f32 %v1235, %v1368
  %v1409 = vadd.f32 %v1236, %v1369
  %v1410 = vadd.f32 %v1237, %v1370
  %v1411 = vadd.f32 %v1238, %v1371
  %v1412 = vadd.f32 %v1239, %v1372
  %v1413 = vadd.f32 %v1240, %v1373
  %v1414 = vadd.f32 %v1241, %v1374
  %v1415 = vadd.f32 %v1242, %v1375
  %v1416 = vadd.f32 %v1243, %v1376
  %v1417 = vadd.f32 %v1244, %v1377
  %v1418 = vadd.f32 %v1245, %v1378
  %v1419 = vadd.f32 %v1246, %v1379
  %v1420 = vadd.f32 %v1247, %v1380
  %v1421 = vld [vmem:[%s2] sm:$0xff]
  %v1422 = vld [vmem:[%s2 + $0x8] sm:$0xff]
  %v1423 = vld [vmem:[%s2 + $0x10] sm:$0xff]
  %v1424 = vld [vmem:[%s2 + $0x18] sm:$0xff]
  %1426 = vset.pattern.permute.xlu0 0
  %1427 = vperm.xlu0 %1426, %v1421
  %v1428 = vpop.permute.xlu0 %1427
  %1431 = vset.pattern.permute.xlu0 0
  %1432 = vperm.xlu0 %1431, %v1422
  %v1433 = vpop.permute.xlu0 %1432
  %1436 = vset.pattern.permute.xlu0 0
  %1437 = vperm.xlu0 %1436, %v1423
  %v1438 = vpop.permute.xlu0 %1437
  %1441 = vset.pattern.permute.xlu0 0
  %1442 = vperm.xlu0 %1441, %v1424
  %v1443 = vpop.permute.xlu0 %1442
  %v1445 = vadd.f32 %v1401, %v1428
  %v1446 = vadd.f32 %v1402, %v1428
  %v1447 = vadd.f32 %v1403, %v1428
  %v1448 = vadd.f32 %v1404, %v1428
  %v1449 = vadd.f32 %v1405, %v1428
  %v1450 = vadd.f32 %v1406, %v1433
  %v1451 = vadd.f32 %v1407, %v1433
  %v1452 = vadd.f32 %v1408, %v1433
  %v1453 = vadd.f32 %v1409, %v1433
  %v1454 = vadd.f32 %v1410, %v1433
  %v1455 = vadd.f32 %v1411, %v1438
  %v1456 = vadd.f32 %v1412, %v1438
  %v1457 = vadd.f32 %v1413, %v1438
  %v1458 = vadd.f32 %v1414, %v1438
  %v1459 = vadd.f32 %v1415, %v1438
  %v1460 = vadd.f32 %v1416, %v1443
  %v1461 = vadd.f32 %v1417, %v1443
  %v1462 = vadd.f32 %v1418, %v1443
  %v1463 = vadd.f32 %v1419, %v1443
  %v1464 = vadd.f32 %v1420, %v1443
  %v1465 = vmax.f32 %v1445, 0.0
  %v1466 = vmax.f32 %v1446, 0.0
  %v1467 = vmax.f32 %v1447, 0.0
  %v1468 = vmax.f32 %v1448, 0.0
  %v1469 = vmax.f32 %v1449, 0.0
  %v1470 = vmax.f32 %v1450, 0.0
  %v1471 = vmax.f32 %v1451, 0.0
  %v1472 = vmax.f32 %v1452, 0.0
  %v1473 = vmax.f32 %v1453, 0.0
  %v1474 = vmax.f32 %v1454, 0.0
  %v1475 = vmax.f32 %v1455, 0.0
  %v1476 = vmax.f32 %v1456, 0.0
  %v1477 = vmax.f32 %v1457, 0.0
  %v1478 = vmax.f32 %v1458, 0.0
  %v1479 = vmax.f32 %v1459, 0.0
  %v1480 = vmax.f32 %v1460, 0.0
  %v1481 = vmax.f32 %v1461, 0.0
  %v1482 = vmax.f32 %v1462, 0.0
  %v1483 = vmax.f32 %v1463, 0.0
  %v1484 = vmax.f32 %v1464, 0.0
  %v1485 = vlaneseq
  %v1486 = vand.u32 %v1485, 127
  %v1487 = vadd.s32 %v1486, 128
  %v1488 = vadd.s32 %v1486, 256
  %v1489 = vadd.s32 %v1486, 384
  %v1490 = vadd.s32 %v1486, 512
  %vm1491 = vcmp.lt.s32.totalorder %v1486, 0
  %v1492 = vsub.s32 0, %v1486
  %v1493 = vsel %vm1491, %v1492, %v1486
  %v1494 = vmul.u32.u64.compose %v1493, 3393554407
  %v1495 = vextract.low.u32 %v1494
  %v1496 = vextract.high.u32 %v1494
  %v1497 = vshrl.u32 %v1496, 8
  %v1498 = vmul.u32 %v1497, 324
  %v1499 = vsub.s32 %v1493, %v1498
  %v1500 = vsub.s32 0, %v1499
  %v1501 = vsel %vm1491, %v1500, %v1499
  %vm1502 = vcmp.lt.s32.totalorder %v1487, 0
  %v1503 = vsub.s32 0, %v1487
  %v1504 = vsel %vm1502, %v1503, %v1487
  %v1505 = vmul.u32.u64.compose %v1504, 3393554407
  %v1506 = vextract.low.u32 %v1505
  %v1507 = vextract.high.u32 %v1505
  %v1508 = vshrl.u32 %v1507, 8
  %v1509 = vmul.u32 %v1508, 324
  %v1510 = vsub.s32 %v1504, %v1509
  %v1511 = vsub.s32 0, %v1510
  %v1512 = vsel %vm1502, %v1511, %v1510
  %vm1513 = vcmp.lt.s32.totalorder %v1488, 0
  %v1514 = vsub.s32 0, %v1488
  %v1515 = vsel %vm1513, %v1514, %v1488
  %v1516 = vmul.u32.u64.compose %v1515, 3393554407
  %v1517 = vextract.low.u32 %v1516
  %v1518 = vextract.high.u32 %v1516
  %v1519 = vshrl.u32 %v1518, 8
  %v1520 = vmul.u32 %v1519, 324
  %v1521 = vsub.s32 %v1515, %v1520
  %v1522 = vsub.s32 0, %v1521
  %v1523 = vsel %vm1513, %v1522, %v1521
  %vm1524 = vcmp.lt.s32.totalorder %v1489, 0
  %v1525 = vsub.s32 0, %v1489
  %v1526 = vsel %vm1524, %v1525, %v1489
  %v1527 = vmul.u32.u64.compose %v1526, 3393554407
  %v1528 = vextract.low.u32 %v1527
  %v1529 = vextract.high.u32 %v1527
  %v1530 = vshrl.u32 %v1529, 8
  %v1531 = vmul.u32 %v1530, 324
  %v1532 = vsub.s32 %v1526, %v1531
  %v1533 = vsub.s32 0, %v1532
  %v1534 = vsel %vm1524, %v1533, %v1532
  %vm1535 = vcmp.lt.s32.totalorder %v1490, 0
  %v1536 = vsub.s32 0, %v1490
  %v1537 = vsel %vm1535, %v1536, %v1490
  %v1538 = vmul.u32.u64.compose %v1537, 3393554407
  %v1539 = vextract.low.u32 %v1538
  %v1540 = vextract.high.u32 %v1538
  %v1541 = vshrl.u32 %v1540, 8
  %v1542 = vmul.u32 %v1541, 324
  %v1543 = vsub.s32 %v1537, %v1542
  %v1544 = vsub.s32 0, %v1543
  %v1545 = vsel %vm1535, %v1544, %v1543
  %vm1546 = vcmp.ne.s32.totalorder %v1501, 0
  %vm1547 = vcmp.ne.s32.totalorder %v1512, 0
  %vm1548 = vcmp.ne.s32.totalorder %v1523, 0
  %vm1549 = vcmp.ne.s32.totalorder %v1534, 0
  %vm1550 = vcmp.ne.s32.totalorder %v1545, 0
  %vm1551 = vcmp.lt.s32.totalorder %v1501, 0
  %vm1552 = vcmp.lt.s32.totalorder %v1512, 0
  %vm1553 = vcmp.lt.s32.totalorder %v1523, 0
  %vm1554 = vcmp.lt.s32.totalorder %v1534, 0
  %vm1555 = vcmp.lt.s32.totalorder %v1545, 0
  %vm1556 = vmand %vm1551, %vm1546
  %vm1557 = vmand %vm1552, %vm1547
  %vm1558 = vmand %vm1553, %vm1548
  %vm1559 = vmand %vm1554, %vm1549
  %vm1560 = vmand %vm1555, %vm1550
  %v1561 = vadd.s32 %v1501, 324
  %v1562 = vadd.s32 %v1512, 324
  %v1563 = vadd.s32 %v1523, 324
  %v1564 = vadd.s32 %v1534, 324
  %v1565 = vadd.s32 %v1545, 324
  %v1566 = vsel %vm1556, %v1561, %v1501
  %v1567 = vsel %vm1557, %v1562, %v1512
  %v1568 = vsel %vm1558, %v1563, %v1523
  %v1569 = vsel %vm1559, %v1564, %v1534
  %v1570 = vsel %vm1560, %v1565, %v1545
  %vm1571 = vcmp.lt.s32.totalorder %v1566, 286
  %vm1572 = vcmp.lt.s32.totalorder %v1567, 286
  %vm1573 = vcmp.lt.s32.totalorder %v1568, 286
  %vm1574 = vcmp.lt.s32.totalorder %v1569, 286
  %vm1575 = vcmp.lt.s32.totalorder %v1570, 286
  %vm1576 = vcmp.lt.s32.totalorder %v1566, 0
  %v1577 = vsub.s32 0, %v1566
  %v1578 = vsel %vm1576, %v1577, %v1566
  %v1579 = vmul.u32.u64.compose %v1578, 3817748708
  %v1580 = vextract.low.u32 %v1579
  %v1581 = vextract.high.u32 %v1579
  %v1582 = vshrl.u32 %v1581, 4
  %v1583 = vmul.u32 %v1582, 18
  %v1584 = vsub.s32 %v1578, %v1583
  %v1585 = vsub.s32 0, %v1584
  %v1586 = vsel %vm1576, %v1585, %v1584
  %vm1587 = vcmp.lt.s32.totalorder %v1567, 0
  %v1588 = vsub.s32 0, %v1567
  %v1589 = vsel %vm1587, %v1588, %v1567
  %v1590 = vmul.u32.u64.compose %v1589, 3817748708
  %v1591 = vextract.low.u32 %v1590
  %v1592 = vextract.high.u32 %v1590
  %v1593 = vshrl.u32 %v1592, 4
  %v1594 = vmul.u32 %v1593, 18
  %v1595 = vsub.s32 %v1589, %v1594
  %v1596 = vsub.s32 0, %v1595
  %v1597 = vsel %vm1587, %v1596, %v1595
  %vm1598 = vcmp.lt.s32.totalorder %v1568, 0
  %v1599 = vsub.s32 0, %v1568
  %v1600 = vsel %vm1598, %v1599, %v1568
  %v1601 = vmul.u32.u64.compose %v1600, 3817748708
  %v1602 = vextract.low.u32 %v1601
  %v1603 = vextract.high.u32 %v1601
  %v1604 = vshrl.u32 %v1603, 4
  %v1605 = vmul.u32 %v1604, 18
  %v1606 = vsub.s32 %v1600, %v1605
  %v1607 = vsub.s32 0, %v1606
  %v1608 = vsel %vm1598, %v1607, %v1606
  %vm1609 = vcmp.lt.s32.totalorder %v1569, 0
  %v1610 = vsub.s32 0, %v1569
  %v1611 = vsel %vm1609, %v1610, %v1569
  %v1612 = vmul.u32.u64.compose %v1611, 3817748708
  %v1613 = vextract.low.u32 %v1612
  %v1614 = vextract.high.u32 %v1612
  %v1615 = vshrl.u32 %v1614, 4
  %v1616 = vmul.u32 %v1615, 18
  %v1617 = vsub.s32 %v1611, %v1616
  %v1618 = vsub.s32 0, %v1617
  %v1619 = vsel %vm1609, %v1618, %v1617
  %vm1620 = vcmp.lt.s32.totalorder %v1570, 0
  %v1621 = vsub.s32 0, %v1570
  %v1622 = vsel %vm1620, %v1621, %v1570
  %v1623 = vmul.u32.u64.compose %v1622, 3817748708
  %v1624 = vextract.low.u32 %v1623
  %v1625 = vextract.high.u32 %v1623
  %v1626 = vshrl.u32 %v1625, 4
  %v1627 = vmul.u32 %v1626, 18
  %v1628 = vsub.s32 %v1622, %v1627
  %v1629 = vsub.s32 0, %v1628
  %v1630 = vsel %vm1620, %v1629, %v1628
  %vm1631 = vcmp.ne.s32.totalorder %v1586, 0
  %vm1632 = vcmp.ne.s32.totalorder %v1597, 0
  %vm1633 = vcmp.ne.s32.totalorder %v1608, 0
  %vm1634 = vcmp.ne.s32.totalorder %v1619, 0
  %vm1635 = vcmp.ne.s32.totalorder %v1630, 0
  %vm1636 = vcmp.lt.s32.totalorder %v1586, 0
  %vm1637 = vcmp.lt.s32.totalorder %v1597, 0
  %vm1638 = vcmp.lt.s32.totalorder %v1608, 0
  %vm1639 = vcmp.lt.s32.totalorder %v1619, 0
  %vm1640 = vcmp.lt.s32.totalorder %v1630, 0
  %vm1641 = vmand %vm1636, %vm1631
  %vm1642 = vmand %vm1637, %vm1632
  %vm1643 = vmand %vm1638, %vm1633
  %vm1644 = vmand %vm1639, %vm1634
  %vm1645 = vmand %vm1640, %vm1635
  %v1646 = vadd.s32 %v1586, 18
  %v1647 = vadd.s32 %v1597, 18
  %v1648 = vadd.s32 %v1608, 18
  %v1649 = vadd.s32 %v1619, 18
  %v1650 = vadd.s32 %v1630, 18
  %v1651 = vsel %vm1641, %v1646, %v1586
  %v1652 = vsel %vm1642, %v1647, %v1597
  %v1653 = vsel %vm1643, %v1648, %v1608
  %v1654 = vsel %vm1644, %v1649, %v1619
  %v1655 = vsel %vm1645, %v1650, %v1630
  %vm1656 = vcmp.lt.s32.totalorder %v1651, 16
  %vm1657 = vcmp.lt.s32.totalorder %v1652, 16
  %vm1658 = vcmp.lt.s32.totalorder %v1653, 16
  %vm1659 = vcmp.lt.s32.totalorder %v1654, 16
  %vm1660 = vcmp.lt.s32.totalorder %v1655, 16
  %vm1661 = vmand %vm1571, %vm1656
  %vm1662 = vmand %vm1572, %vm1657
  %vm1663 = vmand %vm1573, %vm1658
  %vm1664 = vmand %vm1574, %vm1659
  %vm1665 = vmand %vm1575, %vm1660
  %v1666 = vsel %vm1661, 1, 0
  %v1667 = vsel %vm1662, 1, 0
  %v1668 = vsel %vm1663, 1, 0
  %v1669 = vsel %vm1664, 1, 0
  %v1670 = vsel %vm1665, 1, 0
  %vm1671 = vcmp.eq.s32.totalorder %v1666, 1
  %vm1672 = vcmp.eq.s32.totalorder %v1667, 1
  %vm1673 = vcmp.eq.s32.totalorder %v1668, 1
  %vm1674 = vcmp.eq.s32.totalorder %v1669, 1
  %vm1675 = vcmp.eq.s32.totalorder %v1670, 1
  %v1676 = vsel %vm1671, %v1465, 0.0
  %v1677 = vsel %vm1672, %v1466, 0.0
  %v1678 = vsel %vm1673, %v1467, 0.0
  %v1679 = vsel %vm1674, %v1468, 0.0
  %v1680 = vsel %vm1675, %v1469, 0.0
  %v1681 = vsel %vm1671, %v1470, 0.0
  %v1682 = vsel %vm1672, %v1471, 0.0
  %v1683 = vsel %vm1673, %v1472, 0.0
  %v1684 = vsel %vm1674, %v1473, 0.0
  %v1685 = vsel %vm1675, %v1474, 0.0
  %v1686 = vsel %vm1671, %v1475, 0.0
  %v1687 = vsel %vm1672, %v1476, 0.0
  %v1688 = vsel %vm1673, %v1477, 0.0
  %v1689 = vsel %vm1674, %v1478, 0.0
  %v1690 = vsel %vm1675, %v1479, 0.0
  %v1691 = vsel %vm1671, %v1480, 0.0
  %v1692 = vsel %vm1672, %v1481, 0.0
  %v1693 = vsel %vm1673, %v1482, 0.0
  %v1694 = vsel %vm1674, %v1483, 0.0
  %v1695 = vsel %vm1675, %v1484, 0.0
  %v1696 = vpack.c.bf16 %v1681, %v1676
  %v1697 = vpack.c.bf16 %v1682, %v1677
  %v1698 = vpack.c.bf16 %v1683, %v1678
  %v1699 = vpack.c.bf16 %v1684, %v1679
  %v1700 = vpack.c.bf16 %v1685, %v1680
  %v1701 = vpack.c.bf16 %v1691, %v1686
  %v1702 = vpack.c.bf16 %v1692, %v1687
  %v1703 = vpack.c.bf16 %v1693, %v1688
  %v1704 = vpack.c.bf16 %v1694, %v1689
  %v1705 = vpack.c.bf16 %v1695, %v1690
  %vm1706 = vcmask 154624
  %1707 = vst.msk [vmem:[#allocation2] sm:$0xff] %vm1706, 0
  %1708 = vst.msk [vmem:[#allocation2 + $0x30] sm:$0xff] %vm1706, 0
  %1719 = vrot.lane.b32.xlu0 %v1696, 19
  %v1720 = vpop.permute.xlu0 %1719
  %1721 = vrot.lane.b32.xlu0 %v1697, 19
  %v1722 = vpop.permute.xlu0 %1721
  %1723 = vrot.lane.b32.xlu0 %v1698, 19
  %v1724 = vpop.permute.xlu0 %1723
  %1725 = vrot.lane.b32.xlu0 %v1699, 19
  %v1726 = vpop.permute.xlu0 %1725
  %1727 = vrot.lane.b32.xlu0 %v1700, 19
  %v1728 = vpop.permute.xlu0 %1727
  %1729 = vrot.lane.b32.xlu0 %v1701, 19
  %v1730 = vpop.permute.xlu0 %1729
  %1731 = vrot.lane.b32.xlu0 %v1702, 19
  %v1732 = vpop.permute.xlu0 %1731
  %1733 = vrot.lane.b32.xlu0 %v1703, 19
  %v1734 = vpop.permute.xlu0 %1733
  %1735 = vrot.lane.b32.xlu0 %v1704, 19
  %v1736 = vpop.permute.xlu0 %1735
  %1737 = vrot.lane.b32.xlu0 %v1705, 19
  %v1738 = vpop.permute.xlu0 %1737
  %vm1739 = vcmask 154624
  %v1740 = vsel %vm1739, %v1720, %v1722
  %v1741 = vsel %vm1739, %v1722, %v1724
  %v1742 = vsel %vm1739, %v1724, %v1726
  %v1743 = vsel %vm1739, %v1726, %v1728
  %v1744 = vsel %vm1739, %v1730, %v1732
  %v1745 = vsel %vm1739, %v1732, %v1734
  %v1746 = vsel %vm1739, %v1734, %v1736
  %v1747 = vsel %vm1739, %v1736, %v1738
  %vm1758 = vcmask 1047704
  %1759 = vst.msk [vmem:[#allocation2] sm:$0xff] %vm1758, %v1720
  %1760 = vst [vmem:[#allocation2 + $0x8] sm:$0xff] %v1740
  %1761 = vst [vmem:[#allocation2 + $0x10] sm:$0xff] %v1741
  %1762 = vst [vmem:[#allocation2 + $0x18] sm:$0xff] %v1742
  %vm1763 = vcmask 957440
  %1764 = vst.msk [vmem:[#allocation2 + $0x20] sm:$0xff] %vm1763, %v1743
  %1765 = vst.msk [vmem:[#allocation2 + $0x30] sm:$0xff] %vm1758, %v1730
  %1766 = vst [vmem:[#allocation2 + $0x38] sm:$0xff] %v1744
  %1767 = vst [vmem:[#allocation2 + $0x40] sm:$0xff] %v1745
  %1768 = vst [vmem:[#allocation2 + $0x48] sm:$0xff] %v1746
  %1769 = vst.msk [vmem:[#allocation2 + $0x50] sm:$0xff] %vm1763, %v1747
  %vm1770 = vcmask 1048488
  %1771 = vst.msk [vmem:[#allocation2 + $0x20] sm:$0xff] %vm1770, 0
  %vm1772 = vcmask 64512
  %1773 = vst.msk [vmem:[#allocation2 + $0x28] sm:$0xff] %vm1772, 0
  %1774 = vst.msk [vmem:[#allocation2 + $0x50] sm:$0xff] %vm1770, 0
  %1775 = vst.msk [vmem:[#allocation2 + $0x58] sm:$0xff] %vm1772, 0
  %v1776 = vld [vmem:[#allocation2] sm:$0xff]
  %v1777 = vld [vmem:[#allocation2 + $0x8] sm:$0xff]
  %v1778 = vld [vmem:[#allocation2 + $0x10] sm:$0xff]
  %v1779 = vld [vmem:[#allocation2 + $0x18] sm:$0xff]
  %v1780 = vld [vmem:[#allocation2 + $0x20] sm:$0xff]
  %v1781 = vld [vmem:[#allocation2 + $0x28] sm:$0xff]
  %v1782 = vld [vmem:[#allocation2 + $0x30] sm:$0xff]
  %v1783 = vld [vmem:[#allocation2 + $0x38] sm:$0xff]
  %v1784 = vld [vmem:[#allocation2 + $0x40] sm:$0xff]
  %v1785 = vld [vmem:[#allocation2 + $0x48] sm:$0xff]
  %v1786 = vld [vmem:[#allocation2 + $0x50] sm:$0xff]
  %v1787 = vld [vmem:[#allocation2 + $0x58] sm:$0xff]
  %1800 = vrot.lane.b32.xlu0 %v1776, 127
  %v1801 = vpop.permute.xlu0 %1800
  %1802 = vrot.lane.b32.xlu0 %v1777, 127
  %v1803 = vpop.permute.xlu0 %1802
  %1804 = vrot.lane.b32.xlu0 %v1778, 127
  %v1805 = vpop.permute.xlu0 %1804
  %1806 = vrot.lane.b32.xlu0 %v1779, 127
  %v1807 = vpop.permute.xlu0 %1806
  %1808 = vrot.lane.b32.xlu0 %v1780, 127
  %v1809 = vpop.permute.xlu0 %1808
  %1810 = vrot.lane.b32.xlu0 %v1781, 127
  %v1811 = vpop.permute.xlu0 %1810
  %1812 = vrot.lane.b32.xlu0 %v1782, 127
  %v1813 = vpop.permute.xlu0 %1812
  %1814 = vrot.lane.b32.xlu0 %v1783, 127
  %v1815 = vpop.permute.xlu0 %1814
  %1816 = vrot.lane.b32.xlu0 %v1784, 127
  %v1817 = vpop.permute.xlu0 %1816
  %1818 = vrot.lane.b32.xlu0 %v1785, 127
  %v1819 = vpop.permute.xlu0 %1818
  %1820 = vrot.lane.b32.xlu0 %v1786, 127
  %v1821 = vpop.permute.xlu0 %1820
  %1822 = vrot.lane.b32.xlu0 %v1787, 127
  %v1823 = vpop.permute.xlu0 %1822
  %vm1824 = vcmask 1039360
  %v1825 = vsel %vm1824, %v1801, %v1803
  %v1826 = vsel %vm1824, %v1803, %v1805
  %v1827 = vsel %vm1824, %v1805, %v1807
  %v1828 = vsel %vm1824, %v1807, %v1809
  %v1829 = vsel %vm1824, %v1809, %v1811
  %v1830 = vsel %vm1824, %v1813, %v1815
  %v1831 = vsel %vm1824, %v1815, %v1817
  %v1832 = vsel %vm1824, %v1817, %v1819
  %v1833 = vsel %vm1824, %v1819, %v1821
  %v1834 = vsel %vm1824, %v1821, %v1823
  %1847 = vst [vmem:[#allocation2 + $0x60] sm:$0xff] %v1825
  %1848 = vst [vmem:[#allocation2 + $0x68] sm:$0xff] %v1826
  %1849 = vst [vmem:[#allocation2 + $0x70] sm:$0xff] %v1827
  %1850 = vst [vmem:[#allocation2 + $0x78] sm:$0xff] %v1828
  %1851 = vst [vmem:[#allocation2 + $0x80] sm:$0xff] %v1829
  %vm1852 = vcmask 48128
  %1853 = vst.msk [vmem:[#allocation2 + $0x88] sm:$0xff] %vm1852, %v1811
  %1854 = vst [vmem:[#allocation2 + $0x90] sm:$0xff] %v1830
  %1855 = vst [vmem:[#allocation2 + $0x98] sm:$0xff] %v1831
  %1856 = vst [vmem:[#allocation2 + $0xa0] sm:$0xff] %v1832
  %1857 = vst [vmem:[#allocation2 + $0xa8] sm:$0xff] %v1833
  %1858 = vst [vmem:[#allocation2 + $0xb0] sm:$0xff] %v1834
  %1859 = vst.msk [vmem:[#allocation2 + $0xb8] sm:$0xff] %vm1852, %v1823
  %v1860 = vld [vmem:[#allocation2] sm:$0xff]
  %v1861 = vld [vmem:[#allocation2 + $0x8] sm:$0xff]
  %v1862 = vld [vmem:[#allocation2 + $0x10] sm:$0xff]
  %v1863 = vld [vmem:[#allocation2 + $0x18] sm:$0xff]
  %v1864 = vld [vmem:[#allocation2 + $0x20] sm:$0xff]
  %v1865 = vld [vmem:[#allocation2 + $0x28] sm:$0xff]
  %v1866 = vld [vmem:[#allocation2 + $0x30] sm:$0xff]
  %v1867 = vld [vmem:[#allocation2 + $0x38] sm:$0xff]
  %v1868 = vld [vmem:[#allocation2 + $0x40] sm:$0xff]
  %v1869 = vld [vmem:[#allocation2 + $0x48] sm:$0xff]
  %v1870 = vld [vmem:[#allocation2 + $0x50] sm:$0xff]
  %v1871 = vld [vmem:[#allocation2 + $0x58] sm:$0xff]
  %1884 = vrot.lane.b32.xlu0 %v1860, 126
  %v1885 = vpop.permute.xlu0 %1884
  %1886 = vrot.lane.b32.xlu0 %v1861, 126
  %v1887 = vpop.permute.xlu0 %1886
  %1888 = vrot.lane.b32.xlu0 %v1862, 126
  %v1889 = vpop.permute.xlu0 %1888
  %1890 = vrot.lane.b32.xlu0 %v1863, 126
  %v1891 = vpop.permute.xlu0 %1890
  %1892 = vrot.lane.b32.xlu0 %v1864, 126
  %v1893 = vpop.permute.xlu0 %1892
  %1894 = vrot.lane.b32.xlu0 %v1865, 126
  %v1895 = vpop.permute.xlu0 %1894
  %1896 = vrot.lane.b32.xlu0 %v1866, 126
  %v1897 = vpop.permute.xlu0 %1896
  %1898 = vrot.lane.b32.xlu0 %v1867, 126
  %v1899 = vpop.permute.xlu0 %1898
  %1900 = vrot.lane.b32.xlu0 %v1868, 126
  %v1901 = vpop.permute.xlu0 %1900
  %1902 = vrot.lane.b32.xlu0 %v1869, 126
  %v1903 = vpop.permute.xlu0 %1902
  %1904 = vrot.lane.b32.xlu0 %v1870, 126
  %v1905 = vpop.permute.xlu0 %1904
  %1906 = vrot.lane.b32.xlu0 %v1871, 126
  %v1907 = vpop.permute.xlu0 %1906
  %vm1908 = vcmask 1031168
  %v1909 = vsel %vm1908, %v1885, %v1887
  %v1910 = vsel %vm1908, %v1887, %v1889
  %v1911 = vsel %vm1908, %v1889, %v1891
  %v1912 = vsel %vm1908, %v1891, %v1893
  %v1913 = vsel %vm1908, %v1893, %v1895
  %v1914 = vsel %vm1908, %v1897, %v1899
  %v1915 = vsel %vm1908, %v1899, %v1901
  %v1916 = vsel %vm1908, %v1901, %v1903
  %v1917 = vsel %vm1908, %v1903, %v1905
  %v1918 = vsel %vm1908, %v1905, %v1907
  %1931 = vst [vmem:[#allocation2 + $0xc0] sm:$0xff] %v1909
  %1932 = vst [vmem:[#allocation2 + $0xc8] sm:$0xff] %v1910
  %1933 = vst [vmem:[#allocation2 + $0xd0] sm:$0xff] %v1911
  %1934 = vst [vmem:[#allocation2 + $0xd8] sm:$0xff] %v1912
  %1935 = vst [vmem:[#allocation2 + $0xe0] sm:$0xff] %v1913
  %1936 = vst.msk [vmem:[#allocation2 + $0xe8] sm:$0xff] %vm1852, %v1895
  %1937 = vst [vmem:[#allocation2 + $0xf0] sm:$0xff] %v1914
  %1938 = vst [vmem:[#allocation2 + $0xf8] sm:$0xff] %v1915
  %1939 = vst [vmem:[#allocation2 + $0x100] sm:$0xff] %v1916
  %1940 = vst [vmem:[#allocation2 + $0x108] sm:$0xff] %v1917
  %1941 = vst [vmem:[#allocation2 + $0x110] sm:$0xff] %v1918
  %1942 = vst.msk [vmem:[#allocation2 + $0x118] sm:$0xff] %vm1852, %v1907
  %v1943 = vld [vmem:[#allocation2] sm:$0xff]
  %v1944 = vld [vmem:[#allocation2 + $0x8] sm:$0xff]
  %v1945 = vld [vmem:[#allocation2 + $0x10] sm:$0xff]
  %v1946 = vld [vmem:[#allocation2 + $0x18] sm:$0xff]
  %v1947 = vld [vmem:[#allocation2 + $0x20] sm:$0xff]
  %v1948 = vld [vmem:[#allocation2 + $0x30] sm:$0xff]
  %v1949 = vld [vmem:[#allocation2 + $0x38] sm:$0xff]
  %v1950 = vld [vmem:[#allocation2 + $0x40] sm:$0xff]
  %v1951 = vld [vmem:[#allocation2 + $0x48] sm:$0xff]
  %v1952 = vld [vmem:[#allocation2 + $0x50] sm:$0xff]
  %v1953 = vld [vmem:[#allocation2 + $0x60] sm:$0xff]
  %v1954 = vld [vmem:[#allocation2 + $0x68] sm:$0xff]
  %v1955 = vld [vmem:[#allocation2 + $0x70] sm:$0xff]
  %v1956 = vld [vmem:[#allocation2 + $0x78] sm:$0xff]
  %v1957 = vld [vmem:[#allocation2 + $0x80] sm:$0xff]
  %v1958 = vld [vmem:[#allocation2 + $0x90] sm:$0xff]
  %v1959 = vld [vmem:[#allocation2 + $0x98] sm:$0xff]
  %v1960 = vld [vmem:[#allocation2 + $0xa0] sm:$0xff]
  %v1961 = vld [vmem:[#allocation2 + $0xa8] sm:$0xff]
  %v1962 = vld [vmem:[#allocation2 + $0xb0] sm:$0xff]
  %v1963 = vld [vmem:[#allocation2 + $0xc0] sm:$0xff]
  %v1964 = vld [vmem:[#allocation2 + $0xc8] sm:$0xff]
  %v1965 = vld [vmem:[#allocation2 + $0xd0] sm:$0xff]
  %v1966 = vld [vmem:[#allocation2 + $0xd8] sm:$0xff]
  %v1967 = vld [vmem:[#allocation2 + $0xe0] sm:$0xff]
  %v1968 = vld [vmem:[#allocation2 + $0xf0] sm:$0xff]
  %v1969 = vld [vmem:[#allocation2 + $0xf8] sm:$0xff]
  %v1970 = vld [vmem:[#allocation2 + $0x100] sm:$0xff]
  %v1971 = vld [vmem:[#allocation2 + $0x108] sm:$0xff]
  %v1972 = vld [vmem:[#allocation2 + $0x110] sm:$0xff]
  %v1973 = vld [vmem:[%s3] sm:$0xf]
  %v1974 = vld [vmem:[%s3 + $0x4] sm:$0xf]
  %v1975 = vld [vmem:[%s3 + $0x8] sm:$0xf]
  %v1976 = vld [vmem:[%s3 + $0xc] sm:$0xf]
  %s1977 = scalar_lea.vmem %s3, 16
  %v1978 = vld [vmem:[%s1977] sm:$0xf]
  %v1979 = vld [vmem:[%s1977 + $0x4] sm:$0xf]
  %v1980 = vld [vmem:[%s1977 + $0x8] sm:$0xf]
  %v1981 = vld [vmem:[%s1977 + $0xc] sm:$0xf]
  %v1986 = vunpack.c.l.b16 %v1978
  %v1987 = vunpack.c.l.b16 %v1979
  %v1988 = vunpack.c.l.b16 %v1980
  %v1989 = vunpack.c.l.b16 %v1981
  %v1990 = vpack.c.b16 %v1987, %v1986
  %v1991 = vpack.c.b16 %v1989, %v1988
  %2022 = vrot.lane.b32.xlu0 %v1943, 110
  %v2023 = vpop.permute.xlu0 %2022
  %2024 = vrot.lane.b32.xlu0 %v1944, 110
  %v2025 = vpop.permute.xlu0 %2024
  %2026 = vrot.lane.b32.xlu0 %v1945, 110
  %v2027 = vpop.permute.xlu0 %2026
  %2028 = vrot.lane.b32.xlu0 %v1946, 110
  %v2029 = vpop.permute.xlu0 %2028
  %2030 = vrot.lane.b32.xlu0 %v1947, 110
  %v2031 = vpop.permute.xlu0 %2030
  %2032 = vrot.lane.b32.xlu0 %v1948, 110
  %v2033 = vpop.permute.xlu0 %2032
  %2034 = vrot.lane.b32.xlu0 %v1949, 110
  %v2035 = vpop.permute.xlu0 %2034
  %2036 = vrot.lane.b32.xlu0 %v1950, 110
  %v2037 = vpop.permute.xlu0 %2036
  %2038 = vrot.lane.b32.xlu0 %v1951, 110
  %v2039 = vpop.permute.xlu0 %2038
  %2040 = vrot.lane.b32.xlu0 %v1952, 110
  %v2041 = vpop.permute.xlu0 %2040
  %2042 = vrot.lane.b32.xlu0 %v1953, 110
  %v2043 = vpop.permute.xlu0 %2042
  %2044 = vrot.lane.b32.xlu0 %v1954, 110
  %v2045 = vpop.permute.xlu0 %2044
  %2046 = vrot.lane.b32.xlu0 %v1955, 110
  %v2047 = vpop.permute.xlu0 %2046
  %2048 = vrot.lane.b32.xlu0 %v1956, 110
  %v2049 = vpop.permute.xlu0 %2048
  %2050 = vrot.lane.b32.xlu0 %v1957, 110
  %v2051 = vpop.permute.xlu0 %2050
  %2052 = vrot.lane.b32.xlu0 %v1958, 110
  %v2053 = vpop.permute.xlu0 %2052
  %2054 = vrot.lane.b32.xlu0 %v1959, 110
  %v2055 = vpop.permute.xlu0 %2054
  %2056 = vrot.lane.b32.xlu0 %v1960, 110
  %v2057 = vpop.permute.xlu0 %2056
  %2058 = vrot.lane.b32.xlu0 %v1961, 110
  %v2059 = vpop.permute.xlu0 %2058
  %2060 = vrot.lane.b32.xlu0 %v1962, 110
  %v2061 = vpop.permute.xlu0 %2060
  %2062 = vrot.lane.b32.xlu0 %v1963, 110
  %v2063 = vpop.permute.xlu0 %2062
  %2064 = vrot.lane.b32.xlu0 %v1964, 110
  %v2065 = vpop.permute.xlu0 %2064
  %2066 = vrot.lane.b32.xlu0 %v1965, 110
  %v2067 = vpop.permute.xlu0 %2066
  %2068 = vrot.lane.b32.xlu0 %v1966, 110
  %v2069 = vpop.permute.xlu0 %2068
  %2070 = vrot.lane.b32.xlu0 %v1967, 110
  %v2071 = vpop.permute.xlu0 %2070
  %2072 = vrot.lane.b32.xlu0 %v1968, 110
  %v2073 = vpop.permute.xlu0 %2072
  %2074 = vrot.lane.b32.xlu0 %v1969, 110
  %v2075 = vpop.permute.xlu0 %2074
  %2076 = vrot.lane.b32.xlu0 %v1970, 110
  %v2077 = vpop.permute.xlu0 %2076
  %2078 = vrot.lane.b32.xlu0 %v1971, 110
  %v2079 = vpop.permute.xlu0 %2078
  %2080 = vrot.lane.b32.xlu0 %v1972, 110
  %v2081 = vpop.permute.xlu0 %2080
  %vm2082 = vcmask 900096
  %v2083 = vsel %vm2082, %v2023, %v2025
  %v2084 = vsel %vm2082, %v2025, %v2027
  %v2085 = vsel %vm2082, %v2027, %v2029
  %v2086 = vsel %vm2082, %v2029, %v2031
  %v2087 = vsel %vm2082, %v2033, %v2035
  %v2088 = vsel %vm2082, %v2035, %v2037
  %v2089 = vsel %vm2082, %v2037, %v2039
  %v2090 = vsel %vm2082, %v2039, %v2041
  %v2091 = vsel %vm2082, %v2043, %v2045
  %v2092 = vsel %vm2082, %v2045, %v2047
  %v2093 = vsel %vm2082, %v2047, %v2049
  %v2094 = vsel %vm2082, %v2049, %v2051
  %v2095 = vsel %vm2082, %v2053, %v2055
  %v2096 = vsel %vm2082, %v2055, %v2057
  %v2097 = vsel %vm2082, %v2057, %v2059
  %v2098 = vsel %vm2082, %v2059, %v2061
  %v2099 = vsel %vm2082, %v2063, %v2065
  %v2100 = vsel %vm2082, %v2065, %v2067
  %v2101 = vsel %vm2082, %v2067, %v2069
  %v2102 = vsel %vm2082, %v2069, %v2071
  %v2103 = vsel %vm2082, %v2073, %v2075
  %v2104 = vsel %vm2082, %v2075, %v2077
  %v2105 = vsel %vm2082, %v2077, %v2079
  %v2106 = vsel %vm2082, %v2079, %v2081
  %vm2137 = vcmask 785408
  %v2139 = vsel %vm2137, %v1990, 0
  %v2142 = vsel %vm2137, %v1991, 0
  %2144 = vmatprep.subr.bf16.mxu0 %v2084
  %2145 = vmatpush1.bf16.msra.mxu0 %v2083
  %2146 = vmatprep.subr.bf16.mxu0 %v2088
  %2147 = vmatpush1.bf16.msra.mxu0 %v2087
  %2148 = vmatprep.subr.bf16.mxu0 %v2092
  %2149 = vmatpush1.bf16.msra.mxu0 %v2091
  %2150 = vmatprep.subr.bf16.mxu0 %v2096
  %2151 = vmatpush1.bf16.msra.mxu0 %v2095
  %2152 = vmatprep.subr.bf16.mxu0 %v2100
  %2153 = vmatpush1.bf16.msra.mxu0 %v2099
  %2154 = vmatprep.subr.bf16.mxu0 %v2104
  %2155 = vmatpush1.bf16.msra.mxu0 %v2103
  %2156 = vmatprep.subr.bf16.mxu0 0
  %2157 = vmatpush1.bf16.msra.mxu0 0
  %2158 = vmatprep.subr.bf16.mxu0 0
  %2159 = vmatpush1.bf16.msra.mxu0 0
  %2160 = vmatprep.subr.bf16.mxu0 0
  %2161 = vmatpush1.bf16.msra.mxu0 0
  %2162 = vmatprep.subr.bf16.mxu0 0
  %2163 = vmatpush1.bf16.msra.mxu0 0
  %2164 = vmatprep.subr.bf16.mxu0 0
  %2165 = vmatpush1.bf16.msra.mxu0 0
  %2166 = vmatprep.subr.bf16.mxu0 0
  %2167 = vmatpush1.bf16.msra.mxu0 0
  %2168 = vmatprep.subr.bf16.mxu0 0
  %2169 = vmatpush1.bf16.msra.mxu0 0
  %2170 = vmatprep.subr.bf16.mxu0 0
  %2171 = vmatpush1.bf16.msra.mxu0 0
  %2172 = vmatprep.subr.bf16.mxu0 0
  %2173 = vmatpush1.bf16.msra.mxu0 0
  %2174 = vmatprep.subr.bf16.mxu0 0
  %2175 = vmatpush1.bf16.msra.mxu0 0
  %2176 = vmatprep.mubr.bf16.mxu0 0
  %2177 = vmatmul.mubr.bf16.gmra.mrb[0].mxu0 %v2139
  %v2178 = vpop.f32.mrb[0].mxu0
  %v2179 = vadd.f32 0.0, %v2178
  %v2180 = vpop.f32.mrb[0].mxu0
  %v2181 = vadd.f32 0.0, %v2180
  %v2182 = vpop.f32.mrb[0].mxu0
  %v2183 = vadd.f32 0.0, %v2182
  %v2184 = vpop.f32.mrb[0].mxu0
  %v2185 = vadd.f32 0.0, %v2184
  %2186 = vmatprep.mubr.bf16.mxu0 0
  %2187 = vmatmul.mubr.bf16.gmra.mrb[0].mxu0 %v2142
  %v2188 = vpop.f32.mrb[0].mxu0
  %v2189 = vadd.f32 0.0, %v2188
  %v2190 = vpop.f32.mrb[0].mxu0
  %v2191 = vadd.f32 0.0, %v2190
  %v2192 = vpop.f32.mrb[0].mxu0
  %v2193 = vadd.f32 0.0, %v2192
  %v2194 = vpop.f32.mrb[0].mxu0
  %v2195 = vadd.f32 0.0, %v2194
  %2196 = vdwg.mxu0
  %2197 = vmatprep.subr.bf16.mxu0 %v2086
  %2198 = vmatpush1.bf16.msra.mxu0 %v2085
  %2199 = vmatprep.subr.bf16.mxu0 %v2090
  %2200 = vmatpush1.bf16.msra.mxu0 %v2089
  %2201 = vmatprep.subr.bf16.mxu0 %v2094
  %2202 = vmatpush1.bf16.msra.mxu0 %v2093
  %2203 = vmatprep.subr.bf16.mxu0 %v2098
  %2204 = vmatpush1.bf16.msra.mxu0 %v2097
  %2205 = vmatprep.subr.bf16.mxu0 %v2102
  %2206 = vmatpush1.bf16.msra.mxu0 %v2101
  %2207 = vmatprep.subr.bf16.mxu0 %v2106
  %2208 = vmatpush1.bf16.msra.mxu0 %v2105
  %2209 = vmatprep.subr.bf16.mxu0 0
  %2210 = vmatpush1.bf16.msra.mxu0 0
  %2211 = vmatprep.subr.bf16.mxu0 0
  %2212 = vmatpush1.bf16.msra.mxu0 0
  %2213 = vmatprep.subr.bf16.mxu0 0
  %2214 = vmatpush1.bf16.msra.mxu0 0
  %2215 = vmatprep.subr.bf16.mxu0 0
  %2216 = vmatpush1.bf16.msra.mxu0 0
  %2217 = vmatprep.subr.bf16.mxu0 0
  %2218 = vmatpush1.bf16.msra.mxu0 0
  %2219 = vmatprep.subr.bf16.mxu0 0
  %2220 = vmatpush1.bf16.msra.mxu0 0
  %2221 = vmatprep.subr.bf16.mxu0 0
  %2222 = vmatpush1.bf16.msra.mxu0 0
  %2223 = vmatprep.subr.bf16.mxu0 0
  %2224 = vmatpush1.bf16.msra.mxu0 0
  %2225 = vmatprep.subr.bf16.mxu0 0
  %2226 = vmatpush1.bf16.msra.mxu0 0
  %2227 = vmatprep.subr.bf16.mxu0 0
  %2228 = vmatpush1.bf16.msra.mxu0 0
  %2229 = vmatprep.mubr.bf16.mxu0 0
  %2230 = vmatmul.mubr.bf16.gmra.mrb[0].mxu0 %v2139
  %v2231 = vpop.f32.mrb[0].mxu0
  %v2232 = vadd.f32 0.0, %v2231
  %v2233 = vpop.f32.mrb[0].mxu0
  %v2234 = vadd.f32 0.0, %v2233
  %v2235 = vpop.f32.mrb[0].mxu0
  %v2236 = vadd.f32 0.0, %v2235
  %v2237 = vpop.f32.mrb[0].mxu0
  %v2238 = vadd.f32 0.0, %v2237
  %2239 = vmatprep.mubr.bf16.mxu0 0
  %2240 = vmatmul.mubr.bf16.gmra.mrb[0].mxu0 %v2142
  %v2241 = vpop.f32.mrb[0].mxu0
  %v2242 = vadd.f32 0.0, %v2241
  %v2243 = vpop.f32.mrb[0].mxu0
  %v2244 = vadd.f32 0.0, %v2243
  %v2245 = vpop.f32.mrb[0].mxu0
  %v2246 = vadd.f32 0.0, %v2245
  %v2247 = vpop.f32.mrb[0].mxu0
  %v2248 = vadd.f32 0.0, %v2247
  %2249 = vdwg.mxu0
  %2250 = vmatprep.subr.bf16.mxu0 0
  %2251 = vmatpush1.bf16.msra.mxu0 %v2031
  %2252 = vmatprep.subr.bf16.mxu0 0
  %2253 = vmatpush1.bf16.msra.mxu0 %v2041
  %2254 = vmatprep.subr.bf16.mxu0 0
  %2255 = vmatpush1.bf16.msra.mxu0 %v2051
  %2256 = vmatprep.subr.bf16.mxu0 0
  %2257 = vmatpush1.bf16.msra.mxu0 %v2061
  %2258 = vmatprep.subr.bf16.mxu0 0
  %2259 = vmatpush1.bf16.msra.mxu0 %v2071
  %2260 = vmatprep.subr.bf16.mxu0 0
  %2261 = vmatpush1.bf16.msra.mxu0 %v2081
  %2262 = vmatprep.subr.bf16.mxu0 0
  %2263 = vmatpush1.bf16.msra.mxu0 0
  %2264 = vmatprep.subr.bf16.mxu0 0
  %2265 = vmatpush1.bf16.msra.mxu0 0
  %2266 = vmatprep.subr.bf16.mxu0 0
  %2267 = vmatpush1.bf16.msra.mxu0 0
  %2268 = vmatprep.subr.bf16.mxu0 0
  %2269 = vmatpush1.bf16.msra.mxu0 0
  %2270 = vmatprep.subr.bf16.mxu0 0
  %2271 = vmatpush1.bf16.msra.mxu0 0
  %2272 = vmatprep.subr.bf16.mxu0 0
  %2273 = vmatpush1.bf16.msra.mxu0 0
  %2274 = vmatprep.subr.bf16.mxu0 0
  %2275 = vmatpush1.bf16.msra.mxu0 0
  %2276 = vmatprep.subr.bf16.mxu0 0
  %2277 = vmatpush1.bf16.msra.mxu0 0
  %2278 = vmatprep.subr.bf16.mxu0 0
  %2279 = vmatpush1.bf16.msra.mxu0 0
  %2280 = vmatprep.subr.bf16.mxu0 0
  %2281 = vmatpush1.bf16.msra.mxu0 0
  %2282 = vmatprep.mubr.bf16.mxu0 0
  %2283 = vmatmul.mubr.bf16.gmra.mrb[0].mxu0 %v2139
  %v2284 = vpop.f32.mrb[0].mxu0
  %v2285 = vadd.f32 0.0, %v2284
  %v2286 = vpop.f32.mrb[0].mxu0
  %v2287 = vpop.f32.mrb[0].mxu0
  %v2288 = vadd.f32 0.0, %v2287
  %v2289 = vpop.f32.mrb[0].mxu0
  %2290 = vmatprep.mubr.bf16.mxu0 0
  %2291 = vmatmul.mubr.bf16.gmra.mrb[0].mxu0 %v2142
  %v2292 = vpop.f32.mrb[0].mxu0
  %v2293 = vadd.f32 0.0, %v2292
  %v2294 = vpop.f32.mrb[0].mxu0
  %v2295 = vpop.f32.mrb[0].mxu0
  %v2296 = vadd.f32 0.0, %v2295
  %v2297 = vpop.f32.mrb[0].mxu0
  %2298 = vdwg.mxu0
  %v2303 = vunpack.c.l.b16 %v1973
  %v2304 = vunpack.c.l.b16 %v1974
  %v2305 = vunpack.c.l.b16 %v1975
  %v2306 = vunpack.c.l.b16 %v1976
  %v2307 = vpack.c.b16 %v2304, %v2303
  %v2308 = vpack.c.b16 %v2306, %v2305
  %v2310 = vsel %vm2137, %v2307, 0
  %v2313 = vsel %vm2137, %v2308, 0
  %2315 = vmatprep.subr.bf16.mxu0 %v1944
  %2316 = vmatpush1.bf16.msra.mxu0 %v1943
  %2317 = vmatprep.subr.bf16.mxu0 %v1949
  %2318 = vmatpush1.bf16.msra.mxu0 %v1948
  %2319 = vmatprep.subr.bf16.mxu0 %v1954
  %2320 = vmatpush1.bf16.msra.mxu0 %v1953
  %2321 = vmatprep.subr.bf16.mxu0 %v1959
  %2322 = vmatpush1.bf16.msra.mxu0 %v1958
  %2323 = vmatprep.subr.bf16.mxu0 %v1964
  %2324 = vmatpush1.bf16.msra.mxu0 %v1963
  %2325 = vmatprep.subr.bf16.mxu0 %v1969
  %2326 = vmatpush1.bf16.msra.mxu0 %v1968
  %2327 = vmatprep.subr.bf16.mxu0 0
  %2328 = vmatpush1.bf16.msra.mxu0 0
  %2329 = vmatprep.subr.bf16.mxu0 0
  %2330 = vmatpush1.bf16.msra.mxu0 0
  %2331 = vmatprep.subr.bf16.mxu0 0
  %2332 = vmatpush1.bf16.msra.mxu0 0
  %2333 = vmatprep.subr.bf16.mxu0 0
  %2334 = vmatpush1.bf16.msra.mxu0 0
  %2335 = vmatprep.subr.bf16.mxu0 0
  %2336 = vmatpush1.bf16.msra.mxu0 0
  %2337 = vmatprep.subr.bf16.mxu0 0
  %2338 = vmatpush1.bf16.msra.mxu0 0
  %2339 = vmatprep.subr.bf16.mxu0 0
  %2340 = vmatpush1.bf16.msra.mxu0 0
  %2341 = vmatprep.subr.bf16.mxu0 0
  %2342 = vmatpush1.bf16.msra.mxu0 0
  %2343 = vmatprep.subr.bf16.mxu0 0
  %2344 = vmatpush1.bf16.msra.mxu0 0
  %2345 = vmatprep.subr.bf16.mxu0 0
  %2346 = vmatpush1.bf16.msra.mxu0 0
  %2347 = vmatprep.mubr.bf16.mxu0 0
  %2348 = vmatmul.mubr.bf16.gmra.mrb[0].mxu0 %v2310
  %v2349 = vpop.f32.mrb[0].mxu0
  %v2350 = vadd.f32 %v2179, %v2349
  %v2351 = vpop.f32.mrb[0].mxu0
  %v2352 = vadd.f32 %v2181, %v2351
  %v2353 = vpop.f32.mrb[0].mxu0
  %v2354 = vadd.f32 %v2183, %v2353
  %v2355 = vpop.f32.mrb[0].mxu0
  %v2356 = vadd.f32 %v2185, %v2355
  %2357 = vmatprep.mubr.bf16.mxu0 0
  %2358 = vmatmul.mubr.bf16.gmra.mrb[0].mxu0 %v2313
  %v2359 = vpop.f32.mrb[0].mxu0
  %v2360 = vadd.f32 %v2189, %v2359
  %v2361 = vpop.f32.mrb[0].mxu0
  %v2362 = vadd.f32 %v2191, %v2361
  %v2363 = vpop.f32.mrb[0].mxu0
  %v2364 = vadd.f32 %v2193, %v2363
  %v2365 = vpop.f32.mrb[0].mxu0
  %v2366 = vadd.f32 %v2195, %v2365
  %2367 = vdwg.mxu0
  %2368 = vmatprep.subr.bf16.mxu0 %v1946
  %2369 = vmatpush1.bf16.msra.mxu0 %v1945
  %2370 = vmatprep.subr.bf16.mxu0 %v1951
  %2371 = vmatpush1.bf16.msra.mxu0 %v1950
  %2372 = vmatprep.subr.bf16.mxu0 %v1956
  %2373 = vmatpush1.bf16.msra.mxu0 %v1955
  %2374 = vmatprep.subr.bf16.mxu0 %v1961
  %2375 = vmatpush1.bf16.msra.mxu0 %v1960
  %2376 = vmatprep.subr.bf16.mxu0 %v1966
  %2377 = vmatpush1.bf16.msra.mxu0 %v1965
  %2378 = vmatprep.subr.bf16.mxu0 %v1971
  %2379 = vmatpush1.bf16.msra.mxu0 %v1970
  %2380 = vmatprep.subr.bf16.mxu0 0
  %2381 = vmatpush1.bf16.msra.mxu0 0
  %2382 = vmatprep.subr.bf16.mxu0 0
  %2383 = vmatpush1.bf16.msra.mxu0 0
  %2384 = vmatprep.subr.bf16.mxu0 0
  %2385 = vmatpush1.bf16.msra.mxu0 0
  %2386 = vmatprep.subr.bf16.mxu0 0
  %2387 = vmatpush1.bf16.msra.mxu0 0
  %2388 = vmatprep.subr.bf16.mxu0 0
  %2389 = vmatpush1.bf16.msra.mxu0 0
  %2390 = vmatprep.subr.bf16.mxu0 0
  %2391 = vmatpush1.bf16.msra.mxu0 0
  %2392 = vmatprep.subr.bf16.mxu0 0
  %2393 = vmatpush1.bf16.msra.mxu0 0
  %2394 = vmatprep.subr.bf16.mxu0 0
  %2395 = vmatpush1.bf16.msra.mxu0 0
  %2396 = vmatprep.subr.bf16.mxu0 0
  %2397 = vmatpush1.bf16.msra.mxu0 0
  %2398 = vmatprep.subr.bf16.mxu0 0
  %2399 = vmatpush1.bf16.msra.mxu0 0
  %2400 = vmatprep.mubr.bf16.mxu0 0
  %2401 = vmatmul.mubr.bf16.gmra.mrb[0].mxu0 %v2310
  %v2402 = vpop.f32.mrb[0].mxu0
  %v2403 = vadd.f32 %v2232, %v2402
  %v2404 = vpop.f32.mrb[0].mxu0
  %v2405 = vadd.f32 %v2234, %v2404
  %v2406 = vpop.f32.mrb[0].mxu0
  %v2407 = vadd.f32 %v2236, %v2406
  %v2408 = vpop.f32.mrb[0].mxu0
  %v2409 = vadd.f32 %v2238, %v2408
  %2410 = vmatprep.mubr.bf16.mxu0 0
  %2411 = vmatmul.mubr.bf16.gmra.mrb[0].mxu0 %v2313
  %v2412 = vpop.f32.mrb[0].mxu0
  %v2413 = vadd.f32 %v2242, %v2412
  %v2414 = vpop.f32.mrb[0].mxu0
  %v2415 = vadd.f32 %v2244, %v2414
  %v2416 = vpop.f32.mrb[0].mxu0
  %v2417 = vadd.f32 %v2246, %v2416
  %v2418 = vpop.f32.mrb[0].mxu0
  %v2419 = vadd.f32 %v2248, %v2418
  %2420 = vdwg.mxu0
  %2421 = vmatprep.subr.bf16.mxu0 0
  %2422 = vmatpush1.bf16.msra.mxu0 %v1947
  %2423 = vmatprep.subr.bf16.mxu0 0
  %2424 = vmatpush1.bf16.msra.mxu0 %v1952
  %2425 = vmatprep.subr.bf16.mxu0 0
  %2426 = vmatpush1.bf16.msra.mxu0 %v1957
  %2427 = vmatprep.subr.bf16.mxu0 0
  %2428 = vmatpush1.bf16.msra.mxu0 %v1962
  %2429 = vmatprep.subr.bf16.mxu0 0
  %2430 = vmatpush1.bf16.msra.mxu0 %v1967
  %2431 = vmatprep.subr.bf16.mxu0 0
  %2432 = vmatpush1.bf16.msra.mxu0 %v1972
  %2433 = vmatprep.subr.bf16.mxu0 0
  %2434 = vmatpush1.bf16.msra.mxu0 0
  %2435 = vmatprep.subr.bf16.mxu0 0
  %2436 = vmatpush1.bf16.msra.mxu0 0
  %2437 = vmatprep.subr.bf16.mxu0 0
  %2438 = vmatpush1.bf16.msra.mxu0 0
  %2439 = vmatprep.subr.bf16.mxu0 0
  %2440 = vmatpush1.bf16.msra.mxu0 0
  %2441 = vmatprep.subr.bf16.mxu0 0
  %2442 = vmatpush1.bf16.msra.mxu0 0
  %2443 = vmatprep.subr.bf16.mxu0 0
  %2444 = vmatpush1.bf16.msra.mxu0 0
  %2445 = vmatprep.subr.bf16.mxu0 0
  %2446 = vmatpush1.bf16.msra.mxu0 0
  %2447 = vmatprep.subr.bf16.mxu0 0
  %2448 = vmatpush1.bf16.msra.mxu0 0
  %2449 = vmatprep.subr.bf16.mxu0 0
  %2450 = vmatpush1.bf16.msra.mxu0 0
  %2451 = vmatprep.subr.bf16.mxu0 0
  %2452 = vmatpush1.bf16.msra.mxu0 0
  %2453 = vmatprep.mubr.bf16.mxu0 0
  %2454 = vmatmul.mubr.bf16.gmra.mrb[0].mxu0 %v2310
  %v2455 = vpop.f32.mrb[0].mxu0
  %v2456 = vadd.f32 %v2285, %v2455
  %v2457 = vpop.f32.mrb[0].mxu0
  %v2458 = vpop.f32.mrb[0].mxu0
  %v2459 = vadd.f32 %v2288, %v2458
  %v2460 = vpop.f32.mrb[0].mxu0
  %2461 = vmatprep.mubr.bf16.mxu0 0
  %2462 = vmatmul.mubr.bf16.gmra.mrb[0].mxu0 %v2313
  %v2463 = vpop.f32.mrb[0].mxu0
  %v2464 = vadd.f32 %v2293, %v2463
  %v2465 = vpop.f32.mrb[0].mxu0
  %v2466 = vpop.f32.mrb[0].mxu0
  %v2467 = vadd.f32 %v2296, %v2466
  %v2468 = vpop.f32.mrb[0].mxu0
  %2469 = vdwg.mxu0
  %v2470 = vld [vmem:[#allocation2] sm:$0xff]
  %v2471 = vld [vmem:[#allocation2 + $0x8] sm:$0xff]
  %v2472 = vld [vmem:[#allocation2 + $0x10] sm:$0xff]
  %v2473 = vld [vmem:[#allocation2 + $0x18] sm:$0xff]
  %v2474 = vld [vmem:[#allocation2 + $0x20] sm:$0xff]
  %v2475 = vld [vmem:[#allocation2 + $0x28] sm:$0xff]
  %v2476 = vld [vmem:[#allocation2 + $0x30] sm:$0xff]
  %v2477 = vld [vmem:[#allocation2 + $0x38] sm:$0xff]
  %v2478 = vld [vmem:[#allocation2 + $0x40] sm:$0xff]
  %v2479 = vld [vmem:[#allocation2 + $0x48] sm:$0xff]
  %v2480 = vld [vmem:[#allocation2 + $0x50] sm:$0xff]
  %v2481 = vld [vmem:[#allocation2 + $0x58] sm:$0xff]
  %v2482 = vld [vmem:[#allocation2 + $0x60] sm:$0xff]
  %v2483 = vld [vmem:[#allocation2 + $0x68] sm:$0xff]
  %v2484 = vld [vmem:[#allocation2 + $0x70] sm:$0xff]
  %v2485 = vld [vmem:[#allocation2 + $0x78] sm:$0xff]
  %v2486 = vld [vmem:[#allocation2 + $0x80] sm:$0xff]
  %v2487 = vld [vmem:[#allocation2 + $0x88] sm:$0xff]
  %v2488 = vld [vmem:[#allocation2 + $0x90] sm:$0xff]
  %v2489 = vld [vmem:[#allocation2 + $0x98] sm:$0xff]
  %v2490 = vld [vmem:[#allocation2 + $0xa0] sm:$0xff]
  %v2491 = vld [vmem:[#allocation2 + $0xa8] sm:$0xff]
  %v2492 = vld [vmem:[#allocation2 + $0xb0] sm:$0xff]
  %v2493 = vld [vmem:[#allocation2 + $0xb8] sm:$0xff]
  %v2494 = vld [vmem:[#allocation2 + $0xc0] sm:$0xff]
  %v2495 = vld [vmem:[#allocation2 + $0xc8] sm:$0xff]
  %v2496 = vld [vmem:[#allocation2 + $0xd0] sm:$0xff]
  %v2497 = vld [vmem:[#allocation2 + $0xd8] sm:$0xff]
  %v2498 = vld [vmem:[#allocation2 + $0xe0] sm:$0xff]
  %v2499 = vld [vmem:[#allocation2 + $0xe8] sm:$0xff]
  %v2500 = vld [vmem:[#allocation2 + $0xf0] sm:$0xff]
  %v2501 = vld [vmem:[#allocation2 + $0xf8] sm:$0xff]
  %v2502 = vld [vmem:[#allocation2 + $0x100] sm:$0xff]
  %v2503 = vld [vmem:[#allocation2 + $0x108] sm:$0xff]
  %v2504 = vld [vmem:[#allocation2 + $0x110] sm:$0xff]
  %v2505 = vld [vmem:[#allocation2 + $0x118] sm:$0xff]
  %s2506 = scalar_lea.vmem %s3, 32
  %v2507 = vld [vmem:[%s2506] sm:$0xf]
  %v2508 = vld [vmem:[%s2506 + $0x4] sm:$0xf]
  %v2509 = vld [vmem:[%s2506 + $0x8] sm:$0xf]
  %v2510 = vld [vmem:[%s2506 + $0xc] sm:$0xf]
  %v2515 = vunpack.c.l.b16 %v2507
  %v2516 = vunpack.c.l.b16 %v2508
  %v2517 = vunpack.c.l.b16 %v2509
  %v2518 = vunpack.c.l.b16 %v2510
  %v2519 = vpack.c.b16 %v2516, %v2515
  %v2520 = vpack.c.b16 %v2518, %v2517
  %2557 = vrot.lane.b32.xlu0 %v2470, 92
  %v2558 = vpop.permute.xlu0 %2557
  %2559 = vrot.lane.b32.xlu0 %v2471, 92
  %v2560 = vpop.permute.xlu0 %2559
  %2561 = vrot.lane.b32.xlu0 %v2472, 92
  %v2562 = vpop.permute.xlu0 %2561
  %2563 = vrot.lane.b32.xlu0 %v2473, 92
  %v2564 = vpop.permute.xlu0 %2563
  %2565 = vrot.lane.b32.xlu0 %v2474, 92
  %v2566 = vpop.permute.xlu0 %2565
  %2567 = vrot.lane.b32.xlu0 %v2475, 92
  %v2568 = vpop.permute.xlu0 %2567
  %2569 = vrot.lane.b32.xlu0 %v2476, 92
  %v2570 = vpop.permute.xlu0 %2569
  %2571 = vrot.lane.b32.xlu0 %v2477, 92
  %v2572 = vpop.permute.xlu0 %2571
  %2573 = vrot.lane.b32.xlu0 %v2478, 92
  %v2574 = vpop.permute.xlu0 %2573
  %2575 = vrot.lane.b32.xlu0 %v2479, 92
  %v2576 = vpop.permute.xlu0 %2575
  %2577 = vrot.lane.b32.xlu0 %v2480, 92
  %v2578 = vpop.permute.xlu0 %2577
  %2579 = vrot.lane.b32.xlu0 %v2481, 92
  %v2580 = vpop.permute.xlu0 %2579
  %2581 = vrot.lane.b32.xlu0 %v2482, 92
  %v2582 = vpop.permute.xlu0 %2581
  %2583 = vrot.lane.b32.xlu0 %v2483, 92
  %v2584 = vpop.permute.xlu0 %2583
  %2585 = vrot.lane.b32.xlu0 %v2484, 92
  %v2586 = vpop.permute.xlu0 %2585
  %2587 = vrot.lane.b32.xlu0 %v2485, 92
  %v2588 = vpop.permute.xlu0 %2587
  %2589 = vrot.lane.b32.xlu0 %v2486, 92
  %v2590 = vpop.permute.xlu0 %2589
  %2591 = vrot.lane.b32.xlu0 %v2487, 92
  %v2592 = vpop.permute.xlu0 %2591
  %2593 = vrot.lane.b32.xlu0 %v2488, 92
  %v2594 = vpop.permute.xlu0 %2593
  %2595 = vrot.lane.b32.xlu0 %v2489, 92
  %v2596 = vpop.permute.xlu0 %2595
  %2597 = vrot.lane.b32.xlu0 %v2490, 92
  %v2598 = vpop.permute.xlu0 %2597
  %2599 = vrot.lane.b32.xlu0 %v2491, 92
  %v2600 = vpop.permute.xlu0 %2599
  %2601 = vrot.lane.b32.xlu0 %v2492, 92
  %v2602 = vpop.permute.xlu0 %2601
  %2603 = vrot.lane.b32.xlu0 %v2493, 92
  %v2604 = vpop.permute.xlu0 %2603
  %2605 = vrot.lane.b32.xlu0 %v2494, 92
  %v2606 = vpop.permute.xlu0 %2605
  %2607 = vrot.lane.b32.xlu0 %v2495, 92
  %v2608 = vpop.permute.xlu0 %2607
  %2609 = vrot.lane.b32.xlu0 %v2496, 92
  %v2610 = vpop.permute.xlu0 %2609
  %2611 = vrot.lane.b32.xlu0 %v2497, 92
  %v2612 = vpop.permute.xlu0 %2611
  %2613 = vrot.lane.b32.xlu0 %v2498, 92
  %v2614 = vpop.permute.xlu0 %2613
  %2615 = vrot.lane.b32.xlu0 %v2499, 92
  %v2616 = vpop.permute.xlu0 %2615
  %2617 = vrot.lane.b32.xlu0 %v2500, 92
  %v2618 = vpop.permute.xlu0 %2617
  %2619 = vrot.lane.b32.xlu0 %v2501, 92
  %v2620 = vpop.permute.xlu0 %2619
  %2621 = vrot.lane.b32.xlu0 %v2502, 92
  %v2622 = vpop.permute.xlu0 %2621
  %2623 = vrot.lane.b32.xlu0 %v2503, 92
  %v2624 = vpop.permute.xlu0 %2623
  %2625 = vrot.lane.b32.xlu0 %v2504, 92
  %v2626 = vpop.permute.xlu0 %2625
  %2627 = vrot.lane.b32.xlu0 %v2505, 92
  %v2628 = vpop.permute.xlu0 %2627
  %vm2629 = vcmask 752640
  %v2630 = vsel %vm2629, %v2558, %v2560
  %v2631 = vsel %vm2629, %v2560, %v2562
  %v2632 = vsel %vm2629, %v2562, %v2564
  %v2633 = vsel %vm2629, %v2564, %v2566
  %v2634 = vsel %vm2629, %v2566, %v2568
  %v2635 = vsel %vm2629, %v2570, %v2572
  %v2636 = vsel %vm2629, %v2572, %v2574
  %v2637 = vsel %vm2629, %v2574, %v2576
  %v2638 = vsel %vm2629, %v2576, %v2578
  %v2639 = vsel %vm2629, %v2578, %v2580
  %v2640 = vsel %vm2629, %v2582, %v2584
  %v2641 = vsel %vm2629, %v2584, %v2586
  %v2642 = vsel %vm2629, %v2586, %v2588
  %v2643 = vsel %vm2629, %v2588, %v2590
  %v2644 = vsel %vm2629, %v2590, %v2592
  %v2645 = vsel %vm2629, %v2594, %v2596
  %v2646 = vsel %vm2629, %v2596, %v2598
  %v2647 = vsel %vm2629, %v2598, %v2600
  %v2648 = vsel %vm2629, %v2600, %v2602
  %v2649 = vsel %vm2629, %v2602, %v2604
  %v2650 = vsel %vm2629, %v2606, %v2608
  %v2651 = vsel %vm2629, %v2608, %v2610
  %v2652 = vsel %vm2629, %v2610, %v2612
  %v2653 = vsel %vm2629, %v2612, %v2614
  %v2654 = vsel %vm2629, %v2614, %v2616
  %v2655 = vsel %vm2629, %v2618, %v2620
  %v2656 = vsel %vm2629, %v2620, %v2622
  %v2657 = vsel %vm2629, %v2622, %v2624
  %v2658 = vsel %vm2629, %v2624, %v2626
  %v2659 = vsel %vm2629, %v2626, %v2628
  %v2691 = vsel %vm2137, %v2519, 0
  %v2694 = vsel %vm2137, %v2520, 0
  %2696 = vmatprep.subr.bf16.mxu0 %v2631
  %2697 = vmatpush1.bf16.msra.mxu0 %v2630
  %2698 = vmatprep.subr.bf16.mxu0 %v2636
  %2699 = vmatpush1.bf16.msra.mxu0 %v2635
  %2700 = vmatprep.subr.bf16.mxu0 %v2641
  %2701 = vmatpush1.bf16.msra.mxu0 %v2640
  %2702 = vmatprep.subr.bf16.mxu0 %v2646
  %2703 = vmatpush1.bf16.msra.mxu0 %v2645
  %2704 = vmatprep.subr.bf16.mxu0 %v2651
  %2705 = vmatpush1.bf16.msra.mxu0 %v2650
  %2706 = vmatprep.subr.bf16.mxu0 %v2656
  %2707 = vmatpush1.bf16.msra.mxu0 %v2655
  %2708 = vmatprep.subr.bf16.mxu0 0
  %2709 = vmatpush1.bf16.msra.mxu0 0
  %2710 = vmatprep.subr.bf16.mxu0 0
  %2711 = vmatpush1.bf16.msra.mxu0 0
  %2712 = vmatprep.subr.bf16.mxu0 0
  %2713 = vmatpush1.bf16.msra.mxu0 0
  %2714 = vmatprep.subr.bf16.mxu0 0
  %2715 = vmatpush1.bf16.msra.mxu0 0
  %2716 = vmatprep.subr.bf16.mxu0 0
  %2717 = vmatpush1.bf16.msra.mxu0 0
  %2718 = vmatprep.subr.bf16.mxu0 0
  %2719 = vmatpush1.bf16.msra.mxu0 0
  %2720 = vmatprep.subr.bf16.mxu0 0
  %2721 = vmatpush1.bf16.msra.mxu0 0
  %2722 = vmatprep.subr.bf16.mxu0 0
  %2723 = vmatpush1.bf16.msra.mxu0 0
  %2724 = vmatprep.subr.bf16.mxu0 0
  %2725 = vmatpush1.bf16.msra.mxu0 0
  %2726 = vmatprep.subr.bf16.mxu0 0
  %2727 = vmatpush1.bf16.msra.mxu0 0
  %2728 = vmatprep.mubr.bf16.mxu0 0
  %2729 = vmatmul.mubr.bf16.gmra.mrb[0].mxu0 %v2691
  %v2730 = vpop.f32.mrb[0].mxu0
  %v2731 = vadd.f32 0.0, %v2730
  %v2732 = vpop.f32.mrb[0].mxu0
  %v2733 = vadd.f32 0.0, %v2732
  %v2734 = vpop.f32.mrb[0].mxu0
  %v2735 = vadd.f32 0.0, %v2734
  %v2736 = vpop.f32.mrb[0].mxu0
  %v2737 = vadd.f32 0.0, %v2736
  %2738 = vmatprep.mubr.bf16.mxu0 0
  %2739 = vmatmul.mubr.bf16.gmra.mrb[0].mxu0 %v2694
  %v2740 = vpop.f32.mrb[0].mxu0
  %v2741 = vadd.f32 0.0, %v2740
  %v2742 = vpop.f32.mrb[0].mxu0
  %v2743 = vadd.f32 0.0, %v2742
  %v2744 = vpop.f32.mrb[0].mxu0
  %v2745 = vadd.f32 0.0, %v2744
  %v2746 = vpop.f32.mrb[0].mxu0
  %v2747 = vadd.f32 0.0, %v2746
  %2748 = vdwg.mxu0
  %2749 = vmatprep.subr.bf16.mxu0 %v2633
  %2750 = vmatpush1.bf16.msra.mxu0 %v2632
  %2751 = vmatprep.subr.bf16.mxu0 %v2638
  %2752 = vmatpush1.bf16.msra.mxu0 %v2637
  %2753 = vmatprep.subr.bf16.mxu0 %v2643
  %2754 = vmatpush1.bf16.msra.mxu0 %v2642
  %2755 = vmatprep.subr.bf16.mxu0 %v2648
  %2756 = vmatpush1.bf16.msra.mxu0 %v2647
  %2757 = vmatprep.subr.bf16.mxu0 %v2653
  %2758 = vmatpush1.bf16.msra.mxu0 %v2652
  %2759 = vmatprep.subr.bf16.mxu0 %v2658
  %2760 = vmatpush1.bf16.msra.mxu0 %v2657
  %2761 = vmatprep.subr.bf16.mxu0 0
  %2762 = vmatpush1.bf16.msra.mxu0 0
  %2763 = vmatprep.subr.bf16.mxu0 0
  %2764 = vmatpush1.bf16.msra.mxu0 0
  %2765 = vmatprep.subr.bf16.mxu0 0
  %2766 = vmatpush1.bf16.msra.mxu0 0
  %2767 = vmatprep.subr.bf16.mxu0 0
  %2768 = vmatpush1.bf16.msra.mxu0 0
  %2769 = vmatprep.subr.bf16.mxu0 0
  %2770 = vmatpush1.bf16.msra.mxu0 0
  %2771 = vmatprep.subr.bf16.mxu0 0
  %2772 = vmatpush1.bf16.msra.mxu0 0
  %2773 = vmatprep.subr.bf16.mxu0 0
  %2774 = vmatpush1.bf16.msra.mxu0 0
  %2775 = vmatprep.subr.bf16.mxu0 0
  %2776 = vmatpush1.bf16.msra.mxu0 0
  %2777 = vmatprep.subr.bf16.mxu0 0
  %2778 = vmatpush1.bf16.msra.mxu0 0
  %2779 = vmatprep.subr.bf16.mxu0 0
  %2780 = vmatpush1.bf16.msra.mxu0 0
  %2781 = vmatprep.mubr.bf16.mxu0 0
  %2782 = vmatmul.mubr.bf16.gmra.mrb[0].mxu0 %v2691
  %v2783 = vpop.f32.mrb[0].mxu0
  %v2784 = vadd.f32 0.0, %v2783
  %v2785 = vpop.f32.mrb[0].mxu0
  %v2786 = vadd.f32 0.0, %v2785
  %v2787 = vpop.f32.mrb[0].mxu0
  %v2788 = vadd.f32 0.0, %v2787
  %v2789 = vpop.f32.mrb[0].mxu0
  %v2790 = vadd.f32 0.0, %v2789
  %2791 = vmatprep.mubr.bf16.mxu0 0
  %2792 = vmatmul.mubr.bf16.gmra.mrb[0].mxu0 %v2694
  %v2793 = vpop.f32.mrb[0].mxu0
  %v2794 = vadd.f32 0.0, %v2793
  %v2795 = vpop.f32.mrb[0].mxu0
  %v2796 = vadd.f32 0.0, %v2795
  %v2797 = vpop.f32.mrb[0].mxu0
  %v2798 = vadd.f32 0.0, %v2797
  %v2799 = vpop.f32.mrb[0].mxu0
  %v2800 = vadd.f32 0.0, %v2799
  %2801 = vdwg.mxu0
  %2802 = vmatprep.subr.bf16.mxu0 0
  %2803 = vmatpush1.bf16.msra.mxu0 %v2634
  %2804 = vmatprep.subr.bf16.mxu0 0
  %2805 = vmatpush1.bf16.msra.mxu0 %v2639
  %2806 = vmatprep.subr.bf16.mxu0 0
  %2807 = vmatpush1.bf16.msra.mxu0 %v2644
  %2808 = vmatprep.subr.bf16.mxu0 0
  %2809 = vmatpush1.bf16.msra.mxu0 %v2649
  %2810 = vmatprep.subr.bf16.mxu0 0
  %2811 = vmatpush1.bf16.msra.mxu0 %v2654
  %2812 = vmatprep.subr.bf16.mxu0 0
  %2813 = vmatpush1.bf16.msra.mxu0 %v2659
  %2814 = vmatprep.subr.bf16.mxu0 0
  %2815 = vmatpush1.bf16.msra.mxu0 0
  %2816 = vmatprep.subr.bf16.mxu0 0
  %2817 = vmatpush1.bf16.msra.mxu0 0
  %2818 = vmatprep.subr.bf16.mxu0 0
  %2819 = vmatpush1.bf16.msra.mxu0 0
  %2820 = vmatprep.subr.bf16.mxu0 0
  %2821 = vmatpush1.bf16.msra.mxu0 0
  %2822 = vmatprep.subr.bf16.mxu0 0
  %2823 = vmatpush1.bf16.msra.mxu0 0
  %2824 = vmatprep.subr.bf16.mxu0 0
  %2825 = vmatpush1.bf16.msra.mxu0 0
  %2826 = vmatprep.subr.bf16.mxu0 0
  %2827 = vmatpush1.bf16.msra.mxu0 0
  %2828 = vmatprep.subr.bf16.mxu0 0
  %2829 = vmatpush1.bf16.msra.mxu0 0
  %2830 = vmatprep.subr.bf16.mxu0 0
  %2831 = vmatpush1.bf16.msra.mxu0 0
  %2832 = vmatprep.subr.bf16.mxu0 0
  %2833 = vmatpush1.bf16.msra.mxu0 0
  %2834 = vmatprep.mubr.bf16.mxu0 0
  %2835 = vmatmul.mubr.bf16.gmra.mrb[0].mxu0 %v2691
  %v2836 = vpop.f32.mrb[0].mxu0
  %v2837 = vadd.f32 0.0, %v2836
  %v2838 = vpop.f32.mrb[0].mxu0
  %v2839 = vpop.f32.mrb[0].mxu0
  %v2840 = vadd.f32 0.0, %v2839
  %v2841 = vpop.f32.mrb[0].mxu0
  %2842 = vmatprep.mubr.bf16.mxu0 0
  %2843 = vmatmul.mubr.bf16.gmra.mrb[0].mxu0 %v2694
  %v2844 = vpop.f32.mrb[0].mxu0
  %v2845 = vadd.f32 0.0, %v2844
  %v2846 = vpop.f32.mrb[0].mxu0
  %v2847 = vpop.f32.mrb[0].mxu0
  %v2848 = vadd.f32 0.0, %v2847
  %v2849 = vpop.f32.mrb[0].mxu0
  %2850 = vdwg.mxu0
  %v2851 = vadd.f32 %v2350, %v2731
  %v2852 = vadd.f32 %v2352, %v2733
  %v2853 = vadd.f32 %v2403, %v2784
  %v2854 = vadd.f32 %v2405, %v2786
  %v2855 = vadd.f32 %v2456, %v2837
  %v2856 = vadd.f32 %v2354, %v2735
  %v2857 = vadd.f32 %v2356, %v2737
  %v2858 = vadd.f32 %v2407, %v2788
  %v2859 = vadd.f32 %v2409, %v2790
  %v2860 = vadd.f32 %v2459, %v2840
  %v2861 = vadd.f32 %v2360, %v2741
  %v2862 = vadd.f32 %v2362, %v2743
  %v2863 = vadd.f32 %v2413, %v2794
  %v2864 = vadd.f32 %v2415, %v2796
  %v2865 = vadd.f32 %v2464, %v2845
  %v2866 = vadd.f32 %v2364, %v2745
  %v2867 = vadd.f32 %v2366, %v2747
  %v2868 = vadd.f32 %v2417, %v2798
  %v2869 = vadd.f32 %v2419, %v2800
  %v2870 = vadd.f32 %v2467, %v2848
  %v2871 = vld [vmem:[%s4] sm:$0xff]
  %v2872 = vld [vmem:[%s4 + $0x8] sm:$0xff]
  %v2873 = vld [vmem:[%s4 + $0x10] sm:$0xff]
  %v2874 = vld [vmem:[%s4 + $0x18] sm:$0xff]
  %2876 = vset.pattern.permute.xlu0 0
  %2877 = vperm.xlu0 %2876, %v2871
  %v2878 = vpop.permute.xlu0 %2877
  %2881 = vset.pattern.permute.xlu0 0
  %2882 = vperm.xlu0 %2881, %v2872
  %v2883 = vpop.permute.xlu0 %2882
  %2886 = vset.pattern.permute.xlu0 0
  %2887 = vperm.xlu0 %2886, %v2873
  %v2888 = vpop.permute.xlu0 %2887
  %2891 = vset.pattern.permute.xlu0 0
  %2892 = vperm.xlu0 %2891, %v2874
  %v2893 = vpop.permute.xlu0 %2892
  %v2895 = vadd.f32 %v2851, %v2878
  %v2896 = vadd.f32 %v2852, %v2878
  %v2897 = vadd.f32 %v2853, %v2878
  %v2898 = vadd.f32 %v2854, %v2878
  %v2899 = vadd.f32 %v2855, %v2878
  %v2900 = vadd.f32 %v2856, %v2883
  %v2901 = vadd.f32 %v2857, %v2883
  %v2902 = vadd.f32 %v2858, %v2883
  %v2903 = vadd.f32 %v2859, %v2883
  %v2904 = vadd.f32 %v2860, %v2883
  %v2905 = vadd.f32 %v2861, %v2888
  %v2906 = vadd.f32 %v2862, %v2888
  %v2907 = vadd.f32 %v2863, %v2888
  %v2908 = vadd.f32 %v2864, %v2888
  %v2909 = vadd.f32 %v2865, %v2888
  %v2910 = vadd.f32 %v2866, %v2893
  %v2911 = vadd.f32 %v2867, %v2893
  %v2912 = vadd.f32 %v2868, %v2893
  %v2913 = vadd.f32 %v2869, %v2893
  %v2914 = vadd.f32 %v2870, %v2893
  %v2915 = vmax.f32 %v2895, 0.0
  %v2916 = vmax.f32 %v2896, 0.0
  %v2917 = vmax.f32 %v2897, 0.0
  %v2918 = vmax.f32 %v2898, 0.0
  %v2919 = vmax.f32 %v2899, 0.0
  %v2920 = vmax.f32 %v2900, 0.0
  %v2921 = vmax.f32 %v2901, 0.0
  %v2922 = vmax.f32 %v2902, 0.0
  %v2923 = vmax.f32 %v2903, 0.0
  %v2924 = vmax.f32 %v2904, 0.0
  %v2925 = vmax.f32 %v2905, 0.0
  %v2926 = vmax.f32 %v2906, 0.0
  %v2927 = vmax.f32 %v2907, 0.0
  %v2928 = vmax.f32 %v2908, 0.0
  %v2929 = vmax.f32 %v2909, 0.0
  %v2930 = vmax.f32 %v2910, 0.0
  %v2931 = vmax.f32 %v2911, 0.0
  %v2932 = vmax.f32 %v2912, 0.0
  %v2933 = vmax.f32 %v2913, 0.0
  %v2934 = vmax.f32 %v2914, 0.0
  %v2935 = vsel %vm1671, %v2915, 0.0
  %v2936 = vsel %vm1672, %v2916, 0.0
  %v2937 = vsel %vm1673, %v2917, 0.0
  %v2938 = vsel %vm1674, %v2918, 0.0
  %v2939 = vsel %vm1675, %v2919, 0.0
  %v2940 = vsel %vm1671, %v2920, 0.0
  %v2941 = vsel %vm1672, %v2921, 0.0
  %v2942 = vsel %vm1673, %v2922, 0.0
  %v2943 = vsel %vm1674, %v2923, 0.0
  %v2944 = vsel %vm1675, %v2924, 0.0
  %v2945 = vsel %vm1671, %v2925, 0.0
  %v2946 = vsel %vm1672, %v2926, 0.0
  %v2947 = vsel %vm1673, %v2927, 0.0
  %v2948 = vsel %vm1674, %v2928, 0.0
  %v2949 = vsel %vm1675, %v2929, 0.0
  %v2950 = vsel %vm1671, %v2930, 0.0
  %v2951 = vsel %vm1672, %v2931, 0.0
  %v2952 = vsel %vm1673, %v2932, 0.0
  %v2953 = vsel %vm1674, %v2933, 0.0
  %v2954 = vsel %vm1675, %v2934, 0.0
  %v2955 = vpack.c.bf16 %v2940, %v2935
  %v2956 = vpack.c.bf16 %v2941, %v2936
  %v2957 = vpack.c.bf16 %v2942, %v2937
  %v2958 = vpack.c.bf16 %v2943, %v2938
  %v2959 = vpack.c.bf16 %v2944, %v2939
  %v2960 = vpack.c.bf16 %v2950, %v2945
  %v2961 = vpack.c.bf16 %v2951, %v2946
  %v2962 = vpack.c.bf16 %v2952, %v2947
  %v2963 = vpack.c.bf16 %v2953, %v2948
  %v2964 = vpack.c.bf16 %v2954, %v2949
  %2965 = vst.msk [vmem:[#allocation3] sm:$0xff] %vm1706, 0
  %2966 = vst.msk [vmem:[#allocation3 + $0x30] sm:$0xff] %vm1706, 0
  %2977 = vrot.lane.b32.xlu0 %v2955, 19
  %v2978 = vpop.permute.xlu0 %2977
  %2979 = vrot.lane.b32.xlu0 %v2956, 19
  %v2980 = vpop.permute.xlu0 %2979
  %2981 = vrot.lane.b32.xlu0 %v2957, 19
  %v2982 = vpop.permute.xlu0 %2981
  %2983 = vrot.lane.b32.xlu0 %v2958, 19
  %v2984 = vpop.permute.xlu0 %2983
  %2985 = vrot.lane.b32.xlu0 %v2959, 19
  %v2986 = vpop.permute.xlu0 %2985
  %2987 = vrot.lane.b32.xlu0 %v2960, 19
  %v2988 = vpop.permute.xlu0 %2987
  %2989 = vrot.lane.b32.xlu0 %v2961, 19
  %v2990 = vpop.permute.xlu0 %2989
  %2991 = vrot.lane.b32.xlu0 %v2962, 19
  %v2992 = vpop.permute.xlu0 %2991
  %2993 = vrot.lane.b32.xlu0 %v2963, 19
  %v2994 = vpop.permute.xlu0 %2993
  %2995 = vrot.lane.b32.xlu0 %v2964, 19
  %v2996 = vpop.permute.xlu0 %2995
  %v2997 = vsel %vm1739, %v2978, %v2980
  %v2998 = vsel %vm1739, %v2980, %v2982
  %v2999 = vsel %vm1739, %v2982, %v2984
  %v3000 = vsel %vm1739, %v2984, %v2986
  %v3001 = vsel %vm1739, %v2988, %v2990
  %v3002 = vsel %vm1739, %v2990, %v2992
  %v3003 = vsel %vm1739, %v2992, %v2994
  %v3004 = vsel %vm1739, %v2994, %v2996
  %3015 = vst.msk [vmem:[#allocation3] sm:$0xff] %vm1758, %v2978
  %3016 = vst [vmem:[#allocation3 + $0x8] sm:$0xff] %v2997
  %3017 = vst [vmem:[#allocation3 + $0x10] sm:$0xff] %v2998
  %3018 = vst [vmem:[#allocation3 + $0x18] sm:$0xff] %v2999
  %3019 = vst.msk [vmem:[#allocation3 + $0x20] sm:$0xff] %vm1763, %v3000
  %3020 = vst.msk [vmem:[#allocation3 + $0x30] sm:$0xff] %vm1758, %v2988
  %3021 = vst [vmem:[#allocation3 + $0x38] sm:$0xff] %v3001
  %3022 = vst [vmem:[#allocation3 + $0x40] sm:$0xff] %v3002
  %3023 = vst [vmem:[#allocation3 + $0x48] sm:$0xff] %v3003
  %3024 = vst.msk [vmem:[#allocation3 + $0x50] sm:$0xff] %vm1763, %v3004
  %3025 = vst.msk [vmem:[#allocation3 + $0x20] sm:$0xff] %vm1770, 0
  %3026 = vst.msk [vmem:[#allocation3 + $0x28] sm:$0xff] %vm1772, 0
  %3027 = vst.msk [vmem:[#allocation3 + $0x50] sm:$0xff] %vm1770, 0
  %3028 = vst.msk [vmem:[#allocation3 + $0x58] sm:$0xff] %vm1772, 0
  %v3029 = vld [vmem:[#allocation3] sm:$0xff]
  %v3030 = vld [vmem:[#allocation3 + $0x8] sm:$0xff]
  %v3031 = vld [vmem:[#allocation3 + $0x10] sm:$0xff]
  %v3032 = vld [vmem:[#allocation3 + $0x18] sm:$0xff]
  %v3033 = vld [vmem:[#allocation3 + $0x20] sm:$0xff]
  %v3034 = vld [vmem:[#allocation3 + $0x28] sm:$0xff]
  %v3035 = vld [vmem:[#allocation3 + $0x30] sm:$0xff]
  %v3036 = vld [vmem:[#allocation3 + $0x38] sm:$0xff]
  %v3037 = vld [vmem:[#allocation3 + $0x40] sm:$0xff]
  %v3038 = vld [vmem:[#allocation3 + $0x48] sm:$0xff]
  %v3039 = vld [vmem:[#allocation3 + $0x50] sm:$0xff]
  %v3040 = vld [vmem:[#allocation3 + $0x58] sm:$0xff]
  %3053 = vrot.lane.b32.xlu0 %v3029, 127
  %v3054 = vpop.permute.xlu0 %3053
  %3055 = vrot.lane.b32.xlu0 %v3030, 127
  %v3056 = vpop.permute.xlu0 %3055
  %3057 = vrot.lane.b32.xlu0 %v3031, 127
  %v3058 = vpop.permute.xlu0 %3057
  %3059 = vrot.lane.b32.xlu0 %v3032, 127
  %v3060 = vpop.permute.xlu0 %3059
  %3061 = vrot.lane.b32.xlu0 %v3033, 127
  %v3062 = vpop.permute.xlu0 %3061
  %3063 = vrot.lane.b32.xlu0 %v3034, 127
  %v3064 = vpop.permute.xlu0 %3063
  %3065 = vrot.lane.b32.xlu0 %v3035, 127
  %v3066 = vpop.permute.xlu0 %3065
  %3067 = vrot.lane.b32.xlu0 %v3036, 127
  %v3068 = vpop.permute.xlu0 %3067
  %3069 = vrot.lane.b32.xlu0 %v3037, 127
  %v3070 = vpop.permute.xlu0 %3069
  %3071 = vrot.lane.b32.xlu0 %v3038, 127
  %v3072 = vpop.permute.xlu0 %3071
  %3073 = vrot.lane.b32.xlu0 %v3039, 127
  %v3074 = vpop.permute.xlu0 %3073
  %3075 = vrot.lane.b32.xlu0 %v3040, 127
  %v3076 = vpop.permute.xlu0 %3075
  %v3077 = vsel %vm1824, %v3054, %v3056
  %v3078 = vsel %vm1824, %v3056, %v3058
  %v3079 = vsel %vm1824, %v3058, %v3060
  %v3080 = vsel %vm1824, %v3060, %v3062
  %v3081 = vsel %vm1824, %v3062, %v3064
  %v3082 = vsel %vm1824, %v3066, %v3068
  %v3083 = vsel %vm1824, %v3068, %v3070
  %v3084 = vsel %vm1824, %v3070, %v3072
  %v3085 = vsel %vm1824, %v3072, %v3074
  %v3086 = vsel %vm1824, %v3074, %v3076
  %3099 = vst [vmem:[#allocation3 + $0x60] sm:$0xff] %v3077
  %3100 = vst [vmem:[#allocation3 + $0x68] sm:$0xff] %v3078
  %3101 = vst [vmem:[#allocation3 + $0x70] sm:$0xff] %v3079
  %3102 = vst [vmem:[#allocation3 + $0x78] sm:$0xff] %v3080
  %3103 = vst [vmem:[#allocation3 + $0x80] sm:$0xff] %v3081
  %3104 = vst.msk [vmem:[#allocation3 + $0x88] sm:$0xff] %vm1852, %v3064
  %3105 = vst [vmem:[#allocation3 + $0x90] sm:$0xff] %v3082
  %3106 = vst [vmem:[#allocation3 + $0x98] sm:$0xff] %v3083
  %3107 = vst [vmem:[#allocation3 + $0xa0] sm:$0xff] %v3084
  %3108 = vst [vmem:[#allocation3 + $0xa8] sm:$0xff] %v3085
  %3109 = vst [vmem:[#allocation3 + $0xb0] sm:$0xff] %v3086
  %3110 = vst.msk [vmem:[#allocation3 + $0xb8] sm:$0xff] %vm1852, %v3076
  %v3111 = vld [vmem:[#allocation3] sm:$0xff]
  %v3112 = vld [vmem:[#allocation3 + $0x8] sm:$0xff]
  %v3113 = vld [vmem:[#allocation3 + $0x10] sm:$0xff]
  %v3114 = vld [vmem:[#allocation3 + $0x18] sm:$0xff]
  %v3115 = vld [vmem:[#allocation3 + $0x20] sm:$0xff]
  %v3116 = vld [vmem:[#allocation3 + $0x28] sm:$0xff]
  %v3117 = vld [vmem:[#allocation3 + $0x30] sm:$0xff]
  %v3118 = vld [vmem:[#allocation3 + $0x38] sm:$0xff]
  %v3119 = vld [vmem:[#allocation3 + $0x40] sm:$0xff]
  %v3120 = vld [vmem:[#allocation3 + $0x48] sm:$0xff]
  %v3121 = vld [vmem:[#allocation3 + $0x50] sm:$0xff]
  %v3122 = vld [vmem:[#allocation3 + $0x58] sm:$0xff]
  %3135 = vrot.lane.b32.xlu0 %v3111, 126
  %v3136 = vpop.permute.xlu0 %3135
  %3137 = vrot.lane.b32.xlu0 %v3112, 126
  %v3138 = vpop.permute.xlu0 %3137
  %3139 = vrot.lane.b32.xlu0 %v3113, 126
  %v3140 = vpop.permute.xlu0 %3139
  %3141 = vrot.lane.b32.xlu0 %v3114, 126
  %v3142 = vpop.permute.xlu0 %3141
  %3143 = vrot.lane.b32.xlu0 %v3115, 126
  %v3144 = vpop.permute.xlu0 %3143
  %3145 = vrot.lane.b32.xlu0 %v3116, 126
  %v3146 = vpop.permute.xlu0 %3145
  %3147 = vrot.lane.b32.xlu0 %v3117, 126
  %v3148 = vpop.permute.xlu0 %3147
  %3149 = vrot.lane.b32.xlu0 %v3118, 126
  %v3150 = vpop.permute.xlu0 %3149
  %3151 = vrot.lane.b32.xlu0 %v3119, 126
  %v3152 = vpop.permute.xlu0 %3151
  %3153 = vrot.lane.b32.xlu0 %v3120, 126
  %v3154 = vpop.permute.xlu0 %3153
  %3155 = vrot.lane.b32.xlu0 %v3121, 126
  %v3156 = vpop.permute.xlu0 %3155
  %3157 = vrot.lane.b32.xlu0 %v3122, 126
  %v3158 = vpop.permute.xlu0 %3157
  %v3159 = vsel %vm1908, %v3136, %v3138
  %v3160 = vsel %vm1908, %v3138, %v3140
  %v3161 = vsel %vm1908, %v3140, %v3142
  %v3162 = vsel %vm1908, %v3142, %v3144
  %v3163 = vsel %vm1908, %v3144, %v3146
  %v3164 = vsel %vm1908, %v3148, %v3150
  %v3165 = vsel %vm1908, %v3150, %v3152
  %v3166 = vsel %vm1908, %v3152, %v3154
  %v3167 = vsel %vm1908, %v3154, %v3156
  %v3168 = vsel %vm1908, %v3156, %v3158
  %3181 = vst [vmem:[#allocation3 + $0xc0] sm:$0xff] %v3159
  %3182 = vst [vmem:[#allocation3 + $0xc8] sm:$0xff] %v3160
  %3183 = vst [vmem:[#allocation3 + $0xd0] sm:$0xff] %v3161
  %3184 = vst [vmem:[#allocation3 + $0xd8] sm:$0xff] %v3162
  %3185 = vst [vmem:[#allocation3 + $0xe0] sm:$0xff] %v3163
  %3186 = vst.msk [vmem:[#allocation3 + $0xe8] sm:$0xff] %vm1852, %v3146
  %3187 = vst [vmem:[#allocation3 + $0xf0] sm:$0xff] %v3164
  %3188 = vst [vmem:[#allocation3 + $0xf8] sm:$0xff] %v3165
  %3189 = vst [vmem:[#allocation3 + $0x100] sm:$0xff] %v3166
  %3190 = vst [vmem:[#allocation3 + $0x108] sm:$0xff] %v3167
  %3191 = vst [vmem:[#allocation3 + $0x110] sm:$0xff] %v3168
  %3192 = vst.msk [vmem:[#allocation3 + $0x118] sm:$0xff] %vm1852, %v3158
  %v3193 = vld [vmem:[#allocation3] sm:$0xff]
  %v3194 = vld [vmem:[#allocation3 + $0x8] sm:$0xff]
  %v3195 = vld [vmem:[#allocation3 + $0x10] sm:$0xff]
  %v3196 = vld [vmem:[#allocation3 + $0x18] sm:$0xff]
  %v3197 = vld [vmem:[#allocation3 + $0x20] sm:$0xff]
  %v3198 = vld [vmem:[#allocation3 + $0x30] sm:$0xff]
  %v3199 = vld [vmem:[#allocation3 + $0x38] sm:$0xff]
  %v3200 = vld [vmem:[#allocation3 + $0x40] sm:$0xff]
  %v3201 = vld [vmem:[#allocation3 + $0x48] sm:$0xff]
  %v3202 = vld [vmem:[#allocation3 + $0x50] sm:$0xff]
  %v3203 = vld [vmem:[#allocation3 + $0x60] sm:$0xff]
  %v3204 = vld [vmem:[#allocation3 + $0x68] sm:$0xff]
  %v3205 = vld [vmem:[#allocation3 + $0x70] sm:$0xff]
  %v3206 = vld [vmem:[#allocation3 + $0x78] sm:$0xff]
  %v3207 = vld [vmem:[#allocation3 + $0x80] sm:$0xff]
  %v3208 = vld [vmem:[#allocation3 + $0x90] sm:$0xff]
  %v3209 = vld [vmem:[#allocation3 + $0x98] sm:$0xff]
  %v3210 = vld [vmem:[#allocation3 + $0xa0] sm:$0xff]
  %v3211 = vld [vmem:[#allocation3 + $0xa8] sm:$0xff]
  %v3212 = vld [vmem:[#allocation3 + $0xb0] sm:$0xff]
  %v3213 = vld [vmem:[#allocation3 + $0xc0] sm:$0xff]
  %v3214 = vld [vmem:[#allocation3 + $0xc8] sm:$0xff]
  %v3215 = vld [vmem:[#allocation3 + $0xd0] sm:$0xff]
  %v3216 = vld [vmem:[#allocation3 + $0xd8] sm:$0xff]
  %v3217 = vld [vmem:[#allocation3 + $0xe0] sm:$0xff]
  %v3218 = vld [vmem:[#allocation3 + $0xf0] sm:$0xff]
  %v3219 = vld [vmem:[#allocation3 + $0xf8] sm:$0xff]
  %v3220 = vld [vmem:[#allocation3 + $0x100] sm:$0xff]
  %v3221 = vld [vmem:[#allocation3 + $0x108] sm:$0xff]
  %v3222 = vld [vmem:[#allocation3 + $0x110] sm:$0xff]
  %v3223 = vld [vmem:[%s5] sm:$0xf]
  %v3224 = vld [vmem:[%s5 + $0x4] sm:$0xf]
  %v3225 = vld [vmem:[%s5 + $0x8] sm:$0xf]
  %v3226 = vld [vmem:[%s5 + $0xc] sm:$0xf]
  %s3227 = scalar_lea.vmem %s5, 16
  %v3228 = vld [vmem:[%s3227] sm:$0xf]
  %v3229 = vld [vmem:[%s3227 + $0x4] sm:$0xf]
  %v3230 = vld [vmem:[%s3227 + $0x8] sm:$0xf]
  %v3231 = vld [vmem:[%s3227 + $0xc] sm:$0xf]
  %v3236 = vunpack.c.l.b16 %v3228
  %v3237 = vunpack.c.l.b16 %v3229
  %v3238 = vunpack.c.l.b16 %v3230
  %v3239 = vunpack.c.l.b16 %v3231
  %v3240 = vpack.c.b16 %v3237, %v3236
  %v3241 = vpack.c.b16 %v3239, %v3238
  %3272 = vrot.lane.b32.xlu0 %v3193, 110
  %v3273 = vpop.permute.xlu0 %3272
  %3274 = vrot.lane.b32.xlu0 %v3194, 110
  %v3275 = vpop.permute.xlu0 %3274
  %3276 = vrot.lane.b32.xlu0 %v3195, 110
  %v3277 = vpop.permute.xlu0 %3276
  %3278 = vrot.lane.b32.xlu0 %v3196, 110
  %v3279 = vpop.permute.xlu0 %3278
  %3280 = vrot.lane.b32.xlu0 %v3197, 110
  %v3281 = vpop.permute.xlu0 %3280
  %3282 = vrot.lane.b32.xlu0 %v3198, 110
  %v3283 = vpop.permute.xlu0 %3282
  %3284 = vrot.lane.b32.xlu0 %v3199, 110
  %v3285 = vpop.permute.xlu0 %3284
  %3286 = vrot.lane.b32.xlu0 %v3200, 110
  %v3287 = vpop.permute.xlu0 %3286
  %3288 = vrot.lane.b32.xlu0 %v3201, 110
  %v3289 = vpop.permute.xlu0 %3288
  %3290 = vrot.lane.b32.xlu0 %v3202, 110
  %v3291 = vpop.permute.xlu0 %3290
  %3292 = vrot.lane.b32.xlu0 %v3203, 110
  %v3293 = vpop.permute.xlu0 %3292
  %3294 = vrot.lane.b32.xlu0 %v3204, 110
  %v3295 = vpop.permute.xlu0 %3294
  %3296 = vrot.lane.b32.xlu0 %v3205, 110
  %v3297 = vpop.permute.xlu0 %3296
  %3298 = vrot.lane.b32.xlu0 %v3206, 110
  %v3299 = vpop.permute.xlu0 %3298
  %3300 = vrot.lane.b32.xlu0 %v3207, 110
  %v3301 = vpop.permute.xlu0 %3300
  %3302 = vrot.lane.b32.xlu0 %v3208, 110
  %v3303 = vpop.permute.xlu0 %3302
  %3304 = vrot.lane.b32.xlu0 %v3209, 110
  %v3305 = vpop.permute.xlu0 %3304
  %3306 = vrot.lane.b32.xlu0 %v3210, 110
  %v3307 = vpop.permute.xlu0 %3306
  %3308 = vrot.lane.b32.xlu0 %v3211, 110
  %v3309 = vpop.permute.xlu0 %3308
  %3310 = vrot.lane.b32.xlu0 %v3212, 110
  %v3311 = vpop.permute.xlu0 %3310
  %3312 = vrot.lane.b32.xlu0 %v3213, 110
  %v3313 = vpop.permute.xlu0 %3312
  %3314 = vrot.lane.b32.xlu0 %v3214, 110
  %v3315 = vpop.permute.xlu0 %3314
  %3316 = vrot.lane.b32.xlu0 %v3215, 110
  %v3317 = vpop.permute.xlu0 %3316
  %3318 = vrot.lane.b32.xlu0 %v3216, 110
  %v3319 = vpop.permute.xlu0 %3318
  %3320 = vrot.lane.b32.xlu0 %v3217, 110
  %v3321 = vpop.permute.xlu0 %3320
  %3322 = vrot.lane.b32.xlu0 %v3218, 110
  %v3323 = vpop.permute.xlu0 %3322
  %3324 = vrot.lane.b32.xlu0 %v3219, 110
  %v3325 = vpop.permute.xlu0 %3324
  %3326 = vrot.lane.b32.xlu0 %v3220, 110
  %v3327 = vpop.permute.xlu0 %3326
  %3328 = vrot.lane.b32.xlu0 %v3221, 110
  %v3329 = vpop.permute.xlu0 %3328
  %3330 = vrot.lane.b32.xlu0 %v3222, 110
  %v3331 = vpop.permute.xlu0 %3330
  %v3332 = vsel %vm2082, %v3273, %v3275
  %v3333 = vsel %vm2082, %v3275, %v3277
  %v3334 = vsel %vm2082, %v3277, %v3279
  %v3335 = vsel %vm2082, %v3279, %v3281
  %v3336 = vsel %vm2082, %v3283, %v3285
  %v3337 = vsel %vm2082, %v3285, %v3287
  %v3338 = vsel %vm2082, %v3287, %v3289
  %v3339 = vsel %vm2082, %v3289, %v3291
  %v3340 = vsel %vm2082, %v3293, %v3295
  %v3341 = vsel %vm2082, %v3295, %v3297
  %v3342 = vsel %vm2082, %v3297, %v3299
  %v3343 = vsel %vm2082, %v3299, %v3301
  %v3344 = vsel %vm2082, %v3303, %v3305
  %v3345 = vsel %vm2082, %v3305, %v3307
  %v3346 = vsel %vm2082, %v3307, %v3309
  %v3347 = vsel %vm2082, %v3309, %v3311
  %v3348 = vsel %vm2082, %v3313, %v3315
  %v3349 = vsel %vm2082, %v3315, %v3317
  %v3350 = vsel %vm2082, %v3317, %v3319
  %v3351 = vsel %vm2082, %v3319, %v3321
  %v3352 = vsel %vm2082, %v3323, %v3325
  %v3353 = vsel %vm2082, %v3325, %v3327
  %v3354 = vsel %vm2082, %v3327, %v3329
  %v3355 = vsel %vm2082, %v3329, %v3331
  %v3387 = vsel %vm2137, %v3240, 0
  %v3390 = vsel %vm2137, %v3241, 0
  %3392 = vmatprep.subr.bf16.mxu0 %v3333
  %3393 = vmatpush1.bf16.msra.mxu0 %v3332
  %3394 = vmatprep.subr.bf16.mxu0 %v3337
  %3395 = vmatpush1.bf16.msra.mxu0 %v3336
  %3396 = vmatprep.subr.bf16.mxu0 %v3341
  %3397 = vmatpush1.bf16.msra.mxu0 %v3340
  %3398 = vmatprep.subr.bf16.mxu0 %v3345
  %3399 = vmatpush1.bf16.msra.mxu0 %v3344
  %3400 = vmatprep.subr.bf16.mxu0 %v3349
  %3401 = vmatpush1.bf16.msra.mxu0 %v3348
  %3402 = vmatprep.subr.bf16.mxu0 %v3353
  %3403 = vmatpush1.bf16.msra.mxu0 %v3352
  %3404 = vmatprep.subr.bf16.mxu0 0
  %3405 = vmatpush1.bf16.msra.mxu0 0
  %3406 = vmatprep.subr.bf16.mxu0 0
  %3407 = vmatpush1.bf16.msra.mxu0 0
  %3408 = vmatprep.subr.bf16.mxu0 0
  %3409 = vmatpush1.bf16.msra.mxu0 0
  %3410 = vmatprep.subr.bf16.mxu0 0
  %3411 = vmatpush1.bf16.msra.mxu0 0
  %3412 = vmatprep.subr.bf16.mxu0 0
  %3413 = vmatpush1.bf16.msra.mxu0 0
  %3414 = vmatprep.subr.bf16.mxu0 0
  %3415 = vmatpush1.bf16.msra.mxu0 0
  %3416 = vmatprep.subr.bf16.mxu0 0
  %3417 = vmatpush1.bf16.msra.mxu0 0
  %3418 = vmatprep.subr.bf16.mxu0 0
  %3419 = vmatpush1.bf16.msra.mxu0 0
  %3420 = vmatprep.subr.bf16.mxu0 0
  %3421 = vmatpush1.bf16.msra.mxu0 0
  %3422 = vmatprep.subr.bf16.mxu0 0
  %3423 = vmatpush1.bf16.msra.mxu0 0
  %3424 = vmatprep.mubr.bf16.mxu0 0
  %3425 = vmatmul.mubr.bf16.gmra.mrb[0].mxu0 %v3387
  %v3426 = vpop.f32.mrb[0].mxu0
  %v3427 = vadd.f32 0.0, %v3426
  %v3428 = vpop.f32.mrb[0].mxu0
  %v3429 = vadd.f32 0.0, %v3428
  %v3430 = vpop.f32.mrb[0].mxu0
  %v3431 = vadd.f32 0.0, %v3430
  %v3432 = vpop.f32.mrb[0].mxu0
  %v3433 = vadd.f32 0.0, %v3432
  %3434 = vmatprep.mubr.bf16.mxu0 0
  %3435 = vmatmul.mubr.bf16.gmra.mrb[0].mxu0 %v3390
  %v3436 = vpop.f32.mrb[0].mxu0
  %v3437 = vadd.f32 0.0, %v3436
  %v3438 = vpop.f32.mrb[0].mxu0
  %v3439 = vadd.f32 0.0, %v3438
  %v3440 = vpop.f32.mrb[0].mxu0
  %v3441 = vadd.f32 0.0, %v3440
  %v3442 = vpop.f32.mrb[0].mxu0
  %v3443 = vadd.f32 0.0, %v3442
  %3444 = vdwg.mxu0
  %3445 = vmatprep.subr.bf16.mxu0 %v3335
  %3446 = vmatpush1.bf16.msra.mxu0 %v3334
  %3447 = vmatprep.subr.bf16.mxu0 %v3339
  %3448 = vmatpush1.bf16.msra.mxu0 %v3338
  %3449 = vmatprep.subr.bf16.mxu0 %v3343
  %3450 = vmatpush1.bf16.msra.mxu0 %v3342
  %3451 = vmatprep.subr.bf16.mxu0 %v3347
  %3452 = vmatpush1.bf16.msra.mxu0 %v3346
  %3453 = vmatprep.subr.bf16.mxu0 %v3351
  %3454 = vmatpush1.bf16.msra.mxu0 %v3350
  %3455 = vmatprep.subr.bf16.mxu0 %v3355
  %3456 = vmatpush1.bf16.msra.mxu0 %v3354
  %3457 = vmatprep.subr.bf16.mxu0 0
  %3458 = vmatpush1.bf16.msra.mxu0 0
  %3459 = vmatprep.subr.bf16.mxu0 0
  %3460 = vmatpush1.bf16.msra.mxu0 0
  %3461 = vmatprep.subr.bf16.mxu0 0
  %3462 = vmatpush1.bf16.msra.mxu0 0
  %3463 = vmatprep.subr.bf16.mxu0 0
  %3464 = vmatpush1.bf16.msra.mxu0 0
  %3465 = vmatprep.subr.bf16.mxu0 0
  %3466 = vmatpush1.bf16.msra.mxu0 0
  %3467 = vmatprep.subr.bf16.mxu0 0
  %3468 = vmatpush1.bf16.msra.mxu0 0
  %3469 = vmatprep.subr.bf16.mxu0 0
  %3470 = vmatpush1.bf16.msra.mxu0 0
  %3471 = vmatprep.subr.bf16.mxu0 0
  %3472 = vmatpush1.bf16.msra.mxu0 0
  %3473 = vmatprep.subr.bf16.mxu0 0
  %3474 = vmatpush1.bf16.msra.mxu0 0
  %3475 = vmatprep.subr.bf16.mxu0 0
  %3476 = vmatpush1.bf16.msra.mxu0 0
  %3477 = vmatprep.mubr.bf16.mxu0 0
  %3478 = vmatmul.mubr.bf16.gmra.mrb[0].mxu0 %v3387
  %v3479 = vpop.f32.mrb[0].mxu0
  %v3480 = vadd.f32 0.0, %v3479
  %v3481 = vpop.f32.mrb[0].mxu0
  %v3482 = vadd.f32 0.0, %v3481
  %v3483 = vpop.f32.mrb[0].mxu0
  %v3484 = vadd.f32 0.0, %v3483
  %v3485 = vpop.f32.mrb[0].mxu0
  %v3486 = vadd.f32 0.0, %v3485
  %3487 = vmatprep.mubr.bf16.mxu0 0
  %3488 = vmatmul.mubr.bf16.gmra.mrb[0].mxu0 %v3390
  %v3489 = vpop.f32.mrb[0].mxu0
  %v3490 = vadd.f32 0.0, %v3489
  %v3491 = vpop.f32.mrb[0].mxu0
  %v3492 = vadd.f32 0.0, %v3491
  %v3493 = vpop.f32.mrb[0].mxu0
  %v3494 = vadd.f32 0.0, %v3493
  %v3495 = vpop.f32.mrb[0].mxu0
  %v3496 = vadd.f32 0.0, %v3495
  %3497 = vdwg.mxu0
  %3498 = vmatprep.subr.bf16.mxu0 0
  %3499 = vmatpush1.bf16.msra.mxu0 %v3281
  %3500 = vmatprep.subr.bf16.mxu0 0
  %3501 = vmatpush1.bf16.msra.mxu0 %v3291
  %3502 = vmatprep.subr.bf16.mxu0 0
  %3503 = vmatpush1.bf16.msra.mxu0 %v3301
  %3504 = vmatprep.subr.bf16.mxu0 0
  %3505 = vmatpush1.bf16.msra.mxu0 %v3311
  %3506 = vmatprep.subr.bf16.mxu0 0
  %3507 = vmatpush1.bf16.msra.mxu0 %v3321
  %3508 = vmatprep.subr.bf16.mxu0 0
  %3509 = vmatpush1.bf16.msra.mxu0 %v3331
  %3510 = vmatprep.subr.bf16.mxu0 0
  %3511 = vmatpush1.bf16.msra.mxu0 0
  %3512 = vmatprep.subr.bf16.mxu0 0
  %3513 = vmatpush1.bf16.msra.mxu0 0
  %3514 = vmatprep.subr.bf16.mxu0 0
  %3515 = vmatpush1.bf16.msra.mxu0 0
  %3516 = vmatprep.subr.bf16.mxu0 0
  %3517 = vmatpush1.bf16.msra.mxu0 0
  %3518 = vmatprep.subr.bf16.mxu0 0
  %3519 = vmatpush1.bf16.msra.mxu0 0
  %3520 = vmatprep.subr.bf16.mxu0 0
  %3521 = vmatpush1.bf16.msra.mxu0 0
  %3522 = vmatprep.subr.bf16.mxu0 0
  %3523 = vmatpush1.bf16.msra.mxu0 0
  %3524 = vmatprep.subr.bf16.mxu0 0
  %3525 = vmatpush1.bf16.msra.mxu0 0
  %3526 = vmatprep.subr.bf16.mxu0 0
  %3527 = vmatpush1.bf16.msra.mxu0 0
  %3528 = vmatprep.subr.bf16.mxu0 0
  %3529 = vmatpush1.bf16.msra.mxu0 0
  %3530 = vmatprep.mubr.bf16.mxu0 0
  %3531 = vmatmul.mubr.bf16.gmra.mrb[0].mxu0 %v3387
  %v3532 = vpop.f32.mrb[0].mxu0
  %v3533 = vadd.f32 0.0, %v3532
  %v3534 = vpop.f32.mrb[0].mxu0
  %v3535 = vpop.f32.mrb[0].mxu0
  %v3536 = vadd.f32 0.0, %v3535
  %v3537 = vpop.f32.mrb[0].mxu0
  %3538 = vmatprep.mubr.bf16.mxu0 0
  %3539 = vmatmul.mubr.bf16.gmra.mrb[0].mxu0 %v3390
  %v3540 = vpop.f32.mrb[0].mxu0
  %v3541 = vadd.f32 0.0, %v3540
  %v3542 = vpop.f32.mrb[0].mxu0
  %v3543 = vpop.f32.mrb[0].mxu0
  %v3544 = vadd.f32 0.0, %v3543
  %v3545 = vpop.f32.mrb[0].mxu0
  %3546 = vdwg.mxu0
  %v3551 = vunpack.c.l.b16 %v3223
  %v3552 = vunpack.c.l.b16 %v3224
  %v3553 = vunpack.c.l.b16 %v3225
  %v3554 = vunpack.c.l.b16 %v3226
  %v3555 = vpack.c.b16 %v3552, %v3551
  %v3556 = vpack.c.b16 %v3554, %v3553
  %v3558 = vsel %vm2137, %v3555, 0
  %v3561 = vsel %vm2137, %v3556, 0
  %3563 = vmatprep.subr.bf16.mxu0 %v3194
  %3564 = vmatpush1.bf16.msra.mxu0 %v3193
  %3565 = vmatprep.subr.bf16.mxu0 %v3199
  %3566 = vmatpush1.bf16.msra.mxu0 %v3198
  %3567 = vmatprep.subr.bf16.mxu0 %v3204
  %3568 = vmatpush1.bf16.msra.mxu0 %v3203
  %3569 = vmatprep.subr.bf16.mxu0 %v3209
  %3570 = vmatpush1.bf16.msra.mxu0 %v3208
  %3571 = vmatprep.subr.bf16.mxu0 %v3214
  %3572 = vmatpush1.bf16.msra.mxu0 %v3213
  %3573 = vmatprep.subr.bf16.mxu0 %v3219
  %3574 = vmatpush1.bf16.msra.mxu0 %v3218
  %3575 = vmatprep.subr.bf16.mxu0 0
  %3576 = vmatpush1.bf16.msra.mxu0 0
  %3577 = vmatprep.subr.bf16.mxu0 0
  %3578 = vmatpush1.bf16.msra.mxu0 0
  %3579 = vmatprep.subr.bf16.mxu0 0
  %3580 = vmatpush1.bf16.msra.mxu0 0
  %3581 = vmatprep.subr.bf16.mxu0 0
  %3582 = vmatpush1.bf16.msra.mxu0 0
  %3583 = vmatprep.subr.bf16.mxu0 0
  %3584 = vmatpush1.bf16.msra.mxu0 0
  %3585 = vmatprep.subr.bf16.mxu0 0
  %3586 = vmatpush1.bf16.msra.mxu0 0
  %3587 = vmatprep.subr.bf16.mxu0 0
  %3588 = vmatpush1.bf16.msra.mxu0 0
  %3589 = vmatprep.subr.bf16.mxu0 0
  %3590 = vmatpush1.bf16.msra.mxu0 0
  %3591 = vmatprep.subr.bf16.mxu0 0
  %3592 = vmatpush1.bf16.msra.mxu0 0
  %3593 = vmatprep.subr.bf16.mxu0 0
  %3594 = vmatpush1.bf16.msra.mxu0 0
  %3595 = vmatprep.mubr.bf16.mxu0 0
  %3596 = vmatmul.mubr.bf16.gmra.mrb[0].mxu0 %v3558
  %v3597 = vpop.f32.mrb[0].mxu0
  %v3598 = vadd.f32 %v3427, %v3597
  %v3599 = vpop.f32.mrb[0].mxu0
  %v3600 = vadd.f32 %v3429, %v3599
  %v3601 = vpop.f32.mrb[0].mxu0
  %v3602 = vadd.f32 %v3431, %v3601
  %v3603 = vpop.f32.mrb[0].mxu0
  %v3604 = vadd.f32 %v3433, %v3603
  %3605 = vmatprep.mubr.bf16.mxu0 0
  %3606 = vmatmul.mubr.bf16.gmra.mrb[0].mxu0 %v3561
  %v3607 = vpop.f32.mrb[0].mxu0
  %v3608 = vadd.f32 %v3437, %v3607
  %v3609 = vpop.f32.mrb[0].mxu0
  %v3610 = vadd.f32 %v3439, %v3609
  %v3611 = vpop.f32.mrb[0].mxu0
  %v3612 = vadd.f32 %v3441, %v3611
  %v3613 = vpop.f32.mrb[0].mxu0
  %v3614 = vadd.f32 %v3443, %v3613
  %3615 = vdwg.mxu0
  %3616 = vmatprep.subr.bf16.mxu0 %v3196
  %3617 = vmatpush1.bf16.msra.mxu0 %v3195
  %3618 = vmatprep.subr.bf16.mxu0 %v3201
  %3619 = vmatpush1.bf16.msra.mxu0 %v3200
  %3620 = vmatprep.subr.bf16.mxu0 %v3206
  %3621 = vmatpush1.bf16.msra.mxu0 %v3205
  %3622 = vmatprep.subr.bf16.mxu0 %v3211
  %3623 = vmatpush1.bf16.msra.mxu0 %v3210
  %3624 = vmatprep.subr.bf16.mxu0 %v3216
  %3625 = vmatpush1.bf16.msra.mxu0 %v3215
  %3626 = vmatprep.subr.bf16.mxu0 %v3221
  %3627 = vmatpush1.bf16.msra.mxu0 %v3220
  %3628 = vmatprep.subr.bf16.mxu0 0
  %3629 = vmatpush1.bf16.msra.mxu0 0
  %3630 = vmatprep.subr.bf16.mxu0 0
  %3631 = vmatpush1.bf16.msra.mxu0 0
  %3632 = vmatprep.subr.bf16.mxu0 0
  %3633 = vmatpush1.bf16.msra.mxu0 0
  %3634 = vmatprep.subr.bf16.mxu0 0
  %3635 = vmatpush1.bf16.msra.mxu0 0
  %3636 = vmatprep.subr.bf16.mxu0 0
  %3637 = vmatpush1.bf16.msra.mxu0 0
  %3638 = vmatprep.subr.bf16.mxu0 0
  %3639 = vmatpush1.bf16.msra.mxu0 0
  %3640 = vmatprep.subr.bf16.mxu0 0
  %3641 = vmatpush1.bf16.msra.mxu0 0
  %3642 = vmatprep.subr.bf16.mxu0 0
  %3643 = vmatpush1.bf16.msra.mxu0 0
  %3644 = vmatprep.subr.bf16.mxu0 0
  %3645 = vmatpush1.bf16.msra.mxu0 0
  %3646 = vmatprep.subr.bf16.mxu0 0
  %3647 = vmatpush1.bf16.msra.mxu0 0
  %3648 = vmatprep.mubr.bf16.mxu0 0
  %3649 = vmatmul.mubr.bf16.gmra.mrb[0].mxu0 %v3558
  %v3650 = vpop.f32.mrb[0].mxu0
  %v3651 = vadd.f32 %v3480, %v3650
  %v3652 = vpop.f32.mrb[0].mxu0
  %v3653 = vadd.f32 %v3482, %v3652
  %v3654 = vpop.f32.mrb[0].mxu0
  %v3655 = vadd.f32 %v3484, %v3654
  %v3656 = vpop.f32.mrb[0].mxu0
  %v3657 = vadd.f32 %v3486, %v3656
  %3658 = vmatprep.mubr.bf16.mxu0 0
  %3659 = vmatmul.mubr.bf16.gmra.mrb[0].mxu0 %v3561
  %v3660 = vpop.f32.mrb[0].mxu0
  %v3661 = vadd.f32 %v3490, %v3660
  %v3662 = vpop.f32.mrb[0].mxu0
  %v3663 = vadd.f32 %v3492, %v3662
  %v3664 = vpop.f32.mrb[0].mxu0
  %v3665 = vadd.f32 %v3494, %v3664
  %v3666 = vpop.f32.mrb[0].mxu0
  %v3667 = vadd.f32 %v3496, %v3666
  %3668 = vdwg.mxu0
  %3669 = vmatprep.subr.bf16.mxu0 0
  %3670 = vmatpush1.bf16.msra.mxu0 %v3197
  %3671 = vmatprep.subr.bf16.mxu0 0
  %3672 = vmatpush1.bf16.msra.mxu0 %v3202
  %3673 = vmatprep.subr.bf16.mxu0 0
  %3674 = vmatpush1.bf16.msra.mxu0 %v3207
  %3675 = vmatprep.subr.bf16.mxu0 0
  %3676 = vmatpush1.bf16.msra.mxu0 %v3212
  %3677 = vmatprep.subr.bf16.mxu0 0
  %3678 = vmatpush1.bf16.msra.mxu0 %v3217
  %3679 = vmatprep.subr.bf16.mxu0 0
  %3680 = vmatpush1.bf16.msra.mxu0 %v3222
  %3681 = vmatprep.subr.bf16.mxu0 0
  %3682 = vmatpush1.bf16.msra.mxu0 0
  %3683 = vmatprep.subr.bf16.mxu0 0
  %3684 = vmatpush1.bf16.msra.mxu0 0
  %3685 = vmatprep.subr.bf16.mxu0 0
  %3686 = vmatpush1.bf16.msra.mxu0 0
  %3687 = vmatprep.subr.bf16.mxu0 0
  %3688 = vmatpush1.bf16.msra.mxu0 0
  %3689 = vmatprep.subr.bf16.mxu0 0
  %3690 = vmatpush1.bf16.msra.mxu0 0
  %3691 = vmatprep.subr.bf16.mxu0 0
  %3692 = vmatpush1.bf16.msra.mxu0 0
  %3693 = vmatprep.subr.bf16.mxu0 0
  %3694 = vmatpush1.bf16.msra.mxu0 0
  %3695 = vmatprep.subr.bf16.mxu0 0
  %3696 = vmatpush1.bf16.msra.mxu0 0
  %3697 = vmatprep.subr.bf16.mxu0 0
  %3698 = vmatpush1.bf16.msra.mxu0 0
  %3699 = vmatprep.subr.bf16.mxu0 0
  %3700 = vmatpush1.bf16.msra.mxu0 0
  %3701 = vmatprep.mubr.bf16.mxu0 0
  %3702 = vmatmul.mubr.bf16.gmra.mrb[0].mxu0 %v3558
  %v3703 = vpop.f32.mrb[0].mxu0
  %v3704 = vadd.f32 %v3533, %v3703
  %v3705 = vpop.f32.mrb[0].mxu0
  %v3706 = vpop.f32.mrb[0].mxu0
  %v3707 = vadd.f32 %v3536, %v3706
  %v3708 = vpop.f32.mrb[0].mxu0
  %3709 = vmatprep.mubr.bf16.mxu0 0
  %3710 = vmatmul.mubr.bf16.gmra.mrb[0].mxu0 %v3561
  %v3711 = vpop.f32.mrb[0].mxu0
  %v3712 = vadd.f32 %v3541, %v3711
  %v3713 = vpop.f32.mrb[0].mxu0
  %v3714 = vpop.f32.mrb[0].mxu0
  %v3715 = vadd.f32 %v3544, %v3714
  %v3716 = vpop.f32.mrb[0].mxu0
  %3717 = vdwg.mxu0
  %v3718 = vld [vmem:[#allocation3] sm:$0xff]
  %v3719 = vld [vmem:[#allocation3 + $0x8] sm:$0xff]
  %v3720 = vld [vmem:[#allocation3 + $0x10] sm:$0xff]
  %v3721 = vld [vmem:[#allocation3 + $0x18] sm:$0xff]
  %v3722 = vld [vmem:[#allocation3 + $0x20] sm:$0xff]
  %v3723 = vld [vmem:[#allocation3 + $0x28] sm:$0xff]
  %v3724 = vld [vmem:[#allocation3 + $0x30] sm:$0xff]
  %v3725 = vld [vmem:[#allocation3 + $0x38] sm:$0xff]
  %v3726 = vld [vmem:[#allocation3 + $0x40] sm:$0xff]
  %v3727 = vld [vmem:[#allocation3 + $0x48] sm:$0xff]
  %v3728 = vld [vmem:[#allocation3 + $0x50] sm:$0xff]
  %v3729 = vld [vmem:[#allocation3 + $0x58] sm:$0xff]
  %v3730 = vld [vmem:[#allocation3 + $0x60] sm:$0xff]
  %v3731 = vld [vmem:[#allocation3 + $0x68] sm:$0xff]
  %v3732 = vld [vmem:[#allocation3 + $0x70] sm:$0xff]
  %v3733 = vld [vmem:[#allocation3 + $0x78] sm:$0xff]
  %v3734 = vld [vmem:[#allocation3 + $0x80] sm:$0xff]
  %v3735 = vld [vmem:[#allocation3 + $0x88] sm:$0xff]
  %v3736 = vld [vmem:[#allocation3 + $0x90] sm:$0xff]
  %v3737 = vld [vmem:[#allocation3 + $0x98] sm:$0xff]
  %v3738 = vld [vmem:[#allocation3 + $0xa0] sm:$0xff]
  %v3739 = vld [vmem:[#allocation3 + $0xa8] sm:$0xff]
  %v3740 = vld [vmem:[#allocation3 + $0xb0] sm:$0xff]
  %v3741 = vld [vmem:[#allocation3 + $0xb8] sm:$0xff]
  %v3742 = vld [vmem:[#allocation3 + $0xc0] sm:$0xff]
  %v3743 = vld [vmem:[#allocation3 + $0xc8] sm:$0xff]
  %v3744 = vld [vmem:[#allocation3 + $0xd0] sm:$0xff]
  %v3745 = vld [vmem:[#allocation3 + $0xd8] sm:$0xff]
  %v3746 = vld [vmem:[#allocation3 + $0xe0] sm:$0xff]
  %v3747 = vld [vmem:[#allocation3 + $0xe8] sm:$0xff]
  %v3748 = vld [vmem:[#allocation3 + $0xf0] sm:$0xff]
  %v3749 = vld [vmem:[#allocation3 + $0xf8] sm:$0xff]
  %v3750 = vld [vmem:[#allocation3 + $0x100] sm:$0xff]
  %v3751 = vld [vmem:[#allocation3 + $0x108] sm:$0xff]
  %v3752 = vld [vmem:[#allocation3 + $0x110] sm:$0xff]
  %v3753 = vld [vmem:[#allocation3 + $0x118] sm:$0xff]
  %s3754 = scalar_lea.vmem %s5, 32
  %v3755 = vld [vmem:[%s3754] sm:$0xf]
  %v3756 = vld [vmem:[%s3754 + $0x4] sm:$0xf]
  %v3757 = vld [vmem:[%s3754 + $0x8] sm:$0xf]
  %v3758 = vld [vmem:[%s3754 + $0xc] sm:$0xf]
  %v3763 = vunpack.c.l.b16 %v3755
  %v3764 = vunpack.c.l.b16 %v3756
  %v3765 = vunpack.c.l.b16 %v3757
  %v3766 = vunpack.c.l.b16 %v3758
  %v3767 = vpack.c.b16 %v3764, %v3763
  %v3768 = vpack.c.b16 %v3766, %v3765
  %3805 = vrot.lane.b32.xlu0 %v3718, 92
  %v3806 = vpop.permute.xlu0 %3805
  %3807 = vrot.lane.b32.xlu0 %v3719, 92
  %v3808 = vpop.permute.xlu0 %3807
  %3809 = vrot.lane.b32.xlu0 %v3720, 92
  %v3810 = vpop.permute.xlu0 %3809
  %3811 = vrot.lane.b32.xlu0 %v3721, 92
  %v3812 = vpop.permute.xlu0 %3811
  %3813 = vrot.lane.b32.xlu0 %v3722, 92
  %v3814 = vpop.permute.xlu0 %3813
  %3815 = vrot.lane.b32.xlu0 %v3723, 92
  %v3816 = vpop.permute.xlu0 %3815
  %3817 = vrot.lane.b32.xlu0 %v3724, 92
  %v3818 = vpop.permute.xlu0 %3817
  %3819 = vrot.lane.b32.xlu0 %v3725, 92
  %v3820 = vpop.permute.xlu0 %3819
  %3821 = vrot.lane.b32.xlu0 %v3726, 92
  %v3822 = vpop.permute.xlu0 %3821
  %3823 = vrot.lane.b32.xlu0 %v3727, 92
  %v3824 = vpop.permute.xlu0 %3823
  %3825 = vrot.lane.b32.xlu0 %v3728, 92
  %v3826 = vpop.permute.xlu0 %3825
  %3827 = vrot.lane.b32.xlu0 %v3729, 92
  %v3828 = vpop.permute.xlu0 %3827
  %3829 = vrot.lane.b32.xlu0 %v3730, 92
  %v3830 = vpop.permute.xlu0 %3829
  %3831 = vrot.lane.b32.xlu0 %v3731, 92
  %v3832 = vpop.permute.xlu0 %3831
  %3833 = vrot.lane.b32.xlu0 %v3732, 92
  %v3834 = vpop.permute.xlu0 %3833
  %3835 = vrot.lane.b32.xlu0 %v3733, 92
  %v3836 = vpop.permute.xlu0 %3835
  %3837 = vrot.lane.b32.xlu0 %v3734, 92
  %v3838 = vpop.permute.xlu0 %3837
  %3839 = vrot.lane.b32.xlu0 %v3735, 92
  %v3840 = vpop.permute.xlu0 %3839
  %3841 = vrot.lane.b32.xlu0 %v3736, 92
  %v3842 = vpop.permute.xlu0 %3841
  %3843 = vrot.lane.b32.xlu0 %v3737, 92
  %v3844 = vpop.permute.xlu0 %3843
  %3845 = vrot.lane.b32.xlu0 %v3738, 92
  %v3846 = vpop.permute.xlu0 %3845
  %3847 = vrot.lane.b32.xlu0 %v3739, 92
  %v3848 = vpop.permute.xlu0 %3847
  %3849 = vrot.lane.b32.xlu0 %v3740, 92
  %v3850 = vpop.permute.xlu0 %3849
  %3851 = vrot.lane.b32.xlu0 %v3741, 92
  %v3852 = vpop.permute.xlu0 %3851
  %3853 = vrot.lane.b32.xlu0 %v3742, 92
  %v3854 = vpop.permute.xlu0 %3853
  %3855 = vrot.lane.b32.xlu0 %v3743, 92
  %v3856 = vpop.permute.xlu0 %3855
  %3857 = vrot.lane.b32.xlu0 %v3744, 92
  %v3858 = vpop.permute.xlu0 %3857
  %3859 = vrot.lane.b32.xlu0 %v3745, 92
  %v3860 = vpop.permute.xlu0 %3859
  %3861 = vrot.lane.b32.xlu0 %v3746, 92
  %v3862 = vpop.permute.xlu0 %3861
  %3863 = vrot.lane.b32.xlu0 %v3747, 92
  %v3864 = vpop.permute.xlu0 %3863
  %3865 = vrot.lane.b32.xlu0 %v3748, 92
  %v3866 = vpop.permute.xlu0 %3865
  %3867 = vrot.lane.b32.xlu0 %v3749, 92
  %v3868 = vpop.permute.xlu0 %3867
  %3869 = vrot.lane.b32.xlu0 %v3750, 92
  %v3870 = vpop.permute.xlu0 %3869
  %3871 = vrot.lane.b32.xlu0 %v3751, 92
  %v3872 = vpop.permute.xlu0 %3871
  %3873 = vrot.lane.b32.xlu0 %v3752, 92
  %v3874 = vpop.permute.xlu0 %3873
  %3875 = vrot.lane.b32.xlu0 %v3753, 92
  %v3876 = vpop.permute.xlu0 %3875
  %v3877 = vsel %vm2629, %v3806, %v3808
  %v3878 = vsel %vm2629, %v3808, %v3810
  %v3879 = vsel %vm2629, %v3810, %v3812
  %v3880 = vsel %vm2629, %v3812, %v3814
  %v3881 = vsel %vm2629, %v3814, %v3816
  %v3882 = vsel %vm2629, %v3818, %v3820
  %v3883 = vsel %vm2629, %v3820, %v3822
  %v3884 = vsel %vm2629, %v3822, %v3824
  %v3885 = vsel %vm2629, %v3824, %v3826
  %v3886 = vsel %vm2629, %v3826, %v3828
  %v3887 = vsel %vm2629, %v3830, %v3832
  %v3888 = vsel %vm2629, %v3832, %v3834
  %v3889 = vsel %vm2629, %v3834, %v3836
  %v3890 = vsel %vm2629, %v3836, %v3838
  %v3891 = vsel %vm2629, %v3838, %v3840
  %v3892 = vsel %vm2629, %v3842, %v3844
  %v3893 = vsel %vm2629, %v3844, %v3846
  %v3894 = vsel %vm2629, %v3846, %v3848
  %v3895 = vsel %vm2629, %v3848, %v3850
  %v3896 = vsel %vm2629, %v3850, %v3852
  %v3897 = vsel %vm2629, %v3854, %v3856
  %v3898 = vsel %vm2629, %v3856, %v3858
  %v3899 = vsel %vm2629, %v3858, %v3860
  %v3900 = vsel %vm2629, %v3860, %v3862
  %v3901 = vsel %vm2629, %v3862, %v3864
  %v3902 = vsel %vm2629, %v3866, %v3868
  %v3903 = vsel %vm2629, %v3868, %v3870
  %v3904 = vsel %vm2629, %v3870, %v3872
  %v3905 = vsel %vm2629, %v3872, %v3874
  %v3906 = vsel %vm2629, %v3874, %v3876
  %v3938 = vsel %vm2137, %v3767, 0
  %v3941 = vsel %vm2137, %v3768, 0
  %3943 = vmatprep.subr.bf16.mxu0 %v3878
  %3944 = vmatpush1.bf16.msra.mxu0 %v3877
  %3945 = vmatprep.subr.bf16.mxu0 %v3883
  %3946 = vmatpush1.bf16.msra.mxu0 %v3882
  %3947 = vmatprep.subr.bf16.mxu0 %v3888
  %3948 = vmatpush1.bf16.msra.mxu0 %v3887
  %3949 = vmatprep.subr.bf16.mxu0 %v3893
  %3950 = vmatpush1.bf16.msra.mxu0 %v3892
  %3951 = vmatprep.subr.bf16.mxu0 %v3898
  %3952 = vmatpush1.bf16.msra.mxu0 %v3897
  %3953 = vmatprep.subr.bf16.mxu0 %v3903
  %3954 = vmatpush1.bf16.msra.mxu0 %v3902
  %3955 = vmatprep.subr.bf16.mxu0 0
  %3956 = vmatpush1.bf16.msra.mxu0 0
  %3957 = vmatprep.subr.bf16.mxu0 0
  %3958 = vmatpush1.bf16.msra.mxu0 0
  %3959 = vmatprep.subr.bf16.mxu0 0
  %3960 = vmatpush1.bf16.msra.mxu0 0
  %3961 = vmatprep.subr.bf16.mxu0 0
  %3962 = vmatpush1.bf16.msra.mxu0 0
  %3963 = vmatprep.subr.bf16.mxu0 0
  %3964 = vmatpush1.bf16.msra.mxu0 0
  %3965 = vmatprep.subr.bf16.mxu0 0
  %3966 = vmatpush1.bf16.msra.mxu0 0
  %3967 = vmatprep.subr.bf16.mxu0 0
  %3968 = vmatpush1.bf16.msra.mxu0 0
  %3969 = vmatprep.subr.bf16.mxu0 0
  %3970 = vmatpush1.bf16.msra.mxu0 0
  %3971 = vmatprep.subr.bf16.mxu0 0
  %3972 = vmatpush1.bf16.msra.mxu0 0
  %3973 = vmatprep.subr.bf16.mxu0 0
  %3974 = vmatpush1.bf16.msra.mxu0 0
  %3975 = vmatprep.mubr.bf16.mxu0 0
  %3976 = vmatmul.mubr.bf16.gmra.mrb[0].mxu0 %v3938
  %v3977 = vpop.f32.mrb[0].mxu0
  %v3978 = vadd.f32 0.0, %v3977
  %v3979 = vpop.f32.mrb[0].mxu0
  %v3980 = vadd.f32 0.0, %v3979
  %v3981 = vpop.f32.mrb[0].mxu0
  %v3982 = vadd.f32 0.0, %v3981
  %v3983 = vpop.f32.mrb[0].mxu0
  %v3984 = vadd.f32 0.0, %v3983
  %3985 = vmatprep.mubr.bf16.mxu0 0
  %3986 = vmatmul.mubr.bf16.gmra.mrb[0].mxu0 %v3941
  %v3987 = vpop.f32.mrb[0].mxu0
  %v3988 = vadd.f32 0.0, %v3987
  %v3989 = vpop.f32.mrb[0].mxu0
  %v3990 = vadd.f32 0.0, %v3989
  %v3991 = vpop.f32.mrb[0].mxu0
  %v3992 = vadd.f32 0.0, %v3991
  %v3993 = vpop.f32.mrb[0].mxu0
  %v3994 = vadd.f32 0.0, %v3993
  %3995 = vdwg.mxu0
  %3996 = vmatprep.subr.bf16.mxu0 %v3880
  %3997 = vmatpush1.bf16.msra.mxu0 %v3879
  %3998 = vmatprep.subr.bf16.mxu0 %v3885
  %3999 = vmatpush1.bf16.msra.mxu0 %v3884
  %4000 = vmatprep.subr.bf16.mxu0 %v3890
  %4001 = vmatpush1.bf16.msra.mxu0 %v3889
  %4002 = vmatprep.subr.bf16.mxu0 %v3895
  %4003 = vmatpush1.bf16.msra.mxu0 %v3894
  %4004 = vmatprep.subr.bf16.mxu0 %v3900
  %4005 = vmatpush1.bf16.msra.mxu0 %v3899
  %4006 = vmatprep.subr.bf16.mxu0 %v3905
  %4007 = vmatpush1.bf16.msra.mxu0 %v3904
  %4008 = vmatprep.subr.bf16.mxu0 0
  %4009 = vmatpush1.bf16.msra.mxu0 0
  %4010 = vmatprep.subr.bf16.mxu0 0
  %4011 = vmatpush1.bf16.msra.mxu0 0
  %4012 = vmatprep.subr.bf16.mxu0 0
  %4013 = vmatpush1.bf16.msra.mxu0 0
  %4014 = vmatprep.subr.bf16.mxu0 0
  %4015 = vmatpush1.bf16.msra.mxu0 0
  %4016 = vmatprep.subr.bf16.mxu0 0
  %4017 = vmatpush1.bf16.msra.mxu0 0
  %4018 = vmatprep.subr.bf16.mxu0 0
  %4019 = vmatpush1.bf16.msra.mxu0 0
  %4020 = vmatprep.subr.bf16.mxu0 0
  %4021 = vmatpush1.bf16.msra.mxu0 0
  %4022 = vmatprep.subr.bf16.mxu0 0
  %4023 = vmatpush1.bf16.msra.mxu0 0
  %4024 = vmatprep.subr.bf16.mxu0 0
  %4025 = vmatpush1.bf16.msra.mxu0 0
  %4026 = vmatprep.subr.bf16.mxu0 0
  %4027 = vmatpush1.bf16.msra.mxu0 0
  %4028 = vmatprep.mubr.bf16.mxu0 0
  %4029 = vmatmul.mubr.bf16.gmra.mrb[0].mxu0 %v3938
  %v4030 = vpop.f32.mrb[0].mxu0
  %v4031 = vadd.f32 0.0, %v4030
  %v4032 = vpop.f32.mrb[0].mxu0
  %v4033 = vadd.f32 0.0, %v4032
  %v4034 = vpop.f32.mrb[0].mxu0
  %v4035 = vadd.f32 0.0, %v4034
  %v4036 = vpop.f32.mrb[0].mxu0
  %v4037 = vadd.f32 0.0, %v4036
  %4038 = vmatprep.mubr.bf16.mxu0 0
  %4039 = vmatmul.mubr.bf16.gmra.mrb[0].mxu0 %v3941
  %v4040 = vpop.f32.mrb[0].mxu0
  %v4041 = vadd.f32 0.0, %v4040
  %v4042 = vpop.f32.mrb[0].mxu0
  %v4043 = vadd.f32 0.0, %v4042
  %v4044 = vpop.f32.mrb[0].mxu0
  %v4045 = vadd.f32 0.0, %v4044
  %v4046 = vpop.f32.mrb[0].mxu0
  %v4047 = vadd.f32 0.0, %v4046
  %4048 = vdwg.mxu0
  %4049 = vmatprep.subr.bf16.mxu0 0
  %4050 = vmatpush1.bf16.msra.mxu0 %v3881
  %4051 = vmatprep.subr.bf16.mxu0 0
  %4052 = vmatpush1.bf16.msra.mxu0 %v3886
  %4053 = vmatprep.subr.bf16.mxu0 0
  %4054 = vmatpush1.bf16.msra.mxu0 %v3891
  %4055 = vmatprep.subr.bf16.mxu0 0
  %4056 = vmatpush1.bf16.msra.mxu0 %v3896
  %4057 = vmatprep.subr.bf16.mxu0 0
  %4058 = vmatpush1.bf16.msra.mxu0 %v3901
  %4059 = vmatprep.subr.bf16.mxu0 0
  %4060 = vmatpush1.bf16.msra.mxu0 %v3906
  %4061 = vmatprep.subr.bf16.mxu0 0
  %4062 = vmatpush1.bf16.msra.mxu0 0
  %4063 = vmatprep.subr.bf16.mxu0 0
  %4064 = vmatpush1.bf16.msra.mxu0 0
  %4065 = vmatprep.subr.bf16.mxu0 0
  %4066 = vmatpush1.bf16.msra.mxu0 0
  %4067 = vmatprep.subr.bf16.mxu0 0
  %4068 = vmatpush1.bf16.msra.mxu0 0
  %4069 = vmatprep.subr.bf16.mxu0 0
  %4070 = vmatpush1.bf16.msra.mxu0 0
  %4071 = vmatprep.subr.bf16.mxu0 0
  %4072 = vmatpush1.bf16.msra.mxu0 0
  %4073 = vmatprep.subr.bf16.mxu0 0
  %4074 = vmatpush1.bf16.msra.mxu0 0
  %4075 = vmatprep.subr.bf16.mxu0 0
  %4076 = vmatpush1.bf16.msra.mxu0 0
  %4077 = vmatprep.subr.bf16.mxu0 0
  %4078 = vmatpush1.bf16.msra.mxu0 0
  %4079 = vmatprep.subr.bf16.mxu0 0
  %4080 = vmatpush1.bf16.msra.mxu0 0
  %4081 = vmatprep.mubr.bf16.mxu0 0
  %4082 = vmatmul.mubr.bf16.gmra.mrb[0].mxu0 %v3938
  %v4083 = vpop.f32.mrb[0].mxu0
  %v4084 = vadd.f32 0.0, %v4083
  %v4085 = vpop.f32.mrb[0].mxu0
  %v4086 = vpop.f32.mrb[0].mxu0
  %v4087 = vadd.f32 0.0, %v4086
  %v4088 = vpop.f32.mrb[0].mxu0
  %4089 = vmatprep.mubr.bf16.mxu0 0
  %4090 = vmatmul.mubr.bf16.gmra.mrb[0].mxu0 %v3941
  %v4091 = vpop.f32.mrb[0].mxu0
  %v4092 = vadd.f32 0.0, %v4091
  %v4093 = vpop.f32.mrb[0].mxu0
  %v4094 = vpop.f32.mrb[0].mxu0
  %v4095 = vadd.f32 0.0, %v4094
  %v4096 = vpop.f32.mrb[0].mxu0
  %4097 = vdwg.mxu0
  %v4098 = vadd.f32 %v3598, %v3978
  %v4099 = vadd.f32 %v3600, %v3980
  %v4100 = vadd.f32 %v3651, %v4031
  %v4101 = vadd.f32 %v3653, %v4033
  %v4102 = vadd.f32 %v3704, %v4084
  %v4103 = vadd.f32 %v3602, %v3982
  %v4104 = vadd.f32 %v3604, %v3984
  %v4105 = vadd.f32 %v3655, %v4035
  %v4106 = vadd.f32 %v3657, %v4037
  %v4107 = vadd.f32 %v3707, %v4087
  %v4108 = vadd.f32 %v3608, %v3988
  %v4109 = vadd.f32 %v3610, %v3990
  %v4110 = vadd.f32 %v3661, %v4041
  %v4111 = vadd.f32 %v3663, %v4043
  %v4112 = vadd.f32 %v3712, %v4092
  %v4113 = vadd.f32 %v3612, %v3992
  %v4114 = vadd.f32 %v3614, %v3994
  %v4115 = vadd.f32 %v3665, %v4045
  %v4116 = vadd.f32 %v3667, %v4047
  %v4117 = vadd.f32 %v3715, %v4095
  %v4118 = vld [vmem:[%s6] sm:$0xff]
  %v4119 = vld [vmem:[%s6 + $0x8] sm:$0xff]
  %v4120 = vld [vmem:[%s6 + $0x10] sm:$0xff]
  %v4121 = vld [vmem:[%s6 + $0x18] sm:$0xff]
  %4123 = vset.pattern.permute.xlu0 0
  %4124 = vperm.xlu0 %4123, %v4118
  %v4125 = vpop.permute.xlu0 %4124
  %4128 = vset.pattern.permute.xlu0 0
  %4129 = vperm.xlu0 %4128, %v4119
  %v4130 = vpop.permute.xlu0 %4129
  %4133 = vset.pattern.permute.xlu0 0
  %4134 = vperm.xlu0 %4133, %v4120
  %v4135 = vpop.permute.xlu0 %4134
  %4138 = vset.pattern.permute.xlu0 0
  %4139 = vperm.xlu0 %4138, %v4121
  %v4140 = vpop.permute.xlu0 %4139
  %v4142 = vadd.f32 %v4098, %v4125
  %v4143 = vadd.f32 %v4099, %v4125
  %v4144 = vadd.f32 %v4100, %v4125
  %v4145 = vadd.f32 %v4101, %v4125
  %v4146 = vadd.f32 %v4102, %v4125
  %v4147 = vadd.f32 %v4103, %v4130
  %v4148 = vadd.f32 %v4104, %v4130
  %v4149 = vadd.f32 %v4105, %v4130
  %v4150 = vadd.f32 %v4106, %v4130
  %v4151 = vadd.f32 %v4107, %v4130
  %v4152 = vadd.f32 %v4108, %v4135
  %v4153 = vadd.f32 %v4109, %v4135
  %v4154 = vadd.f32 %v4110, %v4135
  %v4155 = vadd.f32 %v4111, %v4135
  %v4156 = vadd.f32 %v4112, %v4135
  %v4157 = vadd.f32 %v4113, %v4140
  %v4158 = vadd.f32 %v4114, %v4140
  %v4159 = vadd.f32 %v4115, %v4140
  %v4160 = vadd.f32 %v4116, %v4140
  %v4161 = vadd.f32 %v4117, %v4140
  %v4162 = vmax.f32 %v4142, 0.0
  %v4163 = vmax.f32 %v4143, 0.0
  %v4164 = vmax.f32 %v4144, 0.0
  %v4165 = vmax.f32 %v4145, 0.0
  %v4166 = vmax.f32 %v4146, 0.0
  %v4167 = vmax.f32 %v4147, 0.0
  %v4168 = vmax.f32 %v4148, 0.0
  %v4169 = vmax.f32 %v4149, 0.0
  %v4170 = vmax.f32 %v4150, 0.0
  %v4171 = vmax.f32 %v4151, 0.0
  %v4172 = vmax.f32 %v4152, 0.0
  %v4173 = vmax.f32 %v4153, 0.0
  %v4174 = vmax.f32 %v4154, 0.0
  %v4175 = vmax.f32 %v4155, 0.0
  %v4176 = vmax.f32 %v4156, 0.0
  %v4177 = vmax.f32 %v4157, 0.0
  %v4178 = vmax.f32 %v4158, 0.0
  %v4179 = vmax.f32 %v4159, 0.0
  %v4180 = vmax.f32 %v4160, 0.0
  %v4181 = vmax.f32 %v4161, 0.0
  %v4182 = vsel %vm1671, %v4162, 0.0
  %v4183 = vsel %vm1672, %v4163, 0.0
  %v4184 = vsel %vm1673, %v4164, 0.0
  %v4185 = vsel %vm1674, %v4165, 0.0
  %v4186 = vsel %vm1675, %v4166, 0.0
  %v4187 = vsel %vm1671, %v4167, 0.0
  %v4188 = vsel %vm1672, %v4168, 0.0
  %v4189 = vsel %vm1673, %v4169, 0.0
  %v4190 = vsel %vm1674, %v4170, 0.0
  %v4191 = vsel %vm1675, %v4171, 0.0
  %v4192 = vsel %vm1671, %v4172, 0.0
  %v4193 = vsel %vm1672, %v4173, 0.0
  %v4194 = vsel %vm1673, %v4174, 0.0
  %v4195 = vsel %vm1674, %v4175, 0.0
  %v4196 = vsel %vm1675, %v4176, 0.0
  %v4197 = vsel %vm1671, %v4177, 0.0
  %v4198 = vsel %vm1672, %v4178, 0.0
  %v4199 = vsel %vm1673, %v4179, 0.0
  %v4200 = vsel %vm1674, %v4180, 0.0
  %v4201 = vsel %vm1675, %v4181, 0.0
  %v4202 = vpack.c.bf16 %v4187, %v4182
  %v4203 = vpack.c.bf16 %v4188, %v4183
  %v4204 = vpack.c.bf16 %v4189, %v4184
  %v4205 = vpack.c.bf16 %v4190, %v4185
  %v4206 = vpack.c.bf16 %v4191, %v4186
  %v4207 = vpack.c.bf16 %v4197, %v4192
  %v4208 = vpack.c.bf16 %v4198, %v4193
  %v4209 = vpack.c.bf16 %v4199, %v4194
  %v4210 = vpack.c.bf16 %v4200, %v4195
  %v4211 = vpack.c.bf16 %v4201, %v4196
  %4212 = vst.msk [vmem:[#allocation2] sm:$0xff] %vm1706, 0
  %4213 = vst.msk [vmem:[#allocation2 + $0x30] sm:$0xff] %vm1706, 0
  %4224 = vrot.lane.b32.xlu0 %v4202, 19
  %v4225 = vpop.permute.xlu0 %4224
  %4226 = vrot.lane.b32.xlu0 %v4203, 19
  %v4227 = vpop.permute.xlu0 %4226
  %4228 = vrot.lane.b32.xlu0 %v4204, 19
  %v4229 = vpop.permute.xlu0 %4228
  %4230 = vrot.lane.b32.xlu0 %v4205, 19
  %v4231 = vpop.permute.xlu0 %4230
  %4232 = vrot.lane.b32.xlu0 %v4206, 19
  %v4233 = vpop.permute.xlu0 %4232
  %4234 = vrot.lane.b32.xlu0 %v4207, 19
  %v4235 = vpop.permute.xlu0 %4234
  %4236 = vrot.lane.b32.xlu0 %v4208, 19
  %v4237 = vpop.permute.xlu0 %4236
  %4238 = vrot.lane.b32.xlu0 %v4209, 19
  %v4239 = vpop.permute.xlu0 %4238
  %4240 = vrot.lane.b32.xlu0 %v4210, 19
  %v4241 = vpop.permute.xlu0 %4240
  %4242 = vrot.lane.b32.xlu0 %v4211, 19
  %v4243 = vpop.permute.xlu0 %4242
  %v4244 = vsel %vm1739, %v4225, %v4227
  %v4245 = vsel %vm1739, %v4227, %v4229
  %v4246 = vsel %vm1739, %v4229, %v4231
  %v4247 = vsel %vm1739, %v4231, %v4233
  %v4248 = vsel %vm1739, %v4235, %v4237
  %v4249 = vsel %vm1739, %v4237, %v4239
  %v4250 = vsel %vm1739, %v4239, %v4241
  %v4251 = vsel %vm1739, %v4241, %v4243
  %4262 = vst.msk [vmem:[#allocation2] sm:$0xff] %vm1758, %v4225
  %4263 = vst [vmem:[#allocation2 + $0x8] sm:$0xff] %v4244
  %4264 = vst [vmem:[#allocation2 + $0x10] sm:$0xff] %v4245
  %4265 = vst [vmem:[#allocation2 + $0x18] sm:$0xff] %v4246
  %4266 = vst.msk [vmem:[#allocation2 + $0x20] sm:$0xff] %vm1763, %v4247
  %4267 = vst.msk [vmem:[#allocation2 + $0x30] sm:$0xff] %vm1758, %v4235
  %4268 = vst [vmem:[#allocation2 + $0x38] sm:$0xff] %v4248
  %4269 = vst [vmem:[#allocation2 + $0x40] sm:$0xff] %v4249
  %4270 = vst [vmem:[#allocation2 + $0x48] sm:$0xff] %v4250
  %4271 = vst.msk [vmem:[#allocation2 + $0x50] sm:$0xff] %vm1763, %v4251
  %4272 = vst.msk [vmem:[#allocation2 + $0x20] sm:$0xff] %vm1770, 0
  %4273 = vst.msk [vmem:[#allocation2 + $0x28] sm:$0xff] %vm1772, 0
  %4274 = vst.msk [vmem:[#allocation2 + $0x50] sm:$0xff] %vm1770, 0
  %4275 = vst.msk [vmem:[#allocation2 + $0x58] sm:$0xff] %vm1772, 0
  %v4276 = vld [vmem:[#allocation2] sm:$0xff]
  %v4277 = vld [vmem:[#allocation2 + $0x8] sm:$0xff]
  %v4278 = vld [vmem:[#allocation2 + $0x10] sm:$0xff]
  %v4279 = vld [vmem:[#allocation2 + $0x18] sm:$0xff]
  %v4280 = vld [vmem:[#allocation2 + $0x20] sm:$0xff]
  %v4281 = vld [vmem:[#allocation2 + $0x28] sm:$0xff]
  %v4282 = vld [vmem:[#allocation2 + $0x30] sm:$0xff]
  %v4283 = vld [vmem:[#allocation2 + $0x38] sm:$0xff]
  %v4284 = vld [vmem:[#allocation2 + $0x40] sm:$0xff]
  %v4285 = vld [vmem:[#allocation2 + $0x48] sm:$0xff]
  %v4286 = vld [vmem:[#allocation2 + $0x50] sm:$0xff]
  %v4287 = vld [vmem:[#allocation2 + $0x58] sm:$0xff]
  %4300 = vrot.lane.b32.xlu0 %v4276, 127
  %v4301 = vpop.permute.xlu0 %4300
  %4302 = vrot.lane.b32.xlu0 %v4277, 127
  %v4303 = vpop.permute.xlu0 %4302
  %4304 = vrot.lane.b32.xlu0 %v4278, 127
  %v4305 = vpop.permute.xlu0 %4304
  %4306 = vrot.lane.b32.xlu0 %v4279, 127
  %v4307 = vpop.permute.xlu0 %4306
  %4308 = vrot.lane.b32.xlu0 %v4280, 127
  %v4309 = vpop.permute.xlu0 %4308
  %4310 = vrot.lane.b32.xlu0 %v4281, 127
  %v4311 = vpop.permute.xlu0 %4310
  %4312 = vrot.lane.b32.xlu0 %v4282, 127
  %v4313 = vpop.permute.xlu0 %4312
  %4314 = vrot.lane.b32.xlu0 %v4283, 127
  %v4315 = vpop.permute.xlu0 %4314
  %4316 = vrot.lane.b32.xlu0 %v4284, 127
  %v4317 = vpop.permute.xlu0 %4316
  %4318 = vrot.lane.b32.xlu0 %v4285, 127
  %v4319 = vpop.permute.xlu0 %4318
  %4320 = vrot.lane.b32.xlu0 %v4286, 127
  %v4321 = vpop.permute.xlu0 %4320
  %4322 = vrot.lane.b32.xlu0 %v4287, 127
  %v4323 = vpop.permute.xlu0 %4322
  %v4324 = vsel %vm1824, %v4301, %v4303
  %v4325 = vsel %vm1824, %v4303, %v4305
  %v4326 = vsel %vm1824, %v4305, %v4307
  %v4327 = vsel %vm1824, %v4307, %v4309
  %v4328 = vsel %vm1824, %v4309, %v4311
  %v4329 = vsel %vm1824, %v4313, %v4315
  %v4330 = vsel %vm1824, %v4315, %v4317
  %v4331 = vsel %vm1824, %v4317, %v4319
  %v4332 = vsel %vm1824, %v4319, %v4321
  %v4333 = vsel %vm1824, %v4321, %v4323
  %4346 = vst [vmem:[#allocation2 + $0x60] sm:$0xff] %v4324
  %4347 = vst [vmem:[#allocation2 + $0x68] sm:$0xff] %v4325
  %4348 = vst [vmem:[#allocation2 + $0x70] sm:$0xff] %v4326
  %4349 = vst [vmem:[#allocation2 + $0x78] sm:$0xff] %v4327
  %4350 = vst [vmem:[#allocation2 + $0x80] sm:$0xff] %v4328
  %4351 = vst.msk [vmem:[#allocation2 + $0x88] sm:$0xff] %vm1852, %v4311
  %4352 = vst [vmem:[#allocation2 + $0x90] sm:$0xff] %v4329
  %4353 = vst [vmem:[#allocation2 + $0x98] sm:$0xff] %v4330
  %4354 = vst [vmem:[#allocation2 + $0xa0] sm:$0xff] %v4331
  %4355 = vst [vmem:[#allocation2 + $0xa8] sm:$0xff] %v4332
  %4356 = vst [vmem:[#allocation2 + $0xb0] sm:$0xff] %v4333
  %4357 = vst.msk [vmem:[#allocation2 + $0xb8] sm:$0xff] %vm1852, %v4323
  %v4358 = vld [vmem:[#allocation2] sm:$0xff]
  %v4359 = vld [vmem:[#allocation2 + $0x8] sm:$0xff]
  %v4360 = vld [vmem:[#allocation2 + $0x10] sm:$0xff]
  %v4361 = vld [vmem:[#allocation2 + $0x18] sm:$0xff]
  %v4362 = vld [vmem:[#allocation2 + $0x20] sm:$0xff]
  %v4363 = vld [vmem:[#allocation2 + $0x28] sm:$0xff]
  %v4364 = vld [vmem:[#allocation2 + $0x30] sm:$0xff]
  %v4365 = vld [vmem:[#allocation2 + $0x38] sm:$0xff]
  %v4366 = vld [vmem:[#allocation2 + $0x40] sm:$0xff]
  %v4367 = vld [vmem:[#allocation2 + $0x48] sm:$0xff]
  %v4368 = vld [vmem:[#allocation2 + $0x50] sm:$0xff]
  %v4369 = vld [vmem:[#allocation2 + $0x58] sm:$0xff]
  %4382 = vrot.lane.b32.xlu0 %v4358, 126
  %v4383 = vpop.permute.xlu0 %4382
  %4384 = vrot.lane.b32.xlu0 %v4359, 126
  %v4385 = vpop.permute.xlu0 %4384
  %4386 = vrot.lane.b32.xlu0 %v4360, 126
  %v4387 = vpop.permute.xlu0 %4386
  %4388 = vrot.lane.b32.xlu0 %v4361, 126
  %v4389 = vpop.permute.xlu0 %4388
  %4390 = vrot.lane.b32.xlu0 %v4362, 126
  %v4391 = vpop.permute.xlu0 %4390
  %4392 = vrot.lane.b32.xlu0 %v4363, 126
  %v4393 = vpop.permute.xlu0 %4392
  %4394 = vrot.lane.b32.xlu0 %v4364, 126
  %v4395 = vpop.permute.xlu0 %4394
  %4396 = vrot.lane.b32.xlu0 %v4365, 126
  %v4397 = vpop.permute.xlu0 %4396
  %4398 = vrot.lane.b32.xlu0 %v4366, 126
  %v4399 = vpop.permute.xlu0 %4398
  %4400 = vrot.lane.b32.xlu0 %v4367, 126
  %v4401 = vpop.permute.xlu0 %4400
  %4402 = vrot.lane.b32.xlu0 %v4368, 126
  %v4403 = vpop.permute.xlu0 %4402
  %4404 = vrot.lane.b32.xlu0 %v4369, 126
  %v4405 = vpop.permute.xlu0 %4404
  %v4406 = vsel %vm1908, %v4383, %v4385
  %v4407 = vsel %vm1908, %v4385, %v4387
  %v4408 = vsel %vm1908, %v4387, %v4389
  %v4409 = vsel %vm1908, %v4389, %v4391
  %v4410 = vsel %vm1908, %v4391, %v4393
  %v4411 = vsel %vm1908, %v4395, %v4397
  %v4412 = vsel %vm1908, %v4397, %v4399
  %v4413 = vsel %vm1908, %v4399, %v4401
  %v4414 = vsel %vm1908, %v4401, %v4403
  %v4415 = vsel %vm1908, %v4403, %v4405
  %4428 = vst [vmem:[#allocation2 + $0xc0] sm:$0xff] %v4406
  %4429 = vst [vmem:[#allocation2 + $0xc8] sm:$0xff] %v4407
  %4430 = vst [vmem:[#allocation2 + $0xd0] sm:$0xff] %v4408
  %4431 = vst [vmem:[#allocation2 + $0xd8] sm:$0xff] %v4409
  %4432 = vst [vmem:[#allocation2 + $0xe0] sm:$0xff] %v4410
  %4433 = vst.msk [vmem:[#allocation2 + $0xe8] sm:$0xff] %vm1852, %v4393
  %4434 = vst [vmem:[#allocation2 + $0xf0] sm:$0xff] %v4411
  %4435 = vst [vmem:[#allocation2 + $0xf8] sm:$0xff] %v4412
  %4436 = vst [vmem:[#allocation2 + $0x100] sm:$0xff] %v4413
  %4437 = vst [vmem:[#allocation2 + $0x108] sm:$0xff] %v4414
  %4438 = vst [vmem:[#allocation2 + $0x110] sm:$0xff] %v4415
  %4439 = vst.msk [vmem:[#allocation2 + $0x118] sm:$0xff] %vm1852, %v4405
  %v4440 = vld [vmem:[#allocation2] sm:$0xff]
  %v4441 = vld [vmem:[#allocation2 + $0x8] sm:$0xff]
  %v4442 = vld [vmem:[#allocation2 + $0x10] sm:$0xff]
  %v4443 = vld [vmem:[#allocation2 + $0x18] sm:$0xff]
  %v4444 = vld [vmem:[#allocation2 + $0x20] sm:$0xff]
  %v4445 = vld [vmem:[#allocation2 + $0x30] sm:$0xff]
  %v4446 = vld [vmem:[#allocation2 + $0x38] sm:$0xff]
  %v4447 = vld [vmem:[#allocation2 + $0x40] sm:$0xff]
  %v4448 = vld [vmem:[#allocation2 + $0x48] sm:$0xff]
  %v4449 = vld [vmem:[#allocation2 + $0x50] sm:$0xff]
  %v4450 = vld [vmem:[#allocation2 + $0x60] sm:$0xff]
  %v4451 = vld [vmem:[#allocation2 + $0x68] sm:$0xff]
  %v4452 = vld [vmem:[#allocation2 + $0x70] sm:$0xff]
  %v4453 = vld [vmem:[#allocation2 + $0x78] sm:$0xff]
  %v4454 = vld [vmem:[#allocation2 + $0x80] sm:$0xff]
  %v4455 = vld [vmem:[#allocation2 + $0x90] sm:$0xff]
  %v4456 = vld [vmem:[#allocation2 + $0x98] sm:$0xff]
  %v4457 = vld [vmem:[#allocation2 + $0xa0] sm:$0xff]
  %v4458 = vld [vmem:[#allocation2 + $0xa8] sm:$0xff]
  %v4459 = vld [vmem:[#allocation2 + $0xb0] sm:$0xff]
  %v4460 = vld [vmem:[#allocation2 + $0xc0] sm:$0xff]
  %v4461 = vld [vmem:[#allocation2 + $0xc8] sm:$0xff]
  %v4462 = vld [vmem:[#allocation2 + $0xd0] sm:$0xff]
  %v4463 = vld [vmem:[#allocation2 + $0xd8] sm:$0xff]
  %v4464 = vld [vmem:[#allocation2 + $0xe0] sm:$0xff]
  %v4465 = vld [vmem:[#allocation2 + $0xf0] sm:$0xff]
  %v4466 = vld [vmem:[#allocation2 + $0xf8] sm:$0xff]
  %v4467 = vld [vmem:[#allocation2 + $0x100] sm:$0xff]
  %v4468 = vld [vmem:[#allocation2 + $0x108] sm:$0xff]
  %v4469 = vld [vmem:[#allocation2 + $0x110] sm:$0xff]
  %v4470 = vld [vmem:[%s7] sm:$0xf]
  %v4471 = vld [vmem:[%s7 + $0x4] sm:$0xf]
  %v4472 = vld [vmem:[%s7 + $0x8] sm:$0xf]
  %v4473 = vld [vmem:[%s7 + $0xc] sm:$0xf]
  %s4474 = scalar_lea.vmem %s7, 16
  %v4475 = vld [vmem:[%s4474] sm:$0xf]
  %v4476 = vld [vmem:[%s4474 + $0x4] sm:$0xf]
  %v4477 = vld [vmem:[%s4474 + $0x8] sm:$0xf]
  %v4478 = vld [vmem:[%s4474 + $0xc] sm:$0xf]
  %v4483 = vunpack.c.l.b16 %v4475
  %v4484 = vunpack.c.l.b16 %v4476
  %v4485 = vunpack.c.l.b16 %v4477
  %v4486 = vunpack.c.l.b16 %v4478
  %v4487 = vpack.c.b16 %v4484, %v4483
  %v4488 = vpack.c.b16 %v4486, %v4485
  %4519 = vrot.lane.b32.xlu0 %v4440, 110
  %v4520 = vpop.permute.xlu0 %4519
  %4521 = vrot.lane.b32.xlu0 %v4441, 110
  %v4522 = vpop.permute.xlu0 %4521
  %4523 = vrot.lane.b32.xlu0 %v4442, 110
  %v4524 = vpop.permute.xlu0 %4523
  %4525 = vrot.lane.b32.xlu0 %v4443, 110
  %v4526 = vpop.permute.xlu0 %4525
  %4527 = vrot.lane.b32.xlu0 %v4444, 110
  %v4528 = vpop.permute.xlu0 %4527
  %4529 = vrot.lane.b32.xlu0 %v4445, 110
  %v4530 = vpop.permute.xlu0 %4529
  %4531 = vrot.lane.b32.xlu0 %v4446, 110
  %v4532 = vpop.permute.xlu0 %4531
  %4533 = vrot.lane.b32.xlu0 %v4447, 110
  %v4534 = vpop.permute.xlu0 %4533
  %4535 = vrot.lane.b32.xlu0 %v4448, 110
  %v4536 = vpop.permute.xlu0 %4535
  %4537 = vrot.lane.b32.xlu0 %v4449, 110
  %v4538 = vpop.permute.xlu0 %4537
  %4539 = vrot.lane.b32.xlu0 %v4450, 110
  %v4540 = vpop.permute.xlu0 %4539
  %4541 = vrot.lane.b32.xlu0 %v4451, 110
  %v4542 = vpop.permute.xlu0 %4541
  %4543 = vrot.lane.b32.xlu0 %v4452, 110
  %v4544 = vpop.permute.xlu0 %4543
  %4545 = vrot.lane.b32.xlu0 %v4453, 110
  %v4546 = vpop.permute.xlu0 %4545
  %4547 = vrot.lane.b32.xlu0 %v4454, 110
  %v4548 = vpop.permute.xlu0 %4547
  %4549 = vrot.lane.b32.xlu0 %v4455, 110
  %v4550 = vpop.permute.xlu0 %4549
  %4551 = vrot.lane.b32.xlu0 %v4456, 110
  %v4552 = vpop.permute.xlu0 %4551
  %4553 = vrot.lane.b32.xlu0 %v4457, 110
  %v4554 = vpop.permute.xlu0 %4553
  %4555 = vrot.lane.b32.xlu0 %v4458, 110
  %v4556 = vpop.permute.xlu0 %4555
  %4557 = vrot.lane.b32.xlu0 %v4459, 110
  %v4558 = vpop.permute.xlu0 %4557
  %4559 = vrot.lane.b32.xlu0 %v4460, 110
  %v4560 = vpop.permute.xlu0 %4559
  %4561 = vrot.lane.b32.xlu0 %v4461, 110
  %v4562 = vpop.permute.xlu0 %4561
  %4563 = vrot.lane.b32.xlu0 %v4462, 110
  %v4564 = vpop.permute.xlu0 %4563
  %4565 = vrot.lane.b32.xlu0 %v4463, 110
  %v4566 = vpop.permute.xlu0 %4565
  %4567 = vrot.lane.b32.xlu0 %v4464, 110
  %v4568 = vpop.permute.xlu0 %4567
  %4569 = vrot.lane.b32.xlu0 %v4465, 110
  %v4570 = vpop.permute.xlu0 %4569
  %4571 = vrot.lane.b32.xlu0 %v4466, 110
  %v4572 = vpop.permute.xlu0 %4571
  %4573 = vrot.lane.b32.xlu0 %v4467, 110
  %v4574 = vpop.permute.xlu0 %4573
  %4575 = vrot.lane.b32.xlu0 %v4468, 110
  %v4576 = vpop.permute.xlu0 %4575
  %4577 = vrot.lane.b32.xlu0 %v4469, 110
  %v4578 = vpop.permute.xlu0 %4577
  %v4579 = vsel %vm2082, %v4520, %v4522
  %v4580 = vsel %vm2082, %v4522, %v4524
  %v4581 = vsel %vm2082, %v4524, %v4526
  %v4582 = vsel %vm2082, %v4526, %v4528
  %v4583 = vsel %vm2082, %v4530, %v4532
  %v4584 = vsel %vm2082, %v4532, %v4534
  %v4585 = vsel %vm2082, %v4534, %v4536
  %v4586 = vsel %vm2082, %v4536, %v4538
  %v4587 = vsel %vm2082, %v4540, %v4542
  %v4588 = vsel %vm2082, %v4542, %v4544
  %v4589 = vsel %vm2082, %v4544, %v4546
  %v4590 = vsel %vm2082, %v4546, %v4548
  %v4591 = vsel %vm2082, %v4550, %v4552
  %v4592 = vsel %vm2082, %v4552, %v4554
  %v4593 = vsel %vm2082, %v4554, %v4556
  %v4594 = vsel %vm2082, %v4556, %v4558
  %v4595 = vsel %vm2082, %v4560, %v4562
  %v4596 = vsel %vm2082, %v4562, %v4564
  %v4597 = vsel %vm2082, %v4564, %v4566
  %v4598 = vsel %vm2082, %v4566, %v4568
  %v4599 = vsel %vm2082, %v4570, %v4572
  %v4600 = vsel %vm2082, %v4572, %v4574
  %v4601 = vsel %vm2082, %v4574, %v4576
  %v4602 = vsel %vm2082, %v4576, %v4578
  %v4634 = vsel %vm2137, %v4487, 0
  %v4637 = vsel %vm2137, %v4488, 0
  %4639 = vmatprep.subr.bf16.mxu0 %v4580
  %4640 = vmatpush1.bf16.msra.mxu0 %v4579
  %4641 = vmatprep.subr.bf16.mxu0 %v4584
  %4642 = vmatpush1.bf16.msra.mxu0 %v4583
  %4643 = vmatprep.subr.bf16.mxu0 %v4588
  %4644 = vmatpush1.bf16.msra.mxu0 %v4587
  %4645 = vmatprep.subr.bf16.mxu0 %v4592
  %4646 = vmatpush1.bf16.msra.mxu0 %v4591
  %4647 = vmatprep.subr.bf16.mxu0 %v4596
  %4648 = vmatpush1.bf16.msra.mxu0 %v4595
  %4649 = vmatprep.subr.bf16.mxu0 %v4600
  %4650 = vmatpush1.bf16.msra.mxu0 %v4599
  %4651 = vmatprep.subr.bf16.mxu0 0
  %4652 = vmatpush1.bf16.msra.mxu0 0
  %4653 = vmatprep.subr.bf16.mxu0 0
  %4654 = vmatpush1.bf16.msra.mxu0 0
  %4655 = vmatprep.subr.bf16.mxu0 0
  %4656 = vmatpush1.bf16.msra.mxu0 0
  %4657 = vmatprep.subr.bf16.mxu0 0
  %4658 = vmatpush1.bf16.msra.mxu0 0
  %4659 = vmatprep.subr.bf16.mxu0 0
  %4660 = vmatpush1.bf16.msra.mxu0 0
  %4661 = vmatprep.subr.bf16.mxu0 0
  %4662 = vmatpush1.bf16.msra.mxu0 0
  %4663 = vmatprep.subr.bf16.mxu0 0
  %4664 = vmatpush1.bf16.msra.mxu0 0
  %4665 = vmatprep.subr.bf16.mxu0 0
  %4666 = vmatpush1.bf16.msra.mxu0 0
  %4667 = vmatprep.subr.bf16.mxu0 0
  %4668 = vmatpush1.bf16.msra.mxu0 0
  %4669 = vmatprep.subr.bf16.mxu0 0
  %4670 = vmatpush1.bf16.msra.mxu0 0
  %4671 = vmatprep.mubr.bf16.mxu0 0
  %4672 = vmatmul.mubr.bf16.gmra.mrb[0].mxu0 %v4634
  %v4673 = vpop.f32.mrb[0].mxu0
  %v4674 = vadd.f32 0.0, %v4673
  %v4675 = vpop.f32.mrb[0].mxu0
  %v4676 = vadd.f32 0.0, %v4675
  %v4677 = vpop.f32.mrb[0].mxu0
  %v4678 = vadd.f32 0.0, %v4677
  %v4679 = vpop.f32.mrb[0].mxu0
  %v4680 = vadd.f32 0.0, %v4679
  %4681 = vmatprep.mubr.bf16.mxu0 0
  %4682 = vmatmul.mubr.bf16.gmra.mrb[0].mxu0 %v4637
  %v4683 = vpop.f32.mrb[0].mxu0
  %v4684 = vadd.f32 0.0, %v4683
  %v4685 = vpop.f32.mrb[0].mxu0
  %v4686 = vadd.f32 0.0, %v4685
  %v4687 = vpop.f32.mrb[0].mxu0
  %v4688 = vadd.f32 0.0, %v4687
  %v4689 = vpop.f32.mrb[0].mxu0
  %v4690 = vadd.f32 0.0, %v4689
  %4691 = vdwg.mxu0
  %4692 = vmatprep.subr.bf16.mxu0 %v4582
  %4693 = vmatpush1.bf16.msra.mxu0 %v4581
  %4694 = vmatprep.subr.bf16.mxu0 %v4586
  %4695 = vmatpush1.bf16.msra.mxu0 %v4585
  %4696 = vmatprep.subr.bf16.mxu0 %v4590
  %4697 = vmatpush1.bf16.msra.mxu0 %v4589
  %4698 = vmatprep.subr.bf16.mxu0 %v4594
  %4699 = vmatpush1.bf16.msra.mxu0 %v4593
  %4700 = vmatprep.subr.bf16.mxu0 %v4598
  %4701 = vmatpush1.bf16.msra.mxu0 %v4597
  %4702 = vmatprep.subr.bf16.mxu0 %v4602
  %4703 = vmatpush1.bf16.msra.mxu0 %v4601
  %4704 = vmatprep.subr.bf16.mxu0 0
  %4705 = vmatpush1.bf16.msra.mxu0 0
  %4706 = vmatprep.subr.bf16.mxu0 0
  %4707 = vmatpush1.bf16.msra.mxu0 0
  %4708 = vmatprep.subr.bf16.mxu0 0
  %4709 = vmatpush1.bf16.msra.mxu0 0
  %4710 = vmatprep.subr.bf16.mxu0 0
  %4711 = vmatpush1.bf16.msra.mxu0 0
  %4712 = vmatprep.subr.bf16.mxu0 0
  %4713 = vmatpush1.bf16.msra.mxu0 0
  %4714 = vmatprep.subr.bf16.mxu0 0
  %4715 = vmatpush1.bf16.msra.mxu0 0
  %4716 = vmatprep.subr.bf16.mxu0 0
  %4717 = vmatpush1.bf16.msra.mxu0 0
  %4718 = vmatprep.subr.bf16.mxu0 0
  %4719 = vmatpush1.bf16.msra.mxu0 0
  %4720 = vmatprep.subr.bf16.mxu0 0
  %4721 = vmatpush1.bf16.msra.mxu0 0
  %4722 = vmatprep.subr.bf16.mxu0 0
  %4723 = vmatpush1.bf16.msra.mxu0 0
  %4724 = vmatprep.mubr.bf16.mxu0 0
  %4725 = vmatmul.mubr.bf16.gmra.mrb[0].mxu0 %v4634
  %v4726 = vpop.f32.mrb[0].mxu0
  %v4727 = vadd.f32 0.0, %v4726
  %v4728 = vpop.f32.mrb[0].mxu0
  %v4729 = vadd.f32 0.0, %v4728
  %v4730 = vpop.f32.mrb[0].mxu0
  %v4731 = vadd.f32 0.0, %v4730
  %v4732 = vpop.f32.mrb[0].mxu0
  %v4733 = vadd.f32 0.0, %v4732
  %4734 = vmatprep.mubr.bf16.mxu0 0
  %4735 = vmatmul.mubr.bf16.gmra.mrb[0].mxu0 %v4637
  %v4736 = vpop.f32.mrb[0].mxu0
  %v4737 = vadd.f32 0.0, %v4736
  %v4738 = vpop.f32.mrb[0].mxu0
  %v4739 = vadd.f32 0.0, %v4738
  %v4740 = vpop.f32.mrb[0].mxu0
  %v4741 = vadd.f32 0.0, %v4740
  %v4742 = vpop.f32.mrb[0].mxu0
  %v4743 = vadd.f32 0.0, %v4742
  %4744 = vdwg.mxu0
  %4745 = vmatprep.subr.bf16.mxu0 0
  %4746 = vmatpush1.bf16.msra.mxu0 %v4528
  %4747 = vmatprep.subr.bf16.mxu0 0
  %4748 = vmatpush1.bf16.msra.mxu0 %v4538
  %4749 = vmatprep.subr.bf16.mxu0 0
  %4750 = vmatpush1.bf16.msra.mxu0 %v4548
  %4751 = vmatprep.subr.bf16.mxu0 0
  %4752 = vmatpush1.bf16.msra.mxu0 %v4558
  %4753 = vmatprep.subr.bf16.mxu0 0
  %4754 = vmatpush1.bf16.msra.mxu0 %v4568
  %4755 = vmatprep.subr.bf16.mxu0 0
  %4756 = vmatpush1.bf16.msra.mxu0 %v4578
  %4757 = vmatprep.subr.bf16.mxu0 0
  %4758 = vmatpush1.bf16.msra.mxu0 0
  %4759 = vmatprep.subr.bf16.mxu0 0
  %4760 = vmatpush1.bf16.msra.mxu0 0
  %4761 = vmatprep.subr.bf16.mxu0 0
  %4762 = vmatpush1.bf16.msra.mxu0 0
  %4763 = vmatprep.subr.bf16.mxu0 0
  %4764 = vmatpush1.bf16.msra.mxu0 0
  %4765 = vmatprep.subr.bf16.mxu0 0
  %4766 = vmatpush1.bf16.msra.mxu0 0
  %4767 = vmatprep.subr.bf16.mxu0 0
  %4768 = vmatpush1.bf16.msra.mxu0 0
  %4769 = vmatprep.subr.bf16.mxu0 0
  %4770 = vmatpush1.bf16.msra.mxu0 0
  %4771 = vmatprep.subr.bf16.mxu0 0
  %4772 = vmatpush1.bf16.msra.mxu0 0
  %4773 = vmatprep.subr.bf16.mxu0 0
  %4774 = vmatpush1.bf16.msra.mxu0 0
  %4775 = vmatprep.subr.bf16.mxu0 0
  %4776 = vmatpush1.bf16.msra.mxu0 0
  %4777 = vmatprep.mubr.bf16.mxu0 0
  %4778 = vmatmul.mubr.bf16.gmra.mrb[0].mxu0 %v4634
  %v4779 = vpop.f32.mrb[0].mxu0
  %v4780 = vadd.f32 0.0, %v4779
  %v4781 = vpop.f32.mrb[0].mxu0
  %v4782 = vpop.f32.mrb[0].mxu0
  %v4783 = vadd.f32 0.0, %v4782
  %v4784 = vpop.f32.mrb[0].mxu0
  %4785 = vmatprep.mubr.bf16.mxu0 0
  %4786 = vmatmul.mubr.bf16.gmra.mrb[0].mxu0 %v4637
  %v4787 = vpop.f32.mrb[0].mxu0
  %v4788 = vadd.f32 0.0, %v4787
  %v4789 = vpop.f32.mrb[0].mxu0
  %v4790 = vpop.f32.mrb[0].mxu0
  %v4791 = vadd.f32 0.0, %v4790
  %v4792 = vpop.f32.mrb[0].mxu0
  %4793 = vdwg.mxu0
  %v4798 = vunpack.c.l.b16 %v4470
  %v4799 = vunpack.c.l.b16 %v4471
  %v4800 = vunpack.c.l.b16 %v4472
  %v4801 = vunpack.c.l.b16 %v4473
  %v4802 = vpack.c.b16 %v4799, %v4798
  %v4803 = vpack.c.b16 %v4801, %v4800
  %v4805 = vsel %vm2137, %v4802, 0
  %v4808 = vsel %vm2137, %v4803, 0
  %4810 = vmatprep.subr.bf16.mxu0 %v4441
  %4811 = vmatpush1.bf16.msra.mxu0 %v4440
  %4812 = vmatprep.subr.bf16.mxu0 %v4446
  %4813 = vmatpush1.bf16.msra.mxu0 %v4445
  %4814 = vmatprep.subr.bf16.mxu0 %v4451
  %4815 = vmatpush1.bf16.msra.mxu0 %v4450
  %4816 = vmatprep.subr.bf16.mxu0 %v4456
  %4817 = vmatpush1.bf16.msra.mxu0 %v4455
  %4818 = vmatprep.subr.bf16.mxu0 %v4461
  %4819 = vmatpush1.bf16.msra.mxu0 %v4460
  %4820 = vmatprep.subr.bf16.mxu0 %v4466
  %4821 = vmatpush1.bf16.msra.mxu0 %v4465
  %4822 = vmatprep.subr.bf16.mxu0 0
  %4823 = vmatpush1.bf16.msra.mxu0 0
  %4824 = vmatprep.subr.bf16.mxu0 0
  %4825 = vmatpush1.bf16.msra.mxu0 0
  %4826 = vmatprep.subr.bf16.mxu0 0
  %4827 = vmatpush1.bf16.msra.mxu0 0
  %4828 = vmatprep.subr.bf16.mxu0 0
  %4829 = vmatpush1.bf16.msra.mxu0 0
  %4830 = vmatprep.subr.bf16.mxu0 0
  %4831 = vmatpush1.bf16.msra.mxu0 0
  %4832 = vmatprep.subr.bf16.mxu0 0
  %4833 = vmatpush1.bf16.msra.mxu0 0
  %4834 = vmatprep.subr.bf16.mxu0 0
  %4835 = vmatpush1.bf16.msra.mxu0 0
  %4836 = vmatprep.subr.bf16.mxu0 0
  %4837 = vmatpush1.bf16.msra.mxu0 0
  %4838 = vmatprep.subr.bf16.mxu0 0
  %4839 = vmatpush1.bf16.msra.mxu0 0
  %4840 = vmatprep.subr.bf16.mxu0 0
  %4841 = vmatpush1.bf16.msra.mxu0 0
  %4842 = vmatprep.mubr.bf16.mxu0 0
  %4843 = vmatmul.mubr.bf16.gmra.mrb[0].mxu0 %v4805
  %v4844 = vpop.f32.mrb[0].mxu0
  %v4845 = vadd.f32 %v4674, %v4844
  %v4846 = vpop.f32.mrb[0].mxu0
  %v4847 = vadd.f32 %v4676, %v4846
  %v4848 = vpop.f32.mrb[0].mxu0
  %v4849 = vadd.f32 %v4678, %v4848
  %v4850 = vpop.f32.mrb[0].mxu0
  %v4851 = vadd.f32 %v4680, %v4850
  %4852 = vmatprep.mubr.bf16.mxu0 0
  %4853 = vmatmul.mubr.bf16.gmra.mrb[0].mxu0 %v4808
  %v4854 = vpop.f32.mrb[0].mxu0
  %v4855 = vadd.f32 %v4684, %v4854
  %v4856 = vpop.f32.mrb[0].mxu0
  %v4857 = vadd.f32 %v4686, %v4856
  %v4858 = vpop.f32.mrb[0].mxu0
  %v4859 = vadd.f32 %v4688, %v4858
  %v4860 = vpop.f32.mrb[0].mxu0
  %v4861 = vadd.f32 %v4690, %v4860
  %4862 = vdwg.mxu0
  %4863 = vmatprep.subr.bf16.mxu0 %v4443
  %4864 = vmatpush1.bf16.msra.mxu0 %v4442
  %4865 = vmatprep.subr.bf16.mxu0 %v4448
  %4866 = vmatpush1.bf16.msra.mxu0 %v4447
  %4867 = vmatprep.subr.bf16.mxu0 %v4453
  %4868 = vmatpush1.bf16.msra.mxu0 %v4452
  %4869 = vmatprep.subr.bf16.mxu0 %v4458
  %4870 = vmatpush1.bf16.msra.mxu0 %v4457
  %4871 = vmatprep.subr.bf16.mxu0 %v4463
  %4872 = vmatpush1.bf16.msra.mxu0 %v4462
  %4873 = vmatprep.subr.bf16.mxu0 %v4468
  %4874 = vmatpush1.bf16.msra.mxu0 %v4467
  %4875 = vmatprep.subr.bf16.mxu0 0
  %4876 = vmatpush1.bf16.msra.mxu0 0
  %4877 = vmatprep.subr.bf16.mxu0 0
  %4878 = vmatpush1.bf16.msra.mxu0 0
  %4879 = vmatprep.subr.bf16.mxu0 0
  %4880 = vmatpush1.bf16.msra.mxu0 0
  %4881 = vmatprep.subr.bf16.mxu0 0
  %4882 = vmatpush1.bf16.msra.mxu0 0
  %4883 = vmatprep.subr.bf16.mxu0 0
  %4884 = vmatpush1.bf16.msra.mxu0 0
  %4885 = vmatprep.subr.bf16.mxu0 0
  %4886 = vmatpush1.bf16.msra.mxu0 0
  %4887 = vmatprep.subr.bf16.mxu0 0
  %4888 = vmatpush1.bf16.msra.mxu0 0
  %4889 = vmatprep.subr.bf16.mxu0 0
  %4890 = vmatpush1.bf16.msra.mxu0 0
  %4891 = vmatprep.subr.bf16.mxu0 0
  %4892 = vmatpush1.bf16.msra.mxu0 0
  %4893 = vmatprep.subr.bf16.mxu0 0
  %4894 = vmatpush1.bf16.msra.mxu0 0
  %4895 = vmatprep.mubr.bf16.mxu0 0
  %4896 = vmatmul.mubr.bf16.gmra.mrb[0].mxu0 %v4805
  %v4897 = vpop.f32.mrb[0].mxu0
  %v4898 = vadd.f32 %v4727, %v4897
  %v4899 = vpop.f32.mrb[0].mxu0
  %v4900 = vadd.f32 %v4729, %v4899
  %v4901 = vpop.f32.mrb[0].mxu0
  %v4902 = vadd.f32 %v4731, %v4901
  %v4903 = vpop.f32.mrb[0].mxu0
  %v4904 = vadd.f32 %v4733, %v4903
  %4905 = vmatprep.mubr.bf16.mxu0 0
  %4906 = vmatmul.mubr.bf16.gmra.mrb[0].mxu0 %v4808
  %v4907 = vpop.f32.mrb[0].mxu0
  %v4908 = vadd.f32 %v4737, %v4907
  %v4909 = vpop.f32.mrb[0].mxu0
  %v4910 = vadd.f32 %v4739, %v4909
  %v4911 = vpop.f32.mrb[0].mxu0
  %v4912 = vadd.f32 %v4741, %v4911
  %v4913 = vpop.f32.mrb[0].mxu0
  %v4914 = vadd.f32 %v4743, %v4913
  %4915 = vdwg.mxu0
  %4916 = vmatprep.subr.bf16.mxu0 0
  %4917 = vmatpush1.bf16.msra.mxu0 %v4444
  %4918 = vmatprep.subr.bf16.mxu0 0
  %4919 = vmatpush1.bf16.msra.mxu0 %v4449
  %4920 = vmatprep.subr.bf16.mxu0 0
  %4921 = vmatpush1.bf16.msra.mxu0 %v4454
  %4922 = vmatprep.subr.bf16.mxu0 0
  %4923 = vmatpush1.bf16.msra.mxu0 %v4459
  %4924 = vmatprep.subr.bf16.mxu0 0
  %4925 = vmatpush1.bf16.msra.mxu0 %v4464
  %4926 = vmatprep.subr.bf16.mxu0 0
  %4927 = vmatpush1.bf16.msra.mxu0 %v4469
  %4928 = vmatprep.subr.bf16.mxu0 0
  %4929 = vmatpush1.bf16.msra.mxu0 0
  %4930 = vmatprep.subr.bf16.mxu0 0
  %4931 = vmatpush1.bf16.msra.mxu0 0
  %4932 = vmatprep.subr.bf16.mxu0 0
  %4933 = vmatpush1.bf16.msra.mxu0 0
  %4934 = vmatprep.subr.bf16.mxu0 0
  %4935 = vmatpush1.bf16.msra.mxu0 0
  %4936 = vmatprep.subr.bf16.mxu0 0
  %4937 = vmatpush1.bf16.msra.mxu0 0
  %4938 = vmatprep.subr.bf16.mxu0 0
  %4939 = vmatpush1.bf16.msra.mxu0 0
  %4940 = vmatprep.subr.bf16.mxu0 0
  %4941 = vmatpush1.bf16.msra.mxu0 0
  %4942 = vmatprep.subr.bf16.mxu0 0
  %4943 = vmatpush1.bf16.msra.mxu0 0
  %4944 = vmatprep.subr.bf16.mxu0 0
  %4945 = vmatpush1.bf16.msra.mxu0 0
  %4946 = vmatprep.subr.bf16.mxu0 0
  %4947 = vmatpush1.bf16.msra.mxu0 0
  %4948 = vmatprep.mubr.bf16.mxu0 0
  %4949 = vmatmul.mubr.bf16.gmra.mrb[0].mxu0 %v4805
  %v4950 = vpop.f32.mrb[0].mxu0
  %v4951 = vadd.f32 %v4780, %v4950
  %v4952 = vpop.f32.mrb[0].mxu0
  %v4953 = vpop.f32.mrb[0].mxu0
  %v4954 = vadd.f32 %v4783, %v4953
  %v4955 = vpop.f32.mrb[0].mxu0
  %4956 = vmatprep.mubr.bf16.mxu0 0
  %4957 = vmatmul.mubr.bf16.gmra.mrb[0].mxu0 %v4808
  %v4958 = vpop.f32.mrb[0].mxu0
  %v4959 = vadd.f32 %v4788, %v4958
  %v4960 = vpop.f32.mrb[0].mxu0
  %v4961 = vpop.f32.mrb[0].mxu0
  %v4962 = vadd.f32 %v4791, %v4961
  %v4963 = vpop.f32.mrb[0].mxu0
  %4964 = vdwg.mxu0
  %v4965 = vld [vmem:[#allocation2] sm:$0xff]
  %v4966 = vld [vmem:[#allocation2 + $0x8] sm:$0xff]
  %v4967 = vld [vmem:[#allocation2 + $0x10] sm:$0xff]
  %v4968 = vld [vmem:[#allocation2 + $0x18] sm:$0xff]
  %v4969 = vld [vmem:[#allocation2 + $0x20] sm:$0xff]
  %v4970 = vld [vmem:[#allocation2 + $0x28] sm:$0xff]
  %v4971 = vld [vmem:[#allocation2 + $0x30] sm:$0xff]
  %v4972 = vld [vmem:[#allocation2 + $0x38] sm:$0xff]
  %v4973 = vld [vmem:[#allocation2 + $0x40] sm:$0xff]
  %v4974 = vld [vmem:[#allocation2 + $0x48] sm:$0xff]
  %v4975 = vld [vmem:[#allocation2 + $0x50] sm:$0xff]
  %v4976 = vld [vmem:[#allocation2 + $0x58] sm:$0xff]
  %v4977 = vld [vmem:[#allocation2 + $0x60] sm:$0xff]
  %v4978 = vld [vmem:[#allocation2 + $0x68] sm:$0xff]
  %v4979 = vld [vmem:[#allocation2 + $0x70] sm:$0xff]
  %v4980 = vld [vmem:[#allocation2 + $0x78] sm:$0xff]
  %v4981 = vld [vmem:[#allocation2 + $0x80] sm:$0xff]
  %v4982 = vld [vmem:[#allocation2 + $0x88] sm:$0xff]
  %v4983 = vld [vmem:[#allocation2 + $0x90] sm:$0xff]
  %v4984 = vld [vmem:[#allocation2 + $0x98] sm:$0xff]
  %v4985 = vld [vmem:[#allocation2 + $0xa0] sm:$0xff]
  %v4986 = vld [vmem:[#allocation2 + $0xa8] sm:$0xff]
  %v4987 = vld [vmem:[#allocation2 + $0xb0] sm:$0xff]
  %v4988 = vld [vmem:[#allocation2 + $0xb8] sm:$0xff]
  %v4989 = vld [vmem:[#allocation2 + $0xc0] sm:$0xff]
  %v4990 = vld [vmem:[#allocation2 + $0xc8] sm:$0xff]
  %v4991 = vld [vmem:[#allocation2 + $0xd0] sm:$0xff]
  %v4992 = vld [vmem:[#allocation2 + $0xd8] sm:$0xff]
  %v4993 = vld [vmem:[#allocation2 + $0xe0] sm:$0xff]
  %v4994 = vld [vmem:[#allocation2 + $0xe8] sm:$0xff]
  %v4995 = vld [vmem:[#allocation2 + $0xf0] sm:$0xff]
  %v4996 = vld [vmem:[#allocation2 + $0xf8] sm:$0xff]
  %v4997 = vld [vmem:[#allocation2 + $0x100] sm:$0xff]
  %v4998 = vld [vmem:[#allocation2 + $0x108] sm:$0xff]
  %v4999 = vld [vmem:[#allocation2 + $0x110] sm:$0xff]
  %v5000 = vld [vmem:[#allocation2 + $0x118] sm:$0xff]
  %s5001 = scalar_lea.vmem %s7, 32
  %v5002 = vld [vmem:[%s5001] sm:$0xf]
  %v5003 = vld [vmem:[%s5001 + $0x4] sm:$0xf]
  %v5004 = vld [vmem:[%s5001 + $0x8] sm:$0xf]
  %v5005 = vld [vmem:[%s5001 + $0xc] sm:$0xf]
  %v5010 = vunpack.c.l.b16 %v5002
  %v5011 = vunpack.c.l.b16 %v5003
  %v5012 = vunpack.c.l.b16 %v5004
  %v5013 = vunpack.c.l.b16 %v5005
  %v5014 = vpack.c.b16 %v5011, %v5010
  %v5015 = vpack.c.b16 %v5013, %v5012
  %5052 = vrot.lane.b32.xlu0 %v4965, 92
  %v5053 = vpop.permute.xlu0 %5052
  %5054 = vrot.lane.b32.xlu0 %v4966, 92
  %v5055 = vpop.permute.xlu0 %5054
  %5056 = vrot.lane.b32.xlu0 %v4967, 92
  %v5057 = vpop.permute.xlu0 %5056
  %5058 = vrot.lane.b32.xlu0 %v4968, 92
  %v5059 = vpop.permute.xlu0 %5058
  %5060 = vrot.lane.b32.xlu0 %v4969, 92
  %v5061 = vpop.permute.xlu0 %5060
  %5062 = vrot.lane.b32.xlu0 %v4970, 92
  %v5063 = vpop.permute.xlu0 %5062
  %5064 = vrot.lane.b32.xlu0 %v4971, 92
  %v5065 = vpop.permute.xlu0 %5064
  %5066 = vrot.lane.b32.xlu0 %v4972, 92
  %v5067 = vpop.permute.xlu0 %5066
  %5068 = vrot.lane.b32.xlu0 %v4973, 92
  %v5069 = vpop.permute.xlu0 %5068
  %5070 = vrot.lane.b32.xlu0 %v4974, 92
  %v5071 = vpop.permute.xlu0 %5070
  %5072 = vrot.lane.b32.xlu0 %v4975, 92
  %v5073 = vpop.permute.xlu0 %5072
  %5074 = vrot.lane.b32.xlu0 %v4976, 92
  %v5075 = vpop.permute.xlu0 %5074
  %5076 = vrot.lane.b32.xlu0 %v4977, 92
  %v5077 = vpop.permute.xlu0 %5076
  %5078 = vrot.lane.b32.xlu0 %v4978, 92
  %v5079 = vpop.permute.xlu0 %5078
  %5080 = vrot.lane.b32.xlu0 %v4979, 92
  %v5081 = vpop.permute.xlu0 %5080
  %5082 = vrot.lane.b32.xlu0 %v4980, 92
  %v5083 = vpop.permute.xlu0 %5082
  %5084 = vrot.lane.b32.xlu0 %v4981, 92
  %v5085 = vpop.permute.xlu0 %5084
  %5086 = vrot.lane.b32.xlu0 %v4982, 92
  %v5087 = vpop.permute.xlu0 %5086
  %5088 = vrot.lane.b32.xlu0 %v4983, 92
  %v5089 = vpop.permute.xlu0 %5088
  %5090 = vrot.lane.b32.xlu0 %v4984, 92
  %v5091 = vpop.permute.xlu0 %5090
  %5092 = vrot.lane.b32.xlu0 %v4985, 92
  %v5093 = vpop.permute.xlu0 %5092
  %5094 = vrot.lane.b32.xlu0 %v4986, 92
  %v5095 = vpop.permute.xlu0 %5094
  %5096 = vrot.lane.b32.xlu0 %v4987, 92
  %v5097 = vpop.permute.xlu0 %5096
  %5098 = vrot.lane.b32.xlu0 %v4988, 92
  %v5099 = vpop.permute.xlu0 %5098
  %5100 = vrot.lane.b32.xlu0 %v4989, 92
  %v5101 = vpop.permute.xlu0 %5100
  %5102 = vrot.lane.b32.xlu0 %v4990, 92
  %v5103 = vpop.permute.xlu0 %5102
  %5104 = vrot.lane.b32.xlu0 %v4991, 92
  %v5105 = vpop.permute.xlu0 %5104
  %5106 = vrot.lane.b32.xlu0 %v4992, 92
  %v5107 = vpop.permute.xlu0 %5106
  %5108 = vrot.lane.b32.xlu0 %v4993, 92
  %v5109 = vpop.permute.xlu0 %5108
  %5110 = vrot.lane.b32.xlu0 %v4994, 92
  %v5111 = vpop.permute.xlu0 %5110
  %5112 = vrot.lane.b32.xlu0 %v4995, 92
  %v5113 = vpop.permute.xlu0 %5112
  %5114 = vrot.lane.b32.xlu0 %v4996, 92
  %v5115 = vpop.permute.xlu0 %5114
  %5116 = vrot.lane.b32.xlu0 %v4997, 92
  %v5117 = vpop.permute.xlu0 %5116
  %5118 = vrot.lane.b32.xlu0 %v4998, 92
  %v5119 = vpop.permute.xlu0 %5118
  %5120 = vrot.lane.b32.xlu0 %v4999, 92
  %v5121 = vpop.permute.xlu0 %5120
  %5122 = vrot.lane.b32.xlu0 %v5000, 92
  %v5123 = vpop.permute.xlu0 %5122
  %v5124 = vsel %vm2629, %v5053, %v5055
  %v5125 = vsel %vm2629, %v5055, %v5057
  %v5126 = vsel %vm2629, %v5057, %v5059
  %v5127 = vsel %vm2629, %v5059, %v5061
  %v5128 = vsel %vm2629, %v5061, %v5063
  %v5129 = vsel %vm2629, %v5065, %v5067
  %v5130 = vsel %vm2629, %v5067, %v5069
  %v5131 = vsel %vm2629, %v5069, %v5071
  %v5132 = vsel %vm2629, %v5071, %v5073
  %v5133 = vsel %vm2629, %v5073, %v5075
  %v5134 = vsel %vm2629, %v5077, %v5079
  %v5135 = vsel %vm2629, %v5079, %v5081
  %v5136 = vsel %vm2629, %v5081, %v5083
  %v5137 = vsel %vm2629, %v5083, %v5085
  %v5138 = vsel %vm2629, %v5085, %v5087
  %v5139 = vsel %vm2629, %v5089, %v5091
  %v5140 = vsel %vm2629, %v5091, %v5093
  %v5141 = vsel %vm2629, %v5093, %v5095
  %v5142 = vsel %vm2629, %v5095, %v5097
  %v5143 = vsel %vm2629, %v5097, %v5099
  %v5144 = vsel %vm2629, %v5101, %v5103
  %v5145 = vsel %vm2629, %v5103, %v5105
  %v5146 = vsel %vm2629, %v5105, %v5107
  %v5147 = vsel %vm2629, %v5107, %v5109
  %v5148 = vsel %vm2629, %v5109, %v5111
  %v5149 = vsel %vm2629, %v5113, %v5115
  %v5150 = vsel %vm2629, %v5115, %v5117
  %v5151 = vsel %vm2629, %v5117, %v5119
  %v5152 = vsel %vm2629, %v5119, %v5121
  %v5153 = vsel %vm2629, %v5121, %v5123
  %v5185 = vsel %vm2137, %v5014, 0
  %v5188 = vsel %vm2137, %v5015, 0
  %5190 = vmatprep.subr.bf16.mxu0 %v5125
  %5191 = vmatpush1.bf16.msra.mxu0 %v5124
  %5192 = vmatprep.subr.bf16.mxu0 %v5130
  %5193 = vmatpush1.bf16.msra.mxu0 %v5129
  %5194 = vmatprep.subr.bf16.mxu0 %v5135
  %5195 = vmatpush1.bf16.msra.mxu0 %v5134
  %5196 = vmatprep.subr.bf16.mxu0 %v5140
  %5197 = vmatpush1.bf16.msra.mxu0 %v5139
  %5198 = vmatprep.subr.bf16.mxu0 %v5145
  %5199 = vmatpush1.bf16.msra.mxu0 %v5144
  %5200 = vmatprep.subr.bf16.mxu0 %v5150
  %5201 = vmatpush1.bf16.msra.mxu0 %v5149
  %5202 = vmatprep.subr.bf16.mxu0 0
  %5203 = vmatpush1.bf16.msra.mxu0 0
  %5204 = vmatprep.subr.bf16.mxu0 0
  %5205 = vmatpush1.bf16.msra.mxu0 0
  %5206 = vmatprep.subr.bf16.mxu0 0
  %5207 = vmatpush1.bf16.msra.mxu0 0
  %5208 = vmatprep.subr.bf16.mxu0 0
  %5209 = vmatpush1.bf16.msra.mxu0 0
  %5210 = vmatprep.subr.bf16.mxu0 0
  %5211 = vmatpush1.bf16.msra.mxu0 0
  %5212 = vmatprep.subr.bf16.mxu0 0
  %5213 = vmatpush1.bf16.msra.mxu0 0
  %5214 = vmatprep.subr.bf16.mxu0 0
  %5215 = vmatpush1.bf16.msra.mxu0 0
  %5216 = vmatprep.subr.bf16.mxu0 0
  %5217 = vmatpush1.bf16.msra.mxu0 0
  %5218 = vmatprep.subr.bf16.mxu0 0
  %5219 = vmatpush1.bf16.msra.mxu0 0
  %5220 = vmatprep.subr.bf16.mxu0 0
  %5221 = vmatpush1.bf16.msra.mxu0 0
  %5222 = vmatprep.mubr.bf16.mxu0 0
  %5223 = vmatmul.mubr.bf16.gmra.mrb[0].mxu0 %v5185
  %v5224 = vpop.f32.mrb[0].mxu0
  %v5225 = vadd.f32 0.0, %v5224
  %v5226 = vpop.f32.mrb[0].mxu0
  %v5227 = vadd.f32 0.0, %v5226
  %v5228 = vpop.f32.mrb[0].mxu0
  %v5229 = vadd.f32 0.0, %v5228
  %v5230 = vpop.f32.mrb[0].mxu0
  %v5231 = vadd.f32 0.0, %v5230
  %5232 = vmatprep.mubr.bf16.mxu0 0
  %5233 = vmatmul.mubr.bf16.gmra.mrb[0].mxu0 %v5188
  %v5234 = vpop.f32.mrb[0].mxu0
  %v5235 = vadd.f32 0.0, %v5234
  %v5236 = vpop.f32.mrb[0].mxu0
  %v5237 = vadd.f32 0.0, %v5236
  %v5238 = vpop.f32.mrb[0].mxu0
  %v5239 = vadd.f32 0.0, %v5238
  %v5240 = vpop.f32.mrb[0].mxu0
  %v5241 = vadd.f32 0.0, %v5240
  %5242 = vdwg.mxu0
  %5243 = vmatprep.subr.bf16.mxu0 %v5127
  %5244 = vmatpush1.bf16.msra.mxu0 %v5126
  %5245 = vmatprep.subr.bf16.mxu0 %v5132
  %5246 = vmatpush1.bf16.msra.mxu0 %v5131
  %5247 = vmatprep.subr.bf16.mxu0 %v5137
  %5248 = vmatpush1.bf16.msra.mxu0 %v5136
  %5249 = vmatprep.subr.bf16.mxu0 %v5142
  %5250 = vmatpush1.bf16.msra.mxu0 %v5141
  %5251 = vmatprep.subr.bf16.mxu0 %v5147
  %5252 = vmatpush1.bf16.msra.mxu0 %v5146
  %5253 = vmatprep.subr.bf16.mxu0 %v5152
  %5254 = vmatpush1.bf16.msra.mxu0 %v5151
  %5255 = vmatprep.subr.bf16.mxu0 0
  %5256 = vmatpush1.bf16.msra.mxu0 0
  %5257 = vmatprep.subr.bf16.mxu0 0
  %5258 = vmatpush1.bf16.msra.mxu0 0
  %5259 = vmatprep.subr.bf16.mxu0 0
  %5260 = vmatpush1.bf16.msra.mxu0 0
  %5261 = vmatprep.subr.bf16.mxu0 0
  %5262 = vmatpush1.bf16.msra.mxu0 0
  %5263 = vmatprep.subr.bf16.mxu0 0
  %5264 = vmatpush1.bf16.msra.mxu0 0
  %5265 = vmatprep.subr.bf16.mxu0 0
  %5266 = vmatpush1.bf16.msra.mxu0 0
  %5267 = vmatprep.subr.bf16.mxu0 0
  %5268 = vmatpush1.bf16.msra.mxu0 0
  %5269 = vmatprep.subr.bf16.mxu0 0
  %5270 = vmatpush1.bf16.msra.mxu0 0
  %5271 = vmatprep.subr.bf16.mxu0 0
  %5272 = vmatpush1.bf16.msra.mxu0 0
  %5273 = vmatprep.subr.bf16.mxu0 0
  %5274 = vmatpush1.bf16.msra.mxu0 0
  %5275 = vmatprep.mubr.bf16.mxu0 0
  %5276 = vmatmul.mubr.bf16.gmra.mrb[0].mxu0 %v5185
  %v5277 = vpop.f32.mrb[0].mxu0
  %v5278 = vadd.f32 0.0, %v5277
  %v5279 = vpop.f32.mrb[0].mxu0
  %v5280 = vadd.f32 0.0, %v5279
  %v5281 = vpop.f32.mrb[0].mxu0
  %v5282 = vadd.f32 0.0, %v5281
  %v5283 = vpop.f32.mrb[0].mxu0
  %v5284 = vadd.f32 0.0, %v5283
  %5285 = vmatprep.mubr.bf16.mxu0 0
  %5286 = vmatmul.mubr.bf16.gmra.mrb[0].mxu0 %v5188
  %v5287 = vpop.f32.mrb[0].mxu0
  %v5288 = vadd.f32 0.0, %v5287
  %v5289 = vpop.f32.mrb[0].mxu0
  %v5290 = vadd.f32 0.0, %v5289
  %v5291 = vpop.f32.mrb[0].mxu0
  %v5292 = vadd.f32 0.0, %v5291
  %v5293 = vpop.f32.mrb[0].mxu0
  %v5294 = vadd.f32 0.0, %v5293
  %5295 = vdwg.mxu0
  %5296 = vmatprep.subr.bf16.mxu0 0
  %5297 = vmatpush1.bf16.msra.mxu0 %v5128
  %5298 = vmatprep.subr.bf16.mxu0 0
  %5299 = vmatpush1.bf16.msra.mxu0 %v5133
  %5300 = vmatprep.subr.bf16.mxu0 0
  %5301 = vmatpush1.bf16.msra.mxu0 %v5138
  %5302 = vmatprep.subr.bf16.mxu0 0
  %5303 = vmatpush1.bf16.msra.mxu0 %v5143
  %5304 = vmatprep.subr.bf16.mxu0 0
  %5305 = vmatpush1.bf16.msra.mxu0 %v5148
  %5306 = vmatprep.subr.bf16.mxu0 0
  %5307 = vmatpush1.bf16.msra.mxu0 %v5153
  %5308 = vmatprep.subr.bf16.mxu0 0
  %5309 = vmatpush1.bf16.msra.mxu0 0
  %5310 = vmatprep.subr.bf16.mxu0 0
  %5311 = vmatpush1.bf16.msra.mxu0 0
  %5312 = vmatprep.subr.bf16.mxu0 0
  %5313 = vmatpush1.bf16.msra.mxu0 0
  %5314 = vmatprep.subr.bf16.mxu0 0
  %5315 = vmatpush1.bf16.msra.mxu0 0
  %5316 = vmatprep.subr.bf16.mxu0 0
  %5317 = vmatpush1.bf16.msra.mxu0 0
  %5318 = vmatprep.subr.bf16.mxu0 0
  %5319 = vmatpush1.bf16.msra.mxu0 0
  %5320 = vmatprep.subr.bf16.mxu0 0
  %5321 = vmatpush1.bf16.msra.mxu0 0
  %5322 = vmatprep.subr.bf16.mxu0 0
  %5323 = vmatpush1.bf16.msra.mxu0 0
  %5324 = vmatprep.subr.bf16.mxu0 0
  %5325 = vmatpush1.bf16.msra.mxu0 0
  %5326 = vmatprep.subr.bf16.mxu0 0
  %5327 = vmatpush1.bf16.msra.mxu0 0
  %5328 = vmatprep.mubr.bf16.mxu0 0
  %5329 = vmatmul.mubr.bf16.gmra.mrb[0].mxu0 %v5185
  %v5330 = vpop.f32.mrb[0].mxu0
  %v5331 = vadd.f32 0.0, %v5330
  %v5332 = vpop.f32.mrb[0].mxu0
  %v5333 = vpop.f32.mrb[0].mxu0
  %v5334 = vadd.f32 0.0, %v5333
  %v5335 = vpop.f32.mrb[0].mxu0
  %5336 = vmatprep.mubr.bf16.mxu0 0
  %5337 = vmatmul.mubr.bf16.gmra.mrb[0].mxu0 %v5188
  %v5338 = vpop.f32.mrb[0].mxu0
  %v5339 = vadd.f32 0.0, %v5338
  %v5340 = vpop.f32.mrb[0].mxu0
  %v5341 = vpop.f32.mrb[0].mxu0
  %v5342 = vadd.f32 0.0, %v5341
  %v5343 = vpop.f32.mrb[0].mxu0
  %5344 = vdwg.mxu0
  %v5345 = vadd.f32 %v4845, %v5225
  %v5346 = vadd.f32 %v4847, %v5227
  %v5347 = vadd.f32 %v4898, %v5278
  %v5348 = vadd.f32 %v4900, %v5280
  %v5349 = vadd.f32 %v4951, %v5331
  %v5350 = vadd.f32 %v4849, %v5229
  %v5351 = vadd.f32 %v4851, %v5231
  %v5352 = vadd.f32 %v4902, %v5282
  %v5353 = vadd.f32 %v4904, %v5284
  %v5354 = vadd.f32 %v4954, %v5334
  %v5355 = vadd.f32 %v4855, %v5235
  %v5356 = vadd.f32 %v4857, %v5237
  %v5357 = vadd.f32 %v4908, %v5288
  %v5358 = vadd.f32 %v4910, %v5290
  %v5359 = vadd.f32 %v4959, %v5339
  %v5360 = vadd.f32 %v4859, %v5239
  %v5361 = vadd.f32 %v4861, %v5241
  %v5362 = vadd.f32 %v4912, %v5292
  %v5363 = vadd.f32 %v4914, %v5294
  %v5364 = vadd.f32 %v4962, %v5342
  %v5365 = vld [vmem:[%s8] sm:$0xff]
  %v5366 = vld [vmem:[%s8 + $0x8] sm:$0xff]
  %v5367 = vld [vmem:[%s8 + $0x10] sm:$0xff]
  %v5368 = vld [vmem:[%s8 + $0x18] sm:$0xff]
  %5370 = vset.pattern.permute.xlu0 0
  %5371 = vperm.xlu0 %5370, %v5365
  %v5372 = vpop.permute.xlu0 %5371
  %5375 = vset.pattern.permute.xlu0 0
  %5376 = vperm.xlu0 %5375, %v5366
  %v5377 = vpop.permute.xlu0 %5376
  %5380 = vset.pattern.permute.xlu0 0
  %5381 = vperm.xlu0 %5380, %v5367
  %v5382 = vpop.permute.xlu0 %5381
  %5385 = vset.pattern.permute.xlu0 0
  %5386 = vperm.xlu0 %5385, %v5368
  %v5387 = vpop.permute.xlu0 %5386
  %v5389 = vadd.f32 %v5345, %v5372
  %v5390 = vadd.f32 %v5346, %v5372
  %v5391 = vadd.f32 %v5347, %v5372
  %v5392 = vadd.f32 %v5348, %v5372
  %v5393 = vadd.f32 %v5349, %v5372
  %v5394 = vadd.f32 %v5350, %v5377
  %v5395 = vadd.f32 %v5351, %v5377
  %v5396 = vadd.f32 %v5352, %v5377
  %v5397 = vadd.f32 %v5353, %v5377
  %v5398 = vadd.f32 %v5354, %v5377
  %v5399 = vadd.f32 %v5355, %v5382
  %v5400 = vadd.f32 %v5356, %v5382
  %v5401 = vadd.f32 %v5357, %v5382
  %v5402 = vadd.f32 %v5358, %v5382
  %v5403 = vadd.f32 %v5359, %v5382
  %v5404 = vadd.f32 %v5360, %v5387
  %v5405 = vadd.f32 %v5361, %v5387
  %v5406 = vadd.f32 %v5362, %v5387
  %v5407 = vadd.f32 %v5363, %v5387
  %v5408 = vadd.f32 %v5364, %v5387
  %v5409 = vmax.f32 %v5389, 0.0
  %v5410 = vmax.f32 %v5390, 0.0
  %v5411 = vmax.f32 %v5391, 0.0
  %v5412 = vmax.f32 %v5392, 0.0
  %v5413 = vmax.f32 %v5393, 0.0
  %v5414 = vmax.f32 %v5394, 0.0
  %v5415 = vmax.f32 %v5395, 0.0
  %v5416 = vmax.f32 %v5396, 0.0
  %v5417 = vmax.f32 %v5397, 0.0
  %v5418 = vmax.f32 %v5398, 0.0
  %v5419 = vmax.f32 %v5399, 0.0
  %v5420 = vmax.f32 %v5400, 0.0
  %v5421 = vmax.f32 %v5401, 0.0
  %v5422 = vmax.f32 %v5402, 0.0
  %v5423 = vmax.f32 %v5403, 0.0
  %v5424 = vmax.f32 %v5404, 0.0
  %v5425 = vmax.f32 %v5405, 0.0
  %v5426 = vmax.f32 %v5406, 0.0
  %v5427 = vmax.f32 %v5407, 0.0
  %v5428 = vmax.f32 %v5408, 0.0
  %v5429 = vsel %vm1671, %v5409, 0.0
  %v5430 = vsel %vm1672, %v5410, 0.0
  %v5431 = vsel %vm1673, %v5411, 0.0
  %v5432 = vsel %vm1674, %v5412, 0.0
  %v5433 = vsel %vm1675, %v5413, 0.0
  %v5434 = vsel %vm1671, %v5414, 0.0
  %v5435 = vsel %vm1672, %v5415, 0.0
  %v5436 = vsel %vm1673, %v5416, 0.0
  %v5437 = vsel %vm1674, %v5417, 0.0
  %v5438 = vsel %vm1675, %v5418, 0.0
  %v5439 = vsel %vm1671, %v5419, 0.0
  %v5440 = vsel %vm1672, %v5420, 0.0
  %v5441 = vsel %vm1673, %v5421, 0.0
  %v5442 = vsel %vm1674, %v5422, 0.0
  %v5443 = vsel %vm1675, %v5423, 0.0
  %v5444 = vsel %vm1671, %v5424, 0.0
  %v5445 = vsel %vm1672, %v5425, 0.0
  %v5446 = vsel %vm1673, %v5426, 0.0
  %v5447 = vsel %vm1674, %v5427, 0.0
  %v5448 = vsel %vm1675, %v5428, 0.0
  %v5449 = vpack.c.bf16 %v5434, %v5429
  %v5450 = vpack.c.bf16 %v5435, %v5430
  %v5451 = vpack.c.bf16 %v5436, %v5431
  %v5452 = vpack.c.bf16 %v5437, %v5432
  %v5453 = vpack.c.bf16 %v5438, %v5433
  %v5454 = vpack.c.bf16 %v5444, %v5439
  %v5455 = vpack.c.bf16 %v5445, %v5440
  %v5456 = vpack.c.bf16 %v5446, %v5441
  %v5457 = vpack.c.bf16 %v5447, %v5442
  %v5458 = vpack.c.bf16 %v5448, %v5443
  %5459 = vst.msk [vmem:[#allocation3] sm:$0xff] %vm1706, 0
  %5460 = vst.msk [vmem:[#allocation3 + $0x30] sm:$0xff] %vm1706, 0
  %5471 = vrot.lane.b32.xlu0 %v5449, 19
  %v5472 = vpop.permute.xlu0 %5471
  %5473 = vrot.lane.b32.xlu0 %v5450, 19
  %v5474 = vpop.permute.xlu0 %5473
  %5475 = vrot.lane.b32.xlu0 %v5451, 19
  %v5476 = vpop.permute.xlu0 %5475
  %5477 = vrot.lane.b32.xlu0 %v5452, 19
  %v5478 = vpop.permute.xlu0 %5477
  %5479 = vrot.lane.b32.xlu0 %v5453, 19
  %v5480 = vpop.permute.xlu0 %5479
  %5481 = vrot.lane.b32.xlu0 %v5454, 19
  %v5482 = vpop.permute.xlu0 %5481
  %5483 = vrot.lane.b32.xlu0 %v5455, 19
  %v5484 = vpop.permute.xlu0 %5483
  %5485 = vrot.lane.b32.xlu0 %v5456, 19
  %v5486 = vpop.permute.xlu0 %5485
  %5487 = vrot.lane.b32.xlu0 %v5457, 19
  %v5488 = vpop.permute.xlu0 %5487
  %5489 = vrot.lane.b32.xlu0 %v5458, 19
  %v5490 = vpop.permute.xlu0 %5489
  %v5491 = vsel %vm1739, %v5472, %v5474
  %v5492 = vsel %vm1739, %v5474, %v5476
  %v5493 = vsel %vm1739, %v5476, %v5478
  %v5494 = vsel %vm1739, %v5478, %v5480
  %v5495 = vsel %vm1739, %v5482, %v5484
  %v5496 = vsel %vm1739, %v5484, %v5486
  %v5497 = vsel %vm1739, %v5486, %v5488
  %v5498 = vsel %vm1739, %v5488, %v5490
  %5509 = vst.msk [vmem:[#allocation3] sm:$0xff] %vm1758, %v5472
  %5510 = vst [vmem:[#allocation3 + $0x8] sm:$0xff] %v5491
  %5511 = vst [vmem:[#allocation3 + $0x10] sm:$0xff] %v5492
  %5512 = vst [vmem:[#allocation3 + $0x18] sm:$0xff] %v5493
  %5513 = vst.msk [vmem:[#allocation3 + $0x20] sm:$0xff] %vm1763, %v5494
  %5514 = vst.msk [vmem:[#allocation3 + $0x30] sm:$0xff] %vm1758, %v5482
  %5515 = vst [vmem:[#allocation3 + $0x38] sm:$0xff] %v5495
  %5516 = vst [vmem:[#allocation3 + $0x40] sm:$0xff] %v5496
  %5517 = vst [vmem:[#allocation3 + $0x48] sm:$0xff] %v5497
  %5518 = vst.msk [vmem:[#allocation3 + $0x50] sm:$0xff] %vm1763, %v5498
  %5519 = vst.msk [vmem:[#allocation3 + $0x20] sm:$0xff] %vm1770, 0
  %5520 = vst.msk [vmem:[#allocation3 + $0x28] sm:$0xff] %vm1772, 0
  %5521 = vst.msk [vmem:[#allocation3 + $0x50] sm:$0xff] %vm1770, 0
  %5522 = vst.msk [vmem:[#allocation3 + $0x58] sm:$0xff] %vm1772, 0
  %v5523 = vld [vmem:[#allocation3] sm:$0xff]
  %v5524 = vld [vmem:[#allocation3 + $0x8] sm:$0xff]
  %v5525 = vld [vmem:[#allocation3 + $0x10] sm:$0xff]
  %v5526 = vld [vmem:[#allocation3 + $0x18] sm:$0xff]
  %v5527 = vld [vmem:[#allocation3 + $0x20] sm:$0xff]
  %v5528 = vld [vmem:[#allocation3 + $0x28] sm:$0xff]
  %v5529 = vld [vmem:[#allocation3 + $0x30] sm:$0xff]
  %v5530 = vld [vmem:[#allocation3 + $0x38] sm:$0xff]
  %v5531 = vld [vmem:[#allocation3 + $0x40] sm:$0xff]
  %v5532 = vld [vmem:[#allocation3 + $0x48] sm:$0xff]
  %v5533 = vld [vmem:[#allocation3 + $0x50] sm:$0xff]
  %v5534 = vld [vmem:[#allocation3 + $0x58] sm:$0xff]
  %5547 = vrot.lane.b32.xlu0 %v5523, 127
  %v5548 = vpop.permute.xlu0 %5547
  %5549 = vrot.lane.b32.xlu0 %v5524, 127
  %v5550 = vpop.permute.xlu0 %5549
  %5551 = vrot.lane.b32.xlu0 %v5525, 127
  %v5552 = vpop.permute.xlu0 %5551
  %5553 = vrot.lane.b32.xlu0 %v5526, 127
  %v5554 = vpop.permute.xlu0 %5553
  %5555 = vrot.lane.b32.xlu0 %v5527, 127
  %v5556 = vpop.permute.xlu0 %5555
  %5557 = vrot.lane.b32.xlu0 %v5528, 127
  %v5558 = vpop.permute.xlu0 %5557
  %5559 = vrot.lane.b32.xlu0 %v5529, 127
  %v5560 = vpop.permute.xlu0 %5559
  %5561 = vrot.lane.b32.xlu0 %v5530, 127
  %v5562 = vpop.permute.xlu0 %5561
  %5563 = vrot.lane.b32.xlu0 %v5531, 127
  %v5564 = vpop.permute.xlu0 %5563
  %5565 = vrot.lane.b32.xlu0 %v5532, 127
  %v5566 = vpop.permute.xlu0 %5565
  %5567 = vrot.lane.b32.xlu0 %v5533, 127
  %v5568 = vpop.permute.xlu0 %5567
  %5569 = vrot.lane.b32.xlu0 %v5534, 127
  %v5570 = vpop.permute.xlu0 %5569
  %v5571 = vsel %vm1824, %v5548, %v5550
  %v5572 = vsel %vm1824, %v5550, %v5552
  %v5573 = vsel %vm1824, %v5552, %v5554
  %v5574 = vsel %vm1824, %v5554, %v5556
  %v5575 = vsel %vm1824, %v5556, %v5558
  %v5576 = vsel %vm1824, %v5560, %v5562
  %v5577 = vsel %vm1824, %v5562, %v5564
  %v5578 = vsel %vm1824, %v5564, %v5566
  %v5579 = vsel %vm1824, %v5566, %v5568
  %v5580 = vsel %vm1824, %v5568, %v5570
  %5593 = vst [vmem:[#allocation3 + $0x60] sm:$0xff] %v5571
  %5594 = vst [vmem:[#allocation3 + $0x68] sm:$0xff] %v5572
  %5595 = vst [vmem:[#allocation3 + $0x70] sm:$0xff] %v5573
  %5596 = vst [vmem:[#allocation3 + $0x78] sm:$0xff] %v5574
  %5597 = vst [vmem:[#allocation3 + $0x80] sm:$0xff] %v5575
  %5598 = vst.msk [vmem:[#allocation3 + $0x88] sm:$0xff] %vm1852, %v5558
  %5599 = vst [vmem:[#allocation3 + $0x90] sm:$0xff] %v5576
  %5600 = vst [vmem:[#allocation3 + $0x98] sm:$0xff] %v5577
  %5601 = vst [vmem:[#allocation3 + $0xa0] sm:$0xff] %v5578
  %5602 = vst [vmem:[#allocation3 + $0xa8] sm:$0xff] %v5579
  %5603 = vst [vmem:[#allocation3 + $0xb0] sm:$0xff] %v5580
  %5604 = vst.msk [vmem:[#allocation3 + $0xb8] sm:$0xff] %vm1852, %v5570
  %v5605 = vld [vmem:[#allocation3] sm:$0xff]
  %v5606 = vld [vmem:[#allocation3 + $0x8] sm:$0xff]
  %v5607 = vld [vmem:[#allocation3 + $0x10] sm:$0xff]
  %v5608 = vld [vmem:[#allocation3 + $0x18] sm:$0xff]
  %v5609 = vld [vmem:[#allocation3 + $0x20] sm:$0xff]
  %v5610 = vld [vmem:[#allocation3 + $0x28] sm:$0xff]
  %v5611 = vld [vmem:[#allocation3 + $0x30] sm:$0xff]
  %v5612 = vld [vmem:[#allocation3 + $0x38] sm:$0xff]
  %v5613 = vld [vmem:[#allocation3 + $0x40] sm:$0xff]
  %v5614 = vld [vmem:[#allocation3 + $0x48] sm:$0xff]
  %v5615 = vld [vmem:[#allocation3 + $0x50] sm:$0xff]
  %v5616 = vld [vmem:[#allocation3 + $0x58] sm:$0xff]
  %5629 = vrot.lane.b32.xlu0 %v5605, 126
  %v5630 = vpop.permute.xlu0 %5629
  %5631 = vrot.lane.b32.xlu0 %v5606, 126
  %v5632 = vpop.permute.xlu0 %5631
  %5633 = vrot.lane.b32.xlu0 %v5607, 126
  %v5634 = vpop.permute.xlu0 %5633
  %5635 = vrot.lane.b32.xlu0 %v5608, 126
  %v5636 = vpop.permute.xlu0 %5635
  %5637 = vrot.lane.b32.xlu0 %v5609, 126
  %v5638 = vpop.permute.xlu0 %5637
  %5639 = vrot.lane.b32.xlu0 %v5610, 126
  %v5640 = vpop.permute.xlu0 %5639
  %5641 = vrot.lane.b32.xlu0 %v5611, 126
  %v5642 = vpop.permute.xlu0 %5641
  %5643 = vrot.lane.b32.xlu0 %v5612, 126
  %v5644 = vpop.permute.xlu0 %5643
  %5645 = vrot.lane.b32.xlu0 %v5613, 126
  %v5646 = vpop.permute.xlu0 %5645
  %5647 = vrot.lane.b32.xlu0 %v5614, 126
  %v5648 = vpop.permute.xlu0 %5647
  %5649 = vrot.lane.b32.xlu0 %v5615, 126
  %v5650 = vpop.permute.xlu0 %5649
  %5651 = vrot.lane.b32.xlu0 %v5616, 126
  %v5652 = vpop.permute.xlu0 %5651
  %v5653 = vsel %vm1908, %v5630, %v5632
  %v5654 = vsel %vm1908, %v5632, %v5634
  %v5655 = vsel %vm1908, %v5634, %v5636
  %v5656 = vsel %vm1908, %v5636, %v5638
  %v5657 = vsel %vm1908, %v5638, %v5640
  %v5658 = vsel %vm1908, %v5642, %v5644
  %v5659 = vsel %vm1908, %v5644, %v5646
  %v5660 = vsel %vm1908, %v5646, %v5648
  %v5661 = vsel %vm1908, %v5648, %v5650
  %v5662 = vsel %vm1908, %v5650, %v5652
  %5675 = vst [vmem:[#allocation3 + $0xc0] sm:$0xff] %v5653
  %5676 = vst [vmem:[#allocation3 + $0xc8] sm:$0xff] %v5654
  %5677 = vst [vmem:[#allocation3 + $0xd0] sm:$0xff] %v5655
  %5678 = vst [vmem:[#allocation3 + $0xd8] sm:$0xff] %v5656
  %5679 = vst [vmem:[#allocation3 + $0xe0] sm:$0xff] %v5657
  %5680 = vst.msk [vmem:[#allocation3 + $0xe8] sm:$0xff] %vm1852, %v5640
  %5681 = vst [vmem:[#allocation3 + $0xf0] sm:$0xff] %v5658
  %5682 = vst [vmem:[#allocation3 + $0xf8] sm:$0xff] %v5659
  %5683 = vst [vmem:[#allocation3 + $0x100] sm:$0xff] %v5660
  %5684 = vst [vmem:[#allocation3 + $0x108] sm:$0xff] %v5661
  %5685 = vst [vmem:[#allocation3 + $0x110] sm:$0xff] %v5662
  %5686 = vst.msk [vmem:[#allocation3 + $0x118] sm:$0xff] %vm1852, %v5652
  %v5687 = vld [vmem:[%s9] sm:$0xff]
  %v5688 = vld [vmem:[%s9 + $0x8] sm:$0xff]
  %v5689 = vld [vmem:[%s9 + $0x10] sm:$0xff]
  %v5690 = vld [vmem:[%s9 + $0x18] sm:$0xff]
  %v5691 = vld [vmem:[#allocation3] sm:$0xff]
  %v5692 = vld [vmem:[#allocation3 + $0x8] sm:$0xff]
  %v5693 = vld [vmem:[#allocation3 + $0x10] sm:$0xff]
  %v5694 = vld [vmem:[#allocation3 + $0x18] sm:$0xff]
  %v5695 = vld [vmem:[#allocation3 + $0x20] sm:$0xff]
  %v5696 = vld [vmem:[#allocation3 + $0x30] sm:$0xff]
  %v5697 = vld [vmem:[#allocation3 + $0x38] sm:$0xff]
  %v5698 = vld [vmem:[#allocation3 + $0x40] sm:$0xff]
  %v5699 = vld [vmem:[#allocation3 + $0x48] sm:$0xff]
  %v5700 = vld [vmem:[#allocation3 + $0x50] sm:$0xff]
  %v5701 = vunpack.c.l.bf16 %v5691
  %v5702 = vunpack.c.l.bf16 %v5692
  %v5703 = vunpack.c.l.bf16 %v5693
  %v5704 = vunpack.c.l.bf16 %v5694
  %v5705 = vunpack.c.l.bf16 %v5695
  %v5706 = vunpack.c.h.bf16 %v5691
  %v5707 = vunpack.c.h.bf16 %v5692
  %v5708 = vunpack.c.h.bf16 %v5693
  %v5709 = vunpack.c.h.bf16 %v5694
  %v5710 = vunpack.c.h.bf16 %v5695
  %v5711 = vunpack.c.l.bf16 %v5696
  %v5712 = vunpack.c.l.bf16 %v5697
  %v5713 = vunpack.c.l.bf16 %v5698
  %v5714 = vunpack.c.l.bf16 %v5699
  %v5715 = vunpack.c.l.bf16 %v5700
  %v5716 = vunpack.c.h.bf16 %v5696
  %v5717 = vunpack.c.h.bf16 %v5697
  %v5718 = vunpack.c.h.bf16 %v5698
  %v5719 = vunpack.c.h.bf16 %v5699
  %v5720 = vunpack.c.h.bf16 %v5700
  %5722 = vset.pattern.permute.xlu0 0
  %5723 = vperm.xlu0 %5722, %v5687
  %v5724 = vpop.permute.xlu0 %5723
  %5727 = vset.pattern.permute.xlu0 0
  %5728 = vperm.xlu0 %5727, %v5688
  %v5729 = vpop.permute.xlu0 %5728
  %5732 = vset.pattern.permute.xlu0 0
  %5733 = vperm.xlu0 %5732, %v5689
  %v5734 = vpop.permute.xlu0 %5733
  %5737 = vset.pattern.permute.xlu0 0
  %5738 = vperm.xlu0 %5737, %v5690
  %v5739 = vpop.permute.xlu0 %5738
  %v5741 = vmul.f32 %v5724, %v5701
  %v5742 = vmul.f32 %v5724, %v5702
  %v5743 = vmul.f32 %v5724, %v5703
  %v5744 = vmul.f32 %v5724, %v5704
  %v5745 = vmul.f32 %v5724, %v5705
  %v5746 = vmul.f32 %v5729, %v5706
  %v5747 = vmul.f32 %v5729, %v5707
  %v5748 = vmul.f32 %v5729, %v5708
  %v5749 = vmul.f32 %v5729, %v5709
  %v5750 = vmul.f32 %v5729, %v5710
  %v5751 = vmul.f32 %v5734, %v5711
  %v5752 = vmul.f32 %v5734, %v5712
  %v5753 = vmul.f32 %v5734, %v5713
  %v5754 = vmul.f32 %v5734, %v5714
  %v5755 = vmul.f32 %v5734, %v5715
  %v5756 = vmul.f32 %v5739, %v5716
  %v5757 = vmul.f32 %v5739, %v5717
  %v5758 = vmul.f32 %v5739, %v5718
  %v5759 = vmul.f32 %v5739, %v5719
  %v5760 = vmul.f32 %v5739, %v5720
  %v5761 = vadd.f32 %v5741, 0.0
  %v5762 = vadd.f32 %v5742, 0.0
  %v5763 = vadd.f32 %v5743, 0.0
  %v5764 = vadd.f32 %v5744, 0.0
  %v5765 = vadd.f32 %v5745, 0.0
  %v5766 = vadd.f32 %v5746, 0.0
  %v5767 = vadd.f32 %v5747, 0.0
  %v5768 = vadd.f32 %v5748, 0.0
  %v5769 = vadd.f32 %v5749, 0.0
  %v5770 = vadd.f32 %v5750, 0.0
  %v5771 = vadd.f32 %v5751, 0.0
  %v5772 = vadd.f32 %v5752, 0.0
  %v5773 = vadd.f32 %v5753, 0.0
  %v5774 = vadd.f32 %v5754, 0.0
  %v5775 = vadd.f32 %v5755, 0.0
  %v5776 = vadd.f32 %v5756, 0.0
  %v5777 = vadd.f32 %v5757, 0.0
  %v5778 = vadd.f32 %v5758, 0.0
  %v5779 = vadd.f32 %v5759, 0.0
  %v5780 = vadd.f32 %v5760, 0.0
  %v5781 = vld [vmem:[#allocation3 + $0x60] sm:$0xff]
  %v5782 = vld [vmem:[#allocation3 + $0x68] sm:$0xff]
  %v5783 = vld [vmem:[#allocation3 + $0x70] sm:$0xff]
  %v5784 = vld [vmem:[#allocation3 + $0x78] sm:$0xff]
  %v5785 = vld [vmem:[#allocation3 + $0x80] sm:$0xff]
  %v5786 = vld [vmem:[#allocation3 + $0x90] sm:$0xff]
  %v5787 = vld [vmem:[#allocation3 + $0x98] sm:$0xff]
  %v5788 = vld [vmem:[#allocation3 + $0xa0] sm:$0xff]
  %v5789 = vld [vmem:[#allocation3 + $0xa8] sm:$0xff]
  %v5790 = vld [vmem:[#allocation3 + $0xb0] sm:$0xff]
  %v5791 = vunpack.c.l.bf16 %v5781
  %v5792 = vunpack.c.l.bf16 %v5782
  %v5793 = vunpack.c.l.bf16 %v5783
  %v5794 = vunpack.c.l.bf16 %v5784
  %v5795 = vunpack.c.l.bf16 %v5785
  %v5796 = vunpack.c.h.bf16 %v5781
  %v5797 = vunpack.c.h.bf16 %v5782
  %v5798 = vunpack.c.h.bf16 %v5783
  %v5799 = vunpack.c.h.bf16 %v5784
  %v5800 = vunpack.c.h.bf16 %v5785
  %v5801 = vunpack.c.l.bf16 %v5786
  %v5802 = vunpack.c.l.bf16 %v5787
  %v5803 = vunpack.c.l.bf16 %v5788
  %v5804 = vunpack.c.l.bf16 %v5789
  %v5805 = vunpack.c.l.bf16 %v5790
  %v5806 = vunpack.c.h.bf16 %v5786
  %v5807 = vunpack.c.h.bf16 %v5787
  %v5808 = vunpack.c.h.bf16 %v5788
  %v5809 = vunpack.c.h.bf16 %v5789
  %v5810 = vunpack.c.h.bf16 %v5790
  %5811 = vset.pattern.permute.xlu0 1
  %5812 = vperm.xlu0 %5811, %v5687
  %v5813 = vpop.permute.xlu0 %5812
  %5815 = vset.pattern.permute.xlu0 1
  %5816 = vperm.xlu0 %5815, %v5688
  %v5817 = vpop.permute.xlu0 %5816
  %5819 = vset.pattern.permute.xlu0 1
  %5820 = vperm.xlu0 %5819, %v5689
  %v5821 = vpop.permute.xlu0 %5820
  %5823 = vset.pattern.permute.xlu0 1
  %5824 = vperm.xlu0 %5823, %v5690
  %v5825 = vpop.permute.xlu0 %5824
  %v5827 = vmul.f32 %v5813, %v5791
  %v5828 = vmul.f32 %v5813, %v5792
  %v5829 = vmul.f32 %v5813, %v5793
  %v5830 = vmul.f32 %v5813, %v5794
  %v5831 = vmul.f32 %v5813, %v5795
  %v5832 = vmul.f32 %v5817, %v5796
  %v5833 = vmul.f32 %v5817, %v5797
  %v5834 = vmul.f32 %v5817, %v5798
  %v5835 = vmul.f32 %v5817, %v5799
  %v5836 = vmul.f32 %v5817, %v5800
  %v5837 = vmul.f32 %v5821, %v5801
  %v5838 = vmul.f32 %v5821, %v5802
  %v5839 = vmul.f32 %v5821, %v5803
  %v5840 = vmul.f32 %v5821, %v5804
  %v5841 = vmul.f32 %v5821, %v5805
  %v5842 = vmul.f32 %v5825, %v5806
  %v5843 = vmul.f32 %v5825, %v5807
  %v5844 = vmul.f32 %v5825, %v5808
  %v5845 = vmul.f32 %v5825, %v5809
  %v5846 = vmul.f32 %v5825, %v5810
  %v5847 = vadd.f32 %v5761, %v5827
  %v5848 = vadd.f32 %v5762, %v5828
  %v5849 = vadd.f32 %v5763, %v5829
  %v5850 = vadd.f32 %v5764, %v5830
  %v5851 = vadd.f32 %v5765, %v5831
  %v5852 = vadd.f32 %v5766, %v5832
  %v5853 = vadd.f32 %v5767, %v5833
  %v5854 = vadd.f32 %v5768, %v5834
  %v5855 = vadd.f32 %v5769, %v5835
  %v5856 = vadd.f32 %v5770, %v5836
  %v5857 = vadd.f32 %v5771, %v5837
  %v5858 = vadd.f32 %v5772, %v5838
  %v5859 = vadd.f32 %v5773, %v5839
  %v5860 = vadd.f32 %v5774, %v5840
  %v5861 = vadd.f32 %v5775, %v5841
  %v5862 = vadd.f32 %v5776, %v5842
  %v5863 = vadd.f32 %v5777, %v5843
  %v5864 = vadd.f32 %v5778, %v5844
  %v5865 = vadd.f32 %v5779, %v5845
  %v5866 = vadd.f32 %v5780, %v5846
  %v5867 = vld [vmem:[#allocation3 + $0xc0] sm:$0xff]
  %v5868 = vld [vmem:[#allocation3 + $0xc8] sm:$0xff]
  %v5869 = vld [vmem:[#allocation3 + $0xd0] sm:$0xff]
  %v5870 = vld [vmem:[#allocation3 + $0xd8] sm:$0xff]
  %v5871 = vld [vmem:[#allocation3 + $0xe0] sm:$0xff]
  %v5872 = vld [vmem:[#allocation3 + $0xf0] sm:$0xff]
  %v5873 = vld [vmem:[#allocation3 + $0xf8] sm:$0xff]
  %v5874 = vld [vmem:[#allocation3 + $0x100] sm:$0xff]
  %v5875 = vld [vmem:[#allocation3 + $0x108] sm:$0xff]
  %v5876 = vld [vmem:[#allocation3 + $0x110] sm:$0xff]
  %v5877 = vunpack.c.l.bf16 %v5867
  %v5878 = vunpack.c.l.bf16 %v5868
  %v5879 = vunpack.c.l.bf16 %v5869
  %v5880 = vunpack.c.l.bf16 %v5870
  %v5881 = vunpack.c.l.bf16 %v5871
  %v5882 = vunpack.c.h.bf16 %v5867
  %v5883 = vunpack.c.h.bf16 %v5868
  %v5884 = vunpack.c.h.bf16 %v5869
  %v5885 = vunpack.c.h.bf16 %v5870
  %v5886 = vunpack.c.h.bf16 %v5871
  %v5887 = vunpack.c.l.bf16 %v5872
  %v5888 = vunpack.c.l.bf16 %v5873
  %v5889 = vunpack.c.l.bf16 %v5874
  %v5890 = vunpack.c.l.bf16 %v5875
  %v5891 = vunpack.c.l.bf16 %v5876
  %v5892 = vunpack.c.h.bf16 %v5872
  %v5893 = vunpack.c.h.bf16 %v5873
  %v5894 = vunpack.c.h.bf16 %v5874
  %v5895 = vunpack.c.h.bf16 %v5875
  %v5896 = vunpack.c.h.bf16 %v5876
  %5897 = vset.pattern.permute.xlu0 2
  %5898 = vperm.xlu0 %5897, %v5687
  %v5899 = vpop.permute.xlu0 %5898
  %5901 = vset.pattern.permute.xlu0 2
  %5902 = vperm.xlu0 %5901, %v5688
  %v5903 = vpop.permute.xlu0 %5902
  %5905 = vset.pattern.permute.xlu0 2
  %5906 = vperm.xlu0 %5905, %v5689
  %v5907 = vpop.permute.xlu0 %5906
  %5909 = vset.pattern.permute.xlu0 2
  %5910 = vperm.xlu0 %5909, %v5690
  %v5911 = vpop.permute.xlu0 %5910
  %v5913 = vmul.f32 %v5899, %v5877
  %v5914 = vmul.f32 %v5899, %v5878
  %v5915 = vmul.f32 %v5899, %v5879
  %v5916 = vmul.f32 %v5899, %v5880
  %v5917 = vmul.f32 %v5899, %v5881
  %v5918 = vmul.f32 %v5903, %v5882
  %v5919 = vmul.f32 %v5903, %v5883
  %v5920 = vmul.f32 %v5903, %v5884
  %v5921 = vmul.f32 %v5903, %v5885
  %v5922 = vmul.f32 %v5903, %v5886
  %v5923 = vmul.f32 %v5907, %v5887
  %v5924 = vmul.f32 %v5907, %v5888
  %v5925 = vmul.f32 %v5907, %v5889
  %v5926 = vmul.f32 %v5907, %v5890
  %v5927 = vmul.f32 %v5907, %v5891
  %v5928 = vmul.f32 %v5911, %v5892
  %v5929 = vmul.f32 %v5911, %v5893
  %v5930 = vmul.f32 %v5911, %v5894
  %v5931 = vmul.f32 %v5911, %v5895
  %v5932 = vmul.f32 %v5911, %v5896
  %v5933 = vadd.f32 %v5847, %v5913
  %v5934 = vadd.f32 %v5848, %v5914
  %v5935 = vadd.f32 %v5849, %v5915
  %v5936 = vadd.f32 %v5850, %v5916
  %v5937 = vadd.f32 %v5851, %v5917
  %v5938 = vadd.f32 %v5852, %v5918
  %v5939 = vadd.f32 %v5853, %v5919
  %v5940 = vadd.f32 %v5854, %v5920
  %v5941 = vadd.f32 %v5855, %v5921
  %v5942 = vadd.f32 %v5856, %v5922
  %v5943 = vadd.f32 %v5857, %v5923
  %v5944 = vadd.f32 %v5858, %v5924
  %v5945 = vadd.f32 %v5859, %v5925
  %v5946 = vadd.f32 %v5860, %v5926
  %v5947 = vadd.f32 %v5861, %v5927
  %v5948 = vadd.f32 %v5862, %v5928
  %v5949 = vadd.f32 %v5863, %v5929
  %v5950 = vadd.f32 %v5864, %v5930
  %v5951 = vadd.f32 %v5865, %v5931
  %v5952 = vadd.f32 %v5866, %v5932
  %5953 = vset.pattern.permute.xlu0 3
  %5954 = vperm.xlu0 %5953, %v5687
  %v5955 = vpop.permute.xlu0 %5954
  %5957 = vset.pattern.permute.xlu0 3
  %5958 = vperm.xlu0 %5957, %v5688
  %v5959 = vpop.permute.xlu0 %5958
  %5961 = vset.pattern.permute.xlu0 3
  %5962 = vperm.xlu0 %5961, %v5689
  %v5963 = vpop.permute.xlu0 %5962
  %5965 = vset.pattern.permute.xlu0 3
  %5966 = vperm.xlu0 %5965, %v5690
  %v5967 = vpop.permute.xlu0 %5966
  %v5969 = vmul.f32 %v5955, %v5701
  %v5970 = vmul.f32 %v5955, %v5702
  %v5971 = vmul.f32 %v5955, %v5703
  %v5972 = vmul.f32 %v5955, %v5704
  %v5973 = vmul.f32 %v5955, %v5705
  %v5974 = vmul.f32 %v5959, %v5706
  %v5975 = vmul.f32 %v5959, %v5707
  %v5976 = vmul.f32 %v5959, %v5708
  %v5977 = vmul.f32 %v5959, %v5709
  %v5978 = vmul.f32 %v5959, %v5710
  %v5979 = vmul.f32 %v5963, %v5711
  %v5980 = vmul.f32 %v5963, %v5712
  %v5981 = vmul.f32 %v5963, %v5713
  %v5982 = vmul.f32 %v5963, %v5714
  %v5983 = vmul.f32 %v5963, %v5715
  %v5984 = vmul.f32 %v5967, %v5716
  %v5985 = vmul.f32 %v5967, %v5717
  %v5986 = vmul.f32 %v5967, %v5718
  %v5987 = vmul.f32 %v5967, %v5719
  %v5988 = vmul.f32 %v5967, %v5720
  %6009 = vrot.lane.b32.xlu0 %v5969, 110
  %v6010 = vpop.permute.xlu0 %6009
  %6011 = vrot.lane.b32.xlu0 %v5970, 110
  %v6012 = vpop.permute.xlu0 %6011
  %6013 = vrot.lane.b32.xlu0 %v5971, 110
  %v6014 = vpop.permute.xlu0 %6013
  %6015 = vrot.lane.b32.xlu0 %v5972, 110
  %v6016 = vpop.permute.xlu0 %6015
  %6017 = vrot.lane.b32.xlu0 %v5973, 110
  %v6018 = vpop.permute.xlu0 %6017
  %6019 = vrot.lane.b32.xlu0 %v5974, 110
  %v6020 = vpop.permute.xlu0 %6019
  %6021 = vrot.lane.b32.xlu0 %v5975, 110
  %v6022 = vpop.permute.xlu0 %6021
  %6023 = vrot.lane.b32.xlu0 %v5976, 110
  %v6024 = vpop.permute.xlu0 %6023
  %6025 = vrot.lane.b32.xlu0 %v5977, 110
  %v6026 = vpop.permute.xlu0 %6025
  %6027 = vrot.lane.b32.xlu0 %v5978, 110
  %v6028 = vpop.permute.xlu0 %6027
  %6029 = vrot.lane.b32.xlu0 %v5979, 110
  %v6030 = vpop.permute.xlu0 %6029
  %6031 = vrot.lane.b32.xlu0 %v5980, 110
  %v6032 = vpop.permute.xlu0 %6031
  %6033 = vrot.lane.b32.xlu0 %v5981, 110
  %v6034 = vpop.permute.xlu0 %6033
  %6035 = vrot.lane.b32.xlu0 %v5982, 110
  %v6036 = vpop.permute.xlu0 %6035
  %6037 = vrot.lane.b32.xlu0 %v5983, 110
  %v6038 = vpop.permute.xlu0 %6037
  %6039 = vrot.lane.b32.xlu0 %v5984, 110
  %v6040 = vpop.permute.xlu0 %6039
  %6041 = vrot.lane.b32.xlu0 %v5985, 110
  %v6042 = vpop.permute.xlu0 %6041
  %6043 = vrot.lane.b32.xlu0 %v5986, 110
  %v6044 = vpop.permute.xlu0 %6043
  %6045 = vrot.lane.b32.xlu0 %v5987, 110
  %v6046 = vpop.permute.xlu0 %6045
  %6047 = vrot.lane.b32.xlu0 %v5988, 110
  %v6048 = vpop.permute.xlu0 %6047
  %v6049 = vsel %vm534, %v6010, %v6012
  %v6050 = vsel %vm534, %v6012, %v6014
  %v6051 = vsel %vm534, %v6014, %v6016
  %v6052 = vsel %vm534, %v6016, %v6018
  %v6053 = vsel %vm534, %v6020, %v6022
  %v6054 = vsel %vm534, %v6022, %v6024
  %v6055 = vsel %vm534, %v6024, %v6026
  %v6056 = vsel %vm534, %v6026, %v6028
  %v6057 = vsel %vm534, %v6030, %v6032
  %v6058 = vsel %vm534, %v6032, %v6034
  %v6059 = vsel %vm534, %v6034, %v6036
  %v6060 = vsel %vm534, %v6036, %v6038
  %v6061 = vsel %vm534, %v6040, %v6042
  %v6062 = vsel %vm534, %v6042, %v6044
  %v6063 = vsel %vm534, %v6044, %v6046
  %v6064 = vsel %vm534, %v6046, %v6048
  %v6085 = vadd.f32 %v5933, %v6049
  %v6086 = vadd.f32 %v5934, %v6050
  %v6087 = vadd.f32 %v5935, %v6051
  %v6088 = vadd.f32 %v5936, %v6052
  %v6089 = vadd.f32 %v5937, %v6018
  %v6090 = vadd.f32 %v5938, %v6053
  %v6091 = vadd.f32 %v5939, %v6054
  %v6092 = vadd.f32 %v5940, %v6055
  %v6093 = vadd.f32 %v5941, %v6056
  %v6094 = vadd.f32 %v5942, %v6028
  %v6095 = vadd.f32 %v5943, %v6057
  %v6096 = vadd.f32 %v5944, %v6058
  %v6097 = vadd.f32 %v5945, %v6059
  %v6098 = vadd.f32 %v5946, %v6060
  %v6099 = vadd.f32 %v5947, %v6038
  %v6100 = vadd.f32 %v5948, %v6061
  %v6101 = vadd.f32 %v5949, %v6062
  %v6102 = vadd.f32 %v5950, %v6063
  %v6103 = vadd.f32 %v5951, %v6064
  %v6104 = vadd.f32 %v5952, %v6048
  %6105 = vset.pattern.permute.xlu0 4
  %6106 = vperm.xlu0 %6105, %v5687
  %v6107 = vpop.permute.xlu0 %6106
  %6109 = vset.pattern.permute.xlu0 4
  %6110 = vperm.xlu0 %6109, %v5688
  %v6111 = vpop.permute.xlu0 %6110
  %6113 = vset.pattern.permute.xlu0 4
  %6114 = vperm.xlu0 %6113, %v5689
  %v6115 = vpop.permute.xlu0 %6114
  %6117 = vset.pattern.permute.xlu0 4
  %6118 = vperm.xlu0 %6117, %v5690
  %v6119 = vpop.permute.xlu0 %6118
  %v6121 = vmul.f32 %v6107, %v5791
  %v6122 = vmul.f32 %v6107, %v5792
  %v6123 = vmul.f32 %v6107, %v5793
  %v6124 = vmul.f32 %v6107, %v5794
  %v6125 = vmul.f32 %v6107, %v5795
  %v6126 = vmul.f32 %v6111, %v5796
  %v6127 = vmul.f32 %v6111, %v5797
  %v6128 = vmul.f32 %v6111, %v5798
  %v6129 = vmul.f32 %v6111, %v5799
  %v6130 = vmul.f32 %v6111, %v5800
  %v6131 = vmul.f32 %v6115, %v5801
  %v6132 = vmul.f32 %v6115, %v5802
  %v6133 = vmul.f32 %v6115, %v5803
  %v6134 = vmul.f32 %v6115, %v5804
  %v6135 = vmul.f32 %v6115, %v5805
  %v6136 = vmul.f32 %v6119, %v5806
  %v6137 = vmul.f32 %v6119, %v5807
  %v6138 = vmul.f32 %v6119, %v5808
  %v6139 = vmul.f32 %v6119, %v5809
  %v6140 = vmul.f32 %v6119, %v5810
  %6161 = vrot.lane.b32.xlu0 %v6121, 110
  %v6162 = vpop.permute.xlu0 %6161
  %6163 = vrot.lane.b32.xlu0 %v6122, 110
  %v6164 = vpop.permute.xlu0 %6163
  %6165 = vrot.lane.b32.xlu0 %v6123, 110
  %v6166 = vpop.permute.xlu0 %6165
  %6167 = vrot.lane.b32.xlu0 %v6124, 110
  %v6168 = vpop.permute.xlu0 %6167
  %6169 = vrot.lane.b32.xlu0 %v6125, 110
  %v6170 = vpop.permute.xlu0 %6169
  %6171 = vrot.lane.b32.xlu0 %v6126, 110
  %v6172 = vpop.permute.xlu0 %6171
  %6173 = vrot.lane.b32.xlu0 %v6127, 110
  %v6174 = vpop.permute.xlu0 %6173
  %6175 = vrot.lane.b32.xlu0 %v6128, 110
  %v6176 = vpop.permute.xlu0 %6175
  %6177 = vrot.lane.b32.xlu0 %v6129, 110
  %v6178 = vpop.permute.xlu0 %6177
  %6179 = vrot.lane.b32.xlu0 %v6130, 110
  %v6180 = vpop.permute.xlu0 %6179
  %6181 = vrot.lane.b32.xlu0 %v6131, 110
  %v6182 = vpop.permute.xlu0 %6181
  %6183 = vrot.lane.b32.xlu0 %v6132, 110
  %v6184 = vpop.permute.xlu0 %6183
  %6185 = vrot.lane.b32.xlu0 %v6133, 110
  %v6186 = vpop.permute.xlu0 %6185
  %6187 = vrot.lane.b32.xlu0 %v6134, 110
  %v6188 = vpop.permute.xlu0 %6187
  %6189 = vrot.lane.b32.xlu0 %v6135, 110
  %v6190 = vpop.permute.xlu0 %6189
  %6191 = vrot.lane.b32.xlu0 %v6136, 110
  %v6192 = vpop.permute.xlu0 %6191
  %6193 = vrot.lane.b32.xlu0 %v6137, 110
  %v6194 = vpop.permute.xlu0 %6193
  %6195 = vrot.lane.b32.xlu0 %v6138, 110
  %v6196 = vpop.permute.xlu0 %6195
  %6197 = vrot.lane.b32.xlu0 %v6139, 110
  %v6198 = vpop.permute.xlu0 %6197
  %6199 = vrot.lane.b32.xlu0 %v6140, 110
  %v6200 = vpop.permute.xlu0 %6199
  %v6201 = vsel %vm534, %v6162, %v6164
  %v6202 = vsel %vm534, %v6164, %v6166
  %v6203 = vsel %vm534, %v6166, %v6168
  %v6204 = vsel %vm534, %v6168, %v6170
  %v6205 = vsel %vm534, %v6172, %v6174
  %v6206 = vsel %vm534, %v6174, %v6176
  %v6207 = vsel %vm534, %v6176, %v6178
  %v6208 = vsel %vm534, %v6178, %v6180
  %v6209 = vsel %vm534, %v6182, %v6184
  %v6210 = vsel %vm534, %v6184, %v6186
  %v6211 = vsel %vm534, %v6186, %v6188
  %v6212 = vsel %vm534, %v6188, %v6190
  %v6213 = vsel %vm534, %v6192, %v6194
  %v6214 = vsel %vm534, %v6194, %v6196
  %v6215 = vsel %vm534, %v6196, %v6198
  %v6216 = vsel %vm534, %v6198, %v6200
  %v6237 = vadd.f32 %v6085, %v6201
  %v6238 = vadd.f32 %v6086, %v6202
  %v6239 = vadd.f32 %v6087, %v6203
  %v6240 = vadd.f32 %v6088, %v6204
  %v6241 = vadd.f32 %v6089, %v6170
  %v6242 = vadd.f32 %v6090, %v6205
  %v6243 = vadd.f32 %v6091, %v6206
  %v6244 = vadd.f32 %v6092, %v6207
  %v6245 = vadd.f32 %v6093, %v6208
  %v6246 = vadd.f32 %v6094, %v6180
  %v6247 = vadd.f32 %v6095, %v6209
  %v6248 = vadd.f32 %v6096, %v6210
  %v6249 = vadd.f32 %v6097, %v6211
  %v6250 = vadd.f32 %v6098, %v6212
  %v6251 = vadd.f32 %v6099, %v6190
  %v6252 = vadd.f32 %v6100, %v6213
  %v6253 = vadd.f32 %v6101, %v6214
  %v6254 = vadd.f32 %v6102, %v6215
  %v6255 = vadd.f32 %v6103, %v6216
  %v6256 = vadd.f32 %v6104, %v6200
  %6257 = vset.pattern.permute.xlu0 5
  %6258 = vperm.xlu0 %6257, %v5687
  %v6259 = vpop.permute.xlu0 %6258
  %6261 = vset.pattern.permute.xlu0 5
  %6262 = vperm.xlu0 %6261, %v5688
  %v6263 = vpop.permute.xlu0 %6262
  %6265 = vset.pattern.permute.xlu0 5
  %6266 = vperm.xlu0 %6265, %v5689
  %v6267 = vpop.permute.xlu0 %6266
  %6269 = vset.pattern.permute.xlu0 5
  %6270 = vperm.xlu0 %6269, %v5690
  %v6271 = vpop.permute.xlu0 %6270
  %v6273 = vmul.f32 %v6259, %v5877
  %v6274 = vmul.f32 %v6259, %v5878
  %v6275 = vmul.f32 %v6259, %v5879
  %v6276 = vmul.f32 %v6259, %v5880
  %v6277 = vmul.f32 %v6259, %v5881
  %v6278 = vmul.f32 %v6263, %v5882
  %v6279 = vmul.f32 %v6263, %v5883
  %v6280 = vmul.f32 %v6263, %v5884
  %v6281 = vmul.f32 %v6263, %v5885
  %v6282 = vmul.f32 %v6263, %v5886
  %v6283 = vmul.f32 %v6267, %v5887
  %v6284 = vmul.f32 %v6267, %v5888
  %v6285 = vmul.f32 %v6267, %v5889
  %v6286 = vmul.f32 %v6267, %v5890
  %v6287 = vmul.f32 %v6267, %v5891
  %v6288 = vmul.f32 %v6271, %v5892
  %v6289 = vmul.f32 %v6271, %v5893
  %v6290 = vmul.f32 %v6271, %v5894
  %v6291 = vmul.f32 %v6271, %v5895
  %v6292 = vmul.f32 %v6271, %v5896
  %6313 = vrot.lane.b32.xlu0 %v6273, 110
  %v6314 = vpop.permute.xlu0 %6313
  %6315 = vrot.lane.b32.xlu0 %v6274, 110
  %v6316 = vpop.permute.xlu0 %6315
  %6317 = vrot.lane.b32.xlu0 %v6275, 110
  %v6318 = vpop.permute.xlu0 %6317
  %6319 = vrot.lane.b32.xlu0 %v6276, 110
  %v6320 = vpop.permute.xlu0 %6319
  %6321 = vrot.lane.b32.xlu0 %v6277, 110
  %v6322 = vpop.permute.xlu0 %6321
  %6323 = vrot.lane.b32.xlu0 %v6278, 110
  %v6324 = vpop.permute.xlu0 %6323
  %6325 = vrot.lane.b32.xlu0 %v6279, 110
  %v6326 = vpop.permute.xlu0 %6325
  %6327 = vrot.lane.b32.xlu0 %v6280, 110
  %v6328 = vpop.permute.xlu0 %6327
  %6329 = vrot.lane.b32.xlu0 %v6281, 110
  %v6330 = vpop.permute.xlu0 %6329
  %6331 = vrot.lane.b32.xlu0 %v6282, 110
  %v6332 = vpop.permute.xlu0 %6331
  %6333 = vrot.lane.b32.xlu0 %v6283, 110
  %v6334 = vpop.permute.xlu0 %6333
  %6335 = vrot.lane.b32.xlu0 %v6284, 110
  %v6336 = vpop.permute.xlu0 %6335
  %6337 = vrot.lane.b32.xlu0 %v6285, 110
  %v6338 = vpop.permute.xlu0 %6337
  %6339 = vrot.lane.b32.xlu0 %v6286, 110
  %v6340 = vpop.permute.xlu0 %6339
  %6341 = vrot.lane.b32.xlu0 %v6287, 110
  %v6342 = vpop.permute.xlu0 %6341
  %6343 = vrot.lane.b32.xlu0 %v6288, 110
  %v6344 = vpop.permute.xlu0 %6343
  %6345 = vrot.lane.b32.xlu0 %v6289, 110
  %v6346 = vpop.permute.xlu0 %6345
  %6347 = vrot.lane.b32.xlu0 %v6290, 110
  %v6348 = vpop.permute.xlu0 %6347
  %6349 = vrot.lane.b32.xlu0 %v6291, 110
  %v6350 = vpop.permute.xlu0 %6349
  %6351 = vrot.lane.b32.xlu0 %v6292, 110
  %v6352 = vpop.permute.xlu0 %6351
  %v6353 = vsel %vm534, %v6314, %v6316
  %v6354 = vsel %vm534, %v6316, %v6318
  %v6355 = vsel %vm534, %v6318, %v6320
  %v6356 = vsel %vm534, %v6320, %v6322
  %v6357 = vsel %vm534, %v6324, %v6326
  %v6358 = vsel %vm534, %v6326, %v6328
  %v6359 = vsel %vm534, %v6328, %v6330
  %v6360 = vsel %vm534, %v6330, %v6332
  %v6361 = vsel %vm534, %v6334, %v6336
  %v6362 = vsel %vm534, %v6336, %v6338
  %v6363 = vsel %vm534, %v6338, %v6340
  %v6364 = vsel %vm534, %v6340, %v6342
  %v6365 = vsel %vm534, %v6344, %v6346
  %v6366 = vsel %vm534, %v6346, %v6348
  %v6367 = vsel %vm534, %v6348, %v6350
  %v6368 = vsel %vm534, %v6350, %v6352
  %v6389 = vadd.f32 %v6237, %v6353
  %v6390 = vadd.f32 %v6238, %v6354
  %v6391 = vadd.f32 %v6239, %v6355
  %v6392 = vadd.f32 %v6240, %v6356
  %v6393 = vadd.f32 %v6241, %v6322
  %v6394 = vadd.f32 %v6242, %v6357
  %v6395 = vadd.f32 %v6243, %v6358
  %v6396 = vadd.f32 %v6244, %v6359
  %v6397 = vadd.f32 %v6245, %v6360
  %v6398 = vadd.f32 %v6246, %v6332
  %v6399 = vadd.f32 %v6247, %v6361
  %v6400 = vadd.f32 %v6248, %v6362
  %v6401 = vadd.f32 %v6249, %v6363
  %v6402 = vadd.f32 %v6250, %v6364
  %v6403 = vadd.f32 %v6251, %v6342
  %v6404 = vadd.f32 %v6252, %v6365
  %v6405 = vadd.f32 %v6253, %v6366
  %v6406 = vadd.f32 %v6254, %v6367
  %v6407 = vadd.f32 %v6255, %v6368
  %v6408 = vadd.f32 %v6256, %v6352
  %v6409 = vld [vmem:[#allocation3] sm:$0xff]
  %v6410 = vld [vmem:[#allocation3 + $0x8] sm:$0xff]
  %v6411 = vld [vmem:[#allocation3 + $0x10] sm:$0xff]
  %v6412 = vld [vmem:[#allocation3 + $0x18] sm:$0xff]
  %v6413 = vld [vmem:[#allocation3 + $0x20] sm:$0xff]
  %v6414 = vld [vmem:[#allocation3 + $0x28] sm:$0xff]
  %v6415 = vld [vmem:[#allocation3 + $0x30] sm:$0xff]
  %v6416 = vld [vmem:[#allocation3 + $0x38] sm:$0xff]
  %v6417 = vld [vmem:[#allocation3 + $0x40] sm:$0xff]
  %v6418 = vld [vmem:[#allocation3 + $0x48] sm:$0xff]
  %v6419 = vld [vmem:[#allocation3 + $0x50] sm:$0xff]
  %v6420 = vld [vmem:[#allocation3 + $0x58] sm:$0xff]
  %v6421 = vunpack.c.l.bf16 %v6409
  %v6422 = vunpack.c.l.bf16 %v6410
  %v6423 = vunpack.c.l.bf16 %v6411
  %v6424 = vunpack.c.l.bf16 %v6412
  %v6425 = vunpack.c.l.bf16 %v6413
  %v6426 = vunpack.c.l.bf16 %v6414
  %v6427 = vunpack.c.h.bf16 %v6409
  %v6428 = vunpack.c.h.bf16 %v6410
  %v6429 = vunpack.c.h.bf16 %v6411
  %v6430 = vunpack.c.h.bf16 %v6412
  %v6431 = vunpack.c.h.bf16 %v6413
  %v6432 = vunpack.c.h.bf16 %v6414
  %v6433 = vunpack.c.l.bf16 %v6415
  %v6434 = vunpack.c.l.bf16 %v6416
  %v6435 = vunpack.c.l.bf16 %v6417
  %v6436 = vunpack.c.l.bf16 %v6418
  %v6437 = vunpack.c.l.bf16 %v6419
  %v6438 = vunpack.c.l.bf16 %v6420
  %v6439 = vunpack.c.h.bf16 %v6415
  %v6440 = vunpack.c.h.bf16 %v6416
  %v6441 = vunpack.c.h.bf16 %v6417
  %v6442 = vunpack.c.h.bf16 %v6418
  %v6443 = vunpack.c.h.bf16 %v6419
  %v6444 = vunpack.c.h.bf16 %v6420
  %6445 = vset.pattern.permute.xlu0 6
  %6446 = vperm.xlu0 %6445, %v5687
  %v6447 = vpop.permute.xlu0 %6446
  %6449 = vset.pattern.permute.xlu0 6
  %6450 = vperm.xlu0 %6449, %v5688
  %v6451 = vpop.permute.xlu0 %6450
  %6453 = vset.pattern.permute.xlu0 6
  %6454 = vperm.xlu0 %6453, %v5689
  %v6455 = vpop.permute.xlu0 %6454
  %6457 = vset.pattern.permute.xlu0 6
  %6458 = vperm.xlu0 %6457, %v5690
  %v6459 = vpop.permute.xlu0 %6458
  %v6461 = vmul.f32 %v6447, %v6421
  %v6462 = vmul.f32 %v6447, %v6422
  %v6463 = vmul.f32 %v6447, %v6423
  %v6464 = vmul.f32 %v6447, %v6424
  %v6465 = vmul.f32 %v6447, %v6425
  %v6466 = vmul.f32 %v6447, %v6426
  %v6467 = vmul.f32 %v6451, %v6427
  %v6468 = vmul.f32 %v6451, %v6428
  %v6469 = vmul.f32 %v6451, %v6429
  %v6470 = vmul.f32 %v6451, %v6430
  %v6471 = vmul.f32 %v6451, %v6431
  %v6472 = vmul.f32 %v6451, %v6432
  %v6473 = vmul.f32 %v6455, %v6433
  %v6474 = vmul.f32 %v6455, %v6434
  %v6475 = vmul.f32 %v6455, %v6435
  %v6476 = vmul.f32 %v6455, %v6436
  %v6477 = vmul.f32 %v6455, %v6437
  %v6478 = vmul.f32 %v6455, %v6438
  %v6479 = vmul.f32 %v6459, %v6439
  %v6480 = vmul.f32 %v6459, %v6440
  %v6481 = vmul.f32 %v6459, %v6441
  %v6482 = vmul.f32 %v6459, %v6442
  %v6483 = vmul.f32 %v6459, %v6443
  %v6484 = vmul.f32 %v6459, %v6444
  %6509 = vrot.lane.b32.xlu0 %v6461, 92
  %v6510 = vpop.permute.xlu0 %6509
  %6511 = vrot.lane.b32.xlu0 %v6462, 92
  %v6512 = vpop.permute.xlu0 %6511
  %6513 = vrot.lane.b32.xlu0 %v6463, 92
  %v6514 = vpop.permute.xlu0 %6513
  %6515 = vrot.lane.b32.xlu0 %v6464, 92
  %v6516 = vpop.permute.xlu0 %6515
  %6517 = vrot.lane.b32.xlu0 %v6465, 92
  %v6518 = vpop.permute.xlu0 %6517
  %6519 = vrot.lane.b32.xlu0 %v6466, 92
  %v6520 = vpop.permute.xlu0 %6519
  %6521 = vrot.lane.b32.xlu0 %v6467, 92
  %v6522 = vpop.permute.xlu0 %6521
  %6523 = vrot.lane.b32.xlu0 %v6468, 92
  %v6524 = vpop.permute.xlu0 %6523
  %6525 = vrot.lane.b32.xlu0 %v6469, 92
  %v6526 = vpop.permute.xlu0 %6525
  %6527 = vrot.lane.b32.xlu0 %v6470, 92
  %v6528 = vpop.permute.xlu0 %6527
  %6529 = vrot.lane.b32.xlu0 %v6471, 92
  %v6530 = vpop.permute.xlu0 %6529
  %6531 = vrot.lane.b32.xlu0 %v6472, 92
  %v6532 = vpop.permute.xlu0 %6531
  %6533 = vrot.lane.b32.xlu0 %v6473, 92
  %v6534 = vpop.permute.xlu0 %6533
  %6535 = vrot.lane.b32.xlu0 %v6474, 92
  %v6536 = vpop.permute.xlu0 %6535
  %6537 = vrot.lane.b32.xlu0 %v6475, 92
  %v6538 = vpop.permute.xlu0 %6537
  %6539 = vrot.lane.b32.xlu0 %v6476, 92
  %v6540 = vpop.permute.xlu0 %6539
  %6541 = vrot.lane.b32.xlu0 %v6477, 92
  %v6542 = vpop.permute.xlu0 %6541
  %6543 = vrot.lane.b32.xlu0 %v6478, 92
  %v6544 = vpop.permute.xlu0 %6543
  %6545 = vrot.lane.b32.xlu0 %v6479, 92
  %v6546 = vpop.permute.xlu0 %6545
  %6547 = vrot.lane.b32.xlu0 %v6480, 92
  %v6548 = vpop.permute.xlu0 %6547
  %6549 = vrot.lane.b32.xlu0 %v6481, 92
  %v6550 = vpop.permute.xlu0 %6549
  %6551 = vrot.lane.b32.xlu0 %v6482, 92
  %v6552 = vpop.permute.xlu0 %6551
  %6553 = vrot.lane.b32.xlu0 %v6483, 92
  %v6554 = vpop.permute.xlu0 %6553
  %6555 = vrot.lane.b32.xlu0 %v6484, 92
  %v6556 = vpop.permute.xlu0 %6555
  %v6557 = vsel %vm1014, %v6510, %v6512
  %v6558 = vsel %vm1014, %v6512, %v6514
  %v6559 = vsel %vm1014, %v6514, %v6516
  %v6560 = vsel %vm1014, %v6516, %v6518
  %v6561 = vsel %vm1014, %v6518, %v6520
  %v6562 = vsel %vm1014, %v6522, %v6524
  %v6563 = vsel %vm1014, %v6524, %v6526
  %v6564 = vsel %vm1014, %v6526, %v6528
  %v6565 = vsel %vm1014, %v6528, %v6530
  %v6566 = vsel %vm1014, %v6530, %v6532
  %v6567 = vsel %vm1014, %v6534, %v6536
  %v6568 = vsel %vm1014, %v6536, %v6538
  %v6569 = vsel %vm1014, %v6538, %v6540
  %v6570 = vsel %vm1014, %v6540, %v6542
  %v6571 = vsel %vm1014, %v6542, %v6544
  %v6572 = vsel %vm1014, %v6546, %v6548
  %v6573 = vsel %vm1014, %v6548, %v6550
  %v6574 = vsel %vm1014, %v6550, %v6552
  %v6575 = vsel %vm1014, %v6552, %v6554
  %v6576 = vsel %vm1014, %v6554, %v6556
  %v6597 = vadd.f32 %v6389, %v6557
  %v6598 = vadd.f32 %v6390, %v6558
  %v6599 = vadd.f32 %v6391, %v6559
  %v6600 = vadd.f32 %v6392, %v6560
  %v6601 = vadd.f32 %v6393, %v6561
  %v6602 = vadd.f32 %v6394, %v6562
  %v6603 = vadd.f32 %v6395, %v6563
  %v6604 = vadd.f32 %v6396, %v6564
  %v6605 = vadd.f32 %v6397, %v6565
  %v6606 = vadd.f32 %v6398, %v6566
  %v6607 = vadd.f32 %v6399, %v6567
  %v6608 = vadd.f32 %v6400, %v6568
  %v6609 = vadd.f32 %v6401, %v6569
  %v6610 = vadd.f32 %v6402, %v6570
  %v6611 = vadd.f32 %v6403, %v6571
  %v6612 = vadd.f32 %v6404, %v6572
  %v6613 = vadd.f32 %v6405, %v6573
  %v6614 = vadd.f32 %v6406, %v6574
  %v6615 = vadd.f32 %v6407, %v6575
  %v6616 = vadd.f32 %v6408, %v6576
  %v6617 = vld [vmem:[#allocation3 + $0x60] sm:$0xff]
  %v6618 = vld [vmem:[#allocation3 + $0x68] sm:$0xff]
  %v6619 = vld [vmem:[#allocation3 + $0x70] sm:$0xff]
  %v6620 = vld [vmem:[#allocation3 + $0x78] sm:$0xff]
  %v6621 = vld [vmem:[#allocation3 + $0x80] sm:$0xff]
  %v6622 = vld [vmem:[#allocation3 + $0x88] sm:$0xff]
  %v6623 = vld [vmem:[#allocation3 + $0x90] sm:$0xff]
  %v6624 = vld [vmem:[#allocation3 + $0x98] sm:$0xff]
  %v6625 = vld [vmem:[#allocation3 + $0xa0] sm:$0xff]
  %v6626 = vld [vmem:[#allocation3 + $0xa8] sm:$0xff]
  %v6627 = vld [vmem:[#allocation3 + $0xb0] sm:$0xff]
  %v6628 = vld [vmem:[#allocation3 + $0xb8] sm:$0xff]
  %v6629 = vunpack.c.l.bf16 %v6617
  %v6630 = vunpack.c.l.bf16 %v6618
  %v6631 = vunpack.c.l.bf16 %v6619
  %v6632 = vunpack.c.l.bf16 %v6620
  %v6633 = vunpack.c.l.bf16 %v6621
  %v6634 = vunpack.c.l.bf16 %v6622
  %v6635 = vunpack.c.h.bf16 %v6617
  %v6636 = vunpack.c.h.bf16 %v6618
  %v6637 = vunpack.c.h.bf16 %v6619
  %v6638 = vunpack.c.h.bf16 %v6620
  %v6639 = vunpack.c.h.bf16 %v6621
  %v6640 = vunpack.c.h.bf16 %v6622
  %v6641 = vunpack.c.l.bf16 %v6623
  %v6642 = vunpack.c.l.bf16 %v6624
  %v6643 = vunpack.c.l.bf16 %v6625
  %v6644 = vunpack.c.l.bf16 %v6626
  %v6645 = vunpack.c.l.bf16 %v6627
  %v6646 = vunpack.c.l.bf16 %v6628
  %v6647 = vunpack.c.h.bf16 %v6623
  %v6648 = vunpack.c.h.bf16 %v6624
  %v6649 = vunpack.c.h.bf16 %v6625
  %v6650 = vunpack.c.h.bf16 %v6626
  %v6651 = vunpack.c.h.bf16 %v6627
  %v6652 = vunpack.c.h.bf16 %v6628
  %6653 = vset.pattern.permute.xlu0 7
  %6654 = vperm.xlu0 %6653, %v5687
  %v6655 = vpop.permute.xlu0 %6654
  %6657 = vset.pattern.permute.xlu0 7
  %6658 = vperm.xlu0 %6657, %v5688
  %v6659 = vpop.permute.xlu0 %6658
  %6661 = vset.pattern.permute.xlu0 7
  %6662 = vperm.xlu0 %6661, %v5689
  %v6663 = vpop.permute.xlu0 %6662
  %6665 = vset.pattern.permute.xlu0 7
  %6666 = vperm.xlu0 %6665, %v5690
  %v6667 = vpop.permute.xlu0 %6666
  %v6669 = vmul.f32 %v6655, %v6629
  %v6670 = vmul.f32 %v6655, %v6630
  %v6671 = vmul.f32 %v6655, %v6631
  %v6672 = vmul.f32 %v6655, %v6632
  %v6673 = vmul.f32 %v6655, %v6633
  %v6674 = vmul.f32 %v6655, %v6634
  %v6675 = vmul.f32 %v6659, %v6635
  %v6676 = vmul.f32 %v6659, %v6636
  %v6677 = vmul.f32 %v6659, %v6637
  %v6678 = vmul.f32 %v6659, %v6638
  %v6679 = vmul.f32 %v6659, %v6639
  %v6680 = vmul.f32 %v6659, %v6640
  %v6681 = vmul.f32 %v6663, %v6641
  %v6682 = vmul.f32 %v6663, %v6642
  %v6683 = vmul.f32 %v6663, %v6643
  %v6684 = vmul.f32 %v6663, %v6644
  %v6685 = vmul.f32 %v6663, %v6645
  %v6686 = vmul.f32 %v6663, %v6646
  %v6687 = vmul.f32 %v6667, %v6647
  %v6688 = vmul.f32 %v6667, %v6648
  %v6689 = vmul.f32 %v6667, %v6649
  %v6690 = vmul.f32 %v6667, %v6650
  %v6691 = vmul.f32 %v6667, %v6651
  %v6692 = vmul.f32 %v6667, %v6652
  %6717 = vrot.lane.b32.xlu0 %v6669, 92
  %v6718 = vpop.permute.xlu0 %6717
  %6719 = vrot.lane.b32.xlu0 %v6670, 92
  %v6720 = vpop.permute.xlu0 %6719
  %6721 = vrot.lane.b32.xlu0 %v6671, 92
  %v6722 = vpop.permute.xlu0 %6721
  %6723 = vrot.lane.b32.xlu0 %v6672, 92
  %v6724 = vpop.permute.xlu0 %6723
  %6725 = vrot.lane.b32.xlu0 %v6673, 92
  %v6726 = vpop.permute.xlu0 %6725
  %6727 = vrot.lane.b32.xlu0 %v6674, 92
  %v6728 = vpop.permute.xlu0 %6727
  %6729 = vrot.lane.b32.xlu0 %v6675, 92
  %v6730 = vpop.permute.xlu0 %6729
  %6731 = vrot.lane.b32.xlu0 %v6676, 92
  %v6732 = vpop.permute.xlu0 %6731
  %6733 = vrot.lane.b32.xlu0 %v6677, 92
  %v6734 = vpop.permute.xlu0 %6733
  %6735 = vrot.lane.b32.xlu0 %v6678, 92
  %v6736 = vpop.permute.xlu0 %6735
  %6737 = vrot.lane.b32.xlu0 %v6679, 92
  %v6738 = vpop.permute.xlu0 %6737
  %6739 = vrot.lane.b32.xlu0 %v6680, 92
  %v6740 = vpop.permute.xlu0 %6739
  %6741 = vrot.lane.b32.xlu0 %v6681, 92
  %v6742 = vpop.permute.xlu0 %6741
  %6743 = vrot.lane.b32.xlu0 %v6682, 92
  %v6744 = vpop.permute.xlu0 %6743
  %6745 = vrot.lane.b32.xlu0 %v6683, 92
  %v6746 = vpop.permute.xlu0 %6745
  %6747 = vrot.lane.b32.xlu0 %v6684, 92
  %v6748 = vpop.permute.xlu0 %6747
  %6749 = vrot.lane.b32.xlu0 %v6685, 92
  %v6750 = vpop.permute.xlu0 %6749
  %6751 = vrot.lane.b32.xlu0 %v6686, 92
  %v6752 = vpop.permute.xlu0 %6751
  %6753 = vrot.lane.b32.xlu0 %v6687, 92
  %v6754 = vpop.permute.xlu0 %6753
  %6755 = vrot.lane.b32.xlu0 %v6688, 92
  %v6756 = vpop.permute.xlu0 %6755
  %6757 = vrot.lane.b32.xlu0 %v6689, 92
  %v6758 = vpop.permute.xlu0 %6757
  %6759 = vrot.lane.b32.xlu0 %v6690, 92
  %v6760 = vpop.permute.xlu0 %6759
  %6761 = vrot.lane.b32.xlu0 %v6691, 92
  %v6762 = vpop.permute.xlu0 %6761
  %6763 = vrot.lane.b32.xlu0 %v6692, 92
  %v6764 = vpop.permute.xlu0 %6763
  %v6765 = vsel %vm1014, %v6718, %v6720
  %v6766 = vsel %vm1014, %v6720, %v6722
  %v6767 = vsel %vm1014, %v6722, %v6724
  %v6768 = vsel %vm1014, %v6724, %v6726
  %v6769 = vsel %vm1014, %v6726, %v6728
  %v6770 = vsel %vm1014, %v6730, %v6732
  %v6771 = vsel %vm1014, %v6732, %v6734
  %v6772 = vsel %vm1014, %v6734, %v6736
  %v6773 = vsel %vm1014, %v6736, %v6738
  %v6774 = vsel %vm1014, %v6738, %v6740
  %v6775 = vsel %vm1014, %v6742, %v6744
  %v6776 = vsel %vm1014, %v6744, %v6746
  %v6777 = vsel %vm1014, %v6746, %v6748
  %v6778 = vsel %vm1014, %v6748, %v6750
  %v6779 = vsel %vm1014, %v6750, %v6752
  %v6780 = vsel %vm1014, %v6754, %v6756
  %v6781 = vsel %vm1014, %v6756, %v6758
  %v6782 = vsel %vm1014, %v6758, %v6760
  %v6783 = vsel %vm1014, %v6760, %v6762
  %v6784 = vsel %vm1014, %v6762, %v6764
  %v6805 = vadd.f32 %v6597, %v6765
  %v6806 = vadd.f32 %v6598, %v6766
  %v6807 = vadd.f32 %v6599, %v6767
  %v6808 = vadd.f32 %v6600, %v6768
  %v6809 = vadd.f32 %v6601, %v6769
  %v6810 = vadd.f32 %v6602, %v6770
  %v6811 = vadd.f32 %v6603, %v6771
  %v6812 = vadd.f32 %v6604, %v6772
  %v6813 = vadd.f32 %v6605, %v6773
  %v6814 = vadd.f32 %v6606, %v6774
  %v6815 = vadd.f32 %v6607, %v6775
  %v6816 = vadd.f32 %v6608, %v6776
  %v6817 = vadd.f32 %v6609, %v6777
  %v6818 = vadd.f32 %v6610, %v6778
  %v6819 = vadd.f32 %v6611, %v6779
  %v6820 = vadd.f32 %v6612, %v6780
  %v6821 = vadd.f32 %v6613, %v6781
  %v6822 = vadd.f32 %v6614, %v6782
  %v6823 = vadd.f32 %v6615, %v6783
  %v6824 = vadd.f32 %v6616, %v6784
  %v6825 = vld [vmem:[#allocation3 + $0xc0] sm:$0xff]
  %v6826 = vld [vmem:[#allocation3 + $0xc8] sm:$0xff]
  %v6827 = vld [vmem:[#allocation3 + $0xd0] sm:$0xff]
  %v6828 = vld [vmem:[#allocation3 + $0xd8] sm:$0xff]
  %v6829 = vld [vmem:[#allocation3 + $0xe0] sm:$0xff]
  %v6830 = vld [vmem:[#allocation3 + $0xe8] sm:$0xff]
  %v6831 = vld [vmem:[#allocation3 + $0xf0] sm:$0xff]
  %v6832 = vld [vmem:[#allocation3 + $0xf8] sm:$0xff]
  %v6833 = vld [vmem:[#allocation3 + $0x100] sm:$0xff]
  %v6834 = vld [vmem:[#allocation3 + $0x108] sm:$0xff]
  %v6835 = vld [vmem:[#allocation3 + $0x110] sm:$0xff]
  %v6836 = vld [vmem:[#allocation3 + $0x118] sm:$0xff]
  %v6837 = vunpack.c.l.bf16 %v6825
  %v6838 = vunpack.c.l.bf16 %v6826
  %v6839 = vunpack.c.l.bf16 %v6827
  %v6840 = vunpack.c.l.bf16 %v6828
  %v6841 = vunpack.c.l.bf16 %v6829
  %v6842 = vunpack.c.l.bf16 %v6830
  %v6843 = vunpack.c.h.bf16 %v6825
  %v6844 = vunpack.c.h.bf16 %v6826
  %v6845 = vunpack.c.h.bf16 %v6827
  %v6846 = vunpack.c.h.bf16 %v6828
  %v6847 = vunpack.c.h.bf16 %v6829
  %v6848 = vunpack.c.h.bf16 %v6830
  %v6849 = vunpack.c.l.bf16 %v6831
  %v6850 = vunpack.c.l.bf16 %v6832
  %v6851 = vunpack.c.l.bf16 %v6833
  %v6852 = vunpack.c.l.bf16 %v6834
  %v6853 = vunpack.c.l.bf16 %v6835
  %v6854 = vunpack.c.l.bf16 %v6836
  %v6855 = vunpack.c.h.bf16 %v6831
  %v6856 = vunpack.c.h.bf16 %v6832
  %v6857 = vunpack.c.h.bf16 %v6833
  %v6858 = vunpack.c.h.bf16 %v6834
  %v6859 = vunpack.c.h.bf16 %v6835
  %v6860 = vunpack.c.h.bf16 %v6836
  %6861 = vset.pattern.permute.xlu0 8
  %6862 = vperm.xlu0 %6861, %v5687
  %v6863 = vpop.permute.xlu0 %6862
  %6865 = vset.pattern.permute.xlu0 8
  %6866 = vperm.xlu0 %6865, %v5688
  %v6867 = vpop.permute.xlu0 %6866
  %6869 = vset.pattern.permute.xlu0 8
  %6870 = vperm.xlu0 %6869, %v5689
  %v6871 = vpop.permute.xlu0 %6870
  %6873 = vset.pattern.permute.xlu0 8
  %6874 = vperm.xlu0 %6873, %v5690
  %v6875 = vpop.permute.xlu0 %6874
  %v6877 = vmul.f32 %v6863, %v6837
  %v6878 = vmul.f32 %v6863, %v6838
  %v6879 = vmul.f32 %v6863, %v6839
  %v6880 = vmul.f32 %v6863, %v6840
  %v6881 = vmul.f32 %v6863, %v6841
  %v6882 = vmul.f32 %v6863, %v6842
  %v6883 = vmul.f32 %v6867, %v6843
  %v6884 = vmul.f32 %v6867, %v6844
  %v6885 = vmul.f32 %v6867, %v6845
  %v6886 = vmul.f32 %v6867, %v6846
  %v6887 = vmul.f32 %v6867, %v6847
  %v6888 = vmul.f32 %v6867, %v6848
  %v6889 = vmul.f32 %v6871, %v6849
  %v6890 = vmul.f32 %v6871, %v6850
  %v6891 = vmul.f32 %v6871, %v6851
  %v6892 = vmul.f32 %v6871, %v6852
  %v6893 = vmul.f32 %v6871, %v6853
  %v6894 = vmul.f32 %v6871, %v6854
  %v6895 = vmul.f32 %v6875, %v6855
  %v6896 = vmul.f32 %v6875, %v6856
  %v6897 = vmul.f32 %v6875, %v6857
  %v6898 = vmul.f32 %v6875, %v6858
  %v6899 = vmul.f32 %v6875, %v6859
  %v6900 = vmul.f32 %v6875, %v6860
  %6925 = vrot.lane.b32.xlu0 %v6877, 92
  %v6926 = vpop.permute.xlu0 %6925
  %6927 = vrot.lane.b32.xlu0 %v6878, 92
  %v6928 = vpop.permute.xlu0 %6927
  %6929 = vrot.lane.b32.xlu0 %v6879, 92
  %v6930 = vpop.permute.xlu0 %6929
  %6931 = vrot.lane.b32.xlu0 %v6880, 92
  %v6932 = vpop.permute.xlu0 %6931
  %6933 = vrot.lane.b32.xlu0 %v6881, 92
  %v6934 = vpop.permute.xlu0 %6933
  %6935 = vrot.lane.b32.xlu0 %v6882, 92
  %v6936 = vpop.permute.xlu0 %6935
  %6937 = vrot.lane.b32.xlu0 %v6883, 92
  %v6938 = vpop.permute.xlu0 %6937
  %6939 = vrot.lane.b32.xlu0 %v6884, 92
  %v6940 = vpop.permute.xlu0 %6939
  %6941 = vrot.lane.b32.xlu0 %v6885, 92
  %v6942 = vpop.permute.xlu0 %6941
  %6943 = vrot.lane.b32.xlu0 %v6886, 92
  %v6944 = vpop.permute.xlu0 %6943
  %6945 = vrot.lane.b32.xlu0 %v6887, 92
  %v6946 = vpop.permute.xlu0 %6945
  %6947 = vrot.lane.b32.xlu0 %v6888, 92
  %v6948 = vpop.permute.xlu0 %6947
  %6949 = vrot.lane.b32.xlu0 %v6889, 92
  %v6950 = vpop.permute.xlu0 %6949
  %6951 = vrot.lane.b32.xlu0 %v6890, 92
  %v6952 = vpop.permute.xlu0 %6951
  %6953 = vrot.lane.b32.xlu0 %v6891, 92
  %v6954 = vpop.permute.xlu0 %6953
  %6955 = vrot.lane.b32.xlu0 %v6892, 92
  %v6956 = vpop.permute.xlu0 %6955
  %6957 = vrot.lane.b32.xlu0 %v6893, 92
  %v6958 = vpop.permute.xlu0 %6957
  %6959 = vrot.lane.b32.xlu0 %v6894, 92
  %v6960 = vpop.permute.xlu0 %6959
  %6961 = vrot.lane.b32.xlu0 %v6895, 92
  %v6962 = vpop.permute.xlu0 %6961
  %6963 = vrot.lane.b32.xlu0 %v6896, 92
  %v6964 = vpop.permute.xlu0 %6963
  %6965 = vrot.lane.b32.xlu0 %v6897, 92
  %v6966 = vpop.permute.xlu0 %6965
  %6967 = vrot.lane.b32.xlu0 %v6898, 92
  %v6968 = vpop.permute.xlu0 %6967
  %6969 = vrot.lane.b32.xlu0 %v6899, 92
  %v6970 = vpop.permute.xlu0 %6969
  %6971 = vrot.lane.b32.xlu0 %v6900, 92
  %v6972 = vpop.permute.xlu0 %6971
  %v6973 = vsel %vm1014, %v6926, %v6928
  %v6974 = vsel %vm1014, %v6928, %v6930
  %v6975 = vsel %vm1014, %v6930, %v6932
  %v6976 = vsel %vm1014, %v6932, %v6934
  %v6977 = vsel %vm1014, %v6934, %v6936
  %v6978 = vsel %vm1014, %v6938, %v6940
  %v6979 = vsel %vm1014, %v6940, %v6942
  %v6980 = vsel %vm1014, %v6942, %v6944
  %v6981 = vsel %vm1014, %v6944, %v6946
  %v6982 = vsel %vm1014, %v6946, %v6948
  %v6983 = vsel %vm1014, %v6950, %v6952
  %v6984 = vsel %vm1014, %v6952, %v6954
  %v6985 = vsel %vm1014, %v6954, %v6956
  %v6986 = vsel %vm1014, %v6956, %v6958
  %v6987 = vsel %vm1014, %v6958, %v6960
  %v6988 = vsel %vm1014, %v6962, %v6964
  %v6989 = vsel %vm1014, %v6964, %v6966
  %v6990 = vsel %vm1014, %v6966, %v6968
  %v6991 = vsel %vm1014, %v6968, %v6970
  %v6992 = vsel %vm1014, %v6970, %v6972
  %v7013 = vadd.f32 %v6805, %v6973
  %v7014 = vadd.f32 %v6806, %v6974
  %v7015 = vadd.f32 %v6807, %v6975
  %v7016 = vadd.f32 %v6808, %v6976
  %v7017 = vadd.f32 %v6809, %v6977
  %v7018 = vadd.f32 %v6810, %v6978
  %v7019 = vadd.f32 %v6811, %v6979
  %v7020 = vadd.f32 %v6812, %v6980
  %v7021 = vadd.f32 %v6813, %v6981
  %v7022 = vadd.f32 %v6814, %v6982
  %v7023 = vadd.f32 %v6815, %v6983
  %v7024 = vadd.f32 %v6816, %v6984
  %v7025 = vadd.f32 %v6817, %v6985
  %v7026 = vadd.f32 %v6818, %v6986
  %v7027 = vadd.f32 %v6819, %v6987
  %v7028 = vadd.f32 %v6820, %v6988
  %v7029 = vadd.f32 %v6821, %v6989
  %v7030 = vadd.f32 %v6822, %v6990
  %v7031 = vadd.f32 %v6823, %v6991
  %v7032 = vadd.f32 %v6824, %v6992
  %v7033 = vadd.f32 %v7013, %v7018
  %v7034 = vadd.f32 %v7033, %v7023
  %v7035 = vadd.f32 %v7034, %v7028
  %v7036 = vrot.slane %v7035, 4
  %v7037 = vadd.f32 %v7035, %v7036
  %v7038 = vrot.slane %v7037, 2
  %v7039 = vadd.f32 %v7037, %v7038
  %v7040 = vrot.slane %v7039, 1
  %v7041 = vadd.f32 %v7039, %v7040
  %v7042 = vadd.f32 %v7014, %v7019
  %v7043 = vadd.f32 %v7042, %v7024
  %v7044 = vadd.f32 %v7043, %v7029
  %v7045 = vrot.slane %v7044, 4
  %v7046 = vadd.f32 %v7044, %v7045
  %v7047 = vrot.slane %v7046, 2
  %v7048 = vadd.f32 %v7046, %v7047
  %v7049 = vrot.slane %v7048, 1
  %v7050 = vadd.f32 %v7048, %v7049
  %v7051 = vadd.f32 %v7015, %v7020
  %v7052 = vadd.f32 %v7051, %v7025
  %v7053 = vadd.f32 %v7052, %v7030
  %v7054 = vrot.slane %v7053, 4
  %v7055 = vadd.f32 %v7053, %v7054
  %v7056 = vrot.slane %v7055, 2
  %v7057 = vadd.f32 %v7055, %v7056
  %v7058 = vrot.slane %v7057, 1
  %v7059 = vadd.f32 %v7057, %v7058
  %v7060 = vadd.f32 %v7016, %v7021
  %v7061 = vadd.f32 %v7060, %v7026
  %v7062 = vadd.f32 %v7061, %v7031
  %v7063 = vrot.slane %v7062, 4
  %v7064 = vadd.f32 %v7062, %v7063
  %v7065 = vrot.slane %v7064, 2
  %v7066 = vadd.f32 %v7064, %v7065
  %v7067 = vrot.slane %v7066, 1
  %v7068 = vadd.f32 %v7066, %v7067
  %vm7069 = vcmask 801792
  %v7070 = vsel %vm7069, %v7017, 0.0
  %v7071 = vsel %vm7069, %v7022, 0.0
  %v7072 = vadd.f32 %v7070, %v7071
  %v7073 = vsel %vm7069, %v7027, 0.0
  %v7074 = vadd.f32 %v7072, %v7073
  %v7075 = vsel %vm7069, %v7032, 0.0
  %v7076 = vadd.f32 %v7074, %v7075
  %v7077 = vrot.slane %v7076, 4
  %v7078 = vadd.f32 %v7076, %v7077
  %v7079 = vrot.slane %v7078, 2
  %v7080 = vadd.f32 %v7078, %v7079
  %v7081 = vrot.slane %v7080, 1
  %v7082 = vadd.f32 %v7080, %v7081
  %v7083 = vld [vmem:[#allocation4] sm:$0x1]
  %7085 = vset.pattern.permute.xlu0 0
  %7086 = vperm.xlu0 %7085, %v7083
  %v7087 = vpop.permute.xlu0 %7086
  %v7089 = vlaneseq
  %v7090 = vshrl.u32 %v7089, 7
  %v7091 = vsub.s32 0, %v7090
  %v7092 = vrot.slane %v7087, %v7091
  %v7093 = vadd.f32 %v7041, %v7092
  %v7094 = vadd.f32 %v7050, %v7092
  %v7095 = vadd.f32 %v7059, %v7092
  %v7096 = vadd.f32 %v7068, %v7092
  %v7097 = vadd.f32 %v7082, %v7092
  %v7098 = vmax.f32 %v7093, 0.0
  %v7099 = vmax.f32 %v7094, 0.0
  %v7100 = vmax.f32 %v7095, 0.0
  %v7101 = vmax.f32 %v7096, 0.0
  %v7102 = vmax.f32 %v7097, 0.0
  %v7108 = vcombine.low %v7098, %v7099
  %v7109 = vcombine.low %v7100, %v7101
  %v7111 = vunpack.c.l.s4 1966171168
  %v7112 = vunpack.c.0.s8 %v7111
  %v7113 = vlaneseq
  %v7114 = vshrl.u32 %v7113, 7
  %v7115 = vsub.s32 %v7112, %v7114
  %v7116 = vrot.slane %v7108, %v7115
  %v7118 = vunpack.c.l.s4 1966171168
  %v7119 = vunpack.c.0.s8 %v7118
  %v7120 = vlaneseq
  %v7121 = vshrl.u32 %v7120, 7
  %v7122 = vsub.s32 %v7119, %v7121
  %v7123 = vrot.slane %v7109, %v7122
  %v7125 = vunpack.c.l.s4 1966171168
  %v7126 = vunpack.c.0.s8 %v7125
  %v7127 = vlaneseq
  %v7128 = vshrl.u32 %v7127, 7
  %v7129 = vsub.s32 %v7126, %v7128
  %v7130 = vrot.slane %v7102, %v7129
  %v7131 = vcombine.low %v7116, %v7123
  %v7133 = vunpack.c.l.s4 1966171168
  %v7134 = vunpack.c.0.s8 %v7133
  %v7135 = vlaneseq
  %v7136 = vshrl.u32 %v7135, 7
  %v7137 = vsub.s32 %v7134, %v7136
  %v7138 = vrot.slane %v7131, %v7137
  %v7140 = vunpack.c.l.s4 1966171168
  %v7141 = vunpack.c.0.s8 %v7140
  %v7142 = vlaneseq
  %v7143 = vshrl.u32 %v7142, 7
  %v7144 = vsub.s32 %v7141, %v7143
  %v7145 = vrot.slane %v7130, %v7144
  %v7146 = vcombine.low %v7138, %v7145
  %v7148 = vlaneseq
  %vm7149 = vcmp.ge.s32.totalorder %v7148, 0
  %vm7150 = vcmp.lt.s32.totalorder %v7148, 610
  %vm7151 = vmand %vm7149, %vm7150
  %7152 = vst.msk [vmem:[%s11] sm:$0x1f] %vm7151, %v7146
  // Predicated region
  $region46: #{_forward_impl.1} parent=0 // pred_check
    _
  $region47: #{_forward_impl.1} parent=0 // pred_check_branch
    %7154 = sbr.rel (0) target = $region49
  $region48: #{_forward_impl.1} parent=0 // pred_region
    _
  $region49: #{_forward_impl.1} parent=0 // pred_fallthru
    _
  // Predicated region
  $region50: #{_forward_impl.1} parent=0 // pred_check
    _
  $region51: #{_forward_impl.1} parent=0 // pred_check_branch
    %7156 = sbr.rel (0) target = $region53
  $region52: #{_forward_impl.1} parent=0 // pred_region
    _
  $region53: #{_forward_impl.1} parent=0 // pred_fallthru
    _

</llo_original>
